<compile_context>
chip_gen: v7x
topology: tpu7x:2x2x1
jax: 0.10.0
libtpu: 0.0.40
codegen_flags: <defaults>
</compile_context>

<pallas_src>
import jax
import jax.numpy as jnp
from jax import lax
from jax.experimental import pallas as pl
from jax.experimental.pallas import tpu as pltpu
import numpy as np

VOCAB = 80
VOCAB_PAD = 128
EMBED = 8
HIDDEN = 256


def charlstm_kernel(z0_ref,      # (T, Bp, 4H) f32  z0_table[tokens], gate order (i,f,o,g)
                    whh0_ref,    # (H, 4H)     bf16
                    wih1_ref,    # (H, 4H)     bf16
                    whh1_ref,    # (H, 4H)     bf16
                    b1_ref,      # (1, 4H)     f32
                    wout_ref,    # (H, VOCAB_PAD)  bf16
                    bout_ref,    # (1, VOCAB_PAD)  f32
                    o_ref):      # (Bp, VOCAB_PAD) f32
    T, Bp, _ = z0_ref.shape
    H = HIDDEN

    # Hoisted out of the unrolled loop (JAX does not CSE broadcast_in_dim).
    b1 = b1_ref[...]

    def cell(z, c):
        # gate order (i, f, o, g): one wide sigmoid over 3H, one tanh over H.
        s = jax.nn.sigmoid(z[:, 0:3 * H])
        g = jnp.tanh(z[:, 3 * H:4 * H])
        i = s[:, 0:H]
        f = s[:, H:2 * H]
        o = s[:, 2 * H:3 * H]
        c_new = f * c + i * g
        h_new = o * jnp.tanh(c_new)
        # h is consumed only by MXU dots -> carry it in bf16 (one pack per step).
        return h_new.astype(jnp.bfloat16), c_new

    def step(t, carry):
        h0, c0, h1, c1 = carry            # h0/h1 bf16, c0/c1 f32
        # layer-1 recurrent partial depends only on previous h1: issue it first so
        # the MXU work overlaps the layer-0 cell's VPU/EUP math.
        z1_rec = jnp.dot(h1, whh1_ref[...], preferred_element_type=jnp.float32)
        # layer 0: input projection hoisted offline; only the recurrent matmul remains.
        z0 = z0_ref[t] + jnp.dot(h0, whh0_ref[...], preferred_element_type=jnp.float32)
        h0, c0 = cell(z0, c0)
        # layer 1: only the K=256 h0_new-dependent contraction sits on the serial path.
        z1 = z1_rec + jnp.dot(h0, wih1_ref[...], preferred_element_type=jnp.float32) + b1
        h1, c1 = cell(z1, c1)
        return (h0, c0, h1, c1)

    zeros_f32 = jnp.zeros((Bp, H), jnp.float32)
    zeros_bf16 = jnp.zeros((Bp, H), jnp.bfloat16)
    h0, c0, h1, c1 = lax.fori_loop(0, T, step,
                                   (zeros_bf16, zeros_f32, zeros_bf16, zeros_f32),
                                   unroll=True)

    # TODO(synk): nn.Dropout() is identity in eval mode; training-mode dropout
    # (p=0.5 via pltpu.prng_random_bits) is not applied here.
    o_ref[...] = (jnp.dot(h1, wout_ref[...], preferred_element_type=jnp.float32)
                  + bout_ref[...])


def charlstm_forward(x_tokens, kp):
    """x_tokens: (B, T) int32 token ids in [0, VOCAB)."""
    B, T = x_tokens.shape
    Bp = ((B + 7) // 8) * 8

    # Embedding + layer-0 input projection + bias folded into one table lookup.
    z0_all = kp["z0_table"][x_tokens.T]                       # (T, B, 4H) gather
    z0_all = jnp.pad(z0_all, ((0, 0), (0, Bp - B), (0, 0)))   # sublane pad

    vmem = pl.BlockSpec(memory_space=pltpu.MemorySpace.VMEM)
    out = pl.pallas_call(
        charlstm_kernel,
        out_shape=jax.ShapeDtypeStruct((Bp, VOCAB_PAD), jnp.float32),
        in_specs=[vmem] * 7,
        out_specs=vmem,
    )(z0_all, kp["whh0_T"], kp["wih1_T"], kp["whh1_T"], kp["b1"],
      kp["wout_T"], kp["bout"])
    return out[:B, :VOCAB]


def init_params(key):
    """Synthetic parameters matching nn.Embedding(80,8),
    nn.LSTM(8,256,2,batch_first=True), nn.Linear(256,80) state-dict shapes."""
    ks = jax.random.split(key, 12)
    H = HIDDEN
    bound = 1.0 / np.sqrt(H)

    def u(k, shape, b):
        return jax.random.uniform(k, shape, jnp.float32, minval=-b, maxval=b)

    return {
        "embed": jax.random.normal(ks[0], (VOCAB, EMBED), jnp.float32),
        "w_ih0": u(ks[1], (4 * H, EMBED), bound),
        "w_hh0": u(ks[2], (4 * H, H), bound),
        "b_ih0": u(ks[3], (4 * H,), bound),
        "b_hh0": u(ks[4], (4 * H,), bound),
        "w_ih1": u(ks[5], (4 * H, H), bound),
        "w_hh1": u(ks[6], (4 * H, H), bound),
        "b_ih1": u(ks[7], (4 * H,), bound),
        "b_hh1": u(ks[8], (4 * H,), bound),
        "w_out": u(ks[9], (VOCAB, H), bound),
        "b_out": u(ks[10], (VOCAB,), bound),
    }


def _permute_gates(w):
    """PyTorch gate order (i, f, g, o) -> kernel order (i, f, o, g) along axis 0."""
    H = HIDDEN
    return jnp.concatenate([w[0:H], w[H:2 * H], w[3 * H:4 * H], w[2 * H:3 * H]], axis=0)


def prepare_kernel_params(raw):
    H = HIDDEN
    wih0 = _permute_gates(raw["w_ih0"])                       # (4H, E)
    whh0 = _permute_gates(raw["w_hh0"])                       # (4H, H)
    b0 = _permute_gates(raw["b_ih0"] + raw["b_hh0"])          # (4H,)
    wih1 = _permute_gates(raw["w_ih1"])                       # (4H, H)
    whh1 = _permute_gates(raw["w_hh1"])                       # (4H, H)
    b1 = _permute_gates(raw["b_ih1"] + raw["b_hh1"])          # (4H,)

    # Embedding folded with the layer-0 input projection: one (VOCAB, 4H) table.
    z0_table = raw["embed"] @ wih0.T + b0[None, :]            # (VOCAB, 4H) f32

    wout = jnp.zeros((H, VOCAB_PAD), jnp.float32).at[:, :VOCAB].set(raw["w_out"].T)
    bout = jnp.zeros((1, VOCAB_PAD), jnp.float32).at[:, :VOCAB].set(raw["b_out"][None, :])

    return {
        "z0_table": z0_table,                                 # (VOCAB, 4H) f32
        "whh0_T": whh0.T.astype(jnp.bfloat16),                # (H, 4H) bf16
        "wih1_T": wih1.T.astype(jnp.bfloat16),                # (H, 4H) bf16
        "whh1_T": whh1.T.astype(jnp.bfloat16),                # (H, 4H) bf16
        "b1": b1[None, :],                                    # (1, 4H) f32
        "wout_T": wout.astype(jnp.bfloat16),                  # (H, 128) bf16
        "bout": bout,                                         # (1, 128) f32
    }


def charlstm_reference(x_tokens, raw):
    """Pure-JAX reference mirroring torch semantics (eval-mode dropout), f32."""
    H = HIDDEN
    x_emb = raw["embed"][x_tokens]                            # (B, T, E)
    B, T, _ = x_emb.shape

    def layer(x_seq, w_ih, w_hh, b_ih, b_hh):
        wih_T, whh_T = w_ih.T, w_hh.T
        b = (b_ih + b_hh)[None, :]

        def step(carry, x_t):
            h, c = carry
            z = x_t @ wih_T + h @ whh_T + b
            i = jax.nn.sigmoid(z[:, 0 * H:1 * H])
            f = jax.nn.sigmoid(z[:, 1 * H:2 * H])
            g = jnp.tanh(z[:, 2 * H:3 * H])
            o = jax.nn.sigmoid(z[:, 3 * H:4 * H])
            c = f * c + i * g
            h = o * jnp.tanh(c)
            return (h, c), h

        z0 = jnp.zeros((B, H), jnp.float32)
        _, hs = lax.scan(step, (z0, z0), jnp.transpose(x_seq, (1, 0, 2)))
        return jnp.transpose(hs, (1, 0, 2))                   # (B, T, H)

    h_seq0 = layer(x_emb, raw["w_ih0"], raw["w_hh0"], raw["b_ih0"], raw["b_hh0"])
    h_seq1 = layer(h_seq0, raw["w_ih1"], raw["w_hh1"], raw["b_ih1"], raw["b_hh1"])
    last = h_seq1[:, -1, :]
    return last @ raw["w_out"].T + raw["b_out"][None, :]


if __name__ == "__main__":
    key = jax.random.PRNGKey(0)
    k_param, k_tok = jax.random.split(key)

    B, T = 2, 8
    raw = init_params(k_param)
    kp = prepare_kernel_params(raw)
    x_tokens = jax.random.randint(k_tok, (B, T), 0, VOCAB, dtype=jnp.int32)

    out = jax.block_until_ready(charlstm_forward(x_tokens, kp))
    ref = jax.block_until_ready(charlstm_reference(x_tokens, raw))

    assert out.shape == (B, VOCAB), out.shape
    # Kernel uses bf16 MXU operands (f32 accumulate) vs. an all-f32 reference,
    # so the tolerance is loosened accordingly.
    np.testing.assert_allclose(np.asarray(out), np.asarray(ref), rtol=5e-2, atol=5e-2)

    print("KERNEL_OK")
</pallas_src>

<mosaic_0001>
module attributes {stable_mosaic.version = 11 : i64} {
  func.func @charlstm_kernel(%arg0: memref<8x8x1024xf32, #tpu.memory_space<vmem>>, %arg1: memref<256x1024xbf16, #tpu.memory_space<vmem>>, %arg2: memref<256x1024xbf16, #tpu.memory_space<vmem>>, %arg3: memref<256x1024xbf16, #tpu.memory_space<vmem>>, %arg4: memref<1x1024xf32, #tpu.memory_space<vmem>>, %arg5: memref<256x128xbf16, #tpu.memory_space<vmem>>, %arg6: memref<1x128xf32, #tpu.memory_space<vmem>>, %arg7: memref<8x128xf32, #tpu.memory_space<vmem>>) attributes {dimension_semantics = [], scalar_prefetch = 0 : i64, scratch_operands = 0 : i64, tpu.core_type = #tpu.core_type<tc>} {
    %c0 = arith.constant 0 : index
    %c0_0 = arith.constant 0 : index
    %0 = vector.load %arg4[%c0, %c0_0] : memref<1x1024xf32, #tpu.memory_space<vmem>>, vector<1x1024xf32>
    %cst = arith.constant 0.000000e+00 : f32
    %1 = vector.broadcast %cst : f32 to vector<8x256xf32>
    %cst_1 = arith.constant 0.000000e+00 : bf16
    %2 = vector.broadcast %cst_1 : bf16 to vector<8x256xbf16>
    %c0_i32 = arith.constant 0 : i32
    %c0_2 = arith.constant 0 : index
    %c0_3 = arith.constant 0 : index
    %3 = vector.load %arg3[%c0_2, %c0_3] : memref<256x1024xbf16, #tpu.memory_space<vmem>>, vector<256x1024xbf16>
    %cst_4 = arith.constant dense<0.000000e+00> : vector<8x1024xf32>
    %4 = tpu.matmul %2, %3, %cst_4 {dimension_numbers = #tpu.dot_dimension_numbers<[1], [0], [0], [1], [0, 0, 1, 1], [], []>} : vector<8x256xbf16>, vector<256x1024xbf16>, vector<8x1024xf32> -> vector<8x1024xf32>
    %5 = arith.index_cast %c0_i32 : i32 to index
    %c0_5 = arith.constant 0 : index
    %c0_6 = arith.constant 0 : index
    %6 = vector.load %arg0[%5, %c0_5, %c0_6] : memref<8x8x1024xf32, #tpu.memory_space<vmem>>, vector<1x8x1024xf32>
    %7 = vector.shape_cast %6 : vector<1x8x1024xf32> to vector<8x1024xf32>
    %c0_7 = arith.constant 0 : index
    %c0_8 = arith.constant 0 : index
    %8 = vector.load %arg1[%c0_7, %c0_8] : memref<256x1024xbf16, #tpu.memory_space<vmem>>, vector<256x1024xbf16>
    %cst_9 = arith.constant dense<0.000000e+00> : vector<8x1024xf32>
    %9 = tpu.matmul %2, %8, %cst_9 {dimension_numbers = #tpu.dot_dimension_numbers<[1], [0], [0], [1], [0, 0, 1, 1], [], []>} : vector<8x256xbf16>, vector<256x1024xbf16>, vector<8x1024xf32> -> vector<8x1024xf32>
    %10 = arith.addf %7, %9 : vector<8x1024xf32>
    %11 = vector.extract_strided_slice %10 {offsets = [0, 0], sizes = [8, 768], strides = [1, 1]} : vector<8x1024xf32> to vector<8x768xf32>
    %12 = arith.negf %11 : vector<8x768xf32>
    %13 = math.exp %12 : vector<8x768xf32>
    %cst_10 = arith.constant 1.000000e+00 : f32
    %14 = vector.broadcast %cst_10 : f32 to vector<8x768xf32>
    %15 = arith.addf %14, %13 : vector<8x768xf32>
    %16 = arith.divf %14, %15 : vector<8x768xf32>
    %17 = vector.extract_strided_slice %10 {offsets = [0, 768], sizes = [8, 256], strides = [1, 1]} : vector<8x1024xf32> to vector<8x256xf32>
    %18 = math.tanh %17 : vector<8x256xf32>
    %19 = vector.extract_strided_slice %16 {offsets = [0, 0], sizes = [8, 256], strides = [1, 1]} : vector<8x768xf32> to vector<8x256xf32>
    %20 = vector.extract_strided_slice %16 {offsets = [0, 256], sizes = [8, 256], strides = [1, 1]} : vector<8x768xf32> to vector<8x256xf32>
    %21 = vector.extract_strided_slice %16 {offsets = [0, 512], sizes = [8, 256], strides = [1, 1]} : vector<8x768xf32> to vector<8x256xf32>
    %22 = arith.mulf %20, %1 : vector<8x256xf32>
    %23 = arith.mulf %19, %18 : vector<8x256xf32>
    %24 = arith.addf %22, %23 : vector<8x256xf32>
    %25 = math.tanh %24 : vector<8x256xf32>
    %26 = arith.mulf %21, %25 : vector<8x256xf32>
    %27 = arith.truncf %26 : vector<8x256xf32> to vector<8x256xbf16>
    %c0_11 = arith.constant 0 : index
    %c0_12 = arith.constant 0 : index
    %28 = vector.load %arg2[%c0_11, %c0_12] : memref<256x1024xbf16, #tpu.memory_space<vmem>>, vector<256x1024xbf16>
    %cst_13 = arith.constant dense<0.000000e+00> : vector<8x1024xf32>
    %29 = tpu.matmul %27, %28, %cst_13 {dimension_numbers = #tpu.dot_dimension_numbers<[1], [0], [0], [1], [0, 0, 1, 1], [], []>} : vector<8x256xbf16>, vector<256x1024xbf16>, vector<8x1024xf32> -> vector<8x1024xf32>
    %30 = arith.addf %4, %29 : vector<8x1024xf32>
    %31 = vector.broadcast %0 : vector<1x1024xf32> to vector<8x1024xf32>
    %32 = arith.addf %30, %31 : vector<8x1024xf32>
    %33 = vector.extract_strided_slice %32 {offsets = [0, 0], sizes = [8, 768], strides = [1, 1]} : vector<8x1024xf32> to vector<8x768xf32>
    %34 = arith.negf %33 : vector<8x768xf32>
    %35 = math.exp %34 : vector<8x768xf32>
    %cst_14 = arith.constant 1.000000e+00 : f32
    %36 = vector.broadcast %cst_14 : f32 to vector<8x768xf32>
    %37 = arith.addf %36, %35 : vector<8x768xf32>
    %38 = arith.divf %36, %37 : vector<8x768xf32>
    %39 = vector.extract_strided_slice %32 {offsets = [0, 768], sizes = [8, 256], strides = [1, 1]} : vector<8x1024xf32> to vector<8x256xf32>
    %40 = math.tanh %39 : vector<8x256xf32>
    %41 = vector.extract_strided_slice %38 {offsets = [0, 0], sizes = [8, 256], strides = [1, 1]} : vector<8x768xf32> to vector<8x256xf32>
    %42 = vector.extract_strided_slice %38 {offsets = [0, 256], sizes = [8, 256], strides = [1, 1]} : vector<8x768xf32> to vector<8x256xf32>
    %43 = vector.extract_strided_slice %38 {offsets = [0, 512], sizes = [8, 256], strides = [1, 1]} : vector<8x768xf32> to vector<8x256xf32>
    %44 = arith.mulf %42, %1 : vector<8x256xf32>
    %45 = arith.mulf %41, %40 : vector<8x256xf32>
    %46 = arith.addf %44, %45 : vector<8x256xf32>
    %47 = math.tanh %46 : vector<8x256xf32>
    %48 = arith.mulf %43, %47 : vector<8x256xf32>
    %49 = arith.truncf %48 : vector<8x256xf32> to vector<8x256xbf16>
    %c1_i32 = arith.constant 1 : i32
    %c0_15 = arith.constant 0 : index
    %c0_16 = arith.constant 0 : index
    %50 = vector.load %arg3[%c0_15, %c0_16] : memref<256x1024xbf16, #tpu.memory_space<vmem>>, vector<256x1024xbf16>
    %cst_17 = arith.constant dense<0.000000e+00> : vector<8x1024xf32>
    %51 = tpu.matmul %49, %50, %cst_17 {dimension_numbers = #tpu.dot_dimension_numbers<[1], [0], [0], [1], [0, 0, 1, 1], [], []>} : vector<8x256xbf16>, vector<256x1024xbf16>, vector<8x1024xf32> -> vector<8x1024xf32>
    %52 = arith.index_cast %c1_i32 : i32 to index
    %c0_18 = arith.constant 0 : index
    %c0_19 = arith.constant 0 : index
    %53 = vector.load %arg0[%52, %c0_18, %c0_19] : memref<8x8x1024xf32, #tpu.memory_space<vmem>>, vector<1x8x1024xf32>
    %54 = vector.shape_cast %53 : vector<1x8x1024xf32> to vector<8x1024xf32>
    %c0_20 = arith.constant 0 : index
    %c0_21 = arith.constant 0 : index
    %55 = vector.load %arg1[%c0_20, %c0_21] : memref<256x1024xbf16, #tpu.memory_space<vmem>>, vector<256x1024xbf16>
    %cst_22 = arith.constant dense<0.000000e+00> : vector<8x1024xf32>
    %56 = tpu.matmul %27, %55, %cst_22 {dimension_numbers = #tpu.dot_dimension_numbers<[1], [0], [0], [1], [0, 0, 1, 1], [], []>} : vector<8x256xbf16>, vector<256x1024xbf16>, vector<8x1024xf32> -> vector<8x1024xf32>
    %57 = arith.addf %54, %56 : vector<8x1024xf32>
    %58 = vector.extract_strided_slice %57 {offsets = [0, 0], sizes = [8, 768], strides = [1, 1]} : vector<8x1024xf32> to vector<8x768xf32>
    %59 = arith.negf %58 : vector<8x768xf32>
    %60 = math.exp %59 : vector<8x768xf32>
    %cst_23 = arith.constant 1.000000e+00 : f32
    %61 = vector.broadcast %cst_23 : f32 to vector<8x768xf32>
    %62 = arith.addf %61, %60 : vector<8x768xf32>
    %63 = arith.divf %61, %62 : vector<8x768xf32>
    %64 = vector.extract_strided_slice %57 {offsets = [0, 768], sizes = [8, 256], strides = [1, 1]} : vector<8x1024xf32> to vector<8x256xf32>
    %65 = math.tanh %64 : vector<8x256xf32>
    %66 = vector.extract_strided_slice %63 {offsets = [0, 0], sizes = [8, 256], strides = [1, 1]} : vector<8x768xf32> to vector<8x256xf32>
    %67 = vector.extract_strided_slice %63 {offsets = [0, 256], sizes = [8, 256], strides = [1, 1]} : vector<8x768xf32> to vector<8x256xf32>
    %68 = vector.extract_strided_slice %63 {offsets = [0, 512], sizes = [8, 256], strides = [1, 1]} : vector<8x768xf32> to vector<8x256xf32>
    %69 = arith.mulf %67, %24 : vector<8x256xf32>
    %70 = arith.mulf %66, %65 : vector<8x256xf32>
    %71 = arith.addf %69, %70 : vector<8x256xf32>
    %72 = math.tanh %71 : vector<8x256xf32>
    %73 = arith.mulf %68, %72 : vector<8x256xf32>
    %74 = arith.truncf %73 : vector<8x256xf32> to vector<8x256xbf16>
    %c0_24 = arith.constant 0 : index
    %c0_25 = arith.constant 0 : index
    %75 = vector.load %arg2[%c0_24, %c0_25] : memref<256x1024xbf16, #tpu.memory_space<vmem>>, vector<256x1024xbf16>
    %cst_26 = arith.constant dense<0.000000e+00> : vector<8x1024xf32>
    %76 = tpu.matmul %74, %75, %cst_26 {dimension_numbers = #tpu.dot_dimension_numbers<[1], [0], [0], [1], [0, 0, 1, 1], [], []>} : vector<8x256xbf16>, vector<256x1024xbf16>, vector<8x1024xf32> -> vector<8x1024xf32>
    %77 = arith.addf %51, %76 : vector<8x1024xf32>
    %78 = vector.broadcast %0 : vector<1x1024xf32> to vector<8x1024xf32>
    %79 = arith.addf %77, %78 : vector<8x1024xf32>
    %80 = vector.extract_strided_slice %79 {offsets = [0, 0], sizes = [8, 768], strides = [1, 1]} : vector<8x1024xf32> to vector<8x768xf32>
    %81 = arith.negf %80 : vector<8x768xf32>
    %82 = math.exp %81 : vector<8x768xf32>
    %cst_27 = arith.constant 1.000000e+00 : f32
    %83 = vector.broadcast %cst_27 : f32 to vector<8x768xf32>
    %84 = arith.addf %83, %82 : vector<8x768xf32>
    %85 = arith.divf %83, %84 : vector<8x768xf32>
    %86 = vector.extract_strided_slice %79 {offsets = [0, 768], sizes = [8, 256], strides = [1, 1]} : vector<8x1024xf32> to vector<8x256xf32>
    %87 = math.tanh %86 : vector<8x256xf32>
    %88 = vector.extract_strided_slice %85 {offsets = [0, 0], sizes = [8, 256], strides = [1, 1]} : vector<8x768xf32> to vector<8x256xf32>
    %89 = vector.extract_strided_slice %85 {offsets = [0, 256], sizes = [8, 256], strides = [1, 1]} : vector<8x768xf32> to vector<8x256xf32>
    %90 = vector.extract_strided_slice %85 {offsets = [0, 512], sizes = [8, 256], strides = [1, 1]} : vector<8x768xf32> to vector<8x256xf32>
    %91 = arith.mulf %89, %46 : vector<8x256xf32>
    %92 = arith.mulf %88, %87 : vector<8x256xf32>
    %93 = arith.addf %91, %92 : vector<8x256xf32>
    %94 = math.tanh %93 : vector<8x256xf32>
    %95 = arith.mulf %90, %94 : vector<8x256xf32>
    %96 = arith.truncf %95 : vector<8x256xf32> to vector<8x256xbf16>
    %c2_i32 = arith.constant 2 : i32
    %c0_28 = arith.constant 0 : index
    %c0_29 = arith.constant 0 : index
    %97 = vector.load %arg3[%c0_28, %c0_29] : memref<256x1024xbf16, #tpu.memory_space<vmem>>, vector<256x1024xbf16>
    %cst_30 = arith.constant dense<0.000000e+00> : vector<8x1024xf32>
    %98 = tpu.matmul %96, %97, %cst_30 {dimension_numbers = #tpu.dot_dimension_numbers<[1], [0], [0], [1], [0, 0, 1, 1], [], []>} : vector<8x256xbf16>, vector<256x1024xbf16>, vector<8x1024xf32> -> vector<8x1024xf32>
    %99 = arith.index_cast %c2_i32 : i32 to index
    %c0_31 = arith.constant 0 : index
    %c0_32 = arith.constant 0 : index
    %100 = vector.load %arg0[%99, %c0_31, %c0_32] : memref<8x8x1024xf32, #tpu.memory_space<vmem>>, vector<1x8x1024xf32>
    %101 = vector.shape_cast %100 : vector<1x8x1024xf32> to vector<8x1024xf32>
    %c0_33 = arith.constant 0 : index
    %c0_34 = arith.constant 0 : index
    %102 = vector.load %arg1[%c0_33, %c0_34] : memref<256x1024xbf16, #tpu.memory_space<vmem>>, vector<256x1024xbf16>
    %cst_35 = arith.constant dense<0.000000e+00> : vector<8x1024xf32>
    %103 = tpu.matmul %74, %102, %cst_35 {dimension_numbers = #tpu.dot_dimension_numbers<[1], [0], [0], [1], [0, 0, 1, 1], [], []>} : vector<8x256xbf16>, vector<256x1024xbf16>, vector<8x1024xf32> -> vector<8x1024xf32>
    %104 = arith.addf %101, %103 : vector<8x1024xf32>
    %105 = vector.extract_strided_slice %104 {offsets = [0, 0], sizes = [8, 768], strides = [1, 1]} : vector<8x1024xf32> to vector<8x768xf32>
    %106 = arith.negf %105 : vector<8x768xf32>
    %107 = math.exp %106 : vector<8x768xf32>
    %cst_36 = arith.constant 1.000000e+00 : f32
    %108 = vector.broadcast %cst_36 : f32 to vector<8x768xf32>
    %109 = arith.addf %108, %107 : vector<8x768xf32>
    %110 = arith.divf %108, %109 : vector<8x768xf32>
    %111 = vector.extract_strided_slice %104 {offsets = [0, 768], sizes = [8, 256], strides = [1, 1]} : vector<8x1024xf32> to vector<8x256xf32>
    %112 = math.tanh %111 : vector<8x256xf32>
    %113 = vector.extract_strided_slice %110 {offsets = [0, 0], sizes = [8, 256], strides = [1, 1]} : vector<8x768xf32> to vector<8x256xf32>
    %114 = vector.extract_strided_slice %110 {offsets = [0, 256], sizes = [8, 256], strides = [1, 1]} : vector<8x768xf32> to vector<8x256xf32>
    %115 = vector.extract_strided_slice %110 {offsets = [0, 512], sizes = [8, 256], strides = [1, 1]} : vector<8x768xf32> to vector<8x256xf32>
    %116 = arith.mulf %114, %71 : vector<8x256xf32>
    %117 = arith.mulf %113, %112 : vector<8x256xf32>
    %118 = arith.addf %116, %117 : vector<8x256xf32>
    %119 = math.tanh %118 : vector<8x256xf32>
    %120 = arith.mulf %115, %119 : vector<8x256xf32>
    %121 = arith.truncf %120 : vector<8x256xf32> to vector<8x256xbf16>
    %c0_37 = arith.constant 0 : index
    %c0_38 = arith.constant 0 : index
    %122 = vector.load %arg2[%c0_37, %c0_38] : memref<256x1024xbf16, #tpu.memory_space<vmem>>, vector<256x1024xbf16>
    %cst_39 = arith.constant dense<0.000000e+00> : vector<8x1024xf32>
    %123 = tpu.matmul %121, %122, %cst_39 {dimension_numbers = #tpu.dot_dimension_numbers<[1], [0], [0], [1], [0, 0, 1, 1], [], []>} : vector<8x256xbf16>, vector<256x1024xbf16>, vector<8x1024xf32> -> vector<8x1024xf32>
    %124 = arith.addf %98, %123 : vector<8x1024xf32>
    %125 = vector.broadcast %0 : vector<1x1024xf32> to vector<8x1024xf32>
    %126 = arith.addf %124, %125 : vector<8x1024xf32>
    %127 = vector.extract_strided_slice %126 {offsets = [0, 0], sizes = [8, 768], strides = [1, 1]} : vector<8x1024xf32> to vector<8x768xf32>
    %128 = arith.negf %127 : vector<8x768xf32>
    %129 = math.exp %128 : vector<8x768xf32>
    %cst_40 = arith.constant 1.000000e+00 : f32
    %130 = vector.broadcast %cst_40 : f32 to vector<8x768xf32>
    %131 = arith.addf %130, %129 : vector<8x768xf32>
    %132 = arith.divf %130, %131 : vector<8x768xf32>
    %133 = vector.extract_strided_slice %126 {offsets = [0, 768], sizes = [8, 256], strides = [1, 1]} : vector<8x1024xf32> to vector<8x256xf32>
    %134 = math.tanh %133 : vector<8x256xf32>
    %135 = vector.extract_strided_slice %132 {offsets = [0, 0], sizes = [8, 256], strides = [1, 1]} : vector<8x768xf32> to vector<8x256xf32>
    %136 = vector.extract_strided_slice %132 {offsets = [0, 256], sizes = [8, 256], strides = [1, 1]} : vector<8x768xf32> to vector<8x256xf32>
    %137 = vector.extract_strided_slice %132 {offsets = [0, 512], sizes = [8, 256], strides = [1, 1]} : vector<8x768xf32> to vector<8x256xf32>
    %138 = arith.mulf %136, %93 : vector<8x256xf32>
    %139 = arith.mulf %135, %134 : vector<8x256xf32>
    %140 = arith.addf %138, %139 : vector<8x256xf32>
    %141 = math.tanh %140 : vector<8x256xf32>
    %142 = arith.mulf %137, %141 : vector<8x256xf32>
    %143 = arith.truncf %142 : vector<8x256xf32> to vector<8x256xbf16>
    %c3_i32 = arith.constant 3 : i32
    %c0_41 = arith.constant 0 : index
    %c0_42 = arith.constant 0 : index
    %144 = vector.load %arg3[%c0_41, %c0_42] : memref<256x1024xbf16, #tpu.memory_space<vmem>>, vector<256x1024xbf16>
    %cst_43 = arith.constant dense<0.000000e+00> : vector<8x1024xf32>
    %145 = tpu.matmul %143, %144, %cst_43 {dimension_numbers = #tpu.dot_dimension_numbers<[1], [0], [0], [1], [0, 0, 1, 1], [], []>} : vector<8x256xbf16>, vector<256x1024xbf16>, vector<8x1024xf32> -> vector<8x1024xf32>
    %146 = arith.index_cast %c3_i32 : i32 to index
    %c0_44 = arith.constant 0 : index
    %c0_45 = arith.constant 0 : index
    %147 = vector.load %arg0[%146, %c0_44, %c0_45] : memref<8x8x1024xf32, #tpu.memory_space<vmem>>, vector<1x8x1024xf32>
    %148 = vector.shape_cast %147 : vector<1x8x1024xf32> to vector<8x1024xf32>
    %c0_46 = arith.constant 0 : index
    %c0_47 = arith.constant 0 : index
    %149 = vector.load %arg1[%c0_46, %c0_47] : memref<256x1024xbf16, #tpu.memory_space<vmem>>, vector<256x1024xbf16>
    %cst_48 = arith.constant dense<0.000000e+00> : vector<8x1024xf32>
    %150 = tpu.matmul %121, %149, %cst_48 {dimension_numbers = #tpu.dot_dimension_numbers<[1], [0], [0], [1], [0, 0, 1, 1], [], []>} : vector<8x256xbf16>, vector<256x1024xbf16>, vector<8x1024xf32> -> vector<8x1024xf32>
    %151 = arith.addf %148, %150 : vector<8x1024xf32>
    %152 = vector.extract_strided_slice %151 {offsets = [0, 0], sizes = [8, 768], strides = [1, 1]} : vector<8x1024xf32> to vector<8x768xf32>
    %153 = arith.negf %152 : vector<8x768xf32>
    %154 = math.exp %153 : vector<8x768xf32>
    %cst_49 = arith.constant 1.000000e+00 : f32
    %155 = vector.broadcast %cst_49 : f32 to vector<8x768xf32>
    %156 = arith.addf %155, %154 : vector<8x768xf32>
    %157 = arith.divf %155, %156 : vector<8x768xf32>
    %158 = vector.extract_strided_slice %151 {offsets = [0, 768], sizes = [8, 256], strides = [1, 1]} : vector<8x1024xf32> to vector<8x256xf32>
    %159 = math.tanh %158 : vector<8x256xf32>
    %160 = vector.extract_strided_slice %157 {offsets = [0, 0], sizes = [8, 256], strides = [1, 1]} : vector<8x768xf32> to vector<8x256xf32>
    %161 = vector.extract_strided_slice %157 {offsets = [0, 256], sizes = [8, 256], strides = [1, 1]} : vector<8x768xf32> to vector<8x256xf32>
    %162 = vector.extract_strided_slice %157 {offsets = [0, 512], sizes = [8, 256], strides = [1, 1]} : vector<8x768xf32> to vector<8x256xf32>
    %163 = arith.mulf %161, %118 : vector<8x256xf32>
    %164 = arith.mulf %160, %159 : vector<8x256xf32>
    %165 = arith.addf %163, %164 : vector<8x256xf32>
    %166 = math.tanh %165 : vector<8x256xf32>
    %167 = arith.mulf %162, %166 : vector<8x256xf32>
    %168 = arith.truncf %167 : vector<8x256xf32> to vector<8x256xbf16>
    %c0_50 = arith.constant 0 : index
    %c0_51 = arith.constant 0 : index
    %169 = vector.load %arg2[%c0_50, %c0_51] : memref<256x1024xbf16, #tpu.memory_space<vmem>>, vector<256x1024xbf16>
    %cst_52 = arith.constant dense<0.000000e+00> : vector<8x1024xf32>
    %170 = tpu.matmul %168, %169, %cst_52 {dimension_numbers = #tpu.dot_dimension_numbers<[1], [0], [0], [1], [0, 0, 1, 1], [], []>} : vector<8x256xbf16>, vector<256x1024xbf16>, vector<8x1024xf32> -> vector<8x1024xf32>
    %171 = arith.addf %145, %170 : vector<8x1024xf32>
    %172 = vector.broadcast %0 : vector<1x1024xf32> to vector<8x1024xf32>
    %173 = arith.addf %171, %172 : vector<8x1024xf32>
    %174 = vector.extract_strided_slice %173 {offsets = [0, 0], sizes = [8, 768], strides = [1, 1]} : vector<8x1024xf32> to vector<8x768xf32>
    %175 = arith.negf %174 : vector<8x768xf32>
    %176 = math.exp %175 : vector<8x768xf32>
    %cst_53 = arith.constant 1.000000e+00 : f32
    %177 = vector.broadcast %cst_53 : f32 to vector<8x768xf32>
    %178 = arith.addf %177, %176 : vector<8x768xf32>
    %179 = arith.divf %177, %178 : vector<8x768xf32>
    %180 = vector.extract_strided_slice %173 {offsets = [0, 768], sizes = [8, 256], strides = [1, 1]} : vector<8x1024xf32> to vector<8x256xf32>
    %181 = math.tanh %180 : vector<8x256xf32>
    %182 = vector.extract_strided_slice %179 {offsets = [0, 0], sizes = [8, 256], strides = [1, 1]} : vector<8x768xf32> to vector<8x256xf32>
    %183 = vector.extract_strided_slice %179 {offsets = [0, 256], sizes = [8, 256], strides = [1, 1]} : vector<8x768xf32> to vector<8x256xf32>
    %184 = vector.extract_strided_slice %179 {offsets = [0, 512], sizes = [8, 256], strides = [1, 1]} : vector<8x768xf32> to vector<8x256xf32>
    %185 = arith.mulf %183, %140 : vector<8x256xf32>
    %186 = arith.mulf %182, %181 : vector<8x256xf32>
    %187 = arith.addf %185, %186 : vector<8x256xf32>
    %188 = math.tanh %187 : vector<8x256xf32>
    %189 = arith.mulf %184, %188 : vector<8x256xf32>
    %190 = arith.truncf %189 : vector<8x256xf32> to vector<8x256xbf16>
    %c4_i32 = arith.constant 4 : i32
    %c0_54 = arith.constant 0 : index
    %c0_55 = arith.constant 0 : index
    %191 = vector.load %arg3[%c0_54, %c0_55] : memref<256x1024xbf16, #tpu.memory_space<vmem>>, vector<256x1024xbf16>
    %cst_56 = arith.constant dense<0.000000e+00> : vector<8x1024xf32>
    %192 = tpu.matmul %190, %191, %cst_56 {dimension_numbers = #tpu.dot_dimension_numbers<[1], [0], [0], [1], [0, 0, 1, 1], [], []>} : vector<8x256xbf16>, vector<256x1024xbf16>, vector<8x1024xf32> -> vector<8x1024xf32>
    %193 = arith.index_cast %c4_i32 : i32 to index
    %c0_57 = arith.constant 0 : index
    %c0_58 = arith.constant 0 : index
    %194 = vector.load %arg0[%193, %c0_57, %c0_58] : memref<8x8x1024xf32, #tpu.memory_space<vmem>>, vector<1x8x1024xf32>
    %195 = vector.shape_cast %194 : vector<1x8x1024xf32> to vector<8x1024xf32>
    %c0_59 = arith.constant 0 : index
    %c0_60 = arith.constant 0 : index
    %196 = vector.load %arg1[%c0_59, %c0_60] : memref<256x1024xbf16, #tpu.memory_space<vmem>>, vector<256x1024xbf16>
    %cst_61 = arith.constant dense<0.000000e+00> : vector<8x1024xf32>
    %197 = tpu.matmul %168, %196, %cst_61 {dimension_numbers = #tpu.dot_dimension_numbers<[1], [0], [0], [1], [0, 0, 1, 1], [], []>} : vector<8x256xbf16>, vector<256x1024xbf16>, vector<8x1024xf32> -> vector<8x1024xf32>
    %198 = arith.addf %195, %197 : vector<8x1024xf32>
    %199 = vector.extract_strided_slice %198 {offsets = [0, 0], sizes = [8, 768], strides = [1, 1]} : vector<8x1024xf32> to vector<8x768xf32>
    %200 = arith.negf %199 : vector<8x768xf32>
    %201 = math.exp %200 : vector<8x768xf32>
    %cst_62 = arith.constant 1.000000e+00 : f32
    %202 = vector.broadcast %cst_62 : f32 to vector<8x768xf32>
    %203 = arith.addf %202, %201 : vector<8x768xf32>
    %204 = arith.divf %202, %203 : vector<8x768xf32>
    %205 = vector.extract_strided_slice %198 {offsets = [0, 768], sizes = [8, 256], strides = [1, 1]} : vector<8x1024xf32> to vector<8x256xf32>
    %206 = math.tanh %205 : vector<8x256xf32>
    %207 = vector.extract_strided_slice %204 {offsets = [0, 0], sizes = [8, 256], strides = [1, 1]} : vector<8x768xf32> to vector<8x256xf32>
    %208 = vector.extract_strided_slice %204 {offsets = [0, 256], sizes = [8, 256], strides = [1, 1]} : vector<8x768xf32> to vector<8x256xf32>
    %209 = vector.extract_strided_slice %204 {offsets = [0, 512], sizes = [8, 256], strides = [1, 1]} : vector<8x768xf32> to vector<8x256xf32>
    %210 = arith.mulf %208, %165 : vector<8x256xf32>
    %211 = arith.mulf %207, %206 : vector<8x256xf32>
    %212 = arith.addf %210, %211 : vector<8x256xf32>
    %213 = math.tanh %212 : vector<8x256xf32>
    %214 = arith.mulf %209, %213 : vector<8x256xf32>
    %215 = arith.truncf %214 : vector<8x256xf32> to vector<8x256xbf16>
    %c0_63 = arith.constant 0 : index
    %c0_64 = arith.constant 0 : index
    %216 = vector.load %arg2[%c0_63, %c0_64] : memref<256x1024xbf16, #tpu.memory_space<vmem>>, vector<256x1024xbf16>
    %cst_65 = arith.constant dense<0.000000e+00> : vector<8x1024xf32>
    %217 = tpu.matmul %215, %216, %cst_65 {dimension_numbers = #tpu.dot_dimension_numbers<[1], [0], [0], [1], [0, 0, 1, 1], [], []>} : vector<8x256xbf16>, vector<256x1024xbf16>, vector<8x1024xf32> -> vector<8x1024xf32>
    %218 = arith.addf %192, %217 : vector<8x1024xf32>
    %219 = vector.broadcast %0 : vector<1x1024xf32> to vector<8x1024xf32>
    %220 = arith.addf %218, %219 : vector<8x1024xf32>
    %221 = vector.extract_strided_slice %220 {offsets = [0, 0], sizes = [8, 768], strides = [1, 1]} : vector<8x1024xf32> to vector<8x768xf32>
    %222 = arith.negf %221 : vector<8x768xf32>
    %223 = math.exp %222 : vector<8x768xf32>
    %cst_66 = arith.constant 1.000000e+00 : f32
    %224 = vector.broadcast %cst_66 : f32 to vector<8x768xf32>
    %225 = arith.addf %224, %223 : vector<8x768xf32>
    %226 = arith.divf %224, %225 : vector<8x768xf32>
    %227 = vector.extract_strided_slice %220 {offsets = [0, 768], sizes = [8, 256], strides = [1, 1]} : vector<8x1024xf32> to vector<8x256xf32>
    %228 = math.tanh %227 : vector<8x256xf32>
    %229 = vector.extract_strided_slice %226 {offsets = [0, 0], sizes = [8, 256], strides = [1, 1]} : vector<8x768xf32> to vector<8x256xf32>
    %230 = vector.extract_strided_slice %226 {offsets = [0, 256], sizes = [8, 256], strides = [1, 1]} : vector<8x768xf32> to vector<8x256xf32>
    %231 = vector.extract_strided_slice %226 {offsets = [0, 512], sizes = [8, 256], strides = [1, 1]} : vector<8x768xf32> to vector<8x256xf32>
    %232 = arith.mulf %230, %187 : vector<8x256xf32>
    %233 = arith.mulf %229, %228 : vector<8x256xf32>
    %234 = arith.addf %232, %233 : vector<8x256xf32>
    %235 = math.tanh %234 : vector<8x256xf32>
    %236 = arith.mulf %231, %235 : vector<8x256xf32>
    %237 = arith.truncf %236 : vector<8x256xf32> to vector<8x256xbf16>
    %c5_i32 = arith.constant 5 : i32
    %c0_67 = arith.constant 0 : index
    %c0_68 = arith.constant 0 : index
    %238 = vector.load %arg3[%c0_67, %c0_68] : memref<256x1024xbf16, #tpu.memory_space<vmem>>, vector<256x1024xbf16>
    %cst_69 = arith.constant dense<0.000000e+00> : vector<8x1024xf32>
    %239 = tpu.matmul %237, %238, %cst_69 {dimension_numbers = #tpu.dot_dimension_numbers<[1], [0], [0], [1], [0, 0, 1, 1], [], []>} : vector<8x256xbf16>, vector<256x1024xbf16>, vector<8x1024xf32> -> vector<8x1024xf32>
    %240 = arith.index_cast %c5_i32 : i32 to index
    %c0_70 = arith.constant 0 : index
    %c0_71 = arith.constant 0 : index
    %241 = vector.load %arg0[%240, %c0_70, %c0_71] : memref<8x8x1024xf32, #tpu.memory_space<vmem>>, vector<1x8x1024xf32>
    %242 = vector.shape_cast %241 : vector<1x8x1024xf32> to vector<8x1024xf32>
    %c0_72 = arith.constant 0 : index
    %c0_73 = arith.constant 0 : index
    %243 = vector.load %arg1[%c0_72, %c0_73] : memref<256x1024xbf16, #tpu.memory_space<vmem>>, vector<256x1024xbf16>
    %cst_74 = arith.constant dense<0.000000e+00> : vector<8x1024xf32>
    %244 = tpu.matmul %215, %243, %cst_74 {dimension_numbers = #tpu.dot_dimension_numbers<[1], [0], [0], [1], [0, 0, 1, 1], [], []>} : vector<8x256xbf16>, vector<256x1024xbf16>, vector<8x1024xf32> -> vector<8x1024xf32>
    %245 = arith.addf %242, %244 : vector<8x1024xf32>
    %246 = vector.extract_strided_slice %245 {offsets = [0, 0], sizes = [8, 768], strides = [1, 1]} : vector<8x1024xf32> to vector<8x768xf32>
    %247 = arith.negf %246 : vector<8x768xf32>
    %248 = math.exp %247 : vector<8x768xf32>
    %cst_75 = arith.constant 1.000000e+00 : f32
    %249 = vector.broadcast %cst_75 : f32 to vector<8x768xf32>
    %250 = arith.addf %249, %248 : vector<8x768xf32>
    %251 = arith.divf %249, %250 : vector<8x768xf32>
    %252 = vector.extract_strided_slice %245 {offsets = [0, 768], sizes = [8, 256], strides = [1, 1]} : vector<8x1024xf32> to vector<8x256xf32>
    %253 = math.tanh %252 : vector<8x256xf32>
    %254 = vector.extract_strided_slice %251 {offsets = [0, 0], sizes = [8, 256], strides = [1, 1]} : vector<8x768xf32> to vector<8x256xf32>
    %255 = vector.extract_strided_slice %251 {offsets = [0, 256], sizes = [8, 256], strides = [1, 1]} : vector<8x768xf32> to vector<8x256xf32>
    %256 = vector.extract_strided_slice %251 {offsets = [0, 512], sizes = [8, 256], strides = [1, 1]} : vector<8x768xf32> to vector<8x256xf32>
    %257 = arith.mulf %255, %212 : vector<8x256xf32>
    %258 = arith.mulf %254, %253 : vector<8x256xf32>
    %259 = arith.addf %257, %258 : vector<8x256xf32>
    %260 = math.tanh %259 : vector<8x256xf32>
    %261 = arith.mulf %256, %260 : vector<8x256xf32>
    %262 = arith.truncf %261 : vector<8x256xf32> to vector<8x256xbf16>
    %c0_76 = arith.constant 0 : index
    %c0_77 = arith.constant 0 : index
    %263 = vector.load %arg2[%c0_76, %c0_77] : memref<256x1024xbf16, #tpu.memory_space<vmem>>, vector<256x1024xbf16>
    %cst_78 = arith.constant dense<0.000000e+00> : vector<8x1024xf32>
    %264 = tpu.matmul %262, %263, %cst_78 {dimension_numbers = #tpu.dot_dimension_numbers<[1], [0], [0], [1], [0, 0, 1, 1], [], []>} : vector<8x256xbf16>, vector<256x1024xbf16>, vector<8x1024xf32> -> vector<8x1024xf32>
    %265 = arith.addf %239, %264 : vector<8x1024xf32>
    %266 = vector.broadcast %0 : vector<1x1024xf32> to vector<8x1024xf32>
    %267 = arith.addf %265, %266 : vector<8x1024xf32>
    %268 = vector.extract_strided_slice %267 {offsets = [0, 0], sizes = [8, 768], strides = [1, 1]} : vector<8x1024xf32> to vector<8x768xf32>
    %269 = arith.negf %268 : vector<8x768xf32>
    %270 = math.exp %269 : vector<8x768xf32>
    %cst_79 = arith.constant 1.000000e+00 : f32
    %271 = vector.broadcast %cst_79 : f32 to vector<8x768xf32>
    %272 = arith.addf %271, %270 : vector<8x768xf32>
    %273 = arith.divf %271, %272 : vector<8x768xf32>
    %274 = vector.extract_strided_slice %267 {offsets = [0, 768], sizes = [8, 256], strides = [1, 1]} : vector<8x1024xf32> to vector<8x256xf32>
    %275 = math.tanh %274 : vector<8x256xf32>
    %276 = vector.extract_strided_slice %273 {offsets = [0, 0], sizes = [8, 256], strides = [1, 1]} : vector<8x768xf32> to vector<8x256xf32>
    %277 = vector.extract_strided_slice %273 {offsets = [0, 256], sizes = [8, 256], strides = [1, 1]} : vector<8x768xf32> to vector<8x256xf32>
    %278 = vector.extract_strided_slice %273 {offsets = [0, 512], sizes = [8, 256], strides = [1, 1]} : vector<8x768xf32> to vector<8x256xf32>
    %279 = arith.mulf %277, %234 : vector<8x256xf32>
    %280 = arith.mulf %276, %275 : vector<8x256xf32>
    %281 = arith.addf %279, %280 : vector<8x256xf32>
    %282 = math.tanh %281 : vector<8x256xf32>
    %283 = arith.mulf %278, %282 : vector<8x256xf32>
    %284 = arith.truncf %283 : vector<8x256xf32> to vector<8x256xbf16>
    %c6_i32 = arith.constant 6 : i32
    %c0_80 = arith.constant 0 : index
    %c0_81 = arith.constant 0 : index
    %285 = vector.load %arg3[%c0_80, %c0_81] : memref<256x1024xbf16, #tpu.memory_space<vmem>>, vector<256x1024xbf16>
    %cst_82 = arith.constant dense<0.000000e+00> : vector<8x1024xf32>
    %286 = tpu.matmul %284, %285, %cst_82 {dimension_numbers = #tpu.dot_dimension_numbers<[1], [0], [0], [1], [0, 0, 1, 1], [], []>} : vector<8x256xbf16>, vector<256x1024xbf16>, vector<8x1024xf32> -> vector<8x1024xf32>
    %287 = arith.index_cast %c6_i32 : i32 to index
    %c0_83 = arith.constant 0 : index
    %c0_84 = arith.constant 0 : index
    %288 = vector.load %arg0[%287, %c0_83, %c0_84] : memref<8x8x1024xf32, #tpu.memory_space<vmem>>, vector<1x8x1024xf32>
    %289 = vector.shape_cast %288 : vector<1x8x1024xf32> to vector<8x1024xf32>
    %c0_85 = arith.constant 0 : index
    %c0_86 = arith.constant 0 : index
    %290 = vector.load %arg1[%c0_85, %c0_86] : memref<256x1024xbf16, #tpu.memory_space<vmem>>, vector<256x1024xbf16>
    %cst_87 = arith.constant dense<0.000000e+00> : vector<8x1024xf32>
    %291 = tpu.matmul %262, %290, %cst_87 {dimension_numbers = #tpu.dot_dimension_numbers<[1], [0], [0], [1], [0, 0, 1, 1], [], []>} : vector<8x256xbf16>, vector<256x1024xbf16>, vector<8x1024xf32> -> vector<8x1024xf32>
    %292 = arith.addf %289, %291 : vector<8x1024xf32>
    %293 = vector.extract_strided_slice %292 {offsets = [0, 0], sizes = [8, 768], strides = [1, 1]} : vector<8x1024xf32> to vector<8x768xf32>
    %294 = arith.negf %293 : vector<8x768xf32>
    %295 = math.exp %294 : vector<8x768xf32>
    %cst_88 = arith.constant 1.000000e+00 : f32
    %296 = vector.broadcast %cst_88 : f32 to vector<8x768xf32>
    %297 = arith.addf %296, %295 : vector<8x768xf32>
    %298 = arith.divf %296, %297 : vector<8x768xf32>
    %299 = vector.extract_strided_slice %292 {offsets = [0, 768], sizes = [8, 256], strides = [1, 1]} : vector<8x1024xf32> to vector<8x256xf32>
    %300 = math.tanh %299 : vector<8x256xf32>
    %301 = vector.extract_strided_slice %298 {offsets = [0, 0], sizes = [8, 256], strides = [1, 1]} : vector<8x768xf32> to vector<8x256xf32>
    %302 = vector.extract_strided_slice %298 {offsets = [0, 256], sizes = [8, 256], strides = [1, 1]} : vector<8x768xf32> to vector<8x256xf32>
    %303 = vector.extract_strided_slice %298 {offsets = [0, 512], sizes = [8, 256], strides = [1, 1]} : vector<8x768xf32> to vector<8x256xf32>
    %304 = arith.mulf %302, %259 : vector<8x256xf32>
    %305 = arith.mulf %301, %300 : vector<8x256xf32>
    %306 = arith.addf %304, %305 : vector<8x256xf32>
    %307 = math.tanh %306 : vector<8x256xf32>
    %308 = arith.mulf %303, %307 : vector<8x256xf32>
    %309 = arith.truncf %308 : vector<8x256xf32> to vector<8x256xbf16>
    %c0_89 = arith.constant 0 : index
    %c0_90 = arith.constant 0 : index
    %310 = vector.load %arg2[%c0_89, %c0_90] : memref<256x1024xbf16, #tpu.memory_space<vmem>>, vector<256x1024xbf16>
    %cst_91 = arith.constant dense<0.000000e+00> : vector<8x1024xf32>
    %311 = tpu.matmul %309, %310, %cst_91 {dimension_numbers = #tpu.dot_dimension_numbers<[1], [0], [0], [1], [0, 0, 1, 1], [], []>} : vector<8x256xbf16>, vector<256x1024xbf16>, vector<8x1024xf32> -> vector<8x1024xf32>
    %312 = arith.addf %286, %311 : vector<8x1024xf32>
    %313 = vector.broadcast %0 : vector<1x1024xf32> to vector<8x1024xf32>
    %314 = arith.addf %312, %313 : vector<8x1024xf32>
    %315 = vector.extract_strided_slice %314 {offsets = [0, 0], sizes = [8, 768], strides = [1, 1]} : vector<8x1024xf32> to vector<8x768xf32>
    %316 = arith.negf %315 : vector<8x768xf32>
    %317 = math.exp %316 : vector<8x768xf32>
    %cst_92 = arith.constant 1.000000e+00 : f32
    %318 = vector.broadcast %cst_92 : f32 to vector<8x768xf32>
    %319 = arith.addf %318, %317 : vector<8x768xf32>
    %320 = arith.divf %318, %319 : vector<8x768xf32>
    %321 = vector.extract_strided_slice %314 {offsets = [0, 768], sizes = [8, 256], strides = [1, 1]} : vector<8x1024xf32> to vector<8x256xf32>
    %322 = math.tanh %321 : vector<8x256xf32>
    %323 = vector.extract_strided_slice %320 {offsets = [0, 0], sizes = [8, 256], strides = [1, 1]} : vector<8x768xf32> to vector<8x256xf32>
    %324 = vector.extract_strided_slice %320 {offsets = [0, 256], sizes = [8, 256], strides = [1, 1]} : vector<8x768xf32> to vector<8x256xf32>
    %325 = vector.extract_strided_slice %320 {offsets = [0, 512], sizes = [8, 256], strides = [1, 1]} : vector<8x768xf32> to vector<8x256xf32>
    %326 = arith.mulf %324, %281 : vector<8x256xf32>
    %327 = arith.mulf %323, %322 : vector<8x256xf32>
    %328 = arith.addf %326, %327 : vector<8x256xf32>
    %329 = math.tanh %328 : vector<8x256xf32>
    %330 = arith.mulf %325, %329 : vector<8x256xf32>
    %331 = arith.truncf %330 : vector<8x256xf32> to vector<8x256xbf16>
    %c7_i32 = arith.constant 7 : i32
    %c0_93 = arith.constant 0 : index
    %c0_94 = arith.constant 0 : index
    %332 = vector.load %arg3[%c0_93, %c0_94] : memref<256x1024xbf16, #tpu.memory_space<vmem>>, vector<256x1024xbf16>
    %cst_95 = arith.constant dense<0.000000e+00> : vector<8x1024xf32>
    %333 = tpu.matmul %331, %332, %cst_95 {dimension_numbers = #tpu.dot_dimension_numbers<[1], [0], [0], [1], [0, 0, 1, 1], [], []>} : vector<8x256xbf16>, vector<256x1024xbf16>, vector<8x1024xf32> -> vector<8x1024xf32>
    %334 = arith.index_cast %c7_i32 : i32 to index
    %c0_96 = arith.constant 0 : index
    %c0_97 = arith.constant 0 : index
    %335 = vector.load %arg0[%334, %c0_96, %c0_97] : memref<8x8x1024xf32, #tpu.memory_space<vmem>>, vector<1x8x1024xf32>
    %336 = vector.shape_cast %335 : vector<1x8x1024xf32> to vector<8x1024xf32>
    %c0_98 = arith.constant 0 : index
    %c0_99 = arith.constant 0 : index
    %337 = vector.load %arg1[%c0_98, %c0_99] : memref<256x1024xbf16, #tpu.memory_space<vmem>>, vector<256x1024xbf16>
    %cst_100 = arith.constant dense<0.000000e+00> : vector<8x1024xf32>
    %338 = tpu.matmul %309, %337, %cst_100 {dimension_numbers = #tpu.dot_dimension_numbers<[1], [0], [0], [1], [0, 0, 1, 1], [], []>} : vector<8x256xbf16>, vector<256x1024xbf16>, vector<8x1024xf32> -> vector<8x1024xf32>
    %339 = arith.addf %336, %338 : vector<8x1024xf32>
    %340 = vector.extract_strided_slice %339 {offsets = [0, 0], sizes = [8, 768], strides = [1, 1]} : vector<8x1024xf32> to vector<8x768xf32>
    %341 = arith.negf %340 : vector<8x768xf32>
    %342 = math.exp %341 : vector<8x768xf32>
    %cst_101 = arith.constant 1.000000e+00 : f32
    %343 = vector.broadcast %cst_101 : f32 to vector<8x768xf32>
    %344 = arith.addf %343, %342 : vector<8x768xf32>
    %345 = arith.divf %343, %344 : vector<8x768xf32>
    %346 = vector.extract_strided_slice %339 {offsets = [0, 768], sizes = [8, 256], strides = [1, 1]} : vector<8x1024xf32> to vector<8x256xf32>
    %347 = math.tanh %346 : vector<8x256xf32>
    %348 = vector.extract_strided_slice %345 {offsets = [0, 0], sizes = [8, 256], strides = [1, 1]} : vector<8x768xf32> to vector<8x256xf32>
    %349 = vector.extract_strided_slice %345 {offsets = [0, 256], sizes = [8, 256], strides = [1, 1]} : vector<8x768xf32> to vector<8x256xf32>
    %350 = vector.extract_strided_slice %345 {offsets = [0, 512], sizes = [8, 256], strides = [1, 1]} : vector<8x768xf32> to vector<8x256xf32>
    %351 = arith.mulf %349, %306 : vector<8x256xf32>
    %352 = arith.mulf %348, %347 : vector<8x256xf32>
    %353 = arith.addf %351, %352 : vector<8x256xf32>
    %354 = math.tanh %353 : vector<8x256xf32>
    %355 = arith.mulf %350, %354 : vector<8x256xf32>
    %356 = arith.truncf %355 : vector<8x256xf32> to vector<8x256xbf16>
    %c0_102 = arith.constant 0 : index
    %c0_103 = arith.constant 0 : index
    %357 = vector.load %arg2[%c0_102, %c0_103] : memref<256x1024xbf16, #tpu.memory_space<vmem>>, vector<256x1024xbf16>
    %cst_104 = arith.constant dense<0.000000e+00> : vector<8x1024xf32>
    %358 = tpu.matmul %356, %357, %cst_104 {dimension_numbers = #tpu.dot_dimension_numbers<[1], [0], [0], [1], [0, 0, 1, 1], [], []>} : vector<8x256xbf16>, vector<256x1024xbf16>, vector<8x1024xf32> -> vector<8x1024xf32>
    %359 = arith.addf %333, %358 : vector<8x1024xf32>
    %360 = vector.broadcast %0 : vector<1x1024xf32> to vector<8x1024xf32>
    %361 = arith.addf %359, %360 : vector<8x1024xf32>
    %362 = vector.extract_strided_slice %361 {offsets = [0, 0], sizes = [8, 768], strides = [1, 1]} : vector<8x1024xf32> to vector<8x768xf32>
    %363 = arith.negf %362 : vector<8x768xf32>
    %364 = math.exp %363 : vector<8x768xf32>
    %cst_105 = arith.constant 1.000000e+00 : f32
    %365 = vector.broadcast %cst_105 : f32 to vector<8x768xf32>
    %366 = arith.addf %365, %364 : vector<8x768xf32>
    %367 = arith.divf %365, %366 : vector<8x768xf32>
    %368 = vector.extract_strided_slice %361 {offsets = [0, 768], sizes = [8, 256], strides = [1, 1]} : vector<8x1024xf32> to vector<8x256xf32>
    %369 = math.tanh %368 : vector<8x256xf32>
    %370 = vector.extract_strided_slice %367 {offsets = [0, 0], sizes = [8, 256], strides = [1, 1]} : vector<8x768xf32> to vector<8x256xf32>
    %371 = vector.extract_strided_slice %367 {offsets = [0, 256], sizes = [8, 256], strides = [1, 1]} : vector<8x768xf32> to vector<8x256xf32>
    %372 = vector.extract_strided_slice %367 {offsets = [0, 512], sizes = [8, 256], strides = [1, 1]} : vector<8x768xf32> to vector<8x256xf32>
    %373 = arith.mulf %371, %328 : vector<8x256xf32>
    %374 = arith.mulf %370, %369 : vector<8x256xf32>
    %375 = arith.addf %373, %374 : vector<8x256xf32>
    %376 = math.tanh %375 : vector<8x256xf32>
    %377 = arith.mulf %372, %376 : vector<8x256xf32>
    %378 = arith.truncf %377 : vector<8x256xf32> to vector<8x256xbf16>
    %c8_i32 = arith.constant 8 : i32
    %c0_106 = arith.constant 0 : index
    %c0_107 = arith.constant 0 : index
    %379 = vector.load %arg5[%c0_106, %c0_107] : memref<256x128xbf16, #tpu.memory_space<vmem>>, vector<256x128xbf16>
    %cst_108 = arith.constant dense<0.000000e+00> : vector<8x128xf32>
    %380 = tpu.matmul %378, %379, %cst_108 {dimension_numbers = #tpu.dot_dimension_numbers<[1], [0], [0], [1], [0, 0, 1, 1], [], []>} : vector<8x256xbf16>, vector<256x128xbf16>, vector<8x128xf32> -> vector<8x128xf32>
    %c0_109 = arith.constant 0 : index
    %c0_110 = arith.constant 0 : index
    %381 = vector.load %arg6[%c0_109, %c0_110] : memref<1x128xf32, #tpu.memory_space<vmem>>, vector<1x128xf32>
    %382 = vector.broadcast %381 : vector<1x128xf32> to vector<8x128xf32>
    %383 = arith.addf %380, %382 : vector<8x128xf32>
    %c0_111 = arith.constant 0 : index
    %c0_112 = arith.constant 0 : index
    %384 = vector.load %arg7[%c0_111, %c0_112] : memref<8x128xf32, #tpu.memory_space<vmem>>, vector<8x128xf32>
    tpu.vector_store %arg7[%c0_111, %c0_112], %383 {strides = array<i32>} : memref<8x128xf32, #tpu.memory_space<vmem>>, vector<8x128xf32>,
    return
  }
}

</mosaic_0001>

<llo_original>
// kernel: tpu_custom_call.1
$region0: #{tpu_custom_call.1}
  #allocation0 [shape = 'u32[]', space=smem, size = 0x4, offset = 0x4, fixed_abs, tag = 'smem constant byte address 0x4 - core index']
  #allocation1 [shape = 'u32[144,128]{1,0:T(1,128)}', space=vmem, size = 0x12000, scoped, tag = 'internal scratch']
  %s0 = inlined_call_operand.hbm [shape: f32[8,8,1024], index: 0, kind: input, shape index: {}]
  %s1 = inlined_call_operand.hbm [shape: bf16[256,1024], index: 1, kind: input, shape index: {}]
  %s2 = inlined_call_operand.hbm [shape: bf16[256,1024], index: 2, kind: input, shape index: {}]
  %s3 = inlined_call_operand.hbm [shape: bf16[256,1024], index: 3, kind: input, shape index: {}]
  %s4 = inlined_call_operand.vmem [shape: f32[1,1024], index: 4, kind: input, shape index: {}]
  %s5 = inlined_call_operand.hbm [shape: bf16[256,128], index: 5, kind: input, shape index: {}]
  %s6 = inlined_call_operand.vmem [shape: f32[1,128], index: 6, kind: input, shape index: {}]
  %s7 = inlined_call_operand.hbm [shape: f32[8,128], index: 7, kind: output, shape index: {}]
  %s8 = sld [smem:[#allocation0]]
  $region58: #{tpu_custom_call.1} parent=0
    _
  %s10 = ssub.s32 1, %s8
  %s11 = scalar_select 0, %s10, %s8
  $region1: #{tpu_custom_call.1} parent=0
    #allocation2 [shape = 'u8[262144]{0}', space=vmem, size = 0x40000, scoped, tag = 'input window, operand 0, single buffered']
    #allocation3 [shape = 's32[1]{0}', space=sflag, size = 0x4, scoped, tag = 'scoped memory for tpu_custom_call.1']
    #allocation4 [shape = 's32[1]{0}', space=sflag, size = 0x4, scoped, tag = 'scoped memory for tpu_custom_call.1']
    #allocation5 [shape = 'u8[524288]{0}', space=vmem, size = 0x80000, scoped, tag = 'input window, operand 1, single buffered']
    #allocation6 [shape = 's32[1]{0}', space=sflag, size = 0x4, scoped, tag = 'scoped memory for tpu_custom_call.1']
    #allocation7 [shape = 'u8[524288]{0}', space=vmem, size = 0x80000, scoped, tag = 'input window, operand 2, single buffered']
    #allocation8 [shape = 'u8[524288]{0}', space=vmem, size = 0x80000, scoped, tag = 'input window, operand 3, single buffered']
    #allocation9 [shape = 's32[1]{0}', space=sflag, size = 0x4, scoped, tag = 'scoped memory for tpu_custom_call.1']
    #allocation10 [shape = 'u8[65536]{0}', space=vmem, size = 0x10000, scoped, tag = 'input window, operand 5, single buffered']
    #allocation11 [shape = 'u8[4096]{0}', space=vmem, size = 0x1000, scoped, tag = 'output window, operand 0, single buffered']
    %12 = vsyncpa [#allocation3], 0
    %13 = vsyncpa [#allocation6], 0
    %14 = vsyncpa [#allocation9], 0
    %15 = vsyncpa [#allocation4], 0
    // Predicated region
    $region2: #{tpu_custom_call.1} parent=1 // pred_check
      _
    $region3: #{tpu_custom_call.1} parent=1 // pred_check_branch
      %17 = sbr.rel (0) target = $region5
    $region4: #{tpu_custom_call.1} parent=1 // pred_region
      %s19 = ssub.s32 8192, 8192
      %20 = vsyncadd [#allocation3], %s19
      %s21 = sshll.u32 [#allocation2], 4
      %s22 = int_to_ptr.vmem [resolvable:$true] %s21
      %27 = dma.hbm_to_vmem [thread:$0]  %s0, 8192, %s22, [#allocation3], 1024, 1024, 64
    $region5: #{tpu_custom_call.1} parent=1 // pred_fallthru
      _
    // Predicated region
    $region6: #{tpu_custom_call.1} parent=1 // pred_check
      _
    $region7: #{tpu_custom_call.1} parent=1 // pred_check_branch
      %29 = sbr.rel (0) target = $region9
    $region8: #{tpu_custom_call.1} parent=1 // pred_region
      %s31 = ssub.s32 16384, 16384
      %32 = vsyncadd [#allocation6], %s31
      %s33 = sshll.u32 [#allocation5], 4
      %s34 = int_to_ptr.vmem [resolvable:$true] %s33
      %39 = dma.hbm_to_vmem [thread:$0]  %s1, 16384, %s34, [#allocation6], 512, 512, 32
    $region9: #{tpu_custom_call.1} parent=1 // pred_fallthru
      _
    // Predicated region
    $region10: #{tpu_custom_call.1} parent=1 // pred_check
      _
    $region11: #{tpu_custom_call.1} parent=1 // pred_check_branch
      %41 = sbr.rel (0) target = $region13
    $region12: #{tpu_custom_call.1} parent=1 // pred_region
      %s43 = ssub.s32 16384, 16384
      %44 = vsyncadd [#allocation6], %s43
      %s45 = sshll.u32 [#allocation7], 4
      %s46 = int_to_ptr.vmem [resolvable:$true] %s45
      %51 = dma.hbm_to_vmem [thread:$0]  %s2, 16384, %s46, [#allocation6], 512, 512, 32
    $region13: #{tpu_custom_call.1} parent=1 // pred_fallthru
      _
    // Predicated region
    $region14: #{tpu_custom_call.1} parent=1 // pred_check
      _
    $region15: #{tpu_custom_call.1} parent=1 // pred_check_branch
      %53 = sbr.rel (0) target = $region17
    $region16: #{tpu_custom_call.1} parent=1 // pred_region
      %s55 = ssub.s32 16384, 16384
      %56 = vsyncadd [#allocation9], %s55
      %s57 = sshll.u32 [#allocation8], 4
      %s58 = int_to_ptr.vmem [resolvable:$true] %s57
      %63 = dma.hbm_to_vmem [thread:$0]  %s3, 16384, %s58, [#allocation9], 512, 512, 32
    $region17: #{tpu_custom_call.1} parent=1 // pred_fallthru
      _
    // Predicated region
    $region18: #{tpu_custom_call.1} parent=1 // pred_check
      _
    $region19: #{tpu_custom_call.1} parent=1 // pred_check_branch
      %65 = sbr.rel (0) target = $region21
    $region20: #{tpu_custom_call.1} parent=1 // pred_region
      _
    $region21: #{tpu_custom_call.1} parent=1 // pred_fallthru
      _
    // Predicated region
    $region22: #{tpu_custom_call.1} parent=1 // pred_check
      _
    $region23: #{tpu_custom_call.1} parent=1 // pred_check_branch
      %67 = sbr.rel (0) target = $region25
    $region24: #{tpu_custom_call.1} parent=1 // pred_region
      %s69 = ssub.s32 2048, 2048
      %70 = vsyncadd [#allocation9], %s69
      %s71 = sshll.u32 [#allocation10], 4
      %s72 = int_to_ptr.vmem [resolvable:$true] %s71
      %77 = dma.hbm_to_vmem [thread:$0]  %s5, 2048, %s72, [#allocation9], 64, 64, 4
    $region25: #{tpu_custom_call.1} parent=1 // pred_fallthru
      _
    // Predicated region
    $region26: #{tpu_custom_call.1} parent=1 // pred_check
      _
    $region27: #{tpu_custom_call.1} parent=1 // pred_check_branch
      %79 = sbr.rel (0) target = $region29
    $region28: #{tpu_custom_call.1} parent=1 // pred_region
      _
    $region29: #{tpu_custom_call.1} parent=1 // pred_fallthru
      _
    // Predicated region
    $region30: #{tpu_custom_call.1} parent=1 // pred_check
      _
    $region31: #{tpu_custom_call.1} parent=1 // pred_check_branch
      %81 = sbr.rel (0) target = $region33
    $region32: #{tpu_custom_call.1} parent=1 // pred_region
      %82 = dma.done [#allocation3], 8192
    $region33: #{tpu_custom_call.1} parent=1 // pred_fallthru
      _
    // Predicated region
    $region34: #{tpu_custom_call.1} parent=1 // pred_check
      _
    $region35: #{tpu_custom_call.1} parent=1 // pred_check_branch
      %84 = sbr.rel (0) target = $region37
    $region36: #{tpu_custom_call.1} parent=1 // pred_region
      %85 = dma.done [#allocation6], 16384
    $region37: #{tpu_custom_call.1} parent=1 // pred_fallthru
      _
    // Predicated region
    $region38: #{tpu_custom_call.1} parent=1 // pred_check
      _
    $region39: #{tpu_custom_call.1} parent=1 // pred_check_branch
      %87 = sbr.rel (0) target = $region41
    $region40: #{tpu_custom_call.1} parent=1 // pred_region
      %88 = dma.done [#allocation6], 16384
    $region41: #{tpu_custom_call.1} parent=1 // pred_fallthru
      _
    // Predicated region
    $region42: #{tpu_custom_call.1} parent=1 // pred_check
      _
    $region43: #{tpu_custom_call.1} parent=1 // pred_check_branch
      %90 = sbr.rel (0) target = $region45
    $region44: #{tpu_custom_call.1} parent=1 // pred_region
      %91 = dma.done [#allocation9], 16384
    $region45: #{tpu_custom_call.1} parent=1 // pred_fallthru
      _
    // Predicated region
    $region46: #{tpu_custom_call.1} parent=1 // pred_check
      _
    $region47: #{tpu_custom_call.1} parent=1 // pred_check_branch
      %93 = sbr.rel (0) target = $region49
    $region48: #{tpu_custom_call.1} parent=1 // pred_region
      %94 = dma.done [#allocation9], 2048
    $region49: #{tpu_custom_call.1} parent=1 // pred_fallthru
      _
    %v96 = vld [vmem:[%s4] sm:$0xff]
    %v97 = vld [vmem:[#allocation8] sm:$0xff]
    %v98 = vld [vmem:[#allocation8 + $0x8] sm:$0xff]
    %v99 = vld [vmem:[#allocation8 + $0x10] sm:$0xff]
    %v100 = vld [vmem:[#allocation8 + $0x18] sm:$0xff]
    %v101 = vld [vmem:[#allocation8 + $0x20] sm:$0xff]
    %v102 = vld [vmem:[#allocation8 + $0x28] sm:$0xff]
    %v103 = vld [vmem:[#allocation8 + $0x30] sm:$0xff]
    %v104 = vld [vmem:[#allocation8 + $0x38] sm:$0xff]
    %v105 = vld [vmem:[#allocation8 + $0x40] sm:$0xff]
    %v106 = vld [vmem:[#allocation8 + $0x48] sm:$0xff]
    %v107 = vld [vmem:[#allocation8 + $0x50] sm:$0xff]
    %v108 = vld [vmem:[#allocation8 + $0x58] sm:$0xff]
    %v109 = vld [vmem:[#allocation8 + $0x60] sm:$0xff]
    %v110 = vld [vmem:[#allocation8 + $0x68] sm:$0xff]
    %v111 = vld [vmem:[#allocation8 + $0x70] sm:$0xff]
    %v112 = vld [vmem:[#allocation8 + $0x78] sm:$0xff]
    %v113 = vld [vmem:[#allocation8 + $0x80] sm:$0xff]
    %v114 = vld [vmem:[#allocation8 + $0x88] sm:$0xff]
    %v115 = vld [vmem:[#allocation8 + $0x90] sm:$0xff]
    %v116 = vld [vmem:[#allocation8 + $0x98] sm:$0xff]
    %v117 = vld [vmem:[#allocation8 + $0xa0] sm:$0xff]
    %v118 = vld [vmem:[#allocation8 + $0xa8] sm:$0xff]
    %v119 = vld [vmem:[#allocation8 + $0xb0] sm:$0xff]
    %v120 = vld [vmem:[#allocation8 + $0xb8] sm:$0xff]
    %v121 = vld [vmem:[#allocation8 + $0xc0] sm:$0xff]
    %v122 = vld [vmem:[#allocation8 + $0xc8] sm:$0xff]
    %v123 = vld [vmem:[#allocation8 + $0xd0] sm:$0xff]
    %v124 = vld [vmem:[#allocation8 + $0xd8] sm:$0xff]
    %v125 = vld [vmem:[#allocation8 + $0xe0] sm:$0xff]
    %v126 = vld [vmem:[#allocation8 + $0xe8] sm:$0xff]
    %v127 = vld [vmem:[#allocation8 + $0xf0] sm:$0xff]
    %v128 = vld [vmem:[#allocation8 + $0xf8] sm:$0xff]
    %v129 = vld [vmem:[#allocation8 + $0x100] sm:$0xff]
    %v130 = vld [vmem:[#allocation8 + $0x108] sm:$0xff]
    %v131 = vld [vmem:[#allocation8 + $0x110] sm:$0xff]
    %v132 = vld [vmem:[#allocation8 + $0x118] sm:$0xff]
    %v133 = vld [vmem:[#allocation8 + $0x120] sm:$0xff]
    %v134 = vld [vmem:[#allocation8 + $0x128] sm:$0xff]
    %v135 = vld [vmem:[#allocation8 + $0x130] sm:$0xff]
    %v136 = vld [vmem:[#allocation8 + $0x138] sm:$0xff]
    %v137 = vld [vmem:[#allocation8 + $0x140] sm:$0xff]
    %v138 = vld [vmem:[#allocation8 + $0x148] sm:$0xff]
    %v139 = vld [vmem:[#allocation8 + $0x150] sm:$0xff]
    %v140 = vld [vmem:[#allocation8 + $0x158] sm:$0xff]
    %v141 = vld [vmem:[#allocation8 + $0x160] sm:$0xff]
    %v142 = vld [vmem:[#allocation8 + $0x168] sm:$0xff]
    %v143 = vld [vmem:[#allocation8 + $0x170] sm:$0xff]
    %v144 = vld [vmem:[#allocation8 + $0x178] sm:$0xff]
    %v145 = vld [vmem:[#allocation8 + $0x180] sm:$0xff]
    %v146 = vld [vmem:[#allocation8 + $0x188] sm:$0xff]
    %v147 = vld [vmem:[#allocation8 + $0x190] sm:$0xff]
    %v148 = vld [vmem:[#allocation8 + $0x198] sm:$0xff]
    %v149 = vld [vmem:[#allocation8 + $0x1a0] sm:$0xff]
    %v150 = vld [vmem:[#allocation8 + $0x1a8] sm:$0xff]
    %v151 = vld [vmem:[#allocation8 + $0x1b0] sm:$0xff]
    %v152 = vld [vmem:[#allocation8 + $0x1b8] sm:$0xff]
    %v153 = vld [vmem:[#allocation8 + $0x1c0] sm:$0xff]
    %v154 = vld [vmem:[#allocation8 + $0x1c8] sm:$0xff]
    %v155 = vld [vmem:[#allocation8 + $0x1d0] sm:$0xff]
    %v156 = vld [vmem:[#allocation8 + $0x1d8] sm:$0xff]
    %v157 = vld [vmem:[#allocation8 + $0x1e0] sm:$0xff]
    %v158 = vld [vmem:[#allocation8 + $0x1e8] sm:$0xff]
    %v159 = vld [vmem:[#allocation8 + $0x1f0] sm:$0xff]
    %v160 = vld [vmem:[#allocation8 + $0x1f8] sm:$0xff]
    %v161 = vld [vmem:[#allocation8 + $0x200] sm:$0xff]
    %v162 = vld [vmem:[#allocation8 + $0x208] sm:$0xff]
    %v163 = vld [vmem:[#allocation8 + $0x210] sm:$0xff]
    %v164 = vld [vmem:[#allocation8 + $0x218] sm:$0xff]
    %v165 = vld [vmem:[#allocation8 + $0x220] sm:$0xff]
    %v166 = vld [vmem:[#allocation8 + $0x228] sm:$0xff]
    %v167 = vld [vmem:[#allocation8 + $0x230] sm:$0xff]
    %v168 = vld [vmem:[#allocation8 + $0x238] sm:$0xff]
    %v169 = vld [vmem:[#allocation8 + $0x240] sm:$0xff]
    %v170 = vld [vmem:[#allocation8 + $0x248] sm:$0xff]
    %v171 = vld [vmem:[#allocation8 + $0x250] sm:$0xff]
    %v172 = vld [vmem:[#allocation8 + $0x258] sm:$0xff]
    %v173 = vld [vmem:[#allocation8 + $0x260] sm:$0xff]
    %v174 = vld [vmem:[#allocation8 + $0x268] sm:$0xff]
    %v175 = vld [vmem:[#allocation8 + $0x270] sm:$0xff]
    %v176 = vld [vmem:[#allocation8 + $0x278] sm:$0xff]
    %v177 = vld [vmem:[#allocation8 + $0x280] sm:$0xff]
    %v178 = vld [vmem:[#allocation8 + $0x288] sm:$0xff]
    %v179 = vld [vmem:[#allocation8 + $0x290] sm:$0xff]
    %v180 = vld [vmem:[#allocation8 + $0x298] sm:$0xff]
    %v181 = vld [vmem:[#allocation8 + $0x2a0] sm:$0xff]
    %v182 = vld [vmem:[#allocation8 + $0x2a8] sm:$0xff]
    %v183 = vld [vmem:[#allocation8 + $0x2b0] sm:$0xff]
    %v184 = vld [vmem:[#allocation8 + $0x2b8] sm:$0xff]
    %v185 = vld [vmem:[#allocation8 + $0x2c0] sm:$0xff]
    %v186 = vld [vmem:[#allocation8 + $0x2c8] sm:$0xff]
    %v187 = vld [vmem:[#allocation8 + $0x2d0] sm:$0xff]
    %v188 = vld [vmem:[#allocation8 + $0x2d8] sm:$0xff]
    %v189 = vld [vmem:[#allocation8 + $0x2e0] sm:$0xff]
    %v190 = vld [vmem:[#allocation8 + $0x2e8] sm:$0xff]
    %v191 = vld [vmem:[#allocation8 + $0x2f0] sm:$0xff]
    %v192 = vld [vmem:[#allocation8 + $0x2f8] sm:$0xff]
    %v193 = vld [vmem:[#allocation8 + $0x300] sm:$0xff]
    %v194 = vld [vmem:[#allocation8 + $0x308] sm:$0xff]
    %v195 = vld [vmem:[#allocation8 + $0x310] sm:$0xff]
    %v196 = vld [vmem:[#allocation8 + $0x318] sm:$0xff]
    %v197 = vld [vmem:[#allocation8 + $0x320] sm:$0xff]
    %v198 = vld [vmem:[#allocation8 + $0x328] sm:$0xff]
    %v199 = vld [vmem:[#allocation8 + $0x330] sm:$0xff]
    %v200 = vld [vmem:[#allocation8 + $0x338] sm:$0xff]
    %v201 = vld [vmem:[#allocation8 + $0x340] sm:$0xff]
    %v202 = vld [vmem:[#allocation8 + $0x348] sm:$0xff]
    %v203 = vld [vmem:[#allocation8 + $0x350] sm:$0xff]
    %v204 = vld [vmem:[#allocation8 + $0x358] sm:$0xff]
    %v205 = vld [vmem:[#allocation8 + $0x360] sm:$0xff]
    %v206 = vld [vmem:[#allocation8 + $0x368] sm:$0xff]
    %v207 = vld [vmem:[#allocation8 + $0x370] sm:$0xff]
    %v208 = vld [vmem:[#allocation8 + $0x378] sm:$0xff]
    %v209 = vld [vmem:[#allocation8 + $0x380] sm:$0xff]
    %v210 = vld [vmem:[#allocation8 + $0x388] sm:$0xff]
    %v211 = vld [vmem:[#allocation8 + $0x390] sm:$0xff]
    %v212 = vld [vmem:[#allocation8 + $0x398] sm:$0xff]
    %v213 = vld [vmem:[#allocation8 + $0x3a0] sm:$0xff]
    %v214 = vld [vmem:[#allocation8 + $0x3a8] sm:$0xff]
    %v215 = vld [vmem:[#allocation8 + $0x3b0] sm:$0xff]
    %v216 = vld [vmem:[#allocation8 + $0x3b8] sm:$0xff]
    %v217 = vld [vmem:[#allocation8 + $0x3c0] sm:$0xff]
    %v218 = vld [vmem:[#allocation8 + $0x3c8] sm:$0xff]
    %v219 = vld [vmem:[#allocation8 + $0x3d0] sm:$0xff]
    %v220 = vld [vmem:[#allocation8 + $0x3d8] sm:$0xff]
    %v221 = vld [vmem:[#allocation8 + $0x3e0] sm:$0xff]
    %v222 = vld [vmem:[#allocation8 + $0x3e8] sm:$0xff]
    %v223 = vld [vmem:[#allocation8 + $0x3f0] sm:$0xff]
    %v224 = vld [vmem:[#allocation8 + $0x3f8] sm:$0xff]
    %v225 = vld [vmem:[#allocation2] sm:$0xff]
    %v226 = vld [vmem:[#allocation2 + $0x8] sm:$0xff]
    %v227 = vld [vmem:[#allocation2 + $0x10] sm:$0xff]
    %v228 = vld [vmem:[#allocation2 + $0x18] sm:$0xff]
    %v229 = vld [vmem:[#allocation2 + $0x20] sm:$0xff]
    %v230 = vld [vmem:[#allocation2 + $0x28] sm:$0xff]
    %v231 = vld [vmem:[#allocation2 + $0x30] sm:$0xff]
    %v232 = vld [vmem:[#allocation2 + $0x38] sm:$0xff]
    %v233 = vld [vmem:[#allocation5] sm:$0xff]
    %v234 = vld [vmem:[#allocation5 + $0x8] sm:$0xff]
    %v235 = vld [vmem:[#allocation5 + $0x10] sm:$0xff]
    %v236 = vld [vmem:[#allocation5 + $0x18] sm:$0xff]
    %v237 = vld [vmem:[#allocation5 + $0x20] sm:$0xff]
    %v238 = vld [vmem:[#allocation5 + $0x28] sm:$0xff]
    %v239 = vld [vmem:[#allocation5 + $0x30] sm:$0xff]
    %v240 = vld [vmem:[#allocation5 + $0x38] sm:$0xff]
    %v241 = vld [vmem:[#allocation5 + $0x40] sm:$0xff]
    %v242 = vld [vmem:[#allocation5 + $0x48] sm:$0xff]
    %v243 = vld [vmem:[#allocation5 + $0x50] sm:$0xff]
    %v244 = vld [vmem:[#allocation5 + $0x58] sm:$0xff]
    %v245 = vld [vmem:[#allocation5 + $0x60] sm:$0xff]
    %v246 = vld [vmem:[#allocation5 + $0x68] sm:$0xff]
    %v247 = vld [vmem:[#allocation5 + $0x70] sm:$0xff]
    %v248 = vld [vmem:[#allocation5 + $0x78] sm:$0xff]
    %v249 = vld [vmem:[#allocation5 + $0x80] sm:$0xff]
    %v250 = vld [vmem:[#allocation5 + $0x88] sm:$0xff]
    %v251 = vld [vmem:[#allocation5 + $0x90] sm:$0xff]
    %v252 = vld [vmem:[#allocation5 + $0x98] sm:$0xff]
    %v253 = vld [vmem:[#allocation5 + $0xa0] sm:$0xff]
    %v254 = vld [vmem:[#allocation5 + $0xa8] sm:$0xff]
    %v255 = vld [vmem:[#allocation5 + $0xb0] sm:$0xff]
    %v256 = vld [vmem:[#allocation5 + $0xb8] sm:$0xff]
    %v257 = vld [vmem:[#allocation5 + $0xc0] sm:$0xff]
    %v258 = vld [vmem:[#allocation5 + $0xc8] sm:$0xff]
    %v259 = vld [vmem:[#allocation5 + $0xd0] sm:$0xff]
    %v260 = vld [vmem:[#allocation5 + $0xd8] sm:$0xff]
    %v261 = vld [vmem:[#allocation5 + $0xe0] sm:$0xff]
    %v262 = vld [vmem:[#allocation5 + $0xe8] sm:$0xff]
    %v263 = vld [vmem:[#allocation5 + $0xf0] sm:$0xff]
    %v264 = vld [vmem:[#allocation5 + $0xf8] sm:$0xff]
    %v265 = vld [vmem:[#allocation5 + $0x100] sm:$0xff]
    %v266 = vld [vmem:[#allocation5 + $0x108] sm:$0xff]
    %v267 = vld [vmem:[#allocation5 + $0x110] sm:$0xff]
    %v268 = vld [vmem:[#allocation5 + $0x118] sm:$0xff]
    %v269 = vld [vmem:[#allocation5 + $0x120] sm:$0xff]
    %v270 = vld [vmem:[#allocation5 + $0x128] sm:$0xff]
    %v271 = vld [vmem:[#allocation5 + $0x130] sm:$0xff]
    %v272 = vld [vmem:[#allocation5 + $0x138] sm:$0xff]
    %v273 = vld [vmem:[#allocation5 + $0x140] sm:$0xff]
    %v274 = vld [vmem:[#allocation5 + $0x148] sm:$0xff]
    %v275 = vld [vmem:[#allocation5 + $0x150] sm:$0xff]
    %v276 = vld [vmem:[#allocation5 + $0x158] sm:$0xff]
    %v277 = vld [vmem:[#allocation5 + $0x160] sm:$0xff]
    %v278 = vld [vmem:[#allocation5 + $0x168] sm:$0xff]
    %v279 = vld [vmem:[#allocation5 + $0x170] sm:$0xff]
    %v280 = vld [vmem:[#allocation5 + $0x178] sm:$0xff]
    %v281 = vld [vmem:[#allocation5 + $0x180] sm:$0xff]
    %v282 = vld [vmem:[#allocation5 + $0x188] sm:$0xff]
    %v283 = vld [vmem:[#allocation5 + $0x190] sm:$0xff]
    %v284 = vld [vmem:[#allocation5 + $0x198] sm:$0xff]
    %v285 = vld [vmem:[#allocation5 + $0x1a0] sm:$0xff]
    %v286 = vld [vmem:[#allocation5 + $0x1a8] sm:$0xff]
    %v287 = vld [vmem:[#allocation5 + $0x1b0] sm:$0xff]
    %v288 = vld [vmem:[#allocation5 + $0x1b8] sm:$0xff]
    %v289 = vld [vmem:[#allocation5 + $0x1c0] sm:$0xff]
    %v290 = vld [vmem:[#allocation5 + $0x1c8] sm:$0xff]
    %v291 = vld [vmem:[#allocation5 + $0x1d0] sm:$0xff]
    %v292 = vld [vmem:[#allocation5 + $0x1d8] sm:$0xff]
    %v293 = vld [vmem:[#allocation5 + $0x1e0] sm:$0xff]
    %v294 = vld [vmem:[#allocation5 + $0x1e8] sm:$0xff]
    %v295 = vld [vmem:[#allocation5 + $0x1f0] sm:$0xff]
    %v296 = vld [vmem:[#allocation5 + $0x1f8] sm:$0xff]
    %v297 = vld [vmem:[#allocation5 + $0x200] sm:$0xff]
    %v298 = vld [vmem:[#allocation5 + $0x208] sm:$0xff]
    %v299 = vld [vmem:[#allocation5 + $0x210] sm:$0xff]
    %v300 = vld [vmem:[#allocation5 + $0x218] sm:$0xff]
    %v301 = vld [vmem:[#allocation5 + $0x220] sm:$0xff]
    %v302 = vld [vmem:[#allocation5 + $0x228] sm:$0xff]
    %v303 = vld [vmem:[#allocation5 + $0x230] sm:$0xff]
    %v304 = vld [vmem:[#allocation5 + $0x238] sm:$0xff]
    %v305 = vld [vmem:[#allocation5 + $0x240] sm:$0xff]
    %v306 = vld [vmem:[#allocation5 + $0x248] sm:$0xff]
    %v307 = vld [vmem:[#allocation5 + $0x250] sm:$0xff]
    %v308 = vld [vmem:[#allocation5 + $0x258] sm:$0xff]
    %v309 = vld [vmem:[#allocation5 + $0x260] sm:$0xff]
    %v310 = vld [vmem:[#allocation5 + $0x268] sm:$0xff]
    %v311 = vld [vmem:[#allocation5 + $0x270] sm:$0xff]
    %v312 = vld [vmem:[#allocation5 + $0x278] sm:$0xff]
    %v313 = vld [vmem:[#allocation5 + $0x280] sm:$0xff]
    %v314 = vld [vmem:[#allocation5 + $0x288] sm:$0xff]
    %v315 = vld [vmem:[#allocation5 + $0x290] sm:$0xff]
    %v316 = vld [vmem:[#allocation5 + $0x298] sm:$0xff]
    %v317 = vld [vmem:[#allocation5 + $0x2a0] sm:$0xff]
    %v318 = vld [vmem:[#allocation5 + $0x2a8] sm:$0xff]
    %v319 = vld [vmem:[#allocation5 + $0x2b0] sm:$0xff]
    %v320 = vld [vmem:[#allocation5 + $0x2b8] sm:$0xff]
    %v321 = vld [vmem:[#allocation5 + $0x2c0] sm:$0xff]
    %v322 = vld [vmem:[#allocation5 + $0x2c8] sm:$0xff]
    %v323 = vld [vmem:[#allocation5 + $0x2d0] sm:$0xff]
    %v324 = vld [vmem:[#allocation5 + $0x2d8] sm:$0xff]
    %v325 = vld [vmem:[#allocation5 + $0x2e0] sm:$0xff]
    %v326 = vld [vmem:[#allocation5 + $0x2e8] sm:$0xff]
    %v327 = vld [vmem:[#allocation5 + $0x2f0] sm:$0xff]
    %v328 = vld [vmem:[#allocation5 + $0x2f8] sm:$0xff]
    %v329 = vld [vmem:[#allocation5 + $0x300] sm:$0xff]
    %v330 = vld [vmem:[#allocation5 + $0x308] sm:$0xff]
    %v331 = vld [vmem:[#allocation5 + $0x310] sm:$0xff]
    %v332 = vld [vmem:[#allocation5 + $0x318] sm:$0xff]
    %v333 = vld [vmem:[#allocation5 + $0x320] sm:$0xff]
    %v334 = vld [vmem:[#allocation5 + $0x328] sm:$0xff]
    %v335 = vld [vmem:[#allocation5 + $0x330] sm:$0xff]
    %v336 = vld [vmem:[#allocation5 + $0x338] sm:$0xff]
    %v337 = vld [vmem:[#allocation5 + $0x340] sm:$0xff]
    %v338 = vld [vmem:[#allocation5 + $0x348] sm:$0xff]
    %v339 = vld [vmem:[#allocation5 + $0x350] sm:$0xff]
    %v340 = vld [vmem:[#allocation5 + $0x358] sm:$0xff]
    %v341 = vld [vmem:[#allocation5 + $0x360] sm:$0xff]
    %v342 = vld [vmem:[#allocation5 + $0x368] sm:$0xff]
    %v343 = vld [vmem:[#allocation5 + $0x370] sm:$0xff]
    %v344 = vld [vmem:[#allocation5 + $0x378] sm:$0xff]
    %v345 = vld [vmem:[#allocation5 + $0x380] sm:$0xff]
    %v346 = vld [vmem:[#allocation5 + $0x388] sm:$0xff]
    %v347 = vld [vmem:[#allocation5 + $0x390] sm:$0xff]
    %v348 = vld [vmem:[#allocation5 + $0x398] sm:$0xff]
    %v349 = vld [vmem:[#allocation5 + $0x3a0] sm:$0xff]
    %v350 = vld [vmem:[#allocation5 + $0x3a8] sm:$0xff]
    %v351 = vld [vmem:[#allocation5 + $0x3b0] sm:$0xff]
    %v352 = vld [vmem:[#allocation5 + $0x3b8] sm:$0xff]
    %v353 = vld [vmem:[#allocation5 + $0x3c0] sm:$0xff]
    %v354 = vld [vmem:[#allocation5 + $0x3c8] sm:$0xff]
    %v355 = vld [vmem:[#allocation5 + $0x3d0] sm:$0xff]
    %v356 = vld [vmem:[#allocation5 + $0x3d8] sm:$0xff]
    %v357 = vld [vmem:[#allocation5 + $0x3e0] sm:$0xff]
    %v358 = vld [vmem:[#allocation5 + $0x3e8] sm:$0xff]
    %v359 = vld [vmem:[#allocation5 + $0x3f0] sm:$0xff]
    %v360 = vld [vmem:[#allocation5 + $0x3f8] sm:$0xff]
    %v489 = vunpack.c.l.b16 %v233
    %v490 = vunpack.c.h.b16 %v233
    %v491 = vunpack.c.l.b16 %v234
    %v492 = vunpack.c.h.b16 %v234
    %v493 = vunpack.c.l.b16 %v235
    %v494 = vunpack.c.h.b16 %v235
    %v495 = vunpack.c.l.b16 %v236
    %v496 = vunpack.c.h.b16 %v236
    %v497 = vunpack.c.l.b16 %v237
    %v498 = vunpack.c.h.b16 %v237
    %v499 = vunpack.c.l.b16 %v238
    %v500 = vunpack.c.h.b16 %v238
    %v501 = vunpack.c.l.b16 %v239
    %v502 = vunpack.c.h.b16 %v239
    %v503 = vunpack.c.l.b16 %v240
    %v504 = vunpack.c.h.b16 %v240
    %v505 = vunpack.c.l.b16 %v241
    %v506 = vunpack.c.h.b16 %v241
    %v507 = vunpack.c.l.b16 %v242
    %v508 = vunpack.c.h.b16 %v242
    %v509 = vunpack.c.l.b16 %v243
    %v510 = vunpack.c.h.b16 %v243
    %v511 = vunpack.c.l.b16 %v244
    %v512 = vunpack.c.h.b16 %v244
    %v513 = vunpack.c.l.b16 %v245
    %v514 = vunpack.c.h.b16 %v245
    %v515 = vunpack.c.l.b16 %v246
    %v516 = vunpack.c.h.b16 %v246
    %v517 = vunpack.c.l.b16 %v247
    %v518 = vunpack.c.h.b16 %v247
    %v519 = vunpack.c.l.b16 %v248
    %v520 = vunpack.c.h.b16 %v248
    %v521 = vunpack.c.l.b16 %v249
    %v522 = vunpack.c.h.b16 %v249
    %v523 = vunpack.c.l.b16 %v250
    %v524 = vunpack.c.h.b16 %v250
    %v525 = vunpack.c.l.b16 %v251
    %v526 = vunpack.c.h.b16 %v251
    %v527 = vunpack.c.l.b16 %v252
    %v528 = vunpack.c.h.b16 %v252
    %v529 = vunpack.c.l.b16 %v253
    %v530 = vunpack.c.h.b16 %v253
    %v531 = vunpack.c.l.b16 %v254
    %v532 = vunpack.c.h.b16 %v254
    %v533 = vunpack.c.l.b16 %v255
    %v534 = vunpack.c.h.b16 %v255
    %v535 = vunpack.c.l.b16 %v256
    %v536 = vunpack.c.h.b16 %v256
    %v537 = vunpack.c.l.b16 %v257
    %v538 = vunpack.c.h.b16 %v257
    %v539 = vunpack.c.l.b16 %v258
    %v540 = vunpack.c.h.b16 %v258
    %v541 = vunpack.c.l.b16 %v259
    %v542 = vunpack.c.h.b16 %v259
    %v543 = vunpack.c.l.b16 %v260
    %v544 = vunpack.c.h.b16 %v260
    %v545 = vunpack.c.l.b16 %v261
    %v546 = vunpack.c.h.b16 %v261
    %v547 = vunpack.c.l.b16 %v262
    %v548 = vunpack.c.h.b16 %v262
    %v549 = vunpack.c.l.b16 %v263
    %v550 = vunpack.c.h.b16 %v263
    %v551 = vunpack.c.l.b16 %v264
    %v552 = vunpack.c.h.b16 %v264
    %v553 = vunpack.c.l.b16 %v265
    %v554 = vunpack.c.h.b16 %v265
    %v555 = vunpack.c.l.b16 %v266
    %v556 = vunpack.c.h.b16 %v266
    %v557 = vunpack.c.l.b16 %v267
    %v558 = vunpack.c.h.b16 %v267
    %v559 = vunpack.c.l.b16 %v268
    %v560 = vunpack.c.h.b16 %v268
    %v561 = vunpack.c.l.b16 %v269
    %v562 = vunpack.c.h.b16 %v269
    %v563 = vunpack.c.l.b16 %v270
    %v564 = vunpack.c.h.b16 %v270
    %v565 = vunpack.c.l.b16 %v271
    %v566 = vunpack.c.h.b16 %v271
    %v567 = vunpack.c.l.b16 %v272
    %v568 = vunpack.c.h.b16 %v272
    %v569 = vunpack.c.l.b16 %v273
    %v570 = vunpack.c.h.b16 %v273
    %v571 = vunpack.c.l.b16 %v274
    %v572 = vunpack.c.h.b16 %v274
    %v573 = vunpack.c.l.b16 %v275
    %v574 = vunpack.c.h.b16 %v275
    %v575 = vunpack.c.l.b16 %v276
    %v576 = vunpack.c.h.b16 %v276
    %v577 = vunpack.c.l.b16 %v277
    %v578 = vunpack.c.h.b16 %v277
    %v579 = vunpack.c.l.b16 %v278
    %v580 = vunpack.c.h.b16 %v278
    %v581 = vunpack.c.l.b16 %v279
    %v582 = vunpack.c.h.b16 %v279
    %v583 = vunpack.c.l.b16 %v280
    %v584 = vunpack.c.h.b16 %v280
    %v585 = vunpack.c.l.b16 %v281
    %v586 = vunpack.c.h.b16 %v281
    %v587 = vunpack.c.l.b16 %v282
    %v588 = vunpack.c.h.b16 %v282
    %v589 = vunpack.c.l.b16 %v283
    %v590 = vunpack.c.h.b16 %v283
    %v591 = vunpack.c.l.b16 %v284
    %v592 = vunpack.c.h.b16 %v284
    %v593 = vunpack.c.l.b16 %v285
    %v594 = vunpack.c.h.b16 %v285
    %v595 = vunpack.c.l.b16 %v286
    %v596 = vunpack.c.h.b16 %v286
    %v597 = vunpack.c.l.b16 %v287
    %v598 = vunpack.c.h.b16 %v287
    %v599 = vunpack.c.l.b16 %v288
    %v600 = vunpack.c.h.b16 %v288
    %v601 = vunpack.c.l.b16 %v289
    %v602 = vunpack.c.h.b16 %v289
    %v603 = vunpack.c.l.b16 %v290
    %v604 = vunpack.c.h.b16 %v290
    %v605 = vunpack.c.l.b16 %v291
    %v606 = vunpack.c.h.b16 %v291
    %v607 = vunpack.c.l.b16 %v292
    %v608 = vunpack.c.h.b16 %v292
    %v609 = vunpack.c.l.b16 %v293
    %v610 = vunpack.c.h.b16 %v293
    %v611 = vunpack.c.l.b16 %v294
    %v612 = vunpack.c.h.b16 %v294
    %v613 = vunpack.c.l.b16 %v295
    %v614 = vunpack.c.h.b16 %v295
    %v615 = vunpack.c.l.b16 %v296
    %v616 = vunpack.c.h.b16 %v296
    %v617 = vunpack.c.l.b16 %v297
    %v618 = vunpack.c.h.b16 %v297
    %v619 = vunpack.c.l.b16 %v298
    %v620 = vunpack.c.h.b16 %v298
    %v621 = vunpack.c.l.b16 %v299
    %v622 = vunpack.c.h.b16 %v299
    %v623 = vunpack.c.l.b16 %v300
    %v624 = vunpack.c.h.b16 %v300
    %v625 = vunpack.c.l.b16 %v301
    %v626 = vunpack.c.h.b16 %v301
    %v627 = vunpack.c.l.b16 %v302
    %v628 = vunpack.c.h.b16 %v302
    %v629 = vunpack.c.l.b16 %v303
    %v630 = vunpack.c.h.b16 %v303
    %v631 = vunpack.c.l.b16 %v304
    %v632 = vunpack.c.h.b16 %v304
    %v633 = vunpack.c.l.b16 %v305
    %v634 = vunpack.c.h.b16 %v305
    %v635 = vunpack.c.l.b16 %v306
    %v636 = vunpack.c.h.b16 %v306
    %v637 = vunpack.c.l.b16 %v307
    %v638 = vunpack.c.h.b16 %v307
    %v639 = vunpack.c.l.b16 %v308
    %v640 = vunpack.c.h.b16 %v308
    %v641 = vunpack.c.l.b16 %v309
    %v642 = vunpack.c.h.b16 %v309
    %v643 = vunpack.c.l.b16 %v310
    %v644 = vunpack.c.h.b16 %v310
    %v645 = vunpack.c.l.b16 %v311
    %v646 = vunpack.c.h.b16 %v311
    %v647 = vunpack.c.l.b16 %v312
    %v648 = vunpack.c.h.b16 %v312
    %v649 = vunpack.c.l.b16 %v313
    %v650 = vunpack.c.h.b16 %v313
    %v651 = vunpack.c.l.b16 %v314
    %v652 = vunpack.c.h.b16 %v314
    %v653 = vunpack.c.l.b16 %v315
    %v654 = vunpack.c.h.b16 %v315
    %v655 = vunpack.c.l.b16 %v316
    %v656 = vunpack.c.h.b16 %v316
    %v657 = vunpack.c.l.b16 %v317
    %v658 = vunpack.c.h.b16 %v317
    %v659 = vunpack.c.l.b16 %v318
    %v660 = vunpack.c.h.b16 %v318
    %v661 = vunpack.c.l.b16 %v319
    %v662 = vunpack.c.h.b16 %v319
    %v663 = vunpack.c.l.b16 %v320
    %v664 = vunpack.c.h.b16 %v320
    %v665 = vunpack.c.l.b16 %v321
    %v666 = vunpack.c.h.b16 %v321
    %v667 = vunpack.c.l.b16 %v322
    %v668 = vunpack.c.h.b16 %v322
    %v669 = vunpack.c.l.b16 %v323
    %v670 = vunpack.c.h.b16 %v323
    %v671 = vunpack.c.l.b16 %v324
    %v672 = vunpack.c.h.b16 %v324
    %v673 = vunpack.c.l.b16 %v325
    %v674 = vunpack.c.h.b16 %v325
    %v675 = vunpack.c.l.b16 %v326
    %v676 = vunpack.c.h.b16 %v326
    %v677 = vunpack.c.l.b16 %v327
    %v678 = vunpack.c.h.b16 %v327
    %v679 = vunpack.c.l.b16 %v328
    %v680 = vunpack.c.h.b16 %v328
    %v681 = vunpack.c.l.b16 %v329
    %v682 = vunpack.c.h.b16 %v329
    %v683 = vunpack.c.l.b16 %v330
    %v684 = vunpack.c.h.b16 %v330
    %v685 = vunpack.c.l.b16 %v331
    %v686 = vunpack.c.h.b16 %v331
    %v687 = vunpack.c.l.b16 %v332
    %v688 = vunpack.c.h.b16 %v332
    %v689 = vunpack.c.l.b16 %v333
    %v690 = vunpack.c.h.b16 %v333
    %v691 = vunpack.c.l.b16 %v334
    %v692 = vunpack.c.h.b16 %v334
    %v693 = vunpack.c.l.b16 %v335
    %v694 = vunpack.c.h.b16 %v335
    %v695 = vunpack.c.l.b16 %v336
    %v696 = vunpack.c.h.b16 %v336
    %v697 = vunpack.c.l.b16 %v337
    %v698 = vunpack.c.h.b16 %v337
    %v699 = vunpack.c.l.b16 %v338
    %v700 = vunpack.c.h.b16 %v338
    %v701 = vunpack.c.l.b16 %v339
    %v702 = vunpack.c.h.b16 %v339
    %v703 = vunpack.c.l.b16 %v340
    %v704 = vunpack.c.h.b16 %v340
    %v705 = vunpack.c.l.b16 %v341
    %v706 = vunpack.c.h.b16 %v341
    %v707 = vunpack.c.l.b16 %v342
    %v708 = vunpack.c.h.b16 %v342
    %v709 = vunpack.c.l.b16 %v343
    %v710 = vunpack.c.h.b16 %v343
    %v711 = vunpack.c.l.b16 %v344
    %v712 = vunpack.c.h.b16 %v344
    %v713 = vunpack.c.l.b16 %v345
    %v714 = vunpack.c.h.b16 %v345
    %v715 = vunpack.c.l.b16 %v346
    %v716 = vunpack.c.h.b16 %v346
    %v717 = vunpack.c.l.b16 %v347
    %v718 = vunpack.c.h.b16 %v347
    %v719 = vunpack.c.l.b16 %v348
    %v720 = vunpack.c.h.b16 %v348
    %v721 = vunpack.c.l.b16 %v349
    %v722 = vunpack.c.h.b16 %v349
    %v723 = vunpack.c.l.b16 %v350
    %v724 = vunpack.c.h.b16 %v350
    %v725 = vunpack.c.l.b16 %v351
    %v726 = vunpack.c.h.b16 %v351
    %v727 = vunpack.c.l.b16 %v352
    %v728 = vunpack.c.h.b16 %v352
    %v729 = vunpack.c.l.b16 %v353
    %v730 = vunpack.c.h.b16 %v353
    %v731 = vunpack.c.l.b16 %v354
    %v732 = vunpack.c.h.b16 %v354
    %v733 = vunpack.c.l.b16 %v355
    %v734 = vunpack.c.h.b16 %v355
    %v735 = vunpack.c.l.b16 %v356
    %v736 = vunpack.c.h.b16 %v356
    %v737 = vunpack.c.l.b16 %v357
    %v738 = vunpack.c.h.b16 %v357
    %v739 = vunpack.c.l.b16 %v358
    %v740 = vunpack.c.h.b16 %v358
    %v741 = vunpack.c.l.b16 %v359
    %v742 = vunpack.c.h.b16 %v359
    %v743 = vunpack.c.l.b16 %v360
    %v744 = vunpack.c.h.b16 %v360
    %v745 = vpack.c.b16 %v497, %v489
    %v746 = vpack.c.b16 %v498, %v490
    %v747 = vpack.c.b16 %v499, %v491
    %v748 = vpack.c.b16 %v500, %v492
    %v749 = vpack.c.b16 %v501, %v493
    %v750 = vpack.c.b16 %v502, %v494
    %v751 = vpack.c.b16 %v503, %v495
    %v752 = vpack.c.b16 %v504, %v496
    %v753 = vpack.c.b16 %v513, %v505
    %v754 = vpack.c.b16 %v514, %v506
    %v755 = vpack.c.b16 %v515, %v507
    %v756 = vpack.c.b16 %v516, %v508
    %v757 = vpack.c.b16 %v517, %v509
    %v758 = vpack.c.b16 %v518, %v510
    %v759 = vpack.c.b16 %v519, %v511
    %v760 = vpack.c.b16 %v520, %v512
    %v761 = vpack.c.b16 %v529, %v521
    %v762 = vpack.c.b16 %v530, %v522
    %v763 = vpack.c.b16 %v531, %v523
    %v764 = vpack.c.b16 %v532, %v524
    %v765 = vpack.c.b16 %v533, %v525
    %v766 = vpack.c.b16 %v534, %v526
    %v767 = vpack.c.b16 %v535, %v527
    %v768 = vpack.c.b16 %v536, %v528
    %v769 = vpack.c.b16 %v545, %v537
    %v770 = vpack.c.b16 %v546, %v538
    %v771 = vpack.c.b16 %v547, %v539
    %v772 = vpack.c.b16 %v548, %v540
    %v773 = vpack.c.b16 %v549, %v541
    %v774 = vpack.c.b16 %v550, %v542
    %v775 = vpack.c.b16 %v551, %v543
    %v776 = vpack.c.b16 %v552, %v544
    %v777 = vpack.c.b16 %v561, %v553
    %v778 = vpack.c.b16 %v562, %v554
    %v779 = vpack.c.b16 %v563, %v555
    %v780 = vpack.c.b16 %v564, %v556
    %v781 = vpack.c.b16 %v565, %v557
    %v782 = vpack.c.b16 %v566, %v558
    %v783 = vpack.c.b16 %v567, %v559
    %v784 = vpack.c.b16 %v568, %v560
    %v785 = vpack.c.b16 %v577, %v569
    %v786 = vpack.c.b16 %v578, %v570
    %v787 = vpack.c.b16 %v579, %v571
    %v788 = vpack.c.b16 %v580, %v572
    %v789 = vpack.c.b16 %v581, %v573
    %v790 = vpack.c.b16 %v582, %v574
    %v791 = vpack.c.b16 %v583, %v575
    %v792 = vpack.c.b16 %v584, %v576
    %v793 = vpack.c.b16 %v593, %v585
    %v794 = vpack.c.b16 %v594, %v586
    %v795 = vpack.c.b16 %v595, %v587
    %v796 = vpack.c.b16 %v596, %v588
    %v797 = vpack.c.b16 %v597, %v589
    %v798 = vpack.c.b16 %v598, %v590
    %v799 = vpack.c.b16 %v599, %v591
    %v800 = vpack.c.b16 %v600, %v592
    %v801 = vpack.c.b16 %v609, %v601
    %v802 = vpack.c.b16 %v610, %v602
    %v803 = vpack.c.b16 %v611, %v603
    %v804 = vpack.c.b16 %v612, %v604
    %v805 = vpack.c.b16 %v613, %v605
    %v806 = vpack.c.b16 %v614, %v606
    %v807 = vpack.c.b16 %v615, %v607
    %v808 = vpack.c.b16 %v616, %v608
    %v809 = vpack.c.b16 %v625, %v617
    %v810 = vpack.c.b16 %v626, %v618
    %v811 = vpack.c.b16 %v627, %v619
    %v812 = vpack.c.b16 %v628, %v620
    %v813 = vpack.c.b16 %v629, %v621
    %v814 = vpack.c.b16 %v630, %v622
    %v815 = vpack.c.b16 %v631, %v623
    %v816 = vpack.c.b16 %v632, %v624
    %v817 = vpack.c.b16 %v641, %v633
    %v818 = vpack.c.b16 %v642, %v634
    %v819 = vpack.c.b16 %v643, %v635
    %v820 = vpack.c.b16 %v644, %v636
    %v821 = vpack.c.b16 %v645, %v637
    %v822 = vpack.c.b16 %v646, %v638
    %v823 = vpack.c.b16 %v647, %v639
    %v824 = vpack.c.b16 %v648, %v640
    %v825 = vpack.c.b16 %v657, %v649
    %v826 = vpack.c.b16 %v658, %v650
    %v827 = vpack.c.b16 %v659, %v651
    %v828 = vpack.c.b16 %v660, %v652
    %v829 = vpack.c.b16 %v661, %v653
    %v830 = vpack.c.b16 %v662, %v654
    %v831 = vpack.c.b16 %v663, %v655
    %v832 = vpack.c.b16 %v664, %v656
    %v833 = vpack.c.b16 %v673, %v665
    %v834 = vpack.c.b16 %v674, %v666
    %v835 = vpack.c.b16 %v675, %v667
    %v836 = vpack.c.b16 %v676, %v668
    %v837 = vpack.c.b16 %v677, %v669
    %v838 = vpack.c.b16 %v678, %v670
    %v839 = vpack.c.b16 %v679, %v671
    %v840 = vpack.c.b16 %v680, %v672
    %v841 = vpack.c.b16 %v689, %v681
    %v842 = vpack.c.b16 %v690, %v682
    %v843 = vpack.c.b16 %v691, %v683
    %v844 = vpack.c.b16 %v692, %v684
    %v845 = vpack.c.b16 %v693, %v685
    %v846 = vpack.c.b16 %v694, %v686
    %v847 = vpack.c.b16 %v695, %v687
    %v848 = vpack.c.b16 %v696, %v688
    %v849 = vpack.c.b16 %v705, %v697
    %v850 = vpack.c.b16 %v706, %v698
    %v851 = vpack.c.b16 %v707, %v699
    %v852 = vpack.c.b16 %v708, %v700
    %v853 = vpack.c.b16 %v709, %v701
    %v854 = vpack.c.b16 %v710, %v702
    %v855 = vpack.c.b16 %v711, %v703
    %v856 = vpack.c.b16 %v712, %v704
    %v857 = vpack.c.b16 %v721, %v713
    %v858 = vpack.c.b16 %v722, %v714
    %v859 = vpack.c.b16 %v723, %v715
    %v860 = vpack.c.b16 %v724, %v716
    %v861 = vpack.c.b16 %v725, %v717
    %v862 = vpack.c.b16 %v726, %v718
    %v863 = vpack.c.b16 %v727, %v719
    %v864 = vpack.c.b16 %v728, %v720
    %v865 = vpack.c.b16 %v737, %v729
    %v866 = vpack.c.b16 %v738, %v730
    %v867 = vpack.c.b16 %v739, %v731
    %v868 = vpack.c.b16 %v740, %v732
    %v869 = vpack.c.b16 %v741, %v733
    %v870 = vpack.c.b16 %v742, %v734
    %v871 = vpack.c.b16 %v743, %v735
    %v872 = vpack.c.b16 %v744, %v736
    %1001 = vmatprep.subr.bf16.mxu0 %v746
    %1002 = vmatpush1.bf16.msra.mxu0 %v745
    %1003 = vmatprep.subr.bf16.mxu0 %v754
    %1004 = vmatpush1.bf16.msra.mxu0 %v753
    %1005 = vmatprep.subr.bf16.mxu0 %v762
    %1006 = vmatpush1.bf16.msra.mxu0 %v761
    %1007 = vmatprep.subr.bf16.mxu0 %v770
    %1008 = vmatpush1.bf16.msra.mxu0 %v769
    %1009 = vmatprep.subr.bf16.mxu0 %v778
    %1010 = vmatpush1.bf16.msra.mxu0 %v777
    %1011 = vmatprep.subr.bf16.mxu0 %v786
    %1012 = vmatpush1.bf16.msra.mxu0 %v785
    %1013 = vmatprep.subr.bf16.mxu0 %v794
    %1014 = vmatpush1.bf16.msra.mxu0 %v793
    %1015 = vmatprep.subr.bf16.mxu0 %v802
    %1016 = vmatpush1.bf16.msra.mxu0 %v801
    %1017 = vmatprep.subr.bf16.mxu0 %v810
    %1018 = vmatpush1.bf16.msra.mxu0 %v809
    %1019 = vmatprep.subr.bf16.mxu0 %v818
    %1020 = vmatpush1.bf16.msra.mxu0 %v817
    %1021 = vmatprep.subr.bf16.mxu0 %v826
    %1022 = vmatpush1.bf16.msra.mxu0 %v825
    %1023 = vmatprep.subr.bf16.mxu0 %v834
    %1024 = vmatpush1.bf16.msra.mxu0 %v833
    %1025 = vmatprep.subr.bf16.mxu0 %v842
    %1026 = vmatpush1.bf16.msra.mxu0 %v841
    %1027 = vmatprep.subr.bf16.mxu0 %v850
    %1028 = vmatpush1.bf16.msra.mxu0 %v849
    %1029 = vmatprep.subr.bf16.mxu0 %v858
    %1030 = vmatpush1.bf16.msra.mxu0 %v857
    %1031 = vmatprep.subr.bf16.mxu0 %v866
    %1032 = vmatpush1.bf16.msra.mxu0 %v865
    %1033 = vmatprep.mubr.bf16.mxu0 0
    %1034 = vmatmul.mubr.bf16.gmra.mrb[0].mxu0 0
    %v1035 = vpop.f32.mrb[0].mxu0
    %v1036 = vadd.f32 0.0, %v1035
    %v1037 = vpop.f32.mrb[0].mxu0
    %v1038 = vadd.f32 0.0, %v1037
    %v1039 = vpop.f32.mrb[0].mxu0
    %v1040 = vpop.f32.mrb[0].mxu0
    %1041 = vdwg.mxu0
    %1042 = vmatprep.subr.bf16.mxu0 %v748
    %1043 = vmatpush1.bf16.msra.mxu0 %v747
    %1044 = vmatprep.subr.bf16.mxu0 %v756
    %1045 = vmatpush1.bf16.msra.mxu0 %v755
    %1046 = vmatprep.subr.bf16.mxu0 %v764
    %1047 = vmatpush1.bf16.msra.mxu0 %v763
    %1048 = vmatprep.subr.bf16.mxu0 %v772
    %1049 = vmatpush1.bf16.msra.mxu0 %v771
    %1050 = vmatprep.subr.bf16.mxu0 %v780
    %1051 = vmatpush1.bf16.msra.mxu0 %v779
    %1052 = vmatprep.subr.bf16.mxu0 %v788
    %1053 = vmatpush1.bf16.msra.mxu0 %v787
    %1054 = vmatprep.subr.bf16.mxu0 %v796
    %1055 = vmatpush1.bf16.msra.mxu0 %v795
    %1056 = vmatprep.subr.bf16.mxu0 %v804
    %1057 = vmatpush1.bf16.msra.mxu0 %v803
    %1058 = vmatprep.subr.bf16.mxu0 %v812
    %1059 = vmatpush1.bf16.msra.mxu0 %v811
    %1060 = vmatprep.subr.bf16.mxu0 %v820
    %1061 = vmatpush1.bf16.msra.mxu0 %v819
    %1062 = vmatprep.subr.bf16.mxu0 %v828
    %1063 = vmatpush1.bf16.msra.mxu0 %v827
    %1064 = vmatprep.subr.bf16.mxu0 %v836
    %1065 = vmatpush1.bf16.msra.mxu0 %v835
    %1066 = vmatprep.subr.bf16.mxu0 %v844
    %1067 = vmatpush1.bf16.msra.mxu0 %v843
    %1068 = vmatprep.subr.bf16.mxu0 %v852
    %1069 = vmatpush1.bf16.msra.mxu0 %v851
    %1070 = vmatprep.subr.bf16.mxu0 %v860
    %1071 = vmatpush1.bf16.msra.mxu0 %v859
    %1072 = vmatprep.subr.bf16.mxu0 %v868
    %1073 = vmatpush1.bf16.msra.mxu0 %v867
    %1074 = vmatprep.mubr.bf16.mxu0 0
    %1075 = vmatmul.mubr.bf16.gmra.mrb[0].mxu0 0
    %v1076 = vpop.f32.mrb[0].mxu0
    %v1077 = vadd.f32 0.0, %v1076
    %v1078 = vpop.f32.mrb[0].mxu0
    %v1079 = vadd.f32 0.0, %v1078
    %v1080 = vpop.f32.mrb[0].mxu0
    %v1081 = vpop.f32.mrb[0].mxu0
    %1082 = vdwg.mxu0
    %1083 = vmatprep.subr.bf16.mxu0 %v750
    %1084 = vmatpush1.bf16.msra.mxu0 %v749
    %1085 = vmatprep.subr.bf16.mxu0 %v758
    %1086 = vmatpush1.bf16.msra.mxu0 %v757
    %1087 = vmatprep.subr.bf16.mxu0 %v766
    %1088 = vmatpush1.bf16.msra.mxu0 %v765
    %1089 = vmatprep.subr.bf16.mxu0 %v774
    %1090 = vmatpush1.bf16.msra.mxu0 %v773
    %1091 = vmatprep.subr.bf16.mxu0 %v782
    %1092 = vmatpush1.bf16.msra.mxu0 %v781
    %1093 = vmatprep.subr.bf16.mxu0 %v790
    %1094 = vmatpush1.bf16.msra.mxu0 %v789
    %1095 = vmatprep.subr.bf16.mxu0 %v798
    %1096 = vmatpush1.bf16.msra.mxu0 %v797
    %1097 = vmatprep.subr.bf16.mxu0 %v806
    %1098 = vmatpush1.bf16.msra.mxu0 %v805
    %1099 = vmatprep.subr.bf16.mxu0 %v814
    %1100 = vmatpush1.bf16.msra.mxu0 %v813
    %1101 = vmatprep.subr.bf16.mxu0 %v822
    %1102 = vmatpush1.bf16.msra.mxu0 %v821
    %1103 = vmatprep.subr.bf16.mxu0 %v830
    %1104 = vmatpush1.bf16.msra.mxu0 %v829
    %1105 = vmatprep.subr.bf16.mxu0 %v838
    %1106 = vmatpush1.bf16.msra.mxu0 %v837
    %1107 = vmatprep.subr.bf16.mxu0 %v846
    %1108 = vmatpush1.bf16.msra.mxu0 %v845
    %1109 = vmatprep.subr.bf16.mxu0 %v854
    %1110 = vmatpush1.bf16.msra.mxu0 %v853
    %1111 = vmatprep.subr.bf16.mxu0 %v862
    %1112 = vmatpush1.bf16.msra.mxu0 %v861
    %1113 = vmatprep.subr.bf16.mxu0 %v870
    %1114 = vmatpush1.bf16.msra.mxu0 %v869
    %1115 = vmatprep.mubr.bf16.mxu0 0
    %1116 = vmatmul.mubr.bf16.gmra.mrb[0].mxu0 0
    %v1117 = vpop.f32.mrb[0].mxu0
    %v1118 = vadd.f32 0.0, %v1117
    %v1119 = vpop.f32.mrb[0].mxu0
    %v1120 = vadd.f32 0.0, %v1119
    %v1121 = vpop.f32.mrb[0].mxu0
    %v1122 = vpop.f32.mrb[0].mxu0
    %1123 = vdwg.mxu0
    %1124 = vmatprep.subr.bf16.mxu0 %v752
    %1125 = vmatpush1.bf16.msra.mxu0 %v751
    %1126 = vmatprep.subr.bf16.mxu0 %v760
    %1127 = vmatpush1.bf16.msra.mxu0 %v759
    %1128 = vmatprep.subr.bf16.mxu0 %v768
    %1129 = vmatpush1.bf16.msra.mxu0 %v767
    %1130 = vmatprep.subr.bf16.mxu0 %v776
    %1131 = vmatpush1.bf16.msra.mxu0 %v775
    %1132 = vmatprep.subr.bf16.mxu0 %v784
    %1133 = vmatpush1.bf16.msra.mxu0 %v783
    %1134 = vmatprep.subr.bf16.mxu0 %v792
    %1135 = vmatpush1.bf16.msra.mxu0 %v791
    %1136 = vmatprep.subr.bf16.mxu0 %v800
    %1137 = vmatpush1.bf16.msra.mxu0 %v799
    %1138 = vmatprep.subr.bf16.mxu0 %v808
    %1139 = vmatpush1.bf16.msra.mxu0 %v807
    %1140 = vmatprep.subr.bf16.mxu0 %v816
    %1141 = vmatpush1.bf16.msra.mxu0 %v815
    %1142 = vmatprep.subr.bf16.mxu0 %v824
    %1143 = vmatpush1.bf16.msra.mxu0 %v823
    %1144 = vmatprep.subr.bf16.mxu0 %v832
    %1145 = vmatpush1.bf16.msra.mxu0 %v831
    %1146 = vmatprep.subr.bf16.mxu0 %v840
    %1147 = vmatpush1.bf16.msra.mxu0 %v839
    %1148 = vmatprep.subr.bf16.mxu0 %v848
    %1149 = vmatpush1.bf16.msra.mxu0 %v847
    %1150 = vmatprep.subr.bf16.mxu0 %v856
    %1151 = vmatpush1.bf16.msra.mxu0 %v855
    %1152 = vmatprep.subr.bf16.mxu0 %v864
    %1153 = vmatpush1.bf16.msra.mxu0 %v863
    %1154 = vmatprep.subr.bf16.mxu0 %v872
    %1155 = vmatpush1.bf16.msra.mxu0 %v871
    %1156 = vmatprep.mubr.bf16.mxu0 0
    %1157 = vmatmul.mubr.bf16.gmra.mrb[0].mxu0 0
    %v1158 = vpop.f32.mrb[0].mxu0
    %v1159 = vadd.f32 0.0, %v1158
    %v1160 = vpop.f32.mrb[0].mxu0
    %v1161 = vadd.f32 0.0, %v1160
    %v1162 = vpop.f32.mrb[0].mxu0
    %v1163 = vpop.f32.mrb[0].mxu0
    %1164 = vdwg.mxu0
    %v1165 = vadd.f32 %v225, %v1036
    %v1166 = vadd.f32 %v226, %v1038
    %v1167 = vadd.f32 %v227, %v1077
    %v1168 = vadd.f32 %v228, %v1079
    %v1169 = vadd.f32 %v229, %v1118
    %v1170 = vadd.f32 %v230, %v1120
    %v1171 = vadd.f32 %v231, %v1159
    %v1172 = vadd.f32 %v232, %v1161
    %v1173 = vxor.u32 %v1165, 2147483648
    %v1174 = vxor.u32 %v1166, 2147483648
    %v1175 = vxor.u32 %v1167, 2147483648
    %v1176 = vxor.u32 %v1168, 2147483648
    %v1177 = vxor.u32 %v1169, 2147483648
    %v1178 = vxor.u32 %v1170, 2147483648
    %v1179 = vmul.f32 %v1173, 1.442695
    %v1180 = vpow.pop %v1179
    %v1181 = vmul.f32 %v1174, 1.442695
    %v1182 = vpow.pop %v1181
    %v1183 = vmul.f32 %v1175, 1.442695
    %v1184 = vpow.pop %v1183
    %v1185 = vmul.f32 %v1176, 1.442695
    %v1186 = vpow.pop %v1185
    %v1187 = vmul.f32 %v1177, 1.442695
    %v1188 = vpow.pop %v1187
    %v1189 = vmul.f32 %v1178, 1.442695
    %v1190 = vpow.pop %v1189
    %v1191 = vadd.f32 %v1180, 1.0
    %v1192 = vadd.f32 %v1182, 1.0
    %v1193 = vadd.f32 %v1184, 1.0
    %v1194 = vadd.f32 %v1186, 1.0
    %v1195 = vadd.f32 %v1188, 1.0
    %v1196 = vadd.f32 %v1190, 1.0
    %v1197 = vrcp.pop %v1191
    %v1198 = vmul.f32 1.0, %v1197
    %v1199 = vrcp.pop %v1192
    %v1200 = vmul.f32 1.0, %v1199
    %v1201 = vrcp.pop %v1193
    %v1202 = vmul.f32 1.0, %v1201
    %v1203 = vrcp.pop %v1194
    %v1204 = vmul.f32 1.0, %v1203
    %v1205 = vrcp.pop %v1195
    %v1206 = vmul.f32 1.0, %v1205
    %v1207 = vrcp.pop %v1196
    %v1208 = vmul.f32 1.0, %v1207
    %v1209 = vtanh.pop %v1171
    %v1210 = vtanh.pop %v1172
    %v1211 = vmul.f32 %v1202, 0.0
    %v1212 = vmul.f32 %v1204, 0.0
    %v1213 = vmul.f32 %v1198, %v1209
    %v1214 = vmul.f32 %v1200, %v1210
    %v1215 = vadd.f32 %v1211, %v1213
    %v1216 = vadd.f32 %v1212, %v1214
    %v1217 = vtanh.pop %v1215
    %v1218 = vtanh.pop %v1216
    %v1219 = vmul.f32 %v1206, %v1217
    %v1220 = vmul.f32 %v1208, %v1218
    %v1221 = vpack.c.bf16 %v1219, %v1219
    %v1222 = vpack.c.bf16 %v1220, %v1220
    %v1223 = vld [vmem:[#allocation7] sm:$0xff]
    %v1224 = vld [vmem:[#allocation7 + $0x8] sm:$0xff]
    %v1225 = vld [vmem:[#allocation7 + $0x10] sm:$0xff]
    %v1226 = vld [vmem:[#allocation7 + $0x18] sm:$0xff]
    %v1227 = vld [vmem:[#allocation7 + $0x20] sm:$0xff]
    %v1228 = vld [vmem:[#allocation7 + $0x28] sm:$0xff]
    %v1229 = vld [vmem:[#allocation7 + $0x30] sm:$0xff]
    %v1230 = vld [vmem:[#allocation7 + $0x38] sm:$0xff]
    %v1231 = vld [vmem:[#allocation7 + $0x40] sm:$0xff]
    %v1232 = vld [vmem:[#allocation7 + $0x48] sm:$0xff]
    %v1233 = vld [vmem:[#allocation7 + $0x50] sm:$0xff]
    %v1234 = vld [vmem:[#allocation7 + $0x58] sm:$0xff]
    %v1235 = vld [vmem:[#allocation7 + $0x60] sm:$0xff]
    %v1236 = vld [vmem:[#allocation7 + $0x68] sm:$0xff]
    %v1237 = vld [vmem:[#allocation7 + $0x70] sm:$0xff]
    %v1238 = vld [vmem:[#allocation7 + $0x78] sm:$0xff]
    %v1239 = vld [vmem:[#allocation7 + $0x80] sm:$0xff]
    %v1240 = vld [vmem:[#allocation7 + $0x88] sm:$0xff]
    %v1241 = vld [vmem:[#allocation7 + $0x90] sm:$0xff]
    %v1242 = vld [vmem:[#allocation7 + $0x98] sm:$0xff]
    %v1243 = vld [vmem:[#allocation7 + $0xa0] sm:$0xff]
    %v1244 = vld [vmem:[#allocation7 + $0xa8] sm:$0xff]
    %v1245 = vld [vmem:[#allocation7 + $0xb0] sm:$0xff]
    %v1246 = vld [vmem:[#allocation7 + $0xb8] sm:$0xff]
    %v1247 = vld [vmem:[#allocation7 + $0xc0] sm:$0xff]
    %v1248 = vld [vmem:[#allocation7 + $0xc8] sm:$0xff]
    %v1249 = vld [vmem:[#allocation7 + $0xd0] sm:$0xff]
    %v1250 = vld [vmem:[#allocation7 + $0xd8] sm:$0xff]
    %v1251 = vld [vmem:[#allocation7 + $0xe0] sm:$0xff]
    %v1252 = vld [vmem:[#allocation7 + $0xe8] sm:$0xff]
    %v1253 = vld [vmem:[#allocation7 + $0xf0] sm:$0xff]
    %v1254 = vld [vmem:[#allocation7 + $0xf8] sm:$0xff]
    %v1255 = vld [vmem:[#allocation7 + $0x100] sm:$0xff]
    %v1256 = vld [vmem:[#allocation7 + $0x108] sm:$0xff]
    %v1257 = vld [vmem:[#allocation7 + $0x110] sm:$0xff]
    %v1258 = vld [vmem:[#allocation7 + $0x118] sm:$0xff]
    %v1259 = vld [vmem:[#allocation7 + $0x120] sm:$0xff]
    %v1260 = vld [vmem:[#allocation7 + $0x128] sm:$0xff]
    %v1261 = vld [vmem:[#allocation7 + $0x130] sm:$0xff]
    %v1262 = vld [vmem:[#allocation7 + $0x138] sm:$0xff]
    %v1263 = vld [vmem:[#allocation7 + $0x140] sm:$0xff]
    %v1264 = vld [vmem:[#allocation7 + $0x148] sm:$0xff]
    %v1265 = vld [vmem:[#allocation7 + $0x150] sm:$0xff]
    %v1266 = vld [vmem:[#allocation7 + $0x158] sm:$0xff]
    %v1267 = vld [vmem:[#allocation7 + $0x160] sm:$0xff]
    %v1268 = vld [vmem:[#allocation7 + $0x168] sm:$0xff]
    %v1269 = vld [vmem:[#allocation7 + $0x170] sm:$0xff]
    %v1270 = vld [vmem:[#allocation7 + $0x178] sm:$0xff]
    %v1271 = vld [vmem:[#allocation7 + $0x180] sm:$0xff]
    %v1272 = vld [vmem:[#allocation7 + $0x188] sm:$0xff]
    %v1273 = vld [vmem:[#allocation7 + $0x190] sm:$0xff]
    %v1274 = vld [vmem:[#allocation7 + $0x198] sm:$0xff]
    %v1275 = vld [vmem:[#allocation7 + $0x1a0] sm:$0xff]
    %v1276 = vld [vmem:[#allocation7 + $0x1a8] sm:$0xff]
    %v1277 = vld [vmem:[#allocation7 + $0x1b0] sm:$0xff]
    %v1278 = vld [vmem:[#allocation7 + $0x1b8] sm:$0xff]
    %v1279 = vld [vmem:[#allocation7 + $0x1c0] sm:$0xff]
    %v1280 = vld [vmem:[#allocation7 + $0x1c8] sm:$0xff]
    %v1281 = vld [vmem:[#allocation7 + $0x1d0] sm:$0xff]
    %v1282 = vld [vmem:[#allocation7 + $0x1d8] sm:$0xff]
    %v1283 = vld [vmem:[#allocation7 + $0x1e0] sm:$0xff]
    %v1284 = vld [vmem:[#allocation7 + $0x1e8] sm:$0xff]
    %v1285 = vld [vmem:[#allocation7 + $0x1f0] sm:$0xff]
    %v1286 = vld [vmem:[#allocation7 + $0x1f8] sm:$0xff]
    %v1287 = vld [vmem:[#allocation7 + $0x200] sm:$0xff]
    %v1288 = vld [vmem:[#allocation7 + $0x208] sm:$0xff]
    %v1289 = vld [vmem:[#allocation7 + $0x210] sm:$0xff]
    %v1290 = vld [vmem:[#allocation7 + $0x218] sm:$0xff]
    %v1291 = vld [vmem:[#allocation7 + $0x220] sm:$0xff]
    %v1292 = vld [vmem:[#allocation7 + $0x228] sm:$0xff]
    %v1293 = vld [vmem:[#allocation7 + $0x230] sm:$0xff]
    %v1294 = vld [vmem:[#allocation7 + $0x238] sm:$0xff]
    %v1295 = vld [vmem:[#allocation7 + $0x240] sm:$0xff]
    %v1296 = vld [vmem:[#allocation7 + $0x248] sm:$0xff]
    %v1297 = vld [vmem:[#allocation7 + $0x250] sm:$0xff]
    %v1298 = vld [vmem:[#allocation7 + $0x258] sm:$0xff]
    %v1299 = vld [vmem:[#allocation7 + $0x260] sm:$0xff]
    %v1300 = vld [vmem:[#allocation7 + $0x268] sm:$0xff]
    %v1301 = vld [vmem:[#allocation7 + $0x270] sm:$0xff]
    %v1302 = vld [vmem:[#allocation7 + $0x278] sm:$0xff]
    %v1303 = vld [vmem:[#allocation7 + $0x280] sm:$0xff]
    %v1304 = vld [vmem:[#allocation7 + $0x288] sm:$0xff]
    %v1305 = vld [vmem:[#allocation7 + $0x290] sm:$0xff]
    %v1306 = vld [vmem:[#allocation7 + $0x298] sm:$0xff]
    %v1307 = vld [vmem:[#allocation7 + $0x2a0] sm:$0xff]
    %v1308 = vld [vmem:[#allocation7 + $0x2a8] sm:$0xff]
    %v1309 = vld [vmem:[#allocation7 + $0x2b0] sm:$0xff]
    %v1310 = vld [vmem:[#allocation7 + $0x2b8] sm:$0xff]
    %v1311 = vld [vmem:[#allocation7 + $0x2c0] sm:$0xff]
    %v1312 = vld [vmem:[#allocation7 + $0x2c8] sm:$0xff]
    %v1313 = vld [vmem:[#allocation7 + $0x2d0] sm:$0xff]
    %v1314 = vld [vmem:[#allocation7 + $0x2d8] sm:$0xff]
    %v1315 = vld [vmem:[#allocation7 + $0x2e0] sm:$0xff]
    %v1316 = vld [vmem:[#allocation7 + $0x2e8] sm:$0xff]
    %v1317 = vld [vmem:[#allocation7 + $0x2f0] sm:$0xff]
    %v1318 = vld [vmem:[#allocation7 + $0x2f8] sm:$0xff]
    %v1319 = vld [vmem:[#allocation7 + $0x300] sm:$0xff]
    %v1320 = vld [vmem:[#allocation7 + $0x308] sm:$0xff]
    %v1321 = vld [vmem:[#allocation7 + $0x310] sm:$0xff]
    %v1322 = vld [vmem:[#allocation7 + $0x318] sm:$0xff]
    %v1323 = vld [vmem:[#allocation7 + $0x320] sm:$0xff]
    %v1324 = vld [vmem:[#allocation7 + $0x328] sm:$0xff]
    %v1325 = vld [vmem:[#allocation7 + $0x330] sm:$0xff]
    %v1326 = vld [vmem:[#allocation7 + $0x338] sm:$0xff]
    %v1327 = vld [vmem:[#allocation7 + $0x340] sm:$0xff]
    %v1328 = vld [vmem:[#allocation7 + $0x348] sm:$0xff]
    %v1329 = vld [vmem:[#allocation7 + $0x350] sm:$0xff]
    %v1330 = vld [vmem:[#allocation7 + $0x358] sm:$0xff]
    %v1331 = vld [vmem:[#allocation7 + $0x360] sm:$0xff]
    %v1332 = vld [vmem:[#allocation7 + $0x368] sm:$0xff]
    %v1333 = vld [vmem:[#allocation7 + $0x370] sm:$0xff]
    %v1334 = vld [vmem:[#allocation7 + $0x378] sm:$0xff]
    %v1335 = vld [vmem:[#allocation7 + $0x380] sm:$0xff]
    %v1336 = vld [vmem:[#allocation7 + $0x388] sm:$0xff]
    %v1337 = vld [vmem:[#allocation7 + $0x390] sm:$0xff]
    %v1338 = vld [vmem:[#allocation7 + $0x398] sm:$0xff]
    %v1339 = vld [vmem:[#allocation7 + $0x3a0] sm:$0xff]
    %v1340 = vld [vmem:[#allocation7 + $0x3a8] sm:$0xff]
    %v1341 = vld [vmem:[#allocation7 + $0x3b0] sm:$0xff]
    %v1342 = vld [vmem:[#allocation7 + $0x3b8] sm:$0xff]
    %v1343 = vld [vmem:[#allocation7 + $0x3c0] sm:$0xff]
    %v1344 = vld [vmem:[#allocation7 + $0x3c8] sm:$0xff]
    %v1345 = vld [vmem:[#allocation7 + $0x3d0] sm:$0xff]
    %v1346 = vld [vmem:[#allocation7 + $0x3d8] sm:$0xff]
    %v1347 = vld [vmem:[#allocation7 + $0x3e0] sm:$0xff]
    %v1348 = vld [vmem:[#allocation7 + $0x3e8] sm:$0xff]
    %v1349 = vld [vmem:[#allocation7 + $0x3f0] sm:$0xff]
    %v1350 = vld [vmem:[#allocation7 + $0x3f8] sm:$0xff]
    %v1479 = vunpack.c.l.b16 %v1223
    %v1480 = vunpack.c.h.b16 %v1223
    %v1481 = vunpack.c.l.b16 %v1224
    %v1482 = vunpack.c.h.b16 %v1224
    %v1483 = vunpack.c.l.b16 %v1225
    %v1484 = vunpack.c.h.b16 %v1225
    %v1485 = vunpack.c.l.b16 %v1226
    %v1486 = vunpack.c.h.b16 %v1226
    %v1487 = vunpack.c.l.b16 %v1227
    %v1488 = vunpack.c.h.b16 %v1227
    %v1489 = vunpack.c.l.b16 %v1228
    %v1490 = vunpack.c.h.b16 %v1228
    %v1491 = vunpack.c.l.b16 %v1229
    %v1492 = vunpack.c.h.b16 %v1229
    %v1493 = vunpack.c.l.b16 %v1230
    %v1494 = vunpack.c.h.b16 %v1230
    %v1495 = vunpack.c.l.b16 %v1231
    %v1496 = vunpack.c.h.b16 %v1231
    %v1497 = vunpack.c.l.b16 %v1232
    %v1498 = vunpack.c.h.b16 %v1232
    %v1499 = vunpack.c.l.b16 %v1233
    %v1500 = vunpack.c.h.b16 %v1233
    %v1501 = vunpack.c.l.b16 %v1234
    %v1502 = vunpack.c.h.b16 %v1234
    %v1503 = vunpack.c.l.b16 %v1235
    %v1504 = vunpack.c.h.b16 %v1235
    %v1505 = vunpack.c.l.b16 %v1236
    %v1506 = vunpack.c.h.b16 %v1236
    %v1507 = vunpack.c.l.b16 %v1237
    %v1508 = vunpack.c.h.b16 %v1237
    %v1509 = vunpack.c.l.b16 %v1238
    %v1510 = vunpack.c.h.b16 %v1238
    %v1511 = vunpack.c.l.b16 %v1239
    %v1512 = vunpack.c.h.b16 %v1239
    %v1513 = vunpack.c.l.b16 %v1240
    %v1514 = vunpack.c.h.b16 %v1240
    %v1515 = vunpack.c.l.b16 %v1241
    %v1516 = vunpack.c.h.b16 %v1241
    %v1517 = vunpack.c.l.b16 %v1242
    %v1518 = vunpack.c.h.b16 %v1242
    %v1519 = vunpack.c.l.b16 %v1243
    %v1520 = vunpack.c.h.b16 %v1243
    %v1521 = vunpack.c.l.b16 %v1244
    %v1522 = vunpack.c.h.b16 %v1244
    %v1523 = vunpack.c.l.b16 %v1245
    %v1524 = vunpack.c.h.b16 %v1245
    %v1525 = vunpack.c.l.b16 %v1246
    %v1526 = vunpack.c.h.b16 %v1246
    %v1527 = vunpack.c.l.b16 %v1247
    %v1528 = vunpack.c.h.b16 %v1247
    %v1529 = vunpack.c.l.b16 %v1248
    %v1530 = vunpack.c.h.b16 %v1248
    %v1531 = vunpack.c.l.b16 %v1249
    %v1532 = vunpack.c.h.b16 %v1249
    %v1533 = vunpack.c.l.b16 %v1250
    %v1534 = vunpack.c.h.b16 %v1250
    %v1535 = vunpack.c.l.b16 %v1251
    %v1536 = vunpack.c.h.b16 %v1251
    %v1537 = vunpack.c.l.b16 %v1252
    %v1538 = vunpack.c.h.b16 %v1252
    %v1539 = vunpack.c.l.b16 %v1253
    %v1540 = vunpack.c.h.b16 %v1253
    %v1541 = vunpack.c.l.b16 %v1254
    %v1542 = vunpack.c.h.b16 %v1254
    %v1543 = vunpack.c.l.b16 %v1255
    %v1544 = vunpack.c.h.b16 %v1255
    %v1545 = vunpack.c.l.b16 %v1256
    %v1546 = vunpack.c.h.b16 %v1256
    %v1547 = vunpack.c.l.b16 %v1257
    %v1548 = vunpack.c.h.b16 %v1257
    %v1549 = vunpack.c.l.b16 %v1258
    %v1550 = vunpack.c.h.b16 %v1258
    %v1551 = vunpack.c.l.b16 %v1259
    %v1552 = vunpack.c.h.b16 %v1259
    %v1553 = vunpack.c.l.b16 %v1260
    %v1554 = vunpack.c.h.b16 %v1260
    %v1555 = vunpack.c.l.b16 %v1261
    %v1556 = vunpack.c.h.b16 %v1261
    %v1557 = vunpack.c.l.b16 %v1262
    %v1558 = vunpack.c.h.b16 %v1262
    %v1559 = vunpack.c.l.b16 %v1263
    %v1560 = vunpack.c.h.b16 %v1263
    %v1561 = vunpack.c.l.b16 %v1264
    %v1562 = vunpack.c.h.b16 %v1264
    %v1563 = vunpack.c.l.b16 %v1265
    %v1564 = vunpack.c.h.b16 %v1265
    %v1565 = vunpack.c.l.b16 %v1266
    %v1566 = vunpack.c.h.b16 %v1266
    %v1567 = vunpack.c.l.b16 %v1267
    %v1568 = vunpack.c.h.b16 %v1267
    %v1569 = vunpack.c.l.b16 %v1268
    %v1570 = vunpack.c.h.b16 %v1268
    %v1571 = vunpack.c.l.b16 %v1269
    %v1572 = vunpack.c.h.b16 %v1269
    %v1573 = vunpack.c.l.b16 %v1270
    %v1574 = vunpack.c.h.b16 %v1270
    %v1575 = vunpack.c.l.b16 %v1271
    %v1576 = vunpack.c.h.b16 %v1271
    %v1577 = vunpack.c.l.b16 %v1272
    %v1578 = vunpack.c.h.b16 %v1272
    %v1579 = vunpack.c.l.b16 %v1273
    %v1580 = vunpack.c.h.b16 %v1273
    %v1581 = vunpack.c.l.b16 %v1274
    %v1582 = vunpack.c.h.b16 %v1274
    %v1583 = vunpack.c.l.b16 %v1275
    %v1584 = vunpack.c.h.b16 %v1275
    %v1585 = vunpack.c.l.b16 %v1276
    %v1586 = vunpack.c.h.b16 %v1276
    %v1587 = vunpack.c.l.b16 %v1277
    %v1588 = vunpack.c.h.b16 %v1277
    %v1589 = vunpack.c.l.b16 %v1278
    %v1590 = vunpack.c.h.b16 %v1278
    %v1591 = vunpack.c.l.b16 %v1279
    %v1592 = vunpack.c.h.b16 %v1279
    %v1593 = vunpack.c.l.b16 %v1280
    %v1594 = vunpack.c.h.b16 %v1280
    %v1595 = vunpack.c.l.b16 %v1281
    %v1596 = vunpack.c.h.b16 %v1281
    %v1597 = vunpack.c.l.b16 %v1282
    %v1598 = vunpack.c.h.b16 %v1282
    %v1599 = vunpack.c.l.b16 %v1283
    %v1600 = vunpack.c.h.b16 %v1283
    %v1601 = vunpack.c.l.b16 %v1284
    %v1602 = vunpack.c.h.b16 %v1284
    %v1603 = vunpack.c.l.b16 %v1285
    %v1604 = vunpack.c.h.b16 %v1285
    %v1605 = vunpack.c.l.b16 %v1286
    %v1606 = vunpack.c.h.b16 %v1286
    %v1607 = vunpack.c.l.b16 %v1287
    %v1608 = vunpack.c.h.b16 %v1287
    %v1609 = vunpack.c.l.b16 %v1288
    %v1610 = vunpack.c.h.b16 %v1288
    %v1611 = vunpack.c.l.b16 %v1289
    %v1612 = vunpack.c.h.b16 %v1289
    %v1613 = vunpack.c.l.b16 %v1290
    %v1614 = vunpack.c.h.b16 %v1290
    %v1615 = vunpack.c.l.b16 %v1291
    %v1616 = vunpack.c.h.b16 %v1291
    %v1617 = vunpack.c.l.b16 %v1292
    %v1618 = vunpack.c.h.b16 %v1292
    %v1619 = vunpack.c.l.b16 %v1293
    %v1620 = vunpack.c.h.b16 %v1293
    %v1621 = vunpack.c.l.b16 %v1294
    %v1622 = vunpack.c.h.b16 %v1294
    %v1623 = vunpack.c.l.b16 %v1295
    %v1624 = vunpack.c.h.b16 %v1295
    %v1625 = vunpack.c.l.b16 %v1296
    %v1626 = vunpack.c.h.b16 %v1296
    %v1627 = vunpack.c.l.b16 %v1297
    %v1628 = vunpack.c.h.b16 %v1297
    %v1629 = vunpack.c.l.b16 %v1298
    %v1630 = vunpack.c.h.b16 %v1298
    %v1631 = vunpack.c.l.b16 %v1299
    %v1632 = vunpack.c.h.b16 %v1299
    %v1633 = vunpack.c.l.b16 %v1300
    %v1634 = vunpack.c.h.b16 %v1300
    %v1635 = vunpack.c.l.b16 %v1301
    %v1636 = vunpack.c.h.b16 %v1301
    %v1637 = vunpack.c.l.b16 %v1302
    %v1638 = vunpack.c.h.b16 %v1302
    %v1639 = vunpack.c.l.b16 %v1303
    %v1640 = vunpack.c.h.b16 %v1303
    %v1641 = vunpack.c.l.b16 %v1304
    %v1642 = vunpack.c.h.b16 %v1304
    %v1643 = vunpack.c.l.b16 %v1305
    %v1644 = vunpack.c.h.b16 %v1305
    %v1645 = vunpack.c.l.b16 %v1306
    %v1646 = vunpack.c.h.b16 %v1306
    %v1647 = vunpack.c.l.b16 %v1307
    %v1648 = vunpack.c.h.b16 %v1307
    %v1649 = vunpack.c.l.b16 %v1308
    %v1650 = vunpack.c.h.b16 %v1308
    %v1651 = vunpack.c.l.b16 %v1309
    %v1652 = vunpack.c.h.b16 %v1309
    %v1653 = vunpack.c.l.b16 %v1310
    %v1654 = vunpack.c.h.b16 %v1310
    %v1655 = vunpack.c.l.b16 %v1311
    %v1656 = vunpack.c.h.b16 %v1311
    %v1657 = vunpack.c.l.b16 %v1312
    %v1658 = vunpack.c.h.b16 %v1312
    %v1659 = vunpack.c.l.b16 %v1313
    %v1660 = vunpack.c.h.b16 %v1313
    %v1661 = vunpack.c.l.b16 %v1314
    %v1662 = vunpack.c.h.b16 %v1314
    %v1663 = vunpack.c.l.b16 %v1315
    %v1664 = vunpack.c.h.b16 %v1315
    %v1665 = vunpack.c.l.b16 %v1316
    %v1666 = vunpack.c.h.b16 %v1316
    %v1667 = vunpack.c.l.b16 %v1317
    %v1668 = vunpack.c.h.b16 %v1317
    %v1669 = vunpack.c.l.b16 %v1318
    %v1670 = vunpack.c.h.b16 %v1318
    %v1671 = vunpack.c.l.b16 %v1319
    %v1672 = vunpack.c.h.b16 %v1319
    %v1673 = vunpack.c.l.b16 %v1320
    %v1674 = vunpack.c.h.b16 %v1320
    %v1675 = vunpack.c.l.b16 %v1321
    %v1676 = vunpack.c.h.b16 %v1321
    %v1677 = vunpack.c.l.b16 %v1322
    %v1678 = vunpack.c.h.b16 %v1322
    %v1679 = vunpack.c.l.b16 %v1323
    %v1680 = vunpack.c.h.b16 %v1323
    %v1681 = vunpack.c.l.b16 %v1324
    %v1682 = vunpack.c.h.b16 %v1324
    %v1683 = vunpack.c.l.b16 %v1325
    %v1684 = vunpack.c.h.b16 %v1325
    %v1685 = vunpack.c.l.b16 %v1326
    %v1686 = vunpack.c.h.b16 %v1326
    %v1687 = vunpack.c.l.b16 %v1327
    %v1688 = vunpack.c.h.b16 %v1327
    %v1689 = vunpack.c.l.b16 %v1328
    %v1690 = vunpack.c.h.b16 %v1328
    %v1691 = vunpack.c.l.b16 %v1329
    %v1692 = vunpack.c.h.b16 %v1329
    %v1693 = vunpack.c.l.b16 %v1330
    %v1694 = vunpack.c.h.b16 %v1330
    %v1695 = vunpack.c.l.b16 %v1331
    %v1696 = vunpack.c.h.b16 %v1331
    %v1697 = vunpack.c.l.b16 %v1332
    %v1698 = vunpack.c.h.b16 %v1332
    %v1699 = vunpack.c.l.b16 %v1333
    %v1700 = vunpack.c.h.b16 %v1333
    %v1701 = vunpack.c.l.b16 %v1334
    %v1702 = vunpack.c.h.b16 %v1334
    %v1703 = vunpack.c.l.b16 %v1335
    %v1704 = vunpack.c.h.b16 %v1335
    %v1705 = vunpack.c.l.b16 %v1336
    %v1706 = vunpack.c.h.b16 %v1336
    %v1707 = vunpack.c.l.b16 %v1337
    %v1708 = vunpack.c.h.b16 %v1337
    %v1709 = vunpack.c.l.b16 %v1338
    %v1710 = vunpack.c.h.b16 %v1338
    %v1711 = vunpack.c.l.b16 %v1339
    %v1712 = vunpack.c.h.b16 %v1339
    %v1713 = vunpack.c.l.b16 %v1340
    %v1714 = vunpack.c.h.b16 %v1340
    %v1715 = vunpack.c.l.b16 %v1341
    %v1716 = vunpack.c.h.b16 %v1341
    %v1717 = vunpack.c.l.b16 %v1342
    %v1718 = vunpack.c.h.b16 %v1342
    %v1719 = vunpack.c.l.b16 %v1343
    %v1720 = vunpack.c.h.b16 %v1343
    %v1721 = vunpack.c.l.b16 %v1344
    %v1722 = vunpack.c.h.b16 %v1344
    %v1723 = vunpack.c.l.b16 %v1345
    %v1724 = vunpack.c.h.b16 %v1345
    %v1725 = vunpack.c.l.b16 %v1346
    %v1726 = vunpack.c.h.b16 %v1346
    %v1727 = vunpack.c.l.b16 %v1347
    %v1728 = vunpack.c.h.b16 %v1347
    %v1729 = vunpack.c.l.b16 %v1348
    %v1730 = vunpack.c.h.b16 %v1348
    %v1731 = vunpack.c.l.b16 %v1349
    %v1732 = vunpack.c.h.b16 %v1349
    %v1733 = vunpack.c.l.b16 %v1350
    %v1734 = vunpack.c.h.b16 %v1350
    %v1735 = vpack.c.b16 %v1487, %v1479
    %v1736 = vpack.c.b16 %v1488, %v1480
    %v1737 = vpack.c.b16 %v1489, %v1481
    %v1738 = vpack.c.b16 %v1490, %v1482
    %v1739 = vpack.c.b16 %v1491, %v1483
    %v1740 = vpack.c.b16 %v1492, %v1484
    %v1741 = vpack.c.b16 %v1493, %v1485
    %v1742 = vpack.c.b16 %v1494, %v1486
    %v1743 = vpack.c.b16 %v1503, %v1495
    %v1744 = vpack.c.b16 %v1504, %v1496
    %v1745 = vpack.c.b16 %v1505, %v1497
    %v1746 = vpack.c.b16 %v1506, %v1498
    %v1747 = vpack.c.b16 %v1507, %v1499
    %v1748 = vpack.c.b16 %v1508, %v1500
    %v1749 = vpack.c.b16 %v1509, %v1501
    %v1750 = vpack.c.b16 %v1510, %v1502
    %v1751 = vpack.c.b16 %v1519, %v1511
    %v1752 = vpack.c.b16 %v1520, %v1512
    %v1753 = vpack.c.b16 %v1521, %v1513
    %v1754 = vpack.c.b16 %v1522, %v1514
    %v1755 = vpack.c.b16 %v1523, %v1515
    %v1756 = vpack.c.b16 %v1524, %v1516
    %v1757 = vpack.c.b16 %v1525, %v1517
    %v1758 = vpack.c.b16 %v1526, %v1518
    %v1759 = vpack.c.b16 %v1535, %v1527
    %v1760 = vpack.c.b16 %v1536, %v1528
    %v1761 = vpack.c.b16 %v1537, %v1529
    %v1762 = vpack.c.b16 %v1538, %v1530
    %v1763 = vpack.c.b16 %v1539, %v1531
    %v1764 = vpack.c.b16 %v1540, %v1532
    %v1765 = vpack.c.b16 %v1541, %v1533
    %v1766 = vpack.c.b16 %v1542, %v1534
    %v1767 = vpack.c.b16 %v1551, %v1543
    %v1768 = vpack.c.b16 %v1552, %v1544
    %v1769 = vpack.c.b16 %v1553, %v1545
    %v1770 = vpack.c.b16 %v1554, %v1546
    %v1771 = vpack.c.b16 %v1555, %v1547
    %v1772 = vpack.c.b16 %v1556, %v1548
    %v1773 = vpack.c.b16 %v1557, %v1549
    %v1774 = vpack.c.b16 %v1558, %v1550
    %v1775 = vpack.c.b16 %v1567, %v1559
    %v1776 = vpack.c.b16 %v1568, %v1560
    %v1777 = vpack.c.b16 %v1569, %v1561
    %v1778 = vpack.c.b16 %v1570, %v1562
    %v1779 = vpack.c.b16 %v1571, %v1563
    %v1780 = vpack.c.b16 %v1572, %v1564
    %v1781 = vpack.c.b16 %v1573, %v1565
    %v1782 = vpack.c.b16 %v1574, %v1566
    %v1783 = vpack.c.b16 %v1583, %v1575
    %v1784 = vpack.c.b16 %v1584, %v1576
    %v1785 = vpack.c.b16 %v1585, %v1577
    %v1786 = vpack.c.b16 %v1586, %v1578
    %v1787 = vpack.c.b16 %v1587, %v1579
    %v1788 = vpack.c.b16 %v1588, %v1580
    %v1789 = vpack.c.b16 %v1589, %v1581
    %v1790 = vpack.c.b16 %v1590, %v1582
    %v1791 = vpack.c.b16 %v1599, %v1591
    %v1792 = vpack.c.b16 %v1600, %v1592
    %v1793 = vpack.c.b16 %v1601, %v1593
    %v1794 = vpack.c.b16 %v1602, %v1594
    %v1795 = vpack.c.b16 %v1603, %v1595
    %v1796 = vpack.c.b16 %v1604, %v1596
    %v1797 = vpack.c.b16 %v1605, %v1597
    %v1798 = vpack.c.b16 %v1606, %v1598
    %v1799 = vpack.c.b16 %v1615, %v1607
    %v1800 = vpack.c.b16 %v1616, %v1608
    %v1801 = vpack.c.b16 %v1617, %v1609
    %v1802 = vpack.c.b16 %v1618, %v1610
    %v1803 = vpack.c.b16 %v1619, %v1611
    %v1804 = vpack.c.b16 %v1620, %v1612
    %v1805 = vpack.c.b16 %v1621, %v1613
    %v1806 = vpack.c.b16 %v1622, %v1614
    %v1807 = vpack.c.b16 %v1631, %v1623
    %v1808 = vpack.c.b16 %v1632, %v1624
    %v1809 = vpack.c.b16 %v1633, %v1625
    %v1810 = vpack.c.b16 %v1634, %v1626
    %v1811 = vpack.c.b16 %v1635, %v1627
    %v1812 = vpack.c.b16 %v1636, %v1628
    %v1813 = vpack.c.b16 %v1637, %v1629
    %v1814 = vpack.c.b16 %v1638, %v1630
    %v1815 = vpack.c.b16 %v1647, %v1639
    %v1816 = vpack.c.b16 %v1648, %v1640
    %v1817 = vpack.c.b16 %v1649, %v1641
    %v1818 = vpack.c.b16 %v1650, %v1642
    %v1819 = vpack.c.b16 %v1651, %v1643
    %v1820 = vpack.c.b16 %v1652, %v1644
    %v1821 = vpack.c.b16 %v1653, %v1645
    %v1822 = vpack.c.b16 %v1654, %v1646
    %v1823 = vpack.c.b16 %v1663, %v1655
    %v1824 = vpack.c.b16 %v1664, %v1656
    %v1825 = vpack.c.b16 %v1665, %v1657
    %v1826 = vpack.c.b16 %v1666, %v1658
    %v1827 = vpack.c.b16 %v1667, %v1659
    %v1828 = vpack.c.b16 %v1668, %v1660
    %v1829 = vpack.c.b16 %v1669, %v1661
    %v1830 = vpack.c.b16 %v1670, %v1662
    %v1831 = vpack.c.b16 %v1679, %v1671
    %v1832 = vpack.c.b16 %v1680, %v1672
    %v1833 = vpack.c.b16 %v1681, %v1673
    %v1834 = vpack.c.b16 %v1682, %v1674
    %v1835 = vpack.c.b16 %v1683, %v1675
    %v1836 = vpack.c.b16 %v1684, %v1676
    %v1837 = vpack.c.b16 %v1685, %v1677
    %v1838 = vpack.c.b16 %v1686, %v1678
    %v1839 = vpack.c.b16 %v1695, %v1687
    %v1840 = vpack.c.b16 %v1696, %v1688
    %v1841 = vpack.c.b16 %v1697, %v1689
    %v1842 = vpack.c.b16 %v1698, %v1690
    %v1843 = vpack.c.b16 %v1699, %v1691
    %v1844 = vpack.c.b16 %v1700, %v1692
    %v1845 = vpack.c.b16 %v1701, %v1693
    %v1846 = vpack.c.b16 %v1702, %v1694
    %v1847 = vpack.c.b16 %v1711, %v1703
    %v1848 = vpack.c.b16 %v1712, %v1704
    %v1849 = vpack.c.b16 %v1713, %v1705
    %v1850 = vpack.c.b16 %v1714, %v1706
    %v1851 = vpack.c.b16 %v1715, %v1707
    %v1852 = vpack.c.b16 %v1716, %v1708
    %v1853 = vpack.c.b16 %v1717, %v1709
    %v1854 = vpack.c.b16 %v1718, %v1710
    %v1855 = vpack.c.b16 %v1727, %v1719
    %v1856 = vpack.c.b16 %v1728, %v1720
    %v1857 = vpack.c.b16 %v1729, %v1721
    %v1858 = vpack.c.b16 %v1730, %v1722
    %v1859 = vpack.c.b16 %v1731, %v1723
    %v1860 = vpack.c.b16 %v1732, %v1724
    %v1861 = vpack.c.b16 %v1733, %v1725
    %v1862 = vpack.c.b16 %v1734, %v1726
    %1991 = vmatprep.subr.bf16.mxu0 %v1736
    %1992 = vmatpush1.bf16.msra.mxu0 %v1735
    %1993 = vmatprep.subr.bf16.mxu0 %v1744
    %1994 = vmatpush1.bf16.msra.mxu0 %v1743
    %1995 = vmatprep.subr.bf16.mxu0 %v1752
    %1996 = vmatpush1.bf16.msra.mxu0 %v1751
    %1997 = vmatprep.subr.bf16.mxu0 %v1760
    %1998 = vmatpush1.bf16.msra.mxu0 %v1759
    %1999 = vmatprep.subr.bf16.mxu0 %v1768
    %2000 = vmatpush1.bf16.msra.mxu0 %v1767
    %2001 = vmatprep.subr.bf16.mxu0 %v1776
    %2002 = vmatpush1.bf16.msra.mxu0 %v1775
    %2003 = vmatprep.subr.bf16.mxu0 %v1784
    %2004 = vmatpush1.bf16.msra.mxu0 %v1783
    %2005 = vmatprep.subr.bf16.mxu0 %v1792
    %2006 = vmatpush1.bf16.msra.mxu0 %v1791
    %2007 = vmatprep.subr.bf16.mxu0 %v1800
    %2008 = vmatpush1.bf16.msra.mxu0 %v1799
    %2009 = vmatprep.subr.bf16.mxu0 %v1808
    %2010 = vmatpush1.bf16.msra.mxu0 %v1807
    %2011 = vmatprep.subr.bf16.mxu0 %v1816
    %2012 = vmatpush1.bf16.msra.mxu0 %v1815
    %2013 = vmatprep.subr.bf16.mxu0 %v1824
    %2014 = vmatpush1.bf16.msra.mxu0 %v1823
    %2015 = vmatprep.subr.bf16.mxu0 %v1832
    %2016 = vmatpush1.bf16.msra.mxu0 %v1831
    %2017 = vmatprep.subr.bf16.mxu0 %v1840
    %2018 = vmatpush1.bf16.msra.mxu0 %v1839
    %2019 = vmatprep.subr.bf16.mxu0 %v1848
    %2020 = vmatpush1.bf16.msra.mxu0 %v1847
    %2021 = vmatprep.subr.bf16.mxu0 %v1856
    %2022 = vmatpush1.bf16.msra.mxu0 %v1855
    %2023 = vmatprep.mubr.bf16.mxu0 %v1222
    %2024 = vmatmul.mubr.bf16.gmra.mrb[0].mxu0 %v1221
    %v2025 = vpop.f32.mrb[0].mxu0
    %v2026 = vadd.f32 0.0, %v2025
    %v2027 = vpop.f32.mrb[0].mxu0
    %v2028 = vadd.f32 0.0, %v2027
    %v2029 = vpop.f32.mrb[0].mxu0
    %v2030 = vpop.f32.mrb[0].mxu0
    %2031 = vdwg.mxu0
    %2032 = vmatprep.subr.bf16.mxu0 %v1738
    %2033 = vmatpush1.bf16.msra.mxu0 %v1737
    %2034 = vmatprep.subr.bf16.mxu0 %v1746
    %2035 = vmatpush1.bf16.msra.mxu0 %v1745
    %2036 = vmatprep.subr.bf16.mxu0 %v1754
    %2037 = vmatpush1.bf16.msra.mxu0 %v1753
    %2038 = vmatprep.subr.bf16.mxu0 %v1762
    %2039 = vmatpush1.bf16.msra.mxu0 %v1761
    %2040 = vmatprep.subr.bf16.mxu0 %v1770
    %2041 = vmatpush1.bf16.msra.mxu0 %v1769
    %2042 = vmatprep.subr.bf16.mxu0 %v1778
    %2043 = vmatpush1.bf16.msra.mxu0 %v1777
    %2044 = vmatprep.subr.bf16.mxu0 %v1786
    %2045 = vmatpush1.bf16.msra.mxu0 %v1785
    %2046 = vmatprep.subr.bf16.mxu0 %v1794
    %2047 = vmatpush1.bf16.msra.mxu0 %v1793
    %2048 = vmatprep.subr.bf16.mxu0 %v1802
    %2049 = vmatpush1.bf16.msra.mxu0 %v1801
    %2050 = vmatprep.subr.bf16.mxu0 %v1810
    %2051 = vmatpush1.bf16.msra.mxu0 %v1809
    %2052 = vmatprep.subr.bf16.mxu0 %v1818
    %2053 = vmatpush1.bf16.msra.mxu0 %v1817
    %2054 = vmatprep.subr.bf16.mxu0 %v1826
    %2055 = vmatpush1.bf16.msra.mxu0 %v1825
    %2056 = vmatprep.subr.bf16.mxu0 %v1834
    %2057 = vmatpush1.bf16.msra.mxu0 %v1833
    %2058 = vmatprep.subr.bf16.mxu0 %v1842
    %2059 = vmatpush1.bf16.msra.mxu0 %v1841
    %2060 = vmatprep.subr.bf16.mxu0 %v1850
    %2061 = vmatpush1.bf16.msra.mxu0 %v1849
    %2062 = vmatprep.subr.bf16.mxu0 %v1858
    %2063 = vmatpush1.bf16.msra.mxu0 %v1857
    %2064 = vmatprep.mubr.bf16.mxu0 %v1222
    %2065 = vmatmul.mubr.bf16.gmra.mrb[0].mxu0 %v1221
    %v2066 = vpop.f32.mrb[0].mxu0
    %v2067 = vadd.f32 0.0, %v2066
    %v2068 = vpop.f32.mrb[0].mxu0
    %v2069 = vadd.f32 0.0, %v2068
    %v2070 = vpop.f32.mrb[0].mxu0
    %v2071 = vpop.f32.mrb[0].mxu0
    %2072 = vdwg.mxu0
    %2073 = vmatprep.subr.bf16.mxu0 %v1740
    %2074 = vmatpush1.bf16.msra.mxu0 %v1739
    %2075 = vmatprep.subr.bf16.mxu0 %v1748
    %2076 = vmatpush1.bf16.msra.mxu0 %v1747
    %2077 = vmatprep.subr.bf16.mxu0 %v1756
    %2078 = vmatpush1.bf16.msra.mxu0 %v1755
    %2079 = vmatprep.subr.bf16.mxu0 %v1764
    %2080 = vmatpush1.bf16.msra.mxu0 %v1763
    %2081 = vmatprep.subr.bf16.mxu0 %v1772
    %2082 = vmatpush1.bf16.msra.mxu0 %v1771
    %2083 = vmatprep.subr.bf16.mxu0 %v1780
    %2084 = vmatpush1.bf16.msra.mxu0 %v1779
    %2085 = vmatprep.subr.bf16.mxu0 %v1788
    %2086 = vmatpush1.bf16.msra.mxu0 %v1787
    %2087 = vmatprep.subr.bf16.mxu0 %v1796
    %2088 = vmatpush1.bf16.msra.mxu0 %v1795
    %2089 = vmatprep.subr.bf16.mxu0 %v1804
    %2090 = vmatpush1.bf16.msra.mxu0 %v1803
    %2091 = vmatprep.subr.bf16.mxu0 %v1812
    %2092 = vmatpush1.bf16.msra.mxu0 %v1811
    %2093 = vmatprep.subr.bf16.mxu0 %v1820
    %2094 = vmatpush1.bf16.msra.mxu0 %v1819
    %2095 = vmatprep.subr.bf16.mxu0 %v1828
    %2096 = vmatpush1.bf16.msra.mxu0 %v1827
    %2097 = vmatprep.subr.bf16.mxu0 %v1836
    %2098 = vmatpush1.bf16.msra.mxu0 %v1835
    %2099 = vmatprep.subr.bf16.mxu0 %v1844
    %2100 = vmatpush1.bf16.msra.mxu0 %v1843
    %2101 = vmatprep.subr.bf16.mxu0 %v1852
    %2102 = vmatpush1.bf16.msra.mxu0 %v1851
    %2103 = vmatprep.subr.bf16.mxu0 %v1860
    %2104 = vmatpush1.bf16.msra.mxu0 %v1859
    %2105 = vmatprep.mubr.bf16.mxu0 %v1222
    %2106 = vmatmul.mubr.bf16.gmra.mrb[0].mxu0 %v1221
    %v2107 = vpop.f32.mrb[0].mxu0
    %v2108 = vadd.f32 0.0, %v2107
    %v2109 = vpop.f32.mrb[0].mxu0
    %v2110 = vadd.f32 0.0, %v2109
    %v2111 = vpop.f32.mrb[0].mxu0
    %v2112 = vpop.f32.mrb[0].mxu0
    %2113 = vdwg.mxu0
    %2114 = vmatprep.subr.bf16.mxu0 %v1742
    %2115 = vmatpush1.bf16.msra.mxu0 %v1741
    %2116 = vmatprep.subr.bf16.mxu0 %v1750
    %2117 = vmatpush1.bf16.msra.mxu0 %v1749
    %2118 = vmatprep.subr.bf16.mxu0 %v1758
    %2119 = vmatpush1.bf16.msra.mxu0 %v1757
    %2120 = vmatprep.subr.bf16.mxu0 %v1766
    %2121 = vmatpush1.bf16.msra.mxu0 %v1765
    %2122 = vmatprep.subr.bf16.mxu0 %v1774
    %2123 = vmatpush1.bf16.msra.mxu0 %v1773
    %2124 = vmatprep.subr.bf16.mxu0 %v1782
    %2125 = vmatpush1.bf16.msra.mxu0 %v1781
    %2126 = vmatprep.subr.bf16.mxu0 %v1790
    %2127 = vmatpush1.bf16.msra.mxu0 %v1789
    %2128 = vmatprep.subr.bf16.mxu0 %v1798
    %2129 = vmatpush1.bf16.msra.mxu0 %v1797
    %2130 = vmatprep.subr.bf16.mxu0 %v1806
    %2131 = vmatpush1.bf16.msra.mxu0 %v1805
    %2132 = vmatprep.subr.bf16.mxu0 %v1814
    %2133 = vmatpush1.bf16.msra.mxu0 %v1813
    %2134 = vmatprep.subr.bf16.mxu0 %v1822
    %2135 = vmatpush1.bf16.msra.mxu0 %v1821
    %2136 = vmatprep.subr.bf16.mxu0 %v1830
    %2137 = vmatpush1.bf16.msra.mxu0 %v1829
    %2138 = vmatprep.subr.bf16.mxu0 %v1838
    %2139 = vmatpush1.bf16.msra.mxu0 %v1837
    %2140 = vmatprep.subr.bf16.mxu0 %v1846
    %2141 = vmatpush1.bf16.msra.mxu0 %v1845
    %2142 = vmatprep.subr.bf16.mxu0 %v1854
    %2143 = vmatpush1.bf16.msra.mxu0 %v1853
    %2144 = vmatprep.subr.bf16.mxu0 %v1862
    %2145 = vmatpush1.bf16.msra.mxu0 %v1861
    %2146 = vmatprep.mubr.bf16.mxu0 %v1222
    %2147 = vmatmul.mubr.bf16.gmra.mrb[0].mxu0 %v1221
    %v2148 = vpop.f32.mrb[0].mxu0
    %v2149 = vadd.f32 0.0, %v2148
    %v2150 = vpop.f32.mrb[0].mxu0
    %v2151 = vadd.f32 0.0, %v2150
    %v2152 = vpop.f32.mrb[0].mxu0
    %v2153 = vpop.f32.mrb[0].mxu0
    %2154 = vdwg.mxu0
    %v2283 = vunpack.c.l.b16 %v97
    %v2284 = vunpack.c.h.b16 %v97
    %v2285 = vunpack.c.l.b16 %v98
    %v2286 = vunpack.c.h.b16 %v98
    %v2287 = vunpack.c.l.b16 %v99
    %v2288 = vunpack.c.h.b16 %v99
    %v2289 = vunpack.c.l.b16 %v100
    %v2290 = vunpack.c.h.b16 %v100
    %v2291 = vunpack.c.l.b16 %v101
    %v2292 = vunpack.c.h.b16 %v101
    %v2293 = vunpack.c.l.b16 %v102
    %v2294 = vunpack.c.h.b16 %v102
    %v2295 = vunpack.c.l.b16 %v103
    %v2296 = vunpack.c.h.b16 %v103
    %v2297 = vunpack.c.l.b16 %v104
    %v2298 = vunpack.c.h.b16 %v104
    %v2299 = vunpack.c.l.b16 %v105
    %v2300 = vunpack.c.h.b16 %v105
    %v2301 = vunpack.c.l.b16 %v106
    %v2302 = vunpack.c.h.b16 %v106
    %v2303 = vunpack.c.l.b16 %v107
    %v2304 = vunpack.c.h.b16 %v107
    %v2305 = vunpack.c.l.b16 %v108
    %v2306 = vunpack.c.h.b16 %v108
    %v2307 = vunpack.c.l.b16 %v109
    %v2308 = vunpack.c.h.b16 %v109
    %v2309 = vunpack.c.l.b16 %v110
    %v2310 = vunpack.c.h.b16 %v110
    %v2311 = vunpack.c.l.b16 %v111
    %v2312 = vunpack.c.h.b16 %v111
    %v2313 = vunpack.c.l.b16 %v112
    %v2314 = vunpack.c.h.b16 %v112
    %v2315 = vunpack.c.l.b16 %v113
    %v2316 = vunpack.c.h.b16 %v113
    %v2317 = vunpack.c.l.b16 %v114
    %v2318 = vunpack.c.h.b16 %v114
    %v2319 = vunpack.c.l.b16 %v115
    %v2320 = vunpack.c.h.b16 %v115
    %v2321 = vunpack.c.l.b16 %v116
    %v2322 = vunpack.c.h.b16 %v116
    %v2323 = vunpack.c.l.b16 %v117
    %v2324 = vunpack.c.h.b16 %v117
    %v2325 = vunpack.c.l.b16 %v118
    %v2326 = vunpack.c.h.b16 %v118
    %v2327 = vunpack.c.l.b16 %v119
    %v2328 = vunpack.c.h.b16 %v119
    %v2329 = vunpack.c.l.b16 %v120
    %v2330 = vunpack.c.h.b16 %v120
    %v2331 = vunpack.c.l.b16 %v121
    %v2332 = vunpack.c.h.b16 %v121
    %v2333 = vunpack.c.l.b16 %v122
    %v2334 = vunpack.c.h.b16 %v122
    %v2335 = vunpack.c.l.b16 %v123
    %v2336 = vunpack.c.h.b16 %v123
    %v2337 = vunpack.c.l.b16 %v124
    %v2338 = vunpack.c.h.b16 %v124
    %v2339 = vunpack.c.l.b16 %v125
    %v2340 = vunpack.c.h.b16 %v125
    %v2341 = vunpack.c.l.b16 %v126
    %v2342 = vunpack.c.h.b16 %v126
    %v2343 = vunpack.c.l.b16 %v127
    %v2344 = vunpack.c.h.b16 %v127
    %v2345 = vunpack.c.l.b16 %v128
    %v2346 = vunpack.c.h.b16 %v128
    %v2347 = vunpack.c.l.b16 %v129
    %v2348 = vunpack.c.h.b16 %v129
    %v2349 = vunpack.c.l.b16 %v130
    %v2350 = vunpack.c.h.b16 %v130
    %v2351 = vunpack.c.l.b16 %v131
    %v2352 = vunpack.c.h.b16 %v131
    %v2353 = vunpack.c.l.b16 %v132
    %v2354 = vunpack.c.h.b16 %v132
    %v2355 = vunpack.c.l.b16 %v133
    %v2356 = vunpack.c.h.b16 %v133
    %v2357 = vunpack.c.l.b16 %v134
    %v2358 = vunpack.c.h.b16 %v134
    %v2359 = vunpack.c.l.b16 %v135
    %v2360 = vunpack.c.h.b16 %v135
    %v2361 = vunpack.c.l.b16 %v136
    %v2362 = vunpack.c.h.b16 %v136
    %v2363 = vunpack.c.l.b16 %v137
    %v2364 = vunpack.c.h.b16 %v137
    %v2365 = vunpack.c.l.b16 %v138
    %v2366 = vunpack.c.h.b16 %v138
    %v2367 = vunpack.c.l.b16 %v139
    %v2368 = vunpack.c.h.b16 %v139
    %v2369 = vunpack.c.l.b16 %v140
    %v2370 = vunpack.c.h.b16 %v140
    %v2371 = vunpack.c.l.b16 %v141
    %v2372 = vunpack.c.h.b16 %v141
    %v2373 = vunpack.c.l.b16 %v142
    %v2374 = vunpack.c.h.b16 %v142
    %v2375 = vunpack.c.l.b16 %v143
    %v2376 = vunpack.c.h.b16 %v143
    %v2377 = vunpack.c.l.b16 %v144
    %v2378 = vunpack.c.h.b16 %v144
    %v2379 = vunpack.c.l.b16 %v145
    %v2380 = vunpack.c.h.b16 %v145
    %v2381 = vunpack.c.l.b16 %v146
    %v2382 = vunpack.c.h.b16 %v146
    %v2383 = vunpack.c.l.b16 %v147
    %v2384 = vunpack.c.h.b16 %v147
    %v2385 = vunpack.c.l.b16 %v148
    %v2386 = vunpack.c.h.b16 %v148
    %v2387 = vunpack.c.l.b16 %v149
    %v2388 = vunpack.c.h.b16 %v149
    %v2389 = vunpack.c.l.b16 %v150
    %v2390 = vunpack.c.h.b16 %v150
    %v2391 = vunpack.c.l.b16 %v151
    %v2392 = vunpack.c.h.b16 %v151
    %v2393 = vunpack.c.l.b16 %v152
    %v2394 = vunpack.c.h.b16 %v152
    %v2395 = vunpack.c.l.b16 %v153
    %v2396 = vunpack.c.h.b16 %v153
    %v2397 = vunpack.c.l.b16 %v154
    %v2398 = vunpack.c.h.b16 %v154
    %v2399 = vunpack.c.l.b16 %v155
    %v2400 = vunpack.c.h.b16 %v155
    %v2401 = vunpack.c.l.b16 %v156
    %v2402 = vunpack.c.h.b16 %v156
    %v2403 = vunpack.c.l.b16 %v157
    %v2404 = vunpack.c.h.b16 %v157
    %v2405 = vunpack.c.l.b16 %v158
    %v2406 = vunpack.c.h.b16 %v158
    %v2407 = vunpack.c.l.b16 %v159
    %v2408 = vunpack.c.h.b16 %v159
    %v2409 = vunpack.c.l.b16 %v160
    %v2410 = vunpack.c.h.b16 %v160
    %v2411 = vunpack.c.l.b16 %v161
    %v2412 = vunpack.c.h.b16 %v161
    %v2413 = vunpack.c.l.b16 %v162
    %v2414 = vunpack.c.h.b16 %v162
    %v2415 = vunpack.c.l.b16 %v163
    %v2416 = vunpack.c.h.b16 %v163
    %v2417 = vunpack.c.l.b16 %v164
    %v2418 = vunpack.c.h.b16 %v164
    %v2419 = vunpack.c.l.b16 %v165
    %v2420 = vunpack.c.h.b16 %v165
    %v2421 = vunpack.c.l.b16 %v166
    %v2422 = vunpack.c.h.b16 %v166
    %v2423 = vunpack.c.l.b16 %v167
    %v2424 = vunpack.c.h.b16 %v167
    %v2425 = vunpack.c.l.b16 %v168
    %v2426 = vunpack.c.h.b16 %v168
    %v2427 = vunpack.c.l.b16 %v169
    %v2428 = vunpack.c.h.b16 %v169
    %v2429 = vunpack.c.l.b16 %v170
    %v2430 = vunpack.c.h.b16 %v170
    %v2431 = vunpack.c.l.b16 %v171
    %v2432 = vunpack.c.h.b16 %v171
    %v2433 = vunpack.c.l.b16 %v172
    %v2434 = vunpack.c.h.b16 %v172
    %v2435 = vunpack.c.l.b16 %v173
    %v2436 = vunpack.c.h.b16 %v173
    %v2437 = vunpack.c.l.b16 %v174
    %v2438 = vunpack.c.h.b16 %v174
    %v2439 = vunpack.c.l.b16 %v175
    %v2440 = vunpack.c.h.b16 %v175
    %v2441 = vunpack.c.l.b16 %v176
    %v2442 = vunpack.c.h.b16 %v176
    %v2443 = vunpack.c.l.b16 %v177
    %v2444 = vunpack.c.h.b16 %v177
    %v2445 = vunpack.c.l.b16 %v178
    %v2446 = vunpack.c.h.b16 %v178
    %v2447 = vunpack.c.l.b16 %v179
    %v2448 = vunpack.c.h.b16 %v179
    %v2449 = vunpack.c.l.b16 %v180
    %v2450 = vunpack.c.h.b16 %v180
    %v2451 = vunpack.c.l.b16 %v181
    %v2452 = vunpack.c.h.b16 %v181
    %v2453 = vunpack.c.l.b16 %v182
    %v2454 = vunpack.c.h.b16 %v182
    %v2455 = vunpack.c.l.b16 %v183
    %v2456 = vunpack.c.h.b16 %v183
    %v2457 = vunpack.c.l.b16 %v184
    %v2458 = vunpack.c.h.b16 %v184
    %v2459 = vunpack.c.l.b16 %v185
    %v2460 = vunpack.c.h.b16 %v185
    %v2461 = vunpack.c.l.b16 %v186
    %v2462 = vunpack.c.h.b16 %v186
    %v2463 = vunpack.c.l.b16 %v187
    %v2464 = vunpack.c.h.b16 %v187
    %v2465 = vunpack.c.l.b16 %v188
    %v2466 = vunpack.c.h.b16 %v188
    %v2467 = vunpack.c.l.b16 %v189
    %v2468 = vunpack.c.h.b16 %v189
    %v2469 = vunpack.c.l.b16 %v190
    %v2470 = vunpack.c.h.b16 %v190
    %v2471 = vunpack.c.l.b16 %v191
    %v2472 = vunpack.c.h.b16 %v191
    %v2473 = vunpack.c.l.b16 %v192
    %v2474 = vunpack.c.h.b16 %v192
    %v2475 = vunpack.c.l.b16 %v193
    %v2476 = vunpack.c.h.b16 %v193
    %v2477 = vunpack.c.l.b16 %v194
    %v2478 = vunpack.c.h.b16 %v194
    %v2479 = vunpack.c.l.b16 %v195
    %v2480 = vunpack.c.h.b16 %v195
    %v2481 = vunpack.c.l.b16 %v196
    %v2482 = vunpack.c.h.b16 %v196
    %v2483 = vunpack.c.l.b16 %v197
    %v2484 = vunpack.c.h.b16 %v197
    %v2485 = vunpack.c.l.b16 %v198
    %v2486 = vunpack.c.h.b16 %v198
    %v2487 = vunpack.c.l.b16 %v199
    %v2488 = vunpack.c.h.b16 %v199
    %v2489 = vunpack.c.l.b16 %v200
    %v2490 = vunpack.c.h.b16 %v200
    %v2491 = vunpack.c.l.b16 %v201
    %v2492 = vunpack.c.h.b16 %v201
    %v2493 = vunpack.c.l.b16 %v202
    %v2494 = vunpack.c.h.b16 %v202
    %v2495 = vunpack.c.l.b16 %v203
    %v2496 = vunpack.c.h.b16 %v203
    %v2497 = vunpack.c.l.b16 %v204
    %v2498 = vunpack.c.h.b16 %v204
    %v2499 = vunpack.c.l.b16 %v205
    %v2500 = vunpack.c.h.b16 %v205
    %v2501 = vunpack.c.l.b16 %v206
    %v2502 = vunpack.c.h.b16 %v206
    %v2503 = vunpack.c.l.b16 %v207
    %v2504 = vunpack.c.h.b16 %v207
    %v2505 = vunpack.c.l.b16 %v208
    %v2506 = vunpack.c.h.b16 %v208
    %v2507 = vunpack.c.l.b16 %v209
    %v2508 = vunpack.c.h.b16 %v209
    %v2509 = vunpack.c.l.b16 %v210
    %v2510 = vunpack.c.h.b16 %v210
    %v2511 = vunpack.c.l.b16 %v211
    %v2512 = vunpack.c.h.b16 %v211
    %v2513 = vunpack.c.l.b16 %v212
    %v2514 = vunpack.c.h.b16 %v212
    %v2515 = vunpack.c.l.b16 %v213
    %v2516 = vunpack.c.h.b16 %v213
    %v2517 = vunpack.c.l.b16 %v214
    %v2518 = vunpack.c.h.b16 %v214
    %v2519 = vunpack.c.l.b16 %v215
    %v2520 = vunpack.c.h.b16 %v215
    %v2521 = vunpack.c.l.b16 %v216
    %v2522 = vunpack.c.h.b16 %v216
    %v2523 = vunpack.c.l.b16 %v217
    %v2524 = vunpack.c.h.b16 %v217
    %v2525 = vunpack.c.l.b16 %v218
    %v2526 = vunpack.c.h.b16 %v218
    %v2527 = vunpack.c.l.b16 %v219
    %v2528 = vunpack.c.h.b16 %v219
    %v2529 = vunpack.c.l.b16 %v220
    %v2530 = vunpack.c.h.b16 %v220
    %v2531 = vunpack.c.l.b16 %v221
    %v2532 = vunpack.c.h.b16 %v221
    %v2533 = vunpack.c.l.b16 %v222
    %v2534 = vunpack.c.h.b16 %v222
    %v2535 = vunpack.c.l.b16 %v223
    %v2536 = vunpack.c.h.b16 %v223
    %v2537 = vunpack.c.l.b16 %v224
    %v2538 = vunpack.c.h.b16 %v224
    %v2539 = vpack.c.b16 %v2291, %v2283
    %v2540 = vpack.c.b16 %v2292, %v2284
    %v2541 = vpack.c.b16 %v2293, %v2285
    %v2542 = vpack.c.b16 %v2294, %v2286
    %v2543 = vpack.c.b16 %v2295, %v2287
    %v2544 = vpack.c.b16 %v2296, %v2288
    %v2545 = vpack.c.b16 %v2297, %v2289
    %v2546 = vpack.c.b16 %v2298, %v2290
    %v2547 = vpack.c.b16 %v2307, %v2299
    %v2548 = vpack.c.b16 %v2308, %v2300
    %v2549 = vpack.c.b16 %v2309, %v2301
    %v2550 = vpack.c.b16 %v2310, %v2302
    %v2551 = vpack.c.b16 %v2311, %v2303
    %v2552 = vpack.c.b16 %v2312, %v2304
    %v2553 = vpack.c.b16 %v2313, %v2305
    %v2554 = vpack.c.b16 %v2314, %v2306
    %v2555 = vpack.c.b16 %v2323, %v2315
    %v2556 = vpack.c.b16 %v2324, %v2316
    %v2557 = vpack.c.b16 %v2325, %v2317
    %v2558 = vpack.c.b16 %v2326, %v2318
    %v2559 = vpack.c.b16 %v2327, %v2319
    %v2560 = vpack.c.b16 %v2328, %v2320
    %v2561 = vpack.c.b16 %v2329, %v2321
    %v2562 = vpack.c.b16 %v2330, %v2322
    %v2563 = vpack.c.b16 %v2339, %v2331
    %v2564 = vpack.c.b16 %v2340, %v2332
    %v2565 = vpack.c.b16 %v2341, %v2333
    %v2566 = vpack.c.b16 %v2342, %v2334
    %v2567 = vpack.c.b16 %v2343, %v2335
    %v2568 = vpack.c.b16 %v2344, %v2336
    %v2569 = vpack.c.b16 %v2345, %v2337
    %v2570 = vpack.c.b16 %v2346, %v2338
    %v2571 = vpack.c.b16 %v2355, %v2347
    %v2572 = vpack.c.b16 %v2356, %v2348
    %v2573 = vpack.c.b16 %v2357, %v2349
    %v2574 = vpack.c.b16 %v2358, %v2350
    %v2575 = vpack.c.b16 %v2359, %v2351
    %v2576 = vpack.c.b16 %v2360, %v2352
    %v2577 = vpack.c.b16 %v2361, %v2353
    %v2578 = vpack.c.b16 %v2362, %v2354
    %v2579 = vpack.c.b16 %v2371, %v2363
    %v2580 = vpack.c.b16 %v2372, %v2364
    %v2581 = vpack.c.b16 %v2373, %v2365
    %v2582 = vpack.c.b16 %v2374, %v2366
    %v2583 = vpack.c.b16 %v2375, %v2367
    %v2584 = vpack.c.b16 %v2376, %v2368
    %v2585 = vpack.c.b16 %v2377, %v2369
    %v2586 = vpack.c.b16 %v2378, %v2370
    %v2587 = vpack.c.b16 %v2387, %v2379
    %v2588 = vpack.c.b16 %v2388, %v2380
    %v2589 = vpack.c.b16 %v2389, %v2381
    %v2590 = vpack.c.b16 %v2390, %v2382
    %v2591 = vpack.c.b16 %v2391, %v2383
    %v2592 = vpack.c.b16 %v2392, %v2384
    %v2593 = vpack.c.b16 %v2393, %v2385
    %v2594 = vpack.c.b16 %v2394, %v2386
    %v2595 = vpack.c.b16 %v2403, %v2395
    %v2596 = vpack.c.b16 %v2404, %v2396
    %v2597 = vpack.c.b16 %v2405, %v2397
    %v2598 = vpack.c.b16 %v2406, %v2398
    %v2599 = vpack.c.b16 %v2407, %v2399
    %v2600 = vpack.c.b16 %v2408, %v2400
    %v2601 = vpack.c.b16 %v2409, %v2401
    %v2602 = vpack.c.b16 %v2410, %v2402
    %v2603 = vpack.c.b16 %v2419, %v2411
    %v2604 = vpack.c.b16 %v2420, %v2412
    %v2605 = vpack.c.b16 %v2421, %v2413
    %v2606 = vpack.c.b16 %v2422, %v2414
    %v2607 = vpack.c.b16 %v2423, %v2415
    %v2608 = vpack.c.b16 %v2424, %v2416
    %v2609 = vpack.c.b16 %v2425, %v2417
    %v2610 = vpack.c.b16 %v2426, %v2418
    %v2611 = vpack.c.b16 %v2435, %v2427
    %v2612 = vpack.c.b16 %v2436, %v2428
    %v2613 = vpack.c.b16 %v2437, %v2429
    %v2614 = vpack.c.b16 %v2438, %v2430
    %v2615 = vpack.c.b16 %v2439, %v2431
    %v2616 = vpack.c.b16 %v2440, %v2432
    %v2617 = vpack.c.b16 %v2441, %v2433
    %v2618 = vpack.c.b16 %v2442, %v2434
    %v2619 = vpack.c.b16 %v2451, %v2443
    %v2620 = vpack.c.b16 %v2452, %v2444
    %v2621 = vpack.c.b16 %v2453, %v2445
    %v2622 = vpack.c.b16 %v2454, %v2446
    %v2623 = vpack.c.b16 %v2455, %v2447
    %v2624 = vpack.c.b16 %v2456, %v2448
    %v2625 = vpack.c.b16 %v2457, %v2449
    %v2626 = vpack.c.b16 %v2458, %v2450
    %v2627 = vpack.c.b16 %v2467, %v2459
    %v2628 = vpack.c.b16 %v2468, %v2460
    %v2629 = vpack.c.b16 %v2469, %v2461
    %v2630 = vpack.c.b16 %v2470, %v2462
    %v2631 = vpack.c.b16 %v2471, %v2463
    %v2632 = vpack.c.b16 %v2472, %v2464
    %v2633 = vpack.c.b16 %v2473, %v2465
    %v2634 = vpack.c.b16 %v2474, %v2466
    %v2635 = vpack.c.b16 %v2483, %v2475
    %v2636 = vpack.c.b16 %v2484, %v2476
    %v2637 = vpack.c.b16 %v2485, %v2477
    %v2638 = vpack.c.b16 %v2486, %v2478
    %v2639 = vpack.c.b16 %v2487, %v2479
    %v2640 = vpack.c.b16 %v2488, %v2480
    %v2641 = vpack.c.b16 %v2489, %v2481
    %v2642 = vpack.c.b16 %v2490, %v2482
    %v2643 = vpack.c.b16 %v2499, %v2491
    %v2644 = vpack.c.b16 %v2500, %v2492
    %v2645 = vpack.c.b16 %v2501, %v2493
    %v2646 = vpack.c.b16 %v2502, %v2494
    %v2647 = vpack.c.b16 %v2503, %v2495
    %v2648 = vpack.c.b16 %v2504, %v2496
    %v2649 = vpack.c.b16 %v2505, %v2497
    %v2650 = vpack.c.b16 %v2506, %v2498
    %v2651 = vpack.c.b16 %v2515, %v2507
    %v2652 = vpack.c.b16 %v2516, %v2508
    %v2653 = vpack.c.b16 %v2517, %v2509
    %v2654 = vpack.c.b16 %v2518, %v2510
    %v2655 = vpack.c.b16 %v2519, %v2511
    %v2656 = vpack.c.b16 %v2520, %v2512
    %v2657 = vpack.c.b16 %v2521, %v2513
    %v2658 = vpack.c.b16 %v2522, %v2514
    %v2659 = vpack.c.b16 %v2531, %v2523
    %v2660 = vpack.c.b16 %v2532, %v2524
    %v2661 = vpack.c.b16 %v2533, %v2525
    %v2662 = vpack.c.b16 %v2534, %v2526
    %v2663 = vpack.c.b16 %v2535, %v2527
    %v2664 = vpack.c.b16 %v2536, %v2528
    %v2665 = vpack.c.b16 %v2537, %v2529
    %v2666 = vpack.c.b16 %v2538, %v2530
    %2795 = vmatprep.subr.bf16.mxu0 %v2540
    %2796 = vmatpush1.bf16.msra.mxu0 %v2539
    %2797 = vmatprep.subr.bf16.mxu0 %v2548
    %2798 = vmatpush1.bf16.msra.mxu0 %v2547
    %2799 = vmatprep.subr.bf16.mxu0 %v2556
    %2800 = vmatpush1.bf16.msra.mxu0 %v2555
    %2801 = vmatprep.subr.bf16.mxu0 %v2564
    %2802 = vmatpush1.bf16.msra.mxu0 %v2563
    %2803 = vmatprep.subr.bf16.mxu0 %v2572
    %2804 = vmatpush1.bf16.msra.mxu0 %v2571
    %2805 = vmatprep.subr.bf16.mxu0 %v2580
    %2806 = vmatpush1.bf16.msra.mxu0 %v2579
    %2807 = vmatprep.subr.bf16.mxu0 %v2588
    %2808 = vmatpush1.bf16.msra.mxu0 %v2587
    %2809 = vmatprep.subr.bf16.mxu0 %v2596
    %2810 = vmatpush1.bf16.msra.mxu0 %v2595
    %2811 = vmatprep.subr.bf16.mxu0 %v2604
    %2812 = vmatpush1.bf16.msra.mxu0 %v2603
    %2813 = vmatprep.subr.bf16.mxu0 %v2612
    %2814 = vmatpush1.bf16.msra.mxu0 %v2611
    %2815 = vmatprep.subr.bf16.mxu0 %v2620
    %2816 = vmatpush1.bf16.msra.mxu0 %v2619
    %2817 = vmatprep.subr.bf16.mxu0 %v2628
    %2818 = vmatpush1.bf16.msra.mxu0 %v2627
    %2819 = vmatprep.subr.bf16.mxu0 %v2636
    %2820 = vmatpush1.bf16.msra.mxu0 %v2635
    %2821 = vmatprep.subr.bf16.mxu0 %v2644
    %2822 = vmatpush1.bf16.msra.mxu0 %v2643
    %2823 = vmatprep.subr.bf16.mxu0 %v2652
    %2824 = vmatpush1.bf16.msra.mxu0 %v2651
    %2825 = vmatprep.subr.bf16.mxu0 %v2660
    %2826 = vmatpush1.bf16.msra.mxu0 %v2659
    %2827 = vmatprep.mubr.bf16.mxu0 0
    %2828 = vmatmul.mubr.bf16.gmra.mrb[0].mxu0 0
    %v2829 = vpop.f32.mrb[0].mxu0
    %v2830 = vadd.f32 %v2026, %v2829
    %v2831 = vpop.f32.mrb[0].mxu0
    %v2832 = vadd.f32 %v2028, %v2831
    %v2833 = vpop.f32.mrb[0].mxu0
    %v2834 = vpop.f32.mrb[0].mxu0
    %2835 = vdwg.mxu0
    %2836 = vmatprep.subr.bf16.mxu0 %v2542
    %2837 = vmatpush1.bf16.msra.mxu0 %v2541
    %2838 = vmatprep.subr.bf16.mxu0 %v2550
    %2839 = vmatpush1.bf16.msra.mxu0 %v2549
    %2840 = vmatprep.subr.bf16.mxu0 %v2558
    %2841 = vmatpush1.bf16.msra.mxu0 %v2557
    %2842 = vmatprep.subr.bf16.mxu0 %v2566
    %2843 = vmatpush1.bf16.msra.mxu0 %v2565
    %2844 = vmatprep.subr.bf16.mxu0 %v2574
    %2845 = vmatpush1.bf16.msra.mxu0 %v2573
    %2846 = vmatprep.subr.bf16.mxu0 %v2582
    %2847 = vmatpush1.bf16.msra.mxu0 %v2581
    %2848 = vmatprep.subr.bf16.mxu0 %v2590
    %2849 = vmatpush1.bf16.msra.mxu0 %v2589
    %2850 = vmatprep.subr.bf16.mxu0 %v2598
    %2851 = vmatpush1.bf16.msra.mxu0 %v2597
    %2852 = vmatprep.subr.bf16.mxu0 %v2606
    %2853 = vmatpush1.bf16.msra.mxu0 %v2605
    %2854 = vmatprep.subr.bf16.mxu0 %v2614
    %2855 = vmatpush1.bf16.msra.mxu0 %v2613
    %2856 = vmatprep.subr.bf16.mxu0 %v2622
    %2857 = vmatpush1.bf16.msra.mxu0 %v2621
    %2858 = vmatprep.subr.bf16.mxu0 %v2630
    %2859 = vmatpush1.bf16.msra.mxu0 %v2629
    %2860 = vmatprep.subr.bf16.mxu0 %v2638
    %2861 = vmatpush1.bf16.msra.mxu0 %v2637
    %2862 = vmatprep.subr.bf16.mxu0 %v2646
    %2863 = vmatpush1.bf16.msra.mxu0 %v2645
    %2864 = vmatprep.subr.bf16.mxu0 %v2654
    %2865 = vmatpush1.bf16.msra.mxu0 %v2653
    %2866 = vmatprep.subr.bf16.mxu0 %v2662
    %2867 = vmatpush1.bf16.msra.mxu0 %v2661
    %2868 = vmatprep.mubr.bf16.mxu0 0
    %2869 = vmatmul.mubr.bf16.gmra.mrb[0].mxu0 0
    %v2870 = vpop.f32.mrb[0].mxu0
    %v2871 = vadd.f32 %v2067, %v2870
    %v2872 = vpop.f32.mrb[0].mxu0
    %v2873 = vadd.f32 %v2069, %v2872
    %v2874 = vpop.f32.mrb[0].mxu0
    %v2875 = vpop.f32.mrb[0].mxu0
    %2876 = vdwg.mxu0
    %2877 = vmatprep.subr.bf16.mxu0 %v2544
    %2878 = vmatpush1.bf16.msra.mxu0 %v2543
    %2879 = vmatprep.subr.bf16.mxu0 %v2552
    %2880 = vmatpush1.bf16.msra.mxu0 %v2551
    %2881 = vmatprep.subr.bf16.mxu0 %v2560
    %2882 = vmatpush1.bf16.msra.mxu0 %v2559
    %2883 = vmatprep.subr.bf16.mxu0 %v2568
    %2884 = vmatpush1.bf16.msra.mxu0 %v2567
    %2885 = vmatprep.subr.bf16.mxu0 %v2576
    %2886 = vmatpush1.bf16.msra.mxu0 %v2575
    %2887 = vmatprep.subr.bf16.mxu0 %v2584
    %2888 = vmatpush1.bf16.msra.mxu0 %v2583
    %2889 = vmatprep.subr.bf16.mxu0 %v2592
    %2890 = vmatpush1.bf16.msra.mxu0 %v2591
    %2891 = vmatprep.subr.bf16.mxu0 %v2600
    %2892 = vmatpush1.bf16.msra.mxu0 %v2599
    %2893 = vmatprep.subr.bf16.mxu0 %v2608
    %2894 = vmatpush1.bf16.msra.mxu0 %v2607
    %2895 = vmatprep.subr.bf16.mxu0 %v2616
    %2896 = vmatpush1.bf16.msra.mxu0 %v2615
    %2897 = vmatprep.subr.bf16.mxu0 %v2624
    %2898 = vmatpush1.bf16.msra.mxu0 %v2623
    %2899 = vmatprep.subr.bf16.mxu0 %v2632
    %2900 = vmatpush1.bf16.msra.mxu0 %v2631
    %2901 = vmatprep.subr.bf16.mxu0 %v2640
    %2902 = vmatpush1.bf16.msra.mxu0 %v2639
    %2903 = vmatprep.subr.bf16.mxu0 %v2648
    %2904 = vmatpush1.bf16.msra.mxu0 %v2647
    %2905 = vmatprep.subr.bf16.mxu0 %v2656
    %2906 = vmatpush1.bf16.msra.mxu0 %v2655
    %2907 = vmatprep.subr.bf16.mxu0 %v2664
    %2908 = vmatpush1.bf16.msra.mxu0 %v2663
    %2909 = vmatprep.mubr.bf16.mxu0 0
    %2910 = vmatmul.mubr.bf16.gmra.mrb[0].mxu0 0
    %v2911 = vpop.f32.mrb[0].mxu0
    %v2912 = vadd.f32 %v2108, %v2911
    %v2913 = vpop.f32.mrb[0].mxu0
    %v2914 = vadd.f32 %v2110, %v2913
    %v2915 = vpop.f32.mrb[0].mxu0
    %v2916 = vpop.f32.mrb[0].mxu0
    %2917 = vdwg.mxu0
    %2918 = vmatprep.subr.bf16.mxu0 %v2546
    %2919 = vmatpush1.bf16.msra.mxu0 %v2545
    %2920 = vmatprep.subr.bf16.mxu0 %v2554
    %2921 = vmatpush1.bf16.msra.mxu0 %v2553
    %2922 = vmatprep.subr.bf16.mxu0 %v2562
    %2923 = vmatpush1.bf16.msra.mxu0 %v2561
    %2924 = vmatprep.subr.bf16.mxu0 %v2570
    %2925 = vmatpush1.bf16.msra.mxu0 %v2569
    %2926 = vmatprep.subr.bf16.mxu0 %v2578
    %2927 = vmatpush1.bf16.msra.mxu0 %v2577
    %2928 = vmatprep.subr.bf16.mxu0 %v2586
    %2929 = vmatpush1.bf16.msra.mxu0 %v2585
    %2930 = vmatprep.subr.bf16.mxu0 %v2594
    %2931 = vmatpush1.bf16.msra.mxu0 %v2593
    %2932 = vmatprep.subr.bf16.mxu0 %v2602
    %2933 = vmatpush1.bf16.msra.mxu0 %v2601
    %2934 = vmatprep.subr.bf16.mxu0 %v2610
    %2935 = vmatpush1.bf16.msra.mxu0 %v2609
    %2936 = vmatprep.subr.bf16.mxu0 %v2618
    %2937 = vmatpush1.bf16.msra.mxu0 %v2617
    %2938 = vmatprep.subr.bf16.mxu0 %v2626
    %2939 = vmatpush1.bf16.msra.mxu0 %v2625
    %2940 = vmatprep.subr.bf16.mxu0 %v2634
    %2941 = vmatpush1.bf16.msra.mxu0 %v2633
    %2942 = vmatprep.subr.bf16.mxu0 %v2642
    %2943 = vmatpush1.bf16.msra.mxu0 %v2641
    %2944 = vmatprep.subr.bf16.mxu0 %v2650
    %2945 = vmatpush1.bf16.msra.mxu0 %v2649
    %2946 = vmatprep.subr.bf16.mxu0 %v2658
    %2947 = vmatpush1.bf16.msra.mxu0 %v2657
    %2948 = vmatprep.subr.bf16.mxu0 %v2666
    %2949 = vmatpush1.bf16.msra.mxu0 %v2665
    %2950 = vmatprep.mubr.bf16.mxu0 0
    %2951 = vmatmul.mubr.bf16.gmra.mrb[0].mxu0 0
    %v2952 = vpop.f32.mrb[0].mxu0
    %v2953 = vadd.f32 %v2149, %v2952
    %v2954 = vpop.f32.mrb[0].mxu0
    %v2955 = vadd.f32 %v2151, %v2954
    %v2956 = vpop.f32.mrb[0].mxu0
    %v2957 = vpop.f32.mrb[0].mxu0
    %2958 = vdwg.mxu0
    %v2960 = vlaneseq
    %v2961 = vshrl.u32 %v2960, 7
    %v2962 = vsub.s32 0, %v2961
    %v2963 = vrot.slane %v96, %v2962
    %v2964 = vlaneseq
    %v2965 = vshrl.u32 %v2964, 7
    %v2966 = vsub.s32 1, %v2965
    %v2967 = vrot.slane %v96, %v2966
    %v2968 = vlaneseq
    %v2969 = vshrl.u32 %v2968, 7
    %v2970 = vsub.s32 2, %v2969
    %v2971 = vrot.slane %v96, %v2970
    %v2972 = vlaneseq
    %v2973 = vshrl.u32 %v2972, 7
    %v2974 = vsub.s32 3, %v2973
    %v2975 = vrot.slane %v96, %v2974
    %v2976 = vlaneseq
    %v2977 = vshrl.u32 %v2976, 7
    %v2978 = vsub.s32 4, %v2977
    %v2979 = vrot.slane %v96, %v2978
    %v2980 = vlaneseq
    %v2981 = vshrl.u32 %v2980, 7
    %v2982 = vsub.s32 5, %v2981
    %v2983 = vrot.slane %v96, %v2982
    %v2984 = vlaneseq
    %v2985 = vshrl.u32 %v2984, 7
    %v2986 = vsub.s32 6, %v2985
    %v2987 = vrot.slane %v96, %v2986
    %v2988 = vlaneseq
    %v2989 = vshrl.u32 %v2988, 7
    %v2990 = vsub.s32 7, %v2989
    %v2991 = vrot.slane %v96, %v2990
    %v3000 = vadd.f32 %v2830, %v2963
    %v3001 = vadd.f32 %v2832, %v2967
    %v3002 = vadd.f32 %v2871, %v2971
    %v3003 = vadd.f32 %v2873, %v2975
    %v3004 = vadd.f32 %v2912, %v2979
    %v3005 = vadd.f32 %v2914, %v2983
    %v3006 = vadd.f32 %v2953, %v2987
    %v3007 = vadd.f32 %v2955, %v2991
    %v3008 = vxor.u32 %v3000, 2147483648
    %v3009 = vxor.u32 %v3001, 2147483648
    %v3010 = vxor.u32 %v3002, 2147483648
    %v3011 = vxor.u32 %v3003, 2147483648
    %v3012 = vxor.u32 %v3004, 2147483648
    %v3013 = vxor.u32 %v3005, 2147483648
    %v3014 = vmul.f32 %v3008, 1.442695
    %v3015 = vpow.pop %v3014
    %v3016 = vmul.f32 %v3009, 1.442695
    %v3017 = vpow.pop %v3016
    %v3018 = vmul.f32 %v3010, 1.442695
    %v3019 = vpow.pop %v3018
    %v3020 = vmul.f32 %v3011, 1.442695
    %v3021 = vpow.pop %v3020
    %v3022 = vmul.f32 %v3012, 1.442695
    %v3023 = vpow.pop %v3022
    %v3024 = vmul.f32 %v3013, 1.442695
    %v3025 = vpow.pop %v3024
    %v3026 = vadd.f32 %v3015, 1.0
    %v3027 = vadd.f32 %v3017, 1.0
    %v3028 = vadd.f32 %v3019, 1.0
    %v3029 = vadd.f32 %v3021, 1.0
    %v3030 = vadd.f32 %v3023, 1.0
    %v3031 = vadd.f32 %v3025, 1.0
    %v3032 = vrcp.pop %v3026
    %v3033 = vmul.f32 1.0, %v3032
    %v3034 = vrcp.pop %v3027
    %v3035 = vmul.f32 1.0, %v3034
    %v3036 = vrcp.pop %v3028
    %v3037 = vmul.f32 1.0, %v3036
    %v3038 = vrcp.pop %v3029
    %v3039 = vmul.f32 1.0, %v3038
    %v3040 = vrcp.pop %v3030
    %v3041 = vmul.f32 1.0, %v3040
    %v3042 = vrcp.pop %v3031
    %v3043 = vmul.f32 1.0, %v3042
    %v3044 = vtanh.pop %v3006
    %v3045 = vtanh.pop %v3007
    %v3046 = vmul.f32 %v3037, 0.0
    %v3047 = vmul.f32 %v3039, 0.0
    %v3048 = vmul.f32 %v3033, %v3044
    %v3049 = vmul.f32 %v3035, %v3045
    %v3050 = vadd.f32 %v3046, %v3048
    %v3051 = vadd.f32 %v3047, %v3049
    %v3052 = vtanh.pop %v3050
    %v3053 = vtanh.pop %v3051
    %v3054 = vmul.f32 %v3041, %v3052
    %v3055 = vmul.f32 %v3043, %v3053
    %v3056 = vpack.c.bf16 %v3054, %v3054
    %v3057 = vpack.c.bf16 %v3055, %v3055
    %s3058 = scalar_lea.vmem [#allocation2], 64
    %v3059 = vld [vmem:[%s3058] sm:$0xff]
    %v3060 = vld [vmem:[%s3058 + $0x8] sm:$0xff]
    %v3061 = vld [vmem:[%s3058 + $0x10] sm:$0xff]
    %v3062 = vld [vmem:[%s3058 + $0x18] sm:$0xff]
    %v3063 = vld [vmem:[%s3058 + $0x20] sm:$0xff]
    %v3064 = vld [vmem:[%s3058 + $0x28] sm:$0xff]
    %v3065 = vld [vmem:[%s3058 + $0x30] sm:$0xff]
    %v3066 = vld [vmem:[%s3058 + $0x38] sm:$0xff]
    %3067 = vmatprep.subr.bf16.mxu0 %v746
    %3068 = vmatpush1.bf16.msra.mxu0 %v745
    %3069 = vmatprep.subr.bf16.mxu0 %v754
    %3070 = vmatpush1.bf16.msra.mxu0 %v753
    %3071 = vmatprep.subr.bf16.mxu0 %v762
    %3072 = vmatpush1.bf16.msra.mxu0 %v761
    %3073 = vmatprep.subr.bf16.mxu0 %v770
    %3074 = vmatpush1.bf16.msra.mxu0 %v769
    %3075 = vmatprep.subr.bf16.mxu0 %v778
    %3076 = vmatpush1.bf16.msra.mxu0 %v777
    %3077 = vmatprep.subr.bf16.mxu0 %v786
    %3078 = vmatpush1.bf16.msra.mxu0 %v785
    %3079 = vmatprep.subr.bf16.mxu0 %v794
    %3080 = vmatpush1.bf16.msra.mxu0 %v793
    %3081 = vmatprep.subr.bf16.mxu0 %v802
    %3082 = vmatpush1.bf16.msra.mxu0 %v801
    %3083 = vmatprep.subr.bf16.mxu0 %v810
    %3084 = vmatpush1.bf16.msra.mxu0 %v809
    %3085 = vmatprep.subr.bf16.mxu0 %v818
    %3086 = vmatpush1.bf16.msra.mxu0 %v817
    %3087 = vmatprep.subr.bf16.mxu0 %v826
    %3088 = vmatpush1.bf16.msra.mxu0 %v825
    %3089 = vmatprep.subr.bf16.mxu0 %v834
    %3090 = vmatpush1.bf16.msra.mxu0 %v833
    %3091 = vmatprep.subr.bf16.mxu0 %v842
    %3092 = vmatpush1.bf16.msra.mxu0 %v841
    %3093 = vmatprep.subr.bf16.mxu0 %v850
    %3094 = vmatpush1.bf16.msra.mxu0 %v849
    %3095 = vmatprep.subr.bf16.mxu0 %v858
    %3096 = vmatpush1.bf16.msra.mxu0 %v857
    %3097 = vmatprep.subr.bf16.mxu0 %v866
    %3098 = vmatpush1.bf16.msra.mxu0 %v865
    %3099 = vmatprep.mubr.bf16.mxu0 %v1222
    %3100 = vmatmul.mubr.bf16.gmra.mrb[0].mxu0 %v1221
    %v3101 = vpop.f32.mrb[0].mxu0
    %v3102 = vadd.f32 0.0, %v3101
    %v3103 = vpop.f32.mrb[0].mxu0
    %v3104 = vadd.f32 0.0, %v3103
    %v3105 = vpop.f32.mrb[0].mxu0
    %v3106 = vpop.f32.mrb[0].mxu0
    %3107 = vdwg.mxu0
    %3108 = vmatprep.subr.bf16.mxu0 %v748
    %3109 = vmatpush1.bf16.msra.mxu0 %v747
    %3110 = vmatprep.subr.bf16.mxu0 %v756
    %3111 = vmatpush1.bf16.msra.mxu0 %v755
    %3112 = vmatprep.subr.bf16.mxu0 %v764
    %3113 = vmatpush1.bf16.msra.mxu0 %v763
    %3114 = vmatprep.subr.bf16.mxu0 %v772
    %3115 = vmatpush1.bf16.msra.mxu0 %v771
    %3116 = vmatprep.subr.bf16.mxu0 %v780
    %3117 = vmatpush1.bf16.msra.mxu0 %v779
    %3118 = vmatprep.subr.bf16.mxu0 %v788
    %3119 = vmatpush1.bf16.msra.mxu0 %v787
    %3120 = vmatprep.subr.bf16.mxu0 %v796
    %3121 = vmatpush1.bf16.msra.mxu0 %v795
    %3122 = vmatprep.subr.bf16.mxu0 %v804
    %3123 = vmatpush1.bf16.msra.mxu0 %v803
    %3124 = vmatprep.subr.bf16.mxu0 %v812
    %3125 = vmatpush1.bf16.msra.mxu0 %v811
    %3126 = vmatprep.subr.bf16.mxu0 %v820
    %3127 = vmatpush1.bf16.msra.mxu0 %v819
    %3128 = vmatprep.subr.bf16.mxu0 %v828
    %3129 = vmatpush1.bf16.msra.mxu0 %v827
    %3130 = vmatprep.subr.bf16.mxu0 %v836
    %3131 = vmatpush1.bf16.msra.mxu0 %v835
    %3132 = vmatprep.subr.bf16.mxu0 %v844
    %3133 = vmatpush1.bf16.msra.mxu0 %v843
    %3134 = vmatprep.subr.bf16.mxu0 %v852
    %3135 = vmatpush1.bf16.msra.mxu0 %v851
    %3136 = vmatprep.subr.bf16.mxu0 %v860
    %3137 = vmatpush1.bf16.msra.mxu0 %v859
    %3138 = vmatprep.subr.bf16.mxu0 %v868
    %3139 = vmatpush1.bf16.msra.mxu0 %v867
    %3140 = vmatprep.mubr.bf16.mxu0 %v1222
    %3141 = vmatmul.mubr.bf16.gmra.mrb[0].mxu0 %v1221
    %v3142 = vpop.f32.mrb[0].mxu0
    %v3143 = vadd.f32 0.0, %v3142
    %v3144 = vpop.f32.mrb[0].mxu0
    %v3145 = vadd.f32 0.0, %v3144
    %v3146 = vpop.f32.mrb[0].mxu0
    %v3147 = vpop.f32.mrb[0].mxu0
    %3148 = vdwg.mxu0
    %3149 = vmatprep.subr.bf16.mxu0 %v750
    %3150 = vmatpush1.bf16.msra.mxu0 %v749
    %3151 = vmatprep.subr.bf16.mxu0 %v758
    %3152 = vmatpush1.bf16.msra.mxu0 %v757
    %3153 = vmatprep.subr.bf16.mxu0 %v766
    %3154 = vmatpush1.bf16.msra.mxu0 %v765
    %3155 = vmatprep.subr.bf16.mxu0 %v774
    %3156 = vmatpush1.bf16.msra.mxu0 %v773
    %3157 = vmatprep.subr.bf16.mxu0 %v782
    %3158 = vmatpush1.bf16.msra.mxu0 %v781
    %3159 = vmatprep.subr.bf16.mxu0 %v790
    %3160 = vmatpush1.bf16.msra.mxu0 %v789
    %3161 = vmatprep.subr.bf16.mxu0 %v798
    %3162 = vmatpush1.bf16.msra.mxu0 %v797
    %3163 = vmatprep.subr.bf16.mxu0 %v806
    %3164 = vmatpush1.bf16.msra.mxu0 %v805
    %3165 = vmatprep.subr.bf16.mxu0 %v814
    %3166 = vmatpush1.bf16.msra.mxu0 %v813
    %3167 = vmatprep.subr.bf16.mxu0 %v822
    %3168 = vmatpush1.bf16.msra.mxu0 %v821
    %3169 = vmatprep.subr.bf16.mxu0 %v830
    %3170 = vmatpush1.bf16.msra.mxu0 %v829
    %3171 = vmatprep.subr.bf16.mxu0 %v838
    %3172 = vmatpush1.bf16.msra.mxu0 %v837
    %3173 = vmatprep.subr.bf16.mxu0 %v846
    %3174 = vmatpush1.bf16.msra.mxu0 %v845
    %3175 = vmatprep.subr.bf16.mxu0 %v854
    %3176 = vmatpush1.bf16.msra.mxu0 %v853
    %3177 = vmatprep.subr.bf16.mxu0 %v862
    %3178 = vmatpush1.bf16.msra.mxu0 %v861
    %3179 = vmatprep.subr.bf16.mxu0 %v870
    %3180 = vmatpush1.bf16.msra.mxu0 %v869
    %3181 = vmatprep.mubr.bf16.mxu0 %v1222
    %3182 = vmatmul.mubr.bf16.gmra.mrb[0].mxu0 %v1221
    %v3183 = vpop.f32.mrb[0].mxu0
    %v3184 = vadd.f32 0.0, %v3183
    %v3185 = vpop.f32.mrb[0].mxu0
    %v3186 = vadd.f32 0.0, %v3185
    %v3187 = vpop.f32.mrb[0].mxu0
    %v3188 = vpop.f32.mrb[0].mxu0
    %3189 = vdwg.mxu0
    %3190 = vmatprep.subr.bf16.mxu0 %v752
    %3191 = vmatpush1.bf16.msra.mxu0 %v751
    %3192 = vmatprep.subr.bf16.mxu0 %v760
    %3193 = vmatpush1.bf16.msra.mxu0 %v759
    %3194 = vmatprep.subr.bf16.mxu0 %v768
    %3195 = vmatpush1.bf16.msra.mxu0 %v767
    %3196 = vmatprep.subr.bf16.mxu0 %v776
    %3197 = vmatpush1.bf16.msra.mxu0 %v775
    %3198 = vmatprep.subr.bf16.mxu0 %v784
    %3199 = vmatpush1.bf16.msra.mxu0 %v783
    %3200 = vmatprep.subr.bf16.mxu0 %v792
    %3201 = vmatpush1.bf16.msra.mxu0 %v791
    %3202 = vmatprep.subr.bf16.mxu0 %v800
    %3203 = vmatpush1.bf16.msra.mxu0 %v799
    %3204 = vmatprep.subr.bf16.mxu0 %v808
    %3205 = vmatpush1.bf16.msra.mxu0 %v807
    %3206 = vmatprep.subr.bf16.mxu0 %v816
    %3207 = vmatpush1.bf16.msra.mxu0 %v815
    %3208 = vmatprep.subr.bf16.mxu0 %v824
    %3209 = vmatpush1.bf16.msra.mxu0 %v823
    %3210 = vmatprep.subr.bf16.mxu0 %v832
    %3211 = vmatpush1.bf16.msra.mxu0 %v831
    %3212 = vmatprep.subr.bf16.mxu0 %v840
    %3213 = vmatpush1.bf16.msra.mxu0 %v839
    %3214 = vmatprep.subr.bf16.mxu0 %v848
    %3215 = vmatpush1.bf16.msra.mxu0 %v847
    %3216 = vmatprep.subr.bf16.mxu0 %v856
    %3217 = vmatpush1.bf16.msra.mxu0 %v855
    %3218 = vmatprep.subr.bf16.mxu0 %v864
    %3219 = vmatpush1.bf16.msra.mxu0 %v863
    %3220 = vmatprep.subr.bf16.mxu0 %v872
    %3221 = vmatpush1.bf16.msra.mxu0 %v871
    %3222 = vmatprep.mubr.bf16.mxu0 %v1222
    %3223 = vmatmul.mubr.bf16.gmra.mrb[0].mxu0 %v1221
    %v3224 = vpop.f32.mrb[0].mxu0
    %v3225 = vadd.f32 0.0, %v3224
    %v3226 = vpop.f32.mrb[0].mxu0
    %v3227 = vadd.f32 0.0, %v3226
    %v3228 = vpop.f32.mrb[0].mxu0
    %v3229 = vpop.f32.mrb[0].mxu0
    %3230 = vdwg.mxu0
    %v3231 = vadd.f32 %v3059, %v3102
    %v3232 = vadd.f32 %v3060, %v3104
    %v3233 = vadd.f32 %v3061, %v3143
    %v3234 = vadd.f32 %v3062, %v3145
    %v3235 = vadd.f32 %v3063, %v3184
    %v3236 = vadd.f32 %v3064, %v3186
    %v3237 = vadd.f32 %v3065, %v3225
    %v3238 = vadd.f32 %v3066, %v3227
    %v3239 = vxor.u32 %v3231, 2147483648
    %v3240 = vxor.u32 %v3232, 2147483648
    %v3241 = vxor.u32 %v3233, 2147483648
    %v3242 = vxor.u32 %v3234, 2147483648
    %v3243 = vxor.u32 %v3235, 2147483648
    %v3244 = vxor.u32 %v3236, 2147483648
    %v3245 = vmul.f32 %v3239, 1.442695
    %v3246 = vpow.pop %v3245
    %v3247 = vmul.f32 %v3240, 1.442695
    %v3248 = vpow.pop %v3247
    %v3249 = vmul.f32 %v3241, 1.442695
    %v3250 = vpow.pop %v3249
    %v3251 = vmul.f32 %v3242, 1.442695
    %v3252 = vpow.pop %v3251
    %v3253 = vmul.f32 %v3243, 1.442695
    %v3254 = vpow.pop %v3253
    %v3255 = vmul.f32 %v3244, 1.442695
    %v3256 = vpow.pop %v3255
    %v3257 = vadd.f32 %v3246, 1.0
    %v3258 = vadd.f32 %v3248, 1.0
    %v3259 = vadd.f32 %v3250, 1.0
    %v3260 = vadd.f32 %v3252, 1.0
    %v3261 = vadd.f32 %v3254, 1.0
    %v3262 = vadd.f32 %v3256, 1.0
    %v3263 = vrcp.pop %v3257
    %v3264 = vmul.f32 1.0, %v3263
    %v3265 = vrcp.pop %v3258
    %v3266 = vmul.f32 1.0, %v3265
    %v3267 = vrcp.pop %v3259
    %v3268 = vmul.f32 1.0, %v3267
    %v3269 = vrcp.pop %v3260
    %v3270 = vmul.f32 1.0, %v3269
    %v3271 = vrcp.pop %v3261
    %v3272 = vmul.f32 1.0, %v3271
    %v3273 = vrcp.pop %v3262
    %v3274 = vmul.f32 1.0, %v3273
    %v3275 = vtanh.pop %v3237
    %v3276 = vtanh.pop %v3238
    %v3277 = vmul.f32 %v3268, %v1215
    %v3278 = vmul.f32 %v3270, %v1216
    %v3279 = vmul.f32 %v3264, %v3275
    %v3280 = vmul.f32 %v3266, %v3276
    %v3281 = vadd.f32 %v3277, %v3279
    %v3282 = vadd.f32 %v3278, %v3280
    %v3283 = vtanh.pop %v3281
    %v3284 = vtanh.pop %v3282
    %v3285 = vmul.f32 %v3272, %v3283
    %v3286 = vmul.f32 %v3274, %v3284
    %v3287 = vpack.c.bf16 %v3285, %v3285
    %v3288 = vpack.c.bf16 %v3286, %v3286
    %3289 = vmatprep.subr.bf16.mxu0 %v1736
    %3290 = vmatpush1.bf16.msra.mxu0 %v1735
    %3291 = vmatprep.subr.bf16.mxu0 %v1744
    %3292 = vmatpush1.bf16.msra.mxu0 %v1743
    %3293 = vmatprep.subr.bf16.mxu0 %v1752
    %3294 = vmatpush1.bf16.msra.mxu0 %v1751
    %3295 = vmatprep.subr.bf16.mxu0 %v1760
    %3296 = vmatpush1.bf16.msra.mxu0 %v1759
    %3297 = vmatprep.subr.bf16.mxu0 %v1768
    %3298 = vmatpush1.bf16.msra.mxu0 %v1767
    %3299 = vmatprep.subr.bf16.mxu0 %v1776
    %3300 = vmatpush1.bf16.msra.mxu0 %v1775
    %3301 = vmatprep.subr.bf16.mxu0 %v1784
    %3302 = vmatpush1.bf16.msra.mxu0 %v1783
    %3303 = vmatprep.subr.bf16.mxu0 %v1792
    %3304 = vmatpush1.bf16.msra.mxu0 %v1791
    %3305 = vmatprep.subr.bf16.mxu0 %v1800
    %3306 = vmatpush1.bf16.msra.mxu0 %v1799
    %3307 = vmatprep.subr.bf16.mxu0 %v1808
    %3308 = vmatpush1.bf16.msra.mxu0 %v1807
    %3309 = vmatprep.subr.bf16.mxu0 %v1816
    %3310 = vmatpush1.bf16.msra.mxu0 %v1815
    %3311 = vmatprep.subr.bf16.mxu0 %v1824
    %3312 = vmatpush1.bf16.msra.mxu0 %v1823
    %3313 = vmatprep.subr.bf16.mxu0 %v1832
    %3314 = vmatpush1.bf16.msra.mxu0 %v1831
    %3315 = vmatprep.subr.bf16.mxu0 %v1840
    %3316 = vmatpush1.bf16.msra.mxu0 %v1839
    %3317 = vmatprep.subr.bf16.mxu0 %v1848
    %3318 = vmatpush1.bf16.msra.mxu0 %v1847
    %3319 = vmatprep.subr.bf16.mxu0 %v1856
    %3320 = vmatpush1.bf16.msra.mxu0 %v1855
    %3321 = vmatprep.mubr.bf16.mxu0 %v3288
    %3322 = vmatmul.mubr.bf16.gmra.mrb[0].mxu0 %v3287
    %v3323 = vpop.f32.mrb[0].mxu0
    %v3324 = vadd.f32 0.0, %v3323
    %v3325 = vpop.f32.mrb[0].mxu0
    %v3326 = vadd.f32 0.0, %v3325
    %v3327 = vpop.f32.mrb[0].mxu0
    %v3328 = vpop.f32.mrb[0].mxu0
    %3329 = vdwg.mxu0
    %3330 = vmatprep.subr.bf16.mxu0 %v1738
    %3331 = vmatpush1.bf16.msra.mxu0 %v1737
    %3332 = vmatprep.subr.bf16.mxu0 %v1746
    %3333 = vmatpush1.bf16.msra.mxu0 %v1745
    %3334 = vmatprep.subr.bf16.mxu0 %v1754
    %3335 = vmatpush1.bf16.msra.mxu0 %v1753
    %3336 = vmatprep.subr.bf16.mxu0 %v1762
    %3337 = vmatpush1.bf16.msra.mxu0 %v1761
    %3338 = vmatprep.subr.bf16.mxu0 %v1770
    %3339 = vmatpush1.bf16.msra.mxu0 %v1769
    %3340 = vmatprep.subr.bf16.mxu0 %v1778
    %3341 = vmatpush1.bf16.msra.mxu0 %v1777
    %3342 = vmatprep.subr.bf16.mxu0 %v1786
    %3343 = vmatpush1.bf16.msra.mxu0 %v1785
    %3344 = vmatprep.subr.bf16.mxu0 %v1794
    %3345 = vmatpush1.bf16.msra.mxu0 %v1793
    %3346 = vmatprep.subr.bf16.mxu0 %v1802
    %3347 = vmatpush1.bf16.msra.mxu0 %v1801
    %3348 = vmatprep.subr.bf16.mxu0 %v1810
    %3349 = vmatpush1.bf16.msra.mxu0 %v1809
    %3350 = vmatprep.subr.bf16.mxu0 %v1818
    %3351 = vmatpush1.bf16.msra.mxu0 %v1817
    %3352 = vmatprep.subr.bf16.mxu0 %v1826
    %3353 = vmatpush1.bf16.msra.mxu0 %v1825
    %3354 = vmatprep.subr.bf16.mxu0 %v1834
    %3355 = vmatpush1.bf16.msra.mxu0 %v1833
    %3356 = vmatprep.subr.bf16.mxu0 %v1842
    %3357 = vmatpush1.bf16.msra.mxu0 %v1841
    %3358 = vmatprep.subr.bf16.mxu0 %v1850
    %3359 = vmatpush1.bf16.msra.mxu0 %v1849
    %3360 = vmatprep.subr.bf16.mxu0 %v1858
    %3361 = vmatpush1.bf16.msra.mxu0 %v1857
    %3362 = vmatprep.mubr.bf16.mxu0 %v3288
    %3363 = vmatmul.mubr.bf16.gmra.mrb[0].mxu0 %v3287
    %v3364 = vpop.f32.mrb[0].mxu0
    %v3365 = vadd.f32 0.0, %v3364
    %v3366 = vpop.f32.mrb[0].mxu0
    %v3367 = vadd.f32 0.0, %v3366
    %v3368 = vpop.f32.mrb[0].mxu0
    %v3369 = vpop.f32.mrb[0].mxu0
    %3370 = vdwg.mxu0
    %3371 = vmatprep.subr.bf16.mxu0 %v1740
    %3372 = vmatpush1.bf16.msra.mxu0 %v1739
    %3373 = vmatprep.subr.bf16.mxu0 %v1748
    %3374 = vmatpush1.bf16.msra.mxu0 %v1747
    %3375 = vmatprep.subr.bf16.mxu0 %v1756
    %3376 = vmatpush1.bf16.msra.mxu0 %v1755
    %3377 = vmatprep.subr.bf16.mxu0 %v1764
    %3378 = vmatpush1.bf16.msra.mxu0 %v1763
    %3379 = vmatprep.subr.bf16.mxu0 %v1772
    %3380 = vmatpush1.bf16.msra.mxu0 %v1771
    %3381 = vmatprep.subr.bf16.mxu0 %v1780
    %3382 = vmatpush1.bf16.msra.mxu0 %v1779
    %3383 = vmatprep.subr.bf16.mxu0 %v1788
    %3384 = vmatpush1.bf16.msra.mxu0 %v1787
    %3385 = vmatprep.subr.bf16.mxu0 %v1796
    %3386 = vmatpush1.bf16.msra.mxu0 %v1795
    %3387 = vmatprep.subr.bf16.mxu0 %v1804
    %3388 = vmatpush1.bf16.msra.mxu0 %v1803
    %3389 = vmatprep.subr.bf16.mxu0 %v1812
    %3390 = vmatpush1.bf16.msra.mxu0 %v1811
    %3391 = vmatprep.subr.bf16.mxu0 %v1820
    %3392 = vmatpush1.bf16.msra.mxu0 %v1819
    %3393 = vmatprep.subr.bf16.mxu0 %v1828
    %3394 = vmatpush1.bf16.msra.mxu0 %v1827
    %3395 = vmatprep.subr.bf16.mxu0 %v1836
    %3396 = vmatpush1.bf16.msra.mxu0 %v1835
    %3397 = vmatprep.subr.bf16.mxu0 %v1844
    %3398 = vmatpush1.bf16.msra.mxu0 %v1843
    %3399 = vmatprep.subr.bf16.mxu0 %v1852
    %3400 = vmatpush1.bf16.msra.mxu0 %v1851
    %3401 = vmatprep.subr.bf16.mxu0 %v1860
    %3402 = vmatpush1.bf16.msra.mxu0 %v1859
    %3403 = vmatprep.mubr.bf16.mxu0 %v3288
    %3404 = vmatmul.mubr.bf16.gmra.mrb[0].mxu0 %v3287
    %v3405 = vpop.f32.mrb[0].mxu0
    %v3406 = vadd.f32 0.0, %v3405
    %v3407 = vpop.f32.mrb[0].mxu0
    %v3408 = vadd.f32 0.0, %v3407
    %v3409 = vpop.f32.mrb[0].mxu0
    %v3410 = vpop.f32.mrb[0].mxu0
    %3411 = vdwg.mxu0
    %3412 = vmatprep.subr.bf16.mxu0 %v1742
    %3413 = vmatpush1.bf16.msra.mxu0 %v1741
    %3414 = vmatprep.subr.bf16.mxu0 %v1750
    %3415 = vmatpush1.bf16.msra.mxu0 %v1749
    %3416 = vmatprep.subr.bf16.mxu0 %v1758
    %3417 = vmatpush1.bf16.msra.mxu0 %v1757
    %3418 = vmatprep.subr.bf16.mxu0 %v1766
    %3419 = vmatpush1.bf16.msra.mxu0 %v1765
    %3420 = vmatprep.subr.bf16.mxu0 %v1774
    %3421 = vmatpush1.bf16.msra.mxu0 %v1773
    %3422 = vmatprep.subr.bf16.mxu0 %v1782
    %3423 = vmatpush1.bf16.msra.mxu0 %v1781
    %3424 = vmatprep.subr.bf16.mxu0 %v1790
    %3425 = vmatpush1.bf16.msra.mxu0 %v1789
    %3426 = vmatprep.subr.bf16.mxu0 %v1798
    %3427 = vmatpush1.bf16.msra.mxu0 %v1797
    %3428 = vmatprep.subr.bf16.mxu0 %v1806
    %3429 = vmatpush1.bf16.msra.mxu0 %v1805
    %3430 = vmatprep.subr.bf16.mxu0 %v1814
    %3431 = vmatpush1.bf16.msra.mxu0 %v1813
    %3432 = vmatprep.subr.bf16.mxu0 %v1822
    %3433 = vmatpush1.bf16.msra.mxu0 %v1821
    %3434 = vmatprep.subr.bf16.mxu0 %v1830
    %3435 = vmatpush1.bf16.msra.mxu0 %v1829
    %3436 = vmatprep.subr.bf16.mxu0 %v1838
    %3437 = vmatpush1.bf16.msra.mxu0 %v1837
    %3438 = vmatprep.subr.bf16.mxu0 %v1846
    %3439 = vmatpush1.bf16.msra.mxu0 %v1845
    %3440 = vmatprep.subr.bf16.mxu0 %v1854
    %3441 = vmatpush1.bf16.msra.mxu0 %v1853
    %3442 = vmatprep.subr.bf16.mxu0 %v1862
    %3443 = vmatpush1.bf16.msra.mxu0 %v1861
    %3444 = vmatprep.mubr.bf16.mxu0 %v3288
    %3445 = vmatmul.mubr.bf16.gmra.mrb[0].mxu0 %v3287
    %v3446 = vpop.f32.mrb[0].mxu0
    %v3447 = vadd.f32 0.0, %v3446
    %v3448 = vpop.f32.mrb[0].mxu0
    %v3449 = vadd.f32 0.0, %v3448
    %v3450 = vpop.f32.mrb[0].mxu0
    %v3451 = vpop.f32.mrb[0].mxu0
    %3452 = vdwg.mxu0
    %3453 = vmatprep.subr.bf16.mxu0 %v2540
    %3454 = vmatpush1.bf16.msra.mxu0 %v2539
    %3455 = vmatprep.subr.bf16.mxu0 %v2548
    %3456 = vmatpush1.bf16.msra.mxu0 %v2547
    %3457 = vmatprep.subr.bf16.mxu0 %v2556
    %3458 = vmatpush1.bf16.msra.mxu0 %v2555
    %3459 = vmatprep.subr.bf16.mxu0 %v2564
    %3460 = vmatpush1.bf16.msra.mxu0 %v2563
    %3461 = vmatprep.subr.bf16.mxu0 %v2572
    %3462 = vmatpush1.bf16.msra.mxu0 %v2571
    %3463 = vmatprep.subr.bf16.mxu0 %v2580
    %3464 = vmatpush1.bf16.msra.mxu0 %v2579
    %3465 = vmatprep.subr.bf16.mxu0 %v2588
    %3466 = vmatpush1.bf16.msra.mxu0 %v2587
    %3467 = vmatprep.subr.bf16.mxu0 %v2596
    %3468 = vmatpush1.bf16.msra.mxu0 %v2595
    %3469 = vmatprep.subr.bf16.mxu0 %v2604
    %3470 = vmatpush1.bf16.msra.mxu0 %v2603
    %3471 = vmatprep.subr.bf16.mxu0 %v2612
    %3472 = vmatpush1.bf16.msra.mxu0 %v2611
    %3473 = vmatprep.subr.bf16.mxu0 %v2620
    %3474 = vmatpush1.bf16.msra.mxu0 %v2619
    %3475 = vmatprep.subr.bf16.mxu0 %v2628
    %3476 = vmatpush1.bf16.msra.mxu0 %v2627
    %3477 = vmatprep.subr.bf16.mxu0 %v2636
    %3478 = vmatpush1.bf16.msra.mxu0 %v2635
    %3479 = vmatprep.subr.bf16.mxu0 %v2644
    %3480 = vmatpush1.bf16.msra.mxu0 %v2643
    %3481 = vmatprep.subr.bf16.mxu0 %v2652
    %3482 = vmatpush1.bf16.msra.mxu0 %v2651
    %3483 = vmatprep.subr.bf16.mxu0 %v2660
    %3484 = vmatpush1.bf16.msra.mxu0 %v2659
    %3485 = vmatprep.mubr.bf16.mxu0 %v3057
    %3486 = vmatmul.mubr.bf16.gmra.mrb[0].mxu0 %v3056
    %v3487 = vpop.f32.mrb[0].mxu0
    %v3488 = vadd.f32 %v3324, %v3487
    %v3489 = vpop.f32.mrb[0].mxu0
    %v3490 = vadd.f32 %v3326, %v3489
    %v3491 = vpop.f32.mrb[0].mxu0
    %v3492 = vpop.f32.mrb[0].mxu0
    %3493 = vdwg.mxu0
    %3494 = vmatprep.subr.bf16.mxu0 %v2542
    %3495 = vmatpush1.bf16.msra.mxu0 %v2541
    %3496 = vmatprep.subr.bf16.mxu0 %v2550
    %3497 = vmatpush1.bf16.msra.mxu0 %v2549
    %3498 = vmatprep.subr.bf16.mxu0 %v2558
    %3499 = vmatpush1.bf16.msra.mxu0 %v2557
    %3500 = vmatprep.subr.bf16.mxu0 %v2566
    %3501 = vmatpush1.bf16.msra.mxu0 %v2565
    %3502 = vmatprep.subr.bf16.mxu0 %v2574
    %3503 = vmatpush1.bf16.msra.mxu0 %v2573
    %3504 = vmatprep.subr.bf16.mxu0 %v2582
    %3505 = vmatpush1.bf16.msra.mxu0 %v2581
    %3506 = vmatprep.subr.bf16.mxu0 %v2590
    %3507 = vmatpush1.bf16.msra.mxu0 %v2589
    %3508 = vmatprep.subr.bf16.mxu0 %v2598
    %3509 = vmatpush1.bf16.msra.mxu0 %v2597
    %3510 = vmatprep.subr.bf16.mxu0 %v2606
    %3511 = vmatpush1.bf16.msra.mxu0 %v2605
    %3512 = vmatprep.subr.bf16.mxu0 %v2614
    %3513 = vmatpush1.bf16.msra.mxu0 %v2613
    %3514 = vmatprep.subr.bf16.mxu0 %v2622
    %3515 = vmatpush1.bf16.msra.mxu0 %v2621
    %3516 = vmatprep.subr.bf16.mxu0 %v2630
    %3517 = vmatpush1.bf16.msra.mxu0 %v2629
    %3518 = vmatprep.subr.bf16.mxu0 %v2638
    %3519 = vmatpush1.bf16.msra.mxu0 %v2637
    %3520 = vmatprep.subr.bf16.mxu0 %v2646
    %3521 = vmatpush1.bf16.msra.mxu0 %v2645
    %3522 = vmatprep.subr.bf16.mxu0 %v2654
    %3523 = vmatpush1.bf16.msra.mxu0 %v2653
    %3524 = vmatprep.subr.bf16.mxu0 %v2662
    %3525 = vmatpush1.bf16.msra.mxu0 %v2661
    %3526 = vmatprep.mubr.bf16.mxu0 %v3057
    %3527 = vmatmul.mubr.bf16.gmra.mrb[0].mxu0 %v3056
    %v3528 = vpop.f32.mrb[0].mxu0
    %v3529 = vadd.f32 %v3365, %v3528
    %v3530 = vpop.f32.mrb[0].mxu0
    %v3531 = vadd.f32 %v3367, %v3530
    %v3532 = vpop.f32.mrb[0].mxu0
    %v3533 = vpop.f32.mrb[0].mxu0
    %3534 = vdwg.mxu0
    %3535 = vmatprep.subr.bf16.mxu0 %v2544
    %3536 = vmatpush1.bf16.msra.mxu0 %v2543
    %3537 = vmatprep.subr.bf16.mxu0 %v2552
    %3538 = vmatpush1.bf16.msra.mxu0 %v2551
    %3539 = vmatprep.subr.bf16.mxu0 %v2560
    %3540 = vmatpush1.bf16.msra.mxu0 %v2559
    %3541 = vmatprep.subr.bf16.mxu0 %v2568
    %3542 = vmatpush1.bf16.msra.mxu0 %v2567
    %3543 = vmatprep.subr.bf16.mxu0 %v2576
    %3544 = vmatpush1.bf16.msra.mxu0 %v2575
    %3545 = vmatprep.subr.bf16.mxu0 %v2584
    %3546 = vmatpush1.bf16.msra.mxu0 %v2583
    %3547 = vmatprep.subr.bf16.mxu0 %v2592
    %3548 = vmatpush1.bf16.msra.mxu0 %v2591
    %3549 = vmatprep.subr.bf16.mxu0 %v2600
    %3550 = vmatpush1.bf16.msra.mxu0 %v2599
    %3551 = vmatprep.subr.bf16.mxu0 %v2608
    %3552 = vmatpush1.bf16.msra.mxu0 %v2607
    %3553 = vmatprep.subr.bf16.mxu0 %v2616
    %3554 = vmatpush1.bf16.msra.mxu0 %v2615
    %3555 = vmatprep.subr.bf16.mxu0 %v2624
    %3556 = vmatpush1.bf16.msra.mxu0 %v2623
    %3557 = vmatprep.subr.bf16.mxu0 %v2632
    %3558 = vmatpush1.bf16.msra.mxu0 %v2631
    %3559 = vmatprep.subr.bf16.mxu0 %v2640
    %3560 = vmatpush1.bf16.msra.mxu0 %v2639
    %3561 = vmatprep.subr.bf16.mxu0 %v2648
    %3562 = vmatpush1.bf16.msra.mxu0 %v2647
    %3563 = vmatprep.subr.bf16.mxu0 %v2656
    %3564 = vmatpush1.bf16.msra.mxu0 %v2655
    %3565 = vmatprep.subr.bf16.mxu0 %v2664
    %3566 = vmatpush1.bf16.msra.mxu0 %v2663
    %3567 = vmatprep.mubr.bf16.mxu0 %v3057
    %3568 = vmatmul.mubr.bf16.gmra.mrb[0].mxu0 %v3056
    %v3569 = vpop.f32.mrb[0].mxu0
    %v3570 = vadd.f32 %v3406, %v3569
    %v3571 = vpop.f32.mrb[0].mxu0
    %v3572 = vadd.f32 %v3408, %v3571
    %v3573 = vpop.f32.mrb[0].mxu0
    %v3574 = vpop.f32.mrb[0].mxu0
    %3575 = vdwg.mxu0
    %3576 = vmatprep.subr.bf16.mxu0 %v2546
    %3577 = vmatpush1.bf16.msra.mxu0 %v2545
    %3578 = vmatprep.subr.bf16.mxu0 %v2554
    %3579 = vmatpush1.bf16.msra.mxu0 %v2553
    %3580 = vmatprep.subr.bf16.mxu0 %v2562
    %3581 = vmatpush1.bf16.msra.mxu0 %v2561
    %3582 = vmatprep.subr.bf16.mxu0 %v2570
    %3583 = vmatpush1.bf16.msra.mxu0 %v2569
    %3584 = vmatprep.subr.bf16.mxu0 %v2578
    %3585 = vmatpush1.bf16.msra.mxu0 %v2577
    %3586 = vmatprep.subr.bf16.mxu0 %v2586
    %3587 = vmatpush1.bf16.msra.mxu0 %v2585
    %3588 = vmatprep.subr.bf16.mxu0 %v2594
    %3589 = vmatpush1.bf16.msra.mxu0 %v2593
    %3590 = vmatprep.subr.bf16.mxu0 %v2602
    %3591 = vmatpush1.bf16.msra.mxu0 %v2601
    %3592 = vmatprep.subr.bf16.mxu0 %v2610
    %3593 = vmatpush1.bf16.msra.mxu0 %v2609
    %3594 = vmatprep.subr.bf16.mxu0 %v2618
    %3595 = vmatpush1.bf16.msra.mxu0 %v2617
    %3596 = vmatprep.subr.bf16.mxu0 %v2626
    %3597 = vmatpush1.bf16.msra.mxu0 %v2625
    %3598 = vmatprep.subr.bf16.mxu0 %v2634
    %3599 = vmatpush1.bf16.msra.mxu0 %v2633
    %3600 = vmatprep.subr.bf16.mxu0 %v2642
    %3601 = vmatpush1.bf16.msra.mxu0 %v2641
    %3602 = vmatprep.subr.bf16.mxu0 %v2650
    %3603 = vmatpush1.bf16.msra.mxu0 %v2649
    %3604 = vmatprep.subr.bf16.mxu0 %v2658
    %3605 = vmatpush1.bf16.msra.mxu0 %v2657
    %3606 = vmatprep.subr.bf16.mxu0 %v2666
    %3607 = vmatpush1.bf16.msra.mxu0 %v2665
    %3608 = vmatprep.mubr.bf16.mxu0 %v3057
    %3609 = vmatmul.mubr.bf16.gmra.mrb[0].mxu0 %v3056
    %v3610 = vpop.f32.mrb[0].mxu0
    %v3611 = vadd.f32 %v3447, %v3610
    %v3612 = vpop.f32.mrb[0].mxu0
    %v3613 = vadd.f32 %v3449, %v3612
    %v3614 = vpop.f32.mrb[0].mxu0
    %v3615 = vpop.f32.mrb[0].mxu0
    %3616 = vdwg.mxu0
    %v3617 = vadd.f32 %v3488, %v2963
    %v3618 = vadd.f32 %v3490, %v2967
    %v3619 = vadd.f32 %v3529, %v2971
    %v3620 = vadd.f32 %v3531, %v2975
    %v3621 = vadd.f32 %v3570, %v2979
    %v3622 = vadd.f32 %v3572, %v2983
    %v3623 = vadd.f32 %v3611, %v2987
    %v3624 = vadd.f32 %v3613, %v2991
    %v3625 = vxor.u32 %v3617, 2147483648
    %v3626 = vxor.u32 %v3618, 2147483648
    %v3627 = vxor.u32 %v3619, 2147483648
    %v3628 = vxor.u32 %v3620, 2147483648
    %v3629 = vxor.u32 %v3621, 2147483648
    %v3630 = vxor.u32 %v3622, 2147483648
    %v3631 = vmul.f32 %v3625, 1.442695
    %v3632 = vpow.pop %v3631
    %v3633 = vmul.f32 %v3626, 1.442695
    %v3634 = vpow.pop %v3633
    %v3635 = vmul.f32 %v3627, 1.442695
    %v3636 = vpow.pop %v3635
    %v3637 = vmul.f32 %v3628, 1.442695
    %v3638 = vpow.pop %v3637
    %v3639 = vmul.f32 %v3629, 1.442695
    %v3640 = vpow.pop %v3639
    %v3641 = vmul.f32 %v3630, 1.442695
    %v3642 = vpow.pop %v3641
    %v3643 = vadd.f32 %v3632, 1.0
    %v3644 = vadd.f32 %v3634, 1.0
    %v3645 = vadd.f32 %v3636, 1.0
    %v3646 = vadd.f32 %v3638, 1.0
    %v3647 = vadd.f32 %v3640, 1.0
    %v3648 = vadd.f32 %v3642, 1.0
    %v3649 = vrcp.pop %v3643
    %v3650 = vmul.f32 1.0, %v3649
    %v3651 = vrcp.pop %v3644
    %v3652 = vmul.f32 1.0, %v3651
    %v3653 = vrcp.pop %v3645
    %v3654 = vmul.f32 1.0, %v3653
    %v3655 = vrcp.pop %v3646
    %v3656 = vmul.f32 1.0, %v3655
    %v3657 = vrcp.pop %v3647
    %v3658 = vmul.f32 1.0, %v3657
    %v3659 = vrcp.pop %v3648
    %v3660 = vmul.f32 1.0, %v3659
    %v3661 = vtanh.pop %v3623
    %v3662 = vtanh.pop %v3624
    %v3663 = vmul.f32 %v3654, %v3050
    %v3664 = vmul.f32 %v3656, %v3051
    %v3665 = vmul.f32 %v3650, %v3661
    %v3666 = vmul.f32 %v3652, %v3662
    %v3667 = vadd.f32 %v3663, %v3665
    %v3668 = vadd.f32 %v3664, %v3666
    %v3669 = vtanh.pop %v3667
    %v3670 = vtanh.pop %v3668
    %v3671 = vmul.f32 %v3658, %v3669
    %v3672 = vmul.f32 %v3660, %v3670
    %v3673 = vpack.c.bf16 %v3671, %v3671
    %v3674 = vpack.c.bf16 %v3672, %v3672
    %s3675 = scalar_lea.vmem [#allocation2], 128
    %v3676 = vld [vmem:[%s3675] sm:$0xff]
    %v3677 = vld [vmem:[%s3675 + $0x8] sm:$0xff]
    %v3678 = vld [vmem:[%s3675 + $0x10] sm:$0xff]
    %v3679 = vld [vmem:[%s3675 + $0x18] sm:$0xff]
    %v3680 = vld [vmem:[%s3675 + $0x20] sm:$0xff]
    %v3681 = vld [vmem:[%s3675 + $0x28] sm:$0xff]
    %v3682 = vld [vmem:[%s3675 + $0x30] sm:$0xff]
    %v3683 = vld [vmem:[%s3675 + $0x38] sm:$0xff]
    %3684 = vmatprep.subr.bf16.mxu0 %v746
    %3685 = vmatpush1.bf16.msra.mxu0 %v745
    %3686 = vmatprep.subr.bf16.mxu0 %v754
    %3687 = vmatpush1.bf16.msra.mxu0 %v753
    %3688 = vmatprep.subr.bf16.mxu0 %v762
    %3689 = vmatpush1.bf16.msra.mxu0 %v761
    %3690 = vmatprep.subr.bf16.mxu0 %v770
    %3691 = vmatpush1.bf16.msra.mxu0 %v769
    %3692 = vmatprep.subr.bf16.mxu0 %v778
    %3693 = vmatpush1.bf16.msra.mxu0 %v777
    %3694 = vmatprep.subr.bf16.mxu0 %v786
    %3695 = vmatpush1.bf16.msra.mxu0 %v785
    %3696 = vmatprep.subr.bf16.mxu0 %v794
    %3697 = vmatpush1.bf16.msra.mxu0 %v793
    %3698 = vmatprep.subr.bf16.mxu0 %v802
    %3699 = vmatpush1.bf16.msra.mxu0 %v801
    %3700 = vmatprep.subr.bf16.mxu0 %v810
    %3701 = vmatpush1.bf16.msra.mxu0 %v809
    %3702 = vmatprep.subr.bf16.mxu0 %v818
    %3703 = vmatpush1.bf16.msra.mxu0 %v817
    %3704 = vmatprep.subr.bf16.mxu0 %v826
    %3705 = vmatpush1.bf16.msra.mxu0 %v825
    %3706 = vmatprep.subr.bf16.mxu0 %v834
    %3707 = vmatpush1.bf16.msra.mxu0 %v833
    %3708 = vmatprep.subr.bf16.mxu0 %v842
    %3709 = vmatpush1.bf16.msra.mxu0 %v841
    %3710 = vmatprep.subr.bf16.mxu0 %v850
    %3711 = vmatpush1.bf16.msra.mxu0 %v849
    %3712 = vmatprep.subr.bf16.mxu0 %v858
    %3713 = vmatpush1.bf16.msra.mxu0 %v857
    %3714 = vmatprep.subr.bf16.mxu0 %v866
    %3715 = vmatpush1.bf16.msra.mxu0 %v865
    %3716 = vmatprep.mubr.bf16.mxu0 %v3288
    %3717 = vmatmul.mubr.bf16.gmra.mrb[0].mxu0 %v3287
    %v3718 = vpop.f32.mrb[0].mxu0
    %v3719 = vadd.f32 0.0, %v3718
    %v3720 = vpop.f32.mrb[0].mxu0
    %v3721 = vadd.f32 0.0, %v3720
    %v3722 = vpop.f32.mrb[0].mxu0
    %v3723 = vpop.f32.mrb[0].mxu0
    %3724 = vdwg.mxu0
    %3725 = vmatprep.subr.bf16.mxu0 %v748
    %3726 = vmatpush1.bf16.msra.mxu0 %v747
    %3727 = vmatprep.subr.bf16.mxu0 %v756
    %3728 = vmatpush1.bf16.msra.mxu0 %v755
    %3729 = vmatprep.subr.bf16.mxu0 %v764
    %3730 = vmatpush1.bf16.msra.mxu0 %v763
    %3731 = vmatprep.subr.bf16.mxu0 %v772
    %3732 = vmatpush1.bf16.msra.mxu0 %v771
    %3733 = vmatprep.subr.bf16.mxu0 %v780
    %3734 = vmatpush1.bf16.msra.mxu0 %v779
    %3735 = vmatprep.subr.bf16.mxu0 %v788
    %3736 = vmatpush1.bf16.msra.mxu0 %v787
    %3737 = vmatprep.subr.bf16.mxu0 %v796
    %3738 = vmatpush1.bf16.msra.mxu0 %v795
    %3739 = vmatprep.subr.bf16.mxu0 %v804
    %3740 = vmatpush1.bf16.msra.mxu0 %v803
    %3741 = vmatprep.subr.bf16.mxu0 %v812
    %3742 = vmatpush1.bf16.msra.mxu0 %v811
    %3743 = vmatprep.subr.bf16.mxu0 %v820
    %3744 = vmatpush1.bf16.msra.mxu0 %v819
    %3745 = vmatprep.subr.bf16.mxu0 %v828
    %3746 = vmatpush1.bf16.msra.mxu0 %v827
    %3747 = vmatprep.subr.bf16.mxu0 %v836
    %3748 = vmatpush1.bf16.msra.mxu0 %v835
    %3749 = vmatprep.subr.bf16.mxu0 %v844
    %3750 = vmatpush1.bf16.msra.mxu0 %v843
    %3751 = vmatprep.subr.bf16.mxu0 %v852
    %3752 = vmatpush1.bf16.msra.mxu0 %v851
    %3753 = vmatprep.subr.bf16.mxu0 %v860
    %3754 = vmatpush1.bf16.msra.mxu0 %v859
    %3755 = vmatprep.subr.bf16.mxu0 %v868
    %3756 = vmatpush1.bf16.msra.mxu0 %v867
    %3757 = vmatprep.mubr.bf16.mxu0 %v3288
    %3758 = vmatmul.mubr.bf16.gmra.mrb[0].mxu0 %v3287
    %v3759 = vpop.f32.mrb[0].mxu0
    %v3760 = vadd.f32 0.0, %v3759
    %v3761 = vpop.f32.mrb[0].mxu0
    %v3762 = vadd.f32 0.0, %v3761
    %v3763 = vpop.f32.mrb[0].mxu0
    %v3764 = vpop.f32.mrb[0].mxu0
    %3765 = vdwg.mxu0
    %3766 = vmatprep.subr.bf16.mxu0 %v750
    %3767 = vmatpush1.bf16.msra.mxu0 %v749
    %3768 = vmatprep.subr.bf16.mxu0 %v758
    %3769 = vmatpush1.bf16.msra.mxu0 %v757
    %3770 = vmatprep.subr.bf16.mxu0 %v766
    %3771 = vmatpush1.bf16.msra.mxu0 %v765
    %3772 = vmatprep.subr.bf16.mxu0 %v774
    %3773 = vmatpush1.bf16.msra.mxu0 %v773
    %3774 = vmatprep.subr.bf16.mxu0 %v782
    %3775 = vmatpush1.bf16.msra.mxu0 %v781
    %3776 = vmatprep.subr.bf16.mxu0 %v790
    %3777 = vmatpush1.bf16.msra.mxu0 %v789
    %3778 = vmatprep.subr.bf16.mxu0 %v798
    %3779 = vmatpush1.bf16.msra.mxu0 %v797
    %3780 = vmatprep.subr.bf16.mxu0 %v806
    %3781 = vmatpush1.bf16.msra.mxu0 %v805
    %3782 = vmatprep.subr.bf16.mxu0 %v814
    %3783 = vmatpush1.bf16.msra.mxu0 %v813
    %3784 = vmatprep.subr.bf16.mxu0 %v822
    %3785 = vmatpush1.bf16.msra.mxu0 %v821
    %3786 = vmatprep.subr.bf16.mxu0 %v830
    %3787 = vmatpush1.bf16.msra.mxu0 %v829
    %3788 = vmatprep.subr.bf16.mxu0 %v838
    %3789 = vmatpush1.bf16.msra.mxu0 %v837
    %3790 = vmatprep.subr.bf16.mxu0 %v846
    %3791 = vmatpush1.bf16.msra.mxu0 %v845
    %3792 = vmatprep.subr.bf16.mxu0 %v854
    %3793 = vmatpush1.bf16.msra.mxu0 %v853
    %3794 = vmatprep.subr.bf16.mxu0 %v862
    %3795 = vmatpush1.bf16.msra.mxu0 %v861
    %3796 = vmatprep.subr.bf16.mxu0 %v870
    %3797 = vmatpush1.bf16.msra.mxu0 %v869
    %3798 = vmatprep.mubr.bf16.mxu0 %v3288
    %3799 = vmatmul.mubr.bf16.gmra.mrb[0].mxu0 %v3287
    %v3800 = vpop.f32.mrb[0].mxu0
    %v3801 = vadd.f32 0.0, %v3800
    %v3802 = vpop.f32.mrb[0].mxu0
    %v3803 = vadd.f32 0.0, %v3802
    %v3804 = vpop.f32.mrb[0].mxu0
    %v3805 = vpop.f32.mrb[0].mxu0
    %3806 = vdwg.mxu0
    %3807 = vmatprep.subr.bf16.mxu0 %v752
    %3808 = vmatpush1.bf16.msra.mxu0 %v751
    %3809 = vmatprep.subr.bf16.mxu0 %v760
    %3810 = vmatpush1.bf16.msra.mxu0 %v759
    %3811 = vmatprep.subr.bf16.mxu0 %v768
    %3812 = vmatpush1.bf16.msra.mxu0 %v767
    %3813 = vmatprep.subr.bf16.mxu0 %v776
    %3814 = vmatpush1.bf16.msra.mxu0 %v775
    %3815 = vmatprep.subr.bf16.mxu0 %v784
    %3816 = vmatpush1.bf16.msra.mxu0 %v783
    %3817 = vmatprep.subr.bf16.mxu0 %v792
    %3818 = vmatpush1.bf16.msra.mxu0 %v791
    %3819 = vmatprep.subr.bf16.mxu0 %v800
    %3820 = vmatpush1.bf16.msra.mxu0 %v799
    %3821 = vmatprep.subr.bf16.mxu0 %v808
    %3822 = vmatpush1.bf16.msra.mxu0 %v807
    %3823 = vmatprep.subr.bf16.mxu0 %v816
    %3824 = vmatpush1.bf16.msra.mxu0 %v815
    %3825 = vmatprep.subr.bf16.mxu0 %v824
    %3826 = vmatpush1.bf16.msra.mxu0 %v823
    %3827 = vmatprep.subr.bf16.mxu0 %v832
    %3828 = vmatpush1.bf16.msra.mxu0 %v831
    %3829 = vmatprep.subr.bf16.mxu0 %v840
    %3830 = vmatpush1.bf16.msra.mxu0 %v839
    %3831 = vmatprep.subr.bf16.mxu0 %v848
    %3832 = vmatpush1.bf16.msra.mxu0 %v847
    %3833 = vmatprep.subr.bf16.mxu0 %v856
    %3834 = vmatpush1.bf16.msra.mxu0 %v855
    %3835 = vmatprep.subr.bf16.mxu0 %v864
    %3836 = vmatpush1.bf16.msra.mxu0 %v863
    %3837 = vmatprep.subr.bf16.mxu0 %v872
    %3838 = vmatpush1.bf16.msra.mxu0 %v871
    %3839 = vmatprep.mubr.bf16.mxu0 %v3288
    %3840 = vmatmul.mubr.bf16.gmra.mrb[0].mxu0 %v3287
    %v3841 = vpop.f32.mrb[0].mxu0
    %v3842 = vadd.f32 0.0, %v3841
    %v3843 = vpop.f32.mrb[0].mxu0
    %v3844 = vadd.f32 0.0, %v3843
    %v3845 = vpop.f32.mrb[0].mxu0
    %v3846 = vpop.f32.mrb[0].mxu0
    %3847 = vdwg.mxu0
    %v3848 = vadd.f32 %v3676, %v3719
    %v3849 = vadd.f32 %v3677, %v3721
    %v3850 = vadd.f32 %v3678, %v3760
    %v3851 = vadd.f32 %v3679, %v3762
    %v3852 = vadd.f32 %v3680, %v3801
    %v3853 = vadd.f32 %v3681, %v3803
    %v3854 = vadd.f32 %v3682, %v3842
    %v3855 = vadd.f32 %v3683, %v3844
    %v3856 = vxor.u32 %v3848, 2147483648
    %v3857 = vxor.u32 %v3849, 2147483648
    %v3858 = vxor.u32 %v3850, 2147483648
    %v3859 = vxor.u32 %v3851, 2147483648
    %v3860 = vxor.u32 %v3852, 2147483648
    %v3861 = vxor.u32 %v3853, 2147483648
    %v3862 = vmul.f32 %v3856, 1.442695
    %v3863 = vpow.pop %v3862
    %v3864 = vmul.f32 %v3857, 1.442695
    %v3865 = vpow.pop %v3864
    %v3866 = vmul.f32 %v3858, 1.442695
    %v3867 = vpow.pop %v3866
    %v3868 = vmul.f32 %v3859, 1.442695
    %v3869 = vpow.pop %v3868
    %v3870 = vmul.f32 %v3860, 1.442695
    %v3871 = vpow.pop %v3870
    %v3872 = vmul.f32 %v3861, 1.442695
    %v3873 = vpow.pop %v3872
    %v3874 = vadd.f32 %v3863, 1.0
    %v3875 = vadd.f32 %v3865, 1.0
    %v3876 = vadd.f32 %v3867, 1.0
    %v3877 = vadd.f32 %v3869, 1.0
    %v3878 = vadd.f32 %v3871, 1.0
    %v3879 = vadd.f32 %v3873, 1.0
    %v3880 = vrcp.pop %v3874
    %v3881 = vmul.f32 1.0, %v3880
    %v3882 = vrcp.pop %v3875
    %v3883 = vmul.f32 1.0, %v3882
    %v3884 = vrcp.pop %v3876
    %v3885 = vmul.f32 1.0, %v3884
    %v3886 = vrcp.pop %v3877
    %v3887 = vmul.f32 1.0, %v3886
    %v3888 = vrcp.pop %v3878
    %v3889 = vmul.f32 1.0, %v3888
    %v3890 = vrcp.pop %v3879
    %v3891 = vmul.f32 1.0, %v3890
    %v3892 = vtanh.pop %v3854
    %v3893 = vtanh.pop %v3855
    %v3894 = vmul.f32 %v3885, %v3281
    %v3895 = vmul.f32 %v3887, %v3282
    %v3896 = vmul.f32 %v3881, %v3892
    %v3897 = vmul.f32 %v3883, %v3893
    %v3898 = vadd.f32 %v3894, %v3896
    %v3899 = vadd.f32 %v3895, %v3897
    %v3900 = vtanh.pop %v3898
    %v3901 = vtanh.pop %v3899
    %v3902 = vmul.f32 %v3889, %v3900
    %v3903 = vmul.f32 %v3891, %v3901
    %v3904 = vpack.c.bf16 %v3902, %v3902
    %v3905 = vpack.c.bf16 %v3903, %v3903
    %3906 = vmatprep.subr.bf16.mxu0 %v1736
    %3907 = vmatpush1.bf16.msra.mxu0 %v1735
    %3908 = vmatprep.subr.bf16.mxu0 %v1744
    %3909 = vmatpush1.bf16.msra.mxu0 %v1743
    %3910 = vmatprep.subr.bf16.mxu0 %v1752
    %3911 = vmatpush1.bf16.msra.mxu0 %v1751
    %3912 = vmatprep.subr.bf16.mxu0 %v1760
    %3913 = vmatpush1.bf16.msra.mxu0 %v1759
    %3914 = vmatprep.subr.bf16.mxu0 %v1768
    %3915 = vmatpush1.bf16.msra.mxu0 %v1767
    %3916 = vmatprep.subr.bf16.mxu0 %v1776
    %3917 = vmatpush1.bf16.msra.mxu0 %v1775
    %3918 = vmatprep.subr.bf16.mxu0 %v1784
    %3919 = vmatpush1.bf16.msra.mxu0 %v1783
    %3920 = vmatprep.subr.bf16.mxu0 %v1792
    %3921 = vmatpush1.bf16.msra.mxu0 %v1791
    %3922 = vmatprep.subr.bf16.mxu0 %v1800
    %3923 = vmatpush1.bf16.msra.mxu0 %v1799
    %3924 = vmatprep.subr.bf16.mxu0 %v1808
    %3925 = vmatpush1.bf16.msra.mxu0 %v1807
    %3926 = vmatprep.subr.bf16.mxu0 %v1816
    %3927 = vmatpush1.bf16.msra.mxu0 %v1815
    %3928 = vmatprep.subr.bf16.mxu0 %v1824
    %3929 = vmatpush1.bf16.msra.mxu0 %v1823
    %3930 = vmatprep.subr.bf16.mxu0 %v1832
    %3931 = vmatpush1.bf16.msra.mxu0 %v1831
    %3932 = vmatprep.subr.bf16.mxu0 %v1840
    %3933 = vmatpush1.bf16.msra.mxu0 %v1839
    %3934 = vmatprep.subr.bf16.mxu0 %v1848
    %3935 = vmatpush1.bf16.msra.mxu0 %v1847
    %3936 = vmatprep.subr.bf16.mxu0 %v1856
    %3937 = vmatpush1.bf16.msra.mxu0 %v1855
    %3938 = vmatprep.mubr.bf16.mxu0 %v3905
    %3939 = vmatmul.mubr.bf16.gmra.mrb[0].mxu0 %v3904
    %v3940 = vpop.f32.mrb[0].mxu0
    %v3941 = vadd.f32 0.0, %v3940
    %v3942 = vpop.f32.mrb[0].mxu0
    %v3943 = vadd.f32 0.0, %v3942
    %v3944 = vpop.f32.mrb[0].mxu0
    %v3945 = vpop.f32.mrb[0].mxu0
    %3946 = vdwg.mxu0
    %3947 = vmatprep.subr.bf16.mxu0 %v1738
    %3948 = vmatpush1.bf16.msra.mxu0 %v1737
    %3949 = vmatprep.subr.bf16.mxu0 %v1746
    %3950 = vmatpush1.bf16.msra.mxu0 %v1745
    %3951 = vmatprep.subr.bf16.mxu0 %v1754
    %3952 = vmatpush1.bf16.msra.mxu0 %v1753
    %3953 = vmatprep.subr.bf16.mxu0 %v1762
    %3954 = vmatpush1.bf16.msra.mxu0 %v1761
    %3955 = vmatprep.subr.bf16.mxu0 %v1770
    %3956 = vmatpush1.bf16.msra.mxu0 %v1769
    %3957 = vmatprep.subr.bf16.mxu0 %v1778
    %3958 = vmatpush1.bf16.msra.mxu0 %v1777
    %3959 = vmatprep.subr.bf16.mxu0 %v1786
    %3960 = vmatpush1.bf16.msra.mxu0 %v1785
    %3961 = vmatprep.subr.bf16.mxu0 %v1794
    %3962 = vmatpush1.bf16.msra.mxu0 %v1793
    %3963 = vmatprep.subr.bf16.mxu0 %v1802
    %3964 = vmatpush1.bf16.msra.mxu0 %v1801
    %3965 = vmatprep.subr.bf16.mxu0 %v1810
    %3966 = vmatpush1.bf16.msra.mxu0 %v1809
    %3967 = vmatprep.subr.bf16.mxu0 %v1818
    %3968 = vmatpush1.bf16.msra.mxu0 %v1817
    %3969 = vmatprep.subr.bf16.mxu0 %v1826
    %3970 = vmatpush1.bf16.msra.mxu0 %v1825
    %3971 = vmatprep.subr.bf16.mxu0 %v1834
    %3972 = vmatpush1.bf16.msra.mxu0 %v1833
    %3973 = vmatprep.subr.bf16.mxu0 %v1842
    %3974 = vmatpush1.bf16.msra.mxu0 %v1841
    %3975 = vmatprep.subr.bf16.mxu0 %v1850
    %3976 = vmatpush1.bf16.msra.mxu0 %v1849
    %3977 = vmatprep.subr.bf16.mxu0 %v1858
    %3978 = vmatpush1.bf16.msra.mxu0 %v1857
    %3979 = vmatprep.mubr.bf16.mxu0 %v3905
    %3980 = vmatmul.mubr.bf16.gmra.mrb[0].mxu0 %v3904
    %v3981 = vpop.f32.mrb[0].mxu0
    %v3982 = vadd.f32 0.0, %v3981
    %v3983 = vpop.f32.mrb[0].mxu0
    %v3984 = vadd.f32 0.0, %v3983
    %v3985 = vpop.f32.mrb[0].mxu0
    %v3986 = vpop.f32.mrb[0].mxu0
    %3987 = vdwg.mxu0
    %3988 = vmatprep.subr.bf16.mxu0 %v1740
    %3989 = vmatpush1.bf16.msra.mxu0 %v1739
    %3990 = vmatprep.subr.bf16.mxu0 %v1748
    %3991 = vmatpush1.bf16.msra.mxu0 %v1747
    %3992 = vmatprep.subr.bf16.mxu0 %v1756
    %3993 = vmatpush1.bf16.msra.mxu0 %v1755
    %3994 = vmatprep.subr.bf16.mxu0 %v1764
    %3995 = vmatpush1.bf16.msra.mxu0 %v1763
    %3996 = vmatprep.subr.bf16.mxu0 %v1772
    %3997 = vmatpush1.bf16.msra.mxu0 %v1771
    %3998 = vmatprep.subr.bf16.mxu0 %v1780
    %3999 = vmatpush1.bf16.msra.mxu0 %v1779
    %4000 = vmatprep.subr.bf16.mxu0 %v1788
    %4001 = vmatpush1.bf16.msra.mxu0 %v1787
    %4002 = vmatprep.subr.bf16.mxu0 %v1796
    %4003 = vmatpush1.bf16.msra.mxu0 %v1795
    %4004 = vmatprep.subr.bf16.mxu0 %v1804
    %4005 = vmatpush1.bf16.msra.mxu0 %v1803
    %4006 = vmatprep.subr.bf16.mxu0 %v1812
    %4007 = vmatpush1.bf16.msra.mxu0 %v1811
    %4008 = vmatprep.subr.bf16.mxu0 %v1820
    %4009 = vmatpush1.bf16.msra.mxu0 %v1819
    %4010 = vmatprep.subr.bf16.mxu0 %v1828
    %4011 = vmatpush1.bf16.msra.mxu0 %v1827
    %4012 = vmatprep.subr.bf16.mxu0 %v1836
    %4013 = vmatpush1.bf16.msra.mxu0 %v1835
    %4014 = vmatprep.subr.bf16.mxu0 %v1844
    %4015 = vmatpush1.bf16.msra.mxu0 %v1843
    %4016 = vmatprep.subr.bf16.mxu0 %v1852
    %4017 = vmatpush1.bf16.msra.mxu0 %v1851
    %4018 = vmatprep.subr.bf16.mxu0 %v1860
    %4019 = vmatpush1.bf16.msra.mxu0 %v1859
    %4020 = vmatprep.mubr.bf16.mxu0 %v3905
    %4021 = vmatmul.mubr.bf16.gmra.mrb[0].mxu0 %v3904
    %v4022 = vpop.f32.mrb[0].mxu0
    %v4023 = vadd.f32 0.0, %v4022
    %v4024 = vpop.f32.mrb[0].mxu0
    %v4025 = vadd.f32 0.0, %v4024
    %v4026 = vpop.f32.mrb[0].mxu0
    %v4027 = vpop.f32.mrb[0].mxu0
    %4028 = vdwg.mxu0
    %4029 = vmatprep.subr.bf16.mxu0 %v1742
    %4030 = vmatpush1.bf16.msra.mxu0 %v1741
    %4031 = vmatprep.subr.bf16.mxu0 %v1750
    %4032 = vmatpush1.bf16.msra.mxu0 %v1749
    %4033 = vmatprep.subr.bf16.mxu0 %v1758
    %4034 = vmatpush1.bf16.msra.mxu0 %v1757
    %4035 = vmatprep.subr.bf16.mxu0 %v1766
    %4036 = vmatpush1.bf16.msra.mxu0 %v1765
    %4037 = vmatprep.subr.bf16.mxu0 %v1774
    %4038 = vmatpush1.bf16.msra.mxu0 %v1773
    %4039 = vmatprep.subr.bf16.mxu0 %v1782
    %4040 = vmatpush1.bf16.msra.mxu0 %v1781
    %4041 = vmatprep.subr.bf16.mxu0 %v1790
    %4042 = vmatpush1.bf16.msra.mxu0 %v1789
    %4043 = vmatprep.subr.bf16.mxu0 %v1798
    %4044 = vmatpush1.bf16.msra.mxu0 %v1797
    %4045 = vmatprep.subr.bf16.mxu0 %v1806
    %4046 = vmatpush1.bf16.msra.mxu0 %v1805
    %4047 = vmatprep.subr.bf16.mxu0 %v1814
    %4048 = vmatpush1.bf16.msra.mxu0 %v1813
    %4049 = vmatprep.subr.bf16.mxu0 %v1822
    %4050 = vmatpush1.bf16.msra.mxu0 %v1821
    %4051 = vmatprep.subr.bf16.mxu0 %v1830
    %4052 = vmatpush1.bf16.msra.mxu0 %v1829
    %4053 = vmatprep.subr.bf16.mxu0 %v1838
    %4054 = vmatpush1.bf16.msra.mxu0 %v1837
    %4055 = vmatprep.subr.bf16.mxu0 %v1846
    %4056 = vmatpush1.bf16.msra.mxu0 %v1845
    %4057 = vmatprep.subr.bf16.mxu0 %v1854
    %4058 = vmatpush1.bf16.msra.mxu0 %v1853
    %4059 = vmatprep.subr.bf16.mxu0 %v1862
    %4060 = vmatpush1.bf16.msra.mxu0 %v1861
    %4061 = vmatprep.mubr.bf16.mxu0 %v3905
    %4062 = vmatmul.mubr.bf16.gmra.mrb[0].mxu0 %v3904
    %v4063 = vpop.f32.mrb[0].mxu0
    %v4064 = vadd.f32 0.0, %v4063
    %v4065 = vpop.f32.mrb[0].mxu0
    %v4066 = vadd.f32 0.0, %v4065
    %v4067 = vpop.f32.mrb[0].mxu0
    %v4068 = vpop.f32.mrb[0].mxu0
    %4069 = vdwg.mxu0
    %4070 = vmatprep.subr.bf16.mxu0 %v2540
    %4071 = vmatpush1.bf16.msra.mxu0 %v2539
    %4072 = vmatprep.subr.bf16.mxu0 %v2548
    %4073 = vmatpush1.bf16.msra.mxu0 %v2547
    %4074 = vmatprep.subr.bf16.mxu0 %v2556
    %4075 = vmatpush1.bf16.msra.mxu0 %v2555
    %4076 = vmatprep.subr.bf16.mxu0 %v2564
    %4077 = vmatpush1.bf16.msra.mxu0 %v2563
    %4078 = vmatprep.subr.bf16.mxu0 %v2572
    %4079 = vmatpush1.bf16.msra.mxu0 %v2571
    %4080 = vmatprep.subr.bf16.mxu0 %v2580
    %4081 = vmatpush1.bf16.msra.mxu0 %v2579
    %4082 = vmatprep.subr.bf16.mxu0 %v2588
    %4083 = vmatpush1.bf16.msra.mxu0 %v2587
    %4084 = vmatprep.subr.bf16.mxu0 %v2596
    %4085 = vmatpush1.bf16.msra.mxu0 %v2595
    %4086 = vmatprep.subr.bf16.mxu0 %v2604
    %4087 = vmatpush1.bf16.msra.mxu0 %v2603
    %4088 = vmatprep.subr.bf16.mxu0 %v2612
    %4089 = vmatpush1.bf16.msra.mxu0 %v2611
    %4090 = vmatprep.subr.bf16.mxu0 %v2620
    %4091 = vmatpush1.bf16.msra.mxu0 %v2619
    %4092 = vmatprep.subr.bf16.mxu0 %v2628
    %4093 = vmatpush1.bf16.msra.mxu0 %v2627
    %4094 = vmatprep.subr.bf16.mxu0 %v2636
    %4095 = vmatpush1.bf16.msra.mxu0 %v2635
    %4096 = vmatprep.subr.bf16.mxu0 %v2644
    %4097 = vmatpush1.bf16.msra.mxu0 %v2643
    %4098 = vmatprep.subr.bf16.mxu0 %v2652
    %4099 = vmatpush1.bf16.msra.mxu0 %v2651
    %4100 = vmatprep.subr.bf16.mxu0 %v2660
    %4101 = vmatpush1.bf16.msra.mxu0 %v2659
    %4102 = vmatprep.mubr.bf16.mxu0 %v3674
    %4103 = vmatmul.mubr.bf16.gmra.mrb[0].mxu0 %v3673
    %v4104 = vpop.f32.mrb[0].mxu0
    %v4105 = vadd.f32 %v3941, %v4104
    %v4106 = vpop.f32.mrb[0].mxu0
    %v4107 = vadd.f32 %v3943, %v4106
    %v4108 = vpop.f32.mrb[0].mxu0
    %v4109 = vpop.f32.mrb[0].mxu0
    %4110 = vdwg.mxu0
    %4111 = vmatprep.subr.bf16.mxu0 %v2542
    %4112 = vmatpush1.bf16.msra.mxu0 %v2541
    %4113 = vmatprep.subr.bf16.mxu0 %v2550
    %4114 = vmatpush1.bf16.msra.mxu0 %v2549
    %4115 = vmatprep.subr.bf16.mxu0 %v2558
    %4116 = vmatpush1.bf16.msra.mxu0 %v2557
    %4117 = vmatprep.subr.bf16.mxu0 %v2566
    %4118 = vmatpush1.bf16.msra.mxu0 %v2565
    %4119 = vmatprep.subr.bf16.mxu0 %v2574
    %4120 = vmatpush1.bf16.msra.mxu0 %v2573
    %4121 = vmatprep.subr.bf16.mxu0 %v2582
    %4122 = vmatpush1.bf16.msra.mxu0 %v2581
    %4123 = vmatprep.subr.bf16.mxu0 %v2590
    %4124 = vmatpush1.bf16.msra.mxu0 %v2589
    %4125 = vmatprep.subr.bf16.mxu0 %v2598
    %4126 = vmatpush1.bf16.msra.mxu0 %v2597
    %4127 = vmatprep.subr.bf16.mxu0 %v2606
    %4128 = vmatpush1.bf16.msra.mxu0 %v2605
    %4129 = vmatprep.subr.bf16.mxu0 %v2614
    %4130 = vmatpush1.bf16.msra.mxu0 %v2613
    %4131 = vmatprep.subr.bf16.mxu0 %v2622
    %4132 = vmatpush1.bf16.msra.mxu0 %v2621
    %4133 = vmatprep.subr.bf16.mxu0 %v2630
    %4134 = vmatpush1.bf16.msra.mxu0 %v2629
    %4135 = vmatprep.subr.bf16.mxu0 %v2638
    %4136 = vmatpush1.bf16.msra.mxu0 %v2637
    %4137 = vmatprep.subr.bf16.mxu0 %v2646
    %4138 = vmatpush1.bf16.msra.mxu0 %v2645
    %4139 = vmatprep.subr.bf16.mxu0 %v2654
    %4140 = vmatpush1.bf16.msra.mxu0 %v2653
    %4141 = vmatprep.subr.bf16.mxu0 %v2662
    %4142 = vmatpush1.bf16.msra.mxu0 %v2661
    %4143 = vmatprep.mubr.bf16.mxu0 %v3674
    %4144 = vmatmul.mubr.bf16.gmra.mrb[0].mxu0 %v3673
    %v4145 = vpop.f32.mrb[0].mxu0
    %v4146 = vadd.f32 %v3982, %v4145
    %v4147 = vpop.f32.mrb[0].mxu0
    %v4148 = vadd.f32 %v3984, %v4147
    %v4149 = vpop.f32.mrb[0].mxu0
    %v4150 = vpop.f32.mrb[0].mxu0
    %4151 = vdwg.mxu0
    %4152 = vmatprep.subr.bf16.mxu0 %v2544
    %4153 = vmatpush1.bf16.msra.mxu0 %v2543
    %4154 = vmatprep.subr.bf16.mxu0 %v2552
    %4155 = vmatpush1.bf16.msra.mxu0 %v2551
    %4156 = vmatprep.subr.bf16.mxu0 %v2560
    %4157 = vmatpush1.bf16.msra.mxu0 %v2559
    %4158 = vmatprep.subr.bf16.mxu0 %v2568
    %4159 = vmatpush1.bf16.msra.mxu0 %v2567
    %4160 = vmatprep.subr.bf16.mxu0 %v2576
    %4161 = vmatpush1.bf16.msra.mxu0 %v2575
    %4162 = vmatprep.subr.bf16.mxu0 %v2584
    %4163 = vmatpush1.bf16.msra.mxu0 %v2583
    %4164 = vmatprep.subr.bf16.mxu0 %v2592
    %4165 = vmatpush1.bf16.msra.mxu0 %v2591
    %4166 = vmatprep.subr.bf16.mxu0 %v2600
    %4167 = vmatpush1.bf16.msra.mxu0 %v2599
    %4168 = vmatprep.subr.bf16.mxu0 %v2608
    %4169 = vmatpush1.bf16.msra.mxu0 %v2607
    %4170 = vmatprep.subr.bf16.mxu0 %v2616
    %4171 = vmatpush1.bf16.msra.mxu0 %v2615
    %4172 = vmatprep.subr.bf16.mxu0 %v2624
    %4173 = vmatpush1.bf16.msra.mxu0 %v2623
    %4174 = vmatprep.subr.bf16.mxu0 %v2632
    %4175 = vmatpush1.bf16.msra.mxu0 %v2631
    %4176 = vmatprep.subr.bf16.mxu0 %v2640
    %4177 = vmatpush1.bf16.msra.mxu0 %v2639
    %4178 = vmatprep.subr.bf16.mxu0 %v2648
    %4179 = vmatpush1.bf16.msra.mxu0 %v2647
    %4180 = vmatprep.subr.bf16.mxu0 %v2656
    %4181 = vmatpush1.bf16.msra.mxu0 %v2655
    %4182 = vmatprep.subr.bf16.mxu0 %v2664
    %4183 = vmatpush1.bf16.msra.mxu0 %v2663
    %4184 = vmatprep.mubr.bf16.mxu0 %v3674
    %4185 = vmatmul.mubr.bf16.gmra.mrb[0].mxu0 %v3673
    %v4186 = vpop.f32.mrb[0].mxu0
    %v4187 = vadd.f32 %v4023, %v4186
    %v4188 = vpop.f32.mrb[0].mxu0
    %v4189 = vadd.f32 %v4025, %v4188
    %v4190 = vpop.f32.mrb[0].mxu0
    %v4191 = vpop.f32.mrb[0].mxu0
    %4192 = vdwg.mxu0
    %4193 = vmatprep.subr.bf16.mxu0 %v2546
    %4194 = vmatpush1.bf16.msra.mxu0 %v2545
    %4195 = vmatprep.subr.bf16.mxu0 %v2554
    %4196 = vmatpush1.bf16.msra.mxu0 %v2553
    %4197 = vmatprep.subr.bf16.mxu0 %v2562
    %4198 = vmatpush1.bf16.msra.mxu0 %v2561
    %4199 = vmatprep.subr.bf16.mxu0 %v2570
    %4200 = vmatpush1.bf16.msra.mxu0 %v2569
    %4201 = vmatprep.subr.bf16.mxu0 %v2578
    %4202 = vmatpush1.bf16.msra.mxu0 %v2577
    %4203 = vmatprep.subr.bf16.mxu0 %v2586
    %4204 = vmatpush1.bf16.msra.mxu0 %v2585
    %4205 = vmatprep.subr.bf16.mxu0 %v2594
    %4206 = vmatpush1.bf16.msra.mxu0 %v2593
    %4207 = vmatprep.subr.bf16.mxu0 %v2602
    %4208 = vmatpush1.bf16.msra.mxu0 %v2601
    %4209 = vmatprep.subr.bf16.mxu0 %v2610
    %4210 = vmatpush1.bf16.msra.mxu0 %v2609
    %4211 = vmatprep.subr.bf16.mxu0 %v2618
    %4212 = vmatpush1.bf16.msra.mxu0 %v2617
    %4213 = vmatprep.subr.bf16.mxu0 %v2626
    %4214 = vmatpush1.bf16.msra.mxu0 %v2625
    %4215 = vmatprep.subr.bf16.mxu0 %v2634
    %4216 = vmatpush1.bf16.msra.mxu0 %v2633
    %4217 = vmatprep.subr.bf16.mxu0 %v2642
    %4218 = vmatpush1.bf16.msra.mxu0 %v2641
    %4219 = vmatprep.subr.bf16.mxu0 %v2650
    %4220 = vmatpush1.bf16.msra.mxu0 %v2649
    %4221 = vmatprep.subr.bf16.mxu0 %v2658
    %4222 = vmatpush1.bf16.msra.mxu0 %v2657
    %4223 = vmatprep.subr.bf16.mxu0 %v2666
    %4224 = vmatpush1.bf16.msra.mxu0 %v2665
    %4225 = vmatprep.mubr.bf16.mxu0 %v3674
    %4226 = vmatmul.mubr.bf16.gmra.mrb[0].mxu0 %v3673
    %v4227 = vpop.f32.mrb[0].mxu0
    %v4228 = vadd.f32 %v4064, %v4227
    %v4229 = vpop.f32.mrb[0].mxu0
    %v4230 = vadd.f32 %v4066, %v4229
    %v4231 = vpop.f32.mrb[0].mxu0
    %v4232 = vpop.f32.mrb[0].mxu0
    %4233 = vdwg.mxu0
    %v4234 = vadd.f32 %v4105, %v2963
    %v4235 = vadd.f32 %v4107, %v2967
    %v4236 = vadd.f32 %v4146, %v2971
    %v4237 = vadd.f32 %v4148, %v2975
    %v4238 = vadd.f32 %v4187, %v2979
    %v4239 = vadd.f32 %v4189, %v2983
    %v4240 = vadd.f32 %v4228, %v2987
    %v4241 = vadd.f32 %v4230, %v2991
    %v4242 = vxor.u32 %v4234, 2147483648
    %v4243 = vxor.u32 %v4235, 2147483648
    %v4244 = vxor.u32 %v4236, 2147483648
    %v4245 = vxor.u32 %v4237, 2147483648
    %v4246 = vxor.u32 %v4238, 2147483648
    %v4247 = vxor.u32 %v4239, 2147483648
    %v4248 = vmul.f32 %v4242, 1.442695
    %v4249 = vpow.pop %v4248
    %v4250 = vmul.f32 %v4243, 1.442695
    %v4251 = vpow.pop %v4250
    %v4252 = vmul.f32 %v4244, 1.442695
    %v4253 = vpow.pop %v4252
    %v4254 = vmul.f32 %v4245, 1.442695
    %v4255 = vpow.pop %v4254
    %v4256 = vmul.f32 %v4246, 1.442695
    %v4257 = vpow.pop %v4256
    %v4258 = vmul.f32 %v4247, 1.442695
    %v4259 = vpow.pop %v4258
    %v4260 = vadd.f32 %v4249, 1.0
    %v4261 = vadd.f32 %v4251, 1.0
    %v4262 = vadd.f32 %v4253, 1.0
    %v4263 = vadd.f32 %v4255, 1.0
    %v4264 = vadd.f32 %v4257, 1.0
    %v4265 = vadd.f32 %v4259, 1.0
    %v4266 = vrcp.pop %v4260
    %v4267 = vmul.f32 1.0, %v4266
    %v4268 = vrcp.pop %v4261
    %v4269 = vmul.f32 1.0, %v4268
    %v4270 = vrcp.pop %v4262
    %v4271 = vmul.f32 1.0, %v4270
    %v4272 = vrcp.pop %v4263
    %v4273 = vmul.f32 1.0, %v4272
    %v4274 = vrcp.pop %v4264
    %v4275 = vmul.f32 1.0, %v4274
    %v4276 = vrcp.pop %v4265
    %v4277 = vmul.f32 1.0, %v4276
    %v4278 = vtanh.pop %v4240
    %v4279 = vtanh.pop %v4241
    %v4280 = vmul.f32 %v4271, %v3667
    %v4281 = vmul.f32 %v4273, %v3668
    %v4282 = vmul.f32 %v4267, %v4278
    %v4283 = vmul.f32 %v4269, %v4279
    %v4284 = vadd.f32 %v4280, %v4282
    %v4285 = vadd.f32 %v4281, %v4283
    %v4286 = vtanh.pop %v4284
    %v4287 = vtanh.pop %v4285
    %v4288 = vmul.f32 %v4275, %v4286
    %v4289 = vmul.f32 %v4277, %v4287
    %v4290 = vpack.c.bf16 %v4288, %v4288
    %v4291 = vpack.c.bf16 %v4289, %v4289
    %s4292 = scalar_lea.vmem [#allocation2], 192
    %v4293 = vld [vmem:[%s4292] sm:$0xff]
    %v4294 = vld [vmem:[%s4292 + $0x8] sm:$0xff]
    %v4295 = vld [vmem:[%s4292 + $0x10] sm:$0xff]
    %v4296 = vld [vmem:[%s4292 + $0x18] sm:$0xff]
    %v4297 = vld [vmem:[%s4292 + $0x20] sm:$0xff]
    %v4298 = vld [vmem:[%s4292 + $0x28] sm:$0xff]
    %v4299 = vld [vmem:[%s4292 + $0x30] sm:$0xff]
    %v4300 = vld [vmem:[%s4292 + $0x38] sm:$0xff]
    %4301 = vmatprep.subr.bf16.mxu0 %v746
    %4302 = vmatpush1.bf16.msra.mxu0 %v745
    %4303 = vmatprep.subr.bf16.mxu0 %v754
    %4304 = vmatpush1.bf16.msra.mxu0 %v753
    %4305 = vmatprep.subr.bf16.mxu0 %v762
    %4306 = vmatpush1.bf16.msra.mxu0 %v761
    %4307 = vmatprep.subr.bf16.mxu0 %v770
    %4308 = vmatpush1.bf16.msra.mxu0 %v769
    %4309 = vmatprep.subr.bf16.mxu0 %v778
    %4310 = vmatpush1.bf16.msra.mxu0 %v777
    %4311 = vmatprep.subr.bf16.mxu0 %v786
    %4312 = vmatpush1.bf16.msra.mxu0 %v785
    %4313 = vmatprep.subr.bf16.mxu0 %v794
    %4314 = vmatpush1.bf16.msra.mxu0 %v793
    %4315 = vmatprep.subr.bf16.mxu0 %v802
    %4316 = vmatpush1.bf16.msra.mxu0 %v801
    %4317 = vmatprep.subr.bf16.mxu0 %v810
    %4318 = vmatpush1.bf16.msra.mxu0 %v809
    %4319 = vmatprep.subr.bf16.mxu0 %v818
    %4320 = vmatpush1.bf16.msra.mxu0 %v817
    %4321 = vmatprep.subr.bf16.mxu0 %v826
    %4322 = vmatpush1.bf16.msra.mxu0 %v825
    %4323 = vmatprep.subr.bf16.mxu0 %v834
    %4324 = vmatpush1.bf16.msra.mxu0 %v833
    %4325 = vmatprep.subr.bf16.mxu0 %v842
    %4326 = vmatpush1.bf16.msra.mxu0 %v841
    %4327 = vmatprep.subr.bf16.mxu0 %v850
    %4328 = vmatpush1.bf16.msra.mxu0 %v849
    %4329 = vmatprep.subr.bf16.mxu0 %v858
    %4330 = vmatpush1.bf16.msra.mxu0 %v857
    %4331 = vmatprep.subr.bf16.mxu0 %v866
    %4332 = vmatpush1.bf16.msra.mxu0 %v865
    %4333 = vmatprep.mubr.bf16.mxu0 %v3905
    %4334 = vmatmul.mubr.bf16.gmra.mrb[0].mxu0 %v3904
    %v4335 = vpop.f32.mrb[0].mxu0
    %v4336 = vadd.f32 0.0, %v4335
    %v4337 = vpop.f32.mrb[0].mxu0
    %v4338 = vadd.f32 0.0, %v4337
    %v4339 = vpop.f32.mrb[0].mxu0
    %v4340 = vpop.f32.mrb[0].mxu0
    %4341 = vdwg.mxu0
    %4342 = vmatprep.subr.bf16.mxu0 %v748
    %4343 = vmatpush1.bf16.msra.mxu0 %v747
    %4344 = vmatprep.subr.bf16.mxu0 %v756
    %4345 = vmatpush1.bf16.msra.mxu0 %v755
    %4346 = vmatprep.subr.bf16.mxu0 %v764
    %4347 = vmatpush1.bf16.msra.mxu0 %v763
    %4348 = vmatprep.subr.bf16.mxu0 %v772
    %4349 = vmatpush1.bf16.msra.mxu0 %v771
    %4350 = vmatprep.subr.bf16.mxu0 %v780
    %4351 = vmatpush1.bf16.msra.mxu0 %v779
    %4352 = vmatprep.subr.bf16.mxu0 %v788
    %4353 = vmatpush1.bf16.msra.mxu0 %v787
    %4354 = vmatprep.subr.bf16.mxu0 %v796
    %4355 = vmatpush1.bf16.msra.mxu0 %v795
    %4356 = vmatprep.subr.bf16.mxu0 %v804
    %4357 = vmatpush1.bf16.msra.mxu0 %v803
    %4358 = vmatprep.subr.bf16.mxu0 %v812
    %4359 = vmatpush1.bf16.msra.mxu0 %v811
    %4360 = vmatprep.subr.bf16.mxu0 %v820
    %4361 = vmatpush1.bf16.msra.mxu0 %v819
    %4362 = vmatprep.subr.bf16.mxu0 %v828
    %4363 = vmatpush1.bf16.msra.mxu0 %v827
    %4364 = vmatprep.subr.bf16.mxu0 %v836
    %4365 = vmatpush1.bf16.msra.mxu0 %v835
    %4366 = vmatprep.subr.bf16.mxu0 %v844
    %4367 = vmatpush1.bf16.msra.mxu0 %v843
    %4368 = vmatprep.subr.bf16.mxu0 %v852
    %4369 = vmatpush1.bf16.msra.mxu0 %v851
    %4370 = vmatprep.subr.bf16.mxu0 %v860
    %4371 = vmatpush1.bf16.msra.mxu0 %v859
    %4372 = vmatprep.subr.bf16.mxu0 %v868
    %4373 = vmatpush1.bf16.msra.mxu0 %v867
    %4374 = vmatprep.mubr.bf16.mxu0 %v3905
    %4375 = vmatmul.mubr.bf16.gmra.mrb[0].mxu0 %v3904
    %v4376 = vpop.f32.mrb[0].mxu0
    %v4377 = vadd.f32 0.0, %v4376
    %v4378 = vpop.f32.mrb[0].mxu0
    %v4379 = vadd.f32 0.0, %v4378
    %v4380 = vpop.f32.mrb[0].mxu0
    %v4381 = vpop.f32.mrb[0].mxu0
    %4382 = vdwg.mxu0
    %4383 = vmatprep.subr.bf16.mxu0 %v750
    %4384 = vmatpush1.bf16.msra.mxu0 %v749
    %4385 = vmatprep.subr.bf16.mxu0 %v758
    %4386 = vmatpush1.bf16.msra.mxu0 %v757
    %4387 = vmatprep.subr.bf16.mxu0 %v766
    %4388 = vmatpush1.bf16.msra.mxu0 %v765
    %4389 = vmatprep.subr.bf16.mxu0 %v774
    %4390 = vmatpush1.bf16.msra.mxu0 %v773
    %4391 = vmatprep.subr.bf16.mxu0 %v782
    %4392 = vmatpush1.bf16.msra.mxu0 %v781
    %4393 = vmatprep.subr.bf16.mxu0 %v790
    %4394 = vmatpush1.bf16.msra.mxu0 %v789
    %4395 = vmatprep.subr.bf16.mxu0 %v798
    %4396 = vmatpush1.bf16.msra.mxu0 %v797
    %4397 = vmatprep.subr.bf16.mxu0 %v806
    %4398 = vmatpush1.bf16.msra.mxu0 %v805
    %4399 = vmatprep.subr.bf16.mxu0 %v814
    %4400 = vmatpush1.bf16.msra.mxu0 %v813
    %4401 = vmatprep.subr.bf16.mxu0 %v822
    %4402 = vmatpush1.bf16.msra.mxu0 %v821
    %4403 = vmatprep.subr.bf16.mxu0 %v830
    %4404 = vmatpush1.bf16.msra.mxu0 %v829
    %4405 = vmatprep.subr.bf16.mxu0 %v838
    %4406 = vmatpush1.bf16.msra.mxu0 %v837
    %4407 = vmatprep.subr.bf16.mxu0 %v846
    %4408 = vmatpush1.bf16.msra.mxu0 %v845
    %4409 = vmatprep.subr.bf16.mxu0 %v854
    %4410 = vmatpush1.bf16.msra.mxu0 %v853
    %4411 = vmatprep.subr.bf16.mxu0 %v862
    %4412 = vmatpush1.bf16.msra.mxu0 %v861
    %4413 = vmatprep.subr.bf16.mxu0 %v870
    %4414 = vmatpush1.bf16.msra.mxu0 %v869
    %4415 = vmatprep.mubr.bf16.mxu0 %v3905
    %4416 = vmatmul.mubr.bf16.gmra.mrb[0].mxu0 %v3904
    %v4417 = vpop.f32.mrb[0].mxu0
    %v4418 = vadd.f32 0.0, %v4417
    %v4419 = vpop.f32.mrb[0].mxu0
    %v4420 = vadd.f32 0.0, %v4419
    %v4421 = vpop.f32.mrb[0].mxu0
    %v4422 = vpop.f32.mrb[0].mxu0
    %4423 = vdwg.mxu0
    %4424 = vmatprep.subr.bf16.mxu0 %v752
    %4425 = vmatpush1.bf16.msra.mxu0 %v751
    %4426 = vmatprep.subr.bf16.mxu0 %v760
    %4427 = vmatpush1.bf16.msra.mxu0 %v759
    %4428 = vmatprep.subr.bf16.mxu0 %v768
    %4429 = vmatpush1.bf16.msra.mxu0 %v767
    %4430 = vmatprep.subr.bf16.mxu0 %v776
    %4431 = vmatpush1.bf16.msra.mxu0 %v775
    %4432 = vmatprep.subr.bf16.mxu0 %v784
    %4433 = vmatpush1.bf16.msra.mxu0 %v783
    %4434 = vmatprep.subr.bf16.mxu0 %v792
    %4435 = vmatpush1.bf16.msra.mxu0 %v791
    %4436 = vmatprep.subr.bf16.mxu0 %v800
    %4437 = vmatpush1.bf16.msra.mxu0 %v799
    %4438 = vmatprep.subr.bf16.mxu0 %v808
    %4439 = vmatpush1.bf16.msra.mxu0 %v807
    %4440 = vmatprep.subr.bf16.mxu0 %v816
    %4441 = vmatpush1.bf16.msra.mxu0 %v815
    %4442 = vmatprep.subr.bf16.mxu0 %v824
    %4443 = vmatpush1.bf16.msra.mxu0 %v823
    %4444 = vmatprep.subr.bf16.mxu0 %v832
    %4445 = vmatpush1.bf16.msra.mxu0 %v831
    %4446 = vmatprep.subr.bf16.mxu0 %v840
    %4447 = vmatpush1.bf16.msra.mxu0 %v839
    %4448 = vmatprep.subr.bf16.mxu0 %v848
    %4449 = vmatpush1.bf16.msra.mxu0 %v847
    %4450 = vmatprep.subr.bf16.mxu0 %v856
    %4451 = vmatpush1.bf16.msra.mxu0 %v855
    %4452 = vmatprep.subr.bf16.mxu0 %v864
    %4453 = vmatpush1.bf16.msra.mxu0 %v863
    %4454 = vmatprep.subr.bf16.mxu0 %v872
    %4455 = vmatpush1.bf16.msra.mxu0 %v871
    %4456 = vmatprep.mubr.bf16.mxu0 %v3905
    %4457 = vmatmul.mubr.bf16.gmra.mrb[0].mxu0 %v3904
    %v4458 = vpop.f32.mrb[0].mxu0
    %v4459 = vadd.f32 0.0, %v4458
    %v4460 = vpop.f32.mrb[0].mxu0
    %v4461 = vadd.f32 0.0, %v4460
    %v4462 = vpop.f32.mrb[0].mxu0
    %v4463 = vpop.f32.mrb[0].mxu0
    %4464 = vdwg.mxu0
    %v4465 = vadd.f32 %v4293, %v4336
    %v4466 = vadd.f32 %v4294, %v4338
    %v4467 = vadd.f32 %v4295, %v4377
    %v4468 = vadd.f32 %v4296, %v4379
    %v4469 = vadd.f32 %v4297, %v4418
    %v4470 = vadd.f32 %v4298, %v4420
    %v4471 = vadd.f32 %v4299, %v4459
    %v4472 = vadd.f32 %v4300, %v4461
    %v4473 = vxor.u32 %v4465, 2147483648
    %v4474 = vxor.u32 %v4466, 2147483648
    %v4475 = vxor.u32 %v4467, 2147483648
    %v4476 = vxor.u32 %v4468, 2147483648
    %v4477 = vxor.u32 %v4469, 2147483648
    %v4478 = vxor.u32 %v4470, 2147483648
    %v4479 = vmul.f32 %v4473, 1.442695
    %v4480 = vpow.pop %v4479
    %v4481 = vmul.f32 %v4474, 1.442695
    %v4482 = vpow.pop %v4481
    %v4483 = vmul.f32 %v4475, 1.442695
    %v4484 = vpow.pop %v4483
    %v4485 = vmul.f32 %v4476, 1.442695
    %v4486 = vpow.pop %v4485
    %v4487 = vmul.f32 %v4477, 1.442695
    %v4488 = vpow.pop %v4487
    %v4489 = vmul.f32 %v4478, 1.442695
    %v4490 = vpow.pop %v4489
    %v4491 = vadd.f32 %v4480, 1.0
    %v4492 = vadd.f32 %v4482, 1.0
    %v4493 = vadd.f32 %v4484, 1.0
    %v4494 = vadd.f32 %v4486, 1.0
    %v4495 = vadd.f32 %v4488, 1.0
    %v4496 = vadd.f32 %v4490, 1.0
    %v4497 = vrcp.pop %v4491
    %v4498 = vmul.f32 1.0, %v4497
    %v4499 = vrcp.pop %v4492
    %v4500 = vmul.f32 1.0, %v4499
    %v4501 = vrcp.pop %v4493
    %v4502 = vmul.f32 1.0, %v4501
    %v4503 = vrcp.pop %v4494
    %v4504 = vmul.f32 1.0, %v4503
    %v4505 = vrcp.pop %v4495
    %v4506 = vmul.f32 1.0, %v4505
    %v4507 = vrcp.pop %v4496
    %v4508 = vmul.f32 1.0, %v4507
    %v4509 = vtanh.pop %v4471
    %v4510 = vtanh.pop %v4472
    %v4511 = vmul.f32 %v4502, %v3898
    %v4512 = vmul.f32 %v4504, %v3899
    %v4513 = vmul.f32 %v4498, %v4509
    %v4514 = vmul.f32 %v4500, %v4510
    %v4515 = vadd.f32 %v4511, %v4513
    %v4516 = vadd.f32 %v4512, %v4514
    %v4517 = vtanh.pop %v4515
    %v4518 = vtanh.pop %v4516
    %v4519 = vmul.f32 %v4506, %v4517
    %v4520 = vmul.f32 %v4508, %v4518
    %v4521 = vpack.c.bf16 %v4519, %v4519
    %v4522 = vpack.c.bf16 %v4520, %v4520
    %4523 = vmatprep.subr.bf16.mxu0 %v1736
    %4524 = vmatpush1.bf16.msra.mxu0 %v1735
    %4525 = vmatprep.subr.bf16.mxu0 %v1744
    %4526 = vmatpush1.bf16.msra.mxu0 %v1743
    %4527 = vmatprep.subr.bf16.mxu0 %v1752
    %4528 = vmatpush1.bf16.msra.mxu0 %v1751
    %4529 = vmatprep.subr.bf16.mxu0 %v1760
    %4530 = vmatpush1.bf16.msra.mxu0 %v1759
    %4531 = vmatprep.subr.bf16.mxu0 %v1768
    %4532 = vmatpush1.bf16.msra.mxu0 %v1767
    %4533 = vmatprep.subr.bf16.mxu0 %v1776
    %4534 = vmatpush1.bf16.msra.mxu0 %v1775
    %4535 = vmatprep.subr.bf16.mxu0 %v1784
    %4536 = vmatpush1.bf16.msra.mxu0 %v1783
    %4537 = vmatprep.subr.bf16.mxu0 %v1792
    %4538 = vmatpush1.bf16.msra.mxu0 %v1791
    %4539 = vmatprep.subr.bf16.mxu0 %v1800
    %4540 = vmatpush1.bf16.msra.mxu0 %v1799
    %4541 = vmatprep.subr.bf16.mxu0 %v1808
    %4542 = vmatpush1.bf16.msra.mxu0 %v1807
    %4543 = vmatprep.subr.bf16.mxu0 %v1816
    %4544 = vmatpush1.bf16.msra.mxu0 %v1815
    %4545 = vmatprep.subr.bf16.mxu0 %v1824
    %4546 = vmatpush1.bf16.msra.mxu0 %v1823
    %4547 = vmatprep.subr.bf16.mxu0 %v1832
    %4548 = vmatpush1.bf16.msra.mxu0 %v1831
    %4549 = vmatprep.subr.bf16.mxu0 %v1840
    %4550 = vmatpush1.bf16.msra.mxu0 %v1839
    %4551 = vmatprep.subr.bf16.mxu0 %v1848
    %4552 = vmatpush1.bf16.msra.mxu0 %v1847
    %4553 = vmatprep.subr.bf16.mxu0 %v1856
    %4554 = vmatpush1.bf16.msra.mxu0 %v1855
    %4555 = vmatprep.mubr.bf16.mxu0 %v4522
    %4556 = vmatmul.mubr.bf16.gmra.mrb[0].mxu0 %v4521
    %v4557 = vpop.f32.mrb[0].mxu0
    %v4558 = vadd.f32 0.0, %v4557
    %v4559 = vpop.f32.mrb[0].mxu0
    %v4560 = vadd.f32 0.0, %v4559
    %v4561 = vpop.f32.mrb[0].mxu0
    %v4562 = vpop.f32.mrb[0].mxu0
    %4563 = vdwg.mxu0
    %4564 = vmatprep.subr.bf16.mxu0 %v1738
    %4565 = vmatpush1.bf16.msra.mxu0 %v1737
    %4566 = vmatprep.subr.bf16.mxu0 %v1746
    %4567 = vmatpush1.bf16.msra.mxu0 %v1745
    %4568 = vmatprep.subr.bf16.mxu0 %v1754
    %4569 = vmatpush1.bf16.msra.mxu0 %v1753
    %4570 = vmatprep.subr.bf16.mxu0 %v1762
    %4571 = vmatpush1.bf16.msra.mxu0 %v1761
    %4572 = vmatprep.subr.bf16.mxu0 %v1770
    %4573 = vmatpush1.bf16.msra.mxu0 %v1769
    %4574 = vmatprep.subr.bf16.mxu0 %v1778
    %4575 = vmatpush1.bf16.msra.mxu0 %v1777
    %4576 = vmatprep.subr.bf16.mxu0 %v1786
    %4577 = vmatpush1.bf16.msra.mxu0 %v1785
    %4578 = vmatprep.subr.bf16.mxu0 %v1794
    %4579 = vmatpush1.bf16.msra.mxu0 %v1793
    %4580 = vmatprep.subr.bf16.mxu0 %v1802
    %4581 = vmatpush1.bf16.msra.mxu0 %v1801
    %4582 = vmatprep.subr.bf16.mxu0 %v1810
    %4583 = vmatpush1.bf16.msra.mxu0 %v1809
    %4584 = vmatprep.subr.bf16.mxu0 %v1818
    %4585 = vmatpush1.bf16.msra.mxu0 %v1817
    %4586 = vmatprep.subr.bf16.mxu0 %v1826
    %4587 = vmatpush1.bf16.msra.mxu0 %v1825
    %4588 = vmatprep.subr.bf16.mxu0 %v1834
    %4589 = vmatpush1.bf16.msra.mxu0 %v1833
    %4590 = vmatprep.subr.bf16.mxu0 %v1842
    %4591 = vmatpush1.bf16.msra.mxu0 %v1841
    %4592 = vmatprep.subr.bf16.mxu0 %v1850
    %4593 = vmatpush1.bf16.msra.mxu0 %v1849
    %4594 = vmatprep.subr.bf16.mxu0 %v1858
    %4595 = vmatpush1.bf16.msra.mxu0 %v1857
    %4596 = vmatprep.mubr.bf16.mxu0 %v4522
    %4597 = vmatmul.mubr.bf16.gmra.mrb[0].mxu0 %v4521
    %v4598 = vpop.f32.mrb[0].mxu0
    %v4599 = vadd.f32 0.0, %v4598
    %v4600 = vpop.f32.mrb[0].mxu0
    %v4601 = vadd.f32 0.0, %v4600
    %v4602 = vpop.f32.mrb[0].mxu0
    %v4603 = vpop.f32.mrb[0].mxu0
    %4604 = vdwg.mxu0
    %4605 = vmatprep.subr.bf16.mxu0 %v1740
    %4606 = vmatpush1.bf16.msra.mxu0 %v1739
    %4607 = vmatprep.subr.bf16.mxu0 %v1748
    %4608 = vmatpush1.bf16.msra.mxu0 %v1747
    %4609 = vmatprep.subr.bf16.mxu0 %v1756
    %4610 = vmatpush1.bf16.msra.mxu0 %v1755
    %4611 = vmatprep.subr.bf16.mxu0 %v1764
    %4612 = vmatpush1.bf16.msra.mxu0 %v1763
    %4613 = vmatprep.subr.bf16.mxu0 %v1772
    %4614 = vmatpush1.bf16.msra.mxu0 %v1771
    %4615 = vmatprep.subr.bf16.mxu0 %v1780
    %4616 = vmatpush1.bf16.msra.mxu0 %v1779
    %4617 = vmatprep.subr.bf16.mxu0 %v1788
    %4618 = vmatpush1.bf16.msra.mxu0 %v1787
    %4619 = vmatprep.subr.bf16.mxu0 %v1796
    %4620 = vmatpush1.bf16.msra.mxu0 %v1795
    %4621 = vmatprep.subr.bf16.mxu0 %v1804
    %4622 = vmatpush1.bf16.msra.mxu0 %v1803
    %4623 = vmatprep.subr.bf16.mxu0 %v1812
    %4624 = vmatpush1.bf16.msra.mxu0 %v1811
    %4625 = vmatprep.subr.bf16.mxu0 %v1820
    %4626 = vmatpush1.bf16.msra.mxu0 %v1819
    %4627 = vmatprep.subr.bf16.mxu0 %v1828
    %4628 = vmatpush1.bf16.msra.mxu0 %v1827
    %4629 = vmatprep.subr.bf16.mxu0 %v1836
    %4630 = vmatpush1.bf16.msra.mxu0 %v1835
    %4631 = vmatprep.subr.bf16.mxu0 %v1844
    %4632 = vmatpush1.bf16.msra.mxu0 %v1843
    %4633 = vmatprep.subr.bf16.mxu0 %v1852
    %4634 = vmatpush1.bf16.msra.mxu0 %v1851
    %4635 = vmatprep.subr.bf16.mxu0 %v1860
    %4636 = vmatpush1.bf16.msra.mxu0 %v1859
    %4637 = vmatprep.mubr.bf16.mxu0 %v4522
    %4638 = vmatmul.mubr.bf16.gmra.mrb[0].mxu0 %v4521
    %v4639 = vpop.f32.mrb[0].mxu0
    %v4640 = vadd.f32 0.0, %v4639
    %v4641 = vpop.f32.mrb[0].mxu0
    %v4642 = vadd.f32 0.0, %v4641
    %v4643 = vpop.f32.mrb[0].mxu0
    %v4644 = vpop.f32.mrb[0].mxu0
    %4645 = vdwg.mxu0
    %4646 = vmatprep.subr.bf16.mxu0 %v1742
    %4647 = vmatpush1.bf16.msra.mxu0 %v1741
    %4648 = vmatprep.subr.bf16.mxu0 %v1750
    %4649 = vmatpush1.bf16.msra.mxu0 %v1749
    %4650 = vmatprep.subr.bf16.mxu0 %v1758
    %4651 = vmatpush1.bf16.msra.mxu0 %v1757
    %4652 = vmatprep.subr.bf16.mxu0 %v1766
    %4653 = vmatpush1.bf16.msra.mxu0 %v1765
    %4654 = vmatprep.subr.bf16.mxu0 %v1774
    %4655 = vmatpush1.bf16.msra.mxu0 %v1773
    %4656 = vmatprep.subr.bf16.mxu0 %v1782
    %4657 = vmatpush1.bf16.msra.mxu0 %v1781
    %4658 = vmatprep.subr.bf16.mxu0 %v1790
    %4659 = vmatpush1.bf16.msra.mxu0 %v1789
    %4660 = vmatprep.subr.bf16.mxu0 %v1798
    %4661 = vmatpush1.bf16.msra.mxu0 %v1797
    %4662 = vmatprep.subr.bf16.mxu0 %v1806
    %4663 = vmatpush1.bf16.msra.mxu0 %v1805
    %4664 = vmatprep.subr.bf16.mxu0 %v1814
    %4665 = vmatpush1.bf16.msra.mxu0 %v1813
    %4666 = vmatprep.subr.bf16.mxu0 %v1822
    %4667 = vmatpush1.bf16.msra.mxu0 %v1821
    %4668 = vmatprep.subr.bf16.mxu0 %v1830
    %4669 = vmatpush1.bf16.msra.mxu0 %v1829
    %4670 = vmatprep.subr.bf16.mxu0 %v1838
    %4671 = vmatpush1.bf16.msra.mxu0 %v1837
    %4672 = vmatprep.subr.bf16.mxu0 %v1846
    %4673 = vmatpush1.bf16.msra.mxu0 %v1845
    %4674 = vmatprep.subr.bf16.mxu0 %v1854
    %4675 = vmatpush1.bf16.msra.mxu0 %v1853
    %4676 = vmatprep.subr.bf16.mxu0 %v1862
    %4677 = vmatpush1.bf16.msra.mxu0 %v1861
    %4678 = vmatprep.mubr.bf16.mxu0 %v4522
    %4679 = vmatmul.mubr.bf16.gmra.mrb[0].mxu0 %v4521
    %v4680 = vpop.f32.mrb[0].mxu0
    %v4681 = vadd.f32 0.0, %v4680
    %v4682 = vpop.f32.mrb[0].mxu0
    %v4683 = vadd.f32 0.0, %v4682
    %v4684 = vpop.f32.mrb[0].mxu0
    %v4685 = vpop.f32.mrb[0].mxu0
    %4686 = vdwg.mxu0
    %4687 = vmatprep.subr.bf16.mxu0 %v2540
    %4688 = vmatpush1.bf16.msra.mxu0 %v2539
    %4689 = vmatprep.subr.bf16.mxu0 %v2548
    %4690 = vmatpush1.bf16.msra.mxu0 %v2547
    %4691 = vmatprep.subr.bf16.mxu0 %v2556
    %4692 = vmatpush1.bf16.msra.mxu0 %v2555
    %4693 = vmatprep.subr.bf16.mxu0 %v2564
    %4694 = vmatpush1.bf16.msra.mxu0 %v2563
    %4695 = vmatprep.subr.bf16.mxu0 %v2572
    %4696 = vmatpush1.bf16.msra.mxu0 %v2571
    %4697 = vmatprep.subr.bf16.mxu0 %v2580
    %4698 = vmatpush1.bf16.msra.mxu0 %v2579
    %4699 = vmatprep.subr.bf16.mxu0 %v2588
    %4700 = vmatpush1.bf16.msra.mxu0 %v2587
    %4701 = vmatprep.subr.bf16.mxu0 %v2596
    %4702 = vmatpush1.bf16.msra.mxu0 %v2595
    %4703 = vmatprep.subr.bf16.mxu0 %v2604
    %4704 = vmatpush1.bf16.msra.mxu0 %v2603
    %4705 = vmatprep.subr.bf16.mxu0 %v2612
    %4706 = vmatpush1.bf16.msra.mxu0 %v2611
    %4707 = vmatprep.subr.bf16.mxu0 %v2620
    %4708 = vmatpush1.bf16.msra.mxu0 %v2619
    %4709 = vmatprep.subr.bf16.mxu0 %v2628
    %4710 = vmatpush1.bf16.msra.mxu0 %v2627
    %4711 = vmatprep.subr.bf16.mxu0 %v2636
    %4712 = vmatpush1.bf16.msra.mxu0 %v2635
    %4713 = vmatprep.subr.bf16.mxu0 %v2644
    %4714 = vmatpush1.bf16.msra.mxu0 %v2643
    %4715 = vmatprep.subr.bf16.mxu0 %v2652
    %4716 = vmatpush1.bf16.msra.mxu0 %v2651
    %4717 = vmatprep.subr.bf16.mxu0 %v2660
    %4718 = vmatpush1.bf16.msra.mxu0 %v2659
    %4719 = vmatprep.mubr.bf16.mxu0 %v4291
    %4720 = vmatmul.mubr.bf16.gmra.mrb[0].mxu0 %v4290
    %v4721 = vpop.f32.mrb[0].mxu0
    %v4722 = vadd.f32 %v4558, %v4721
    %v4723 = vpop.f32.mrb[0].mxu0
    %v4724 = vadd.f32 %v4560, %v4723
    %v4725 = vpop.f32.mrb[0].mxu0
    %v4726 = vpop.f32.mrb[0].mxu0
    %4727 = vdwg.mxu0
    %4728 = vmatprep.subr.bf16.mxu0 %v2542
    %4729 = vmatpush1.bf16.msra.mxu0 %v2541
    %4730 = vmatprep.subr.bf16.mxu0 %v2550
    %4731 = vmatpush1.bf16.msra.mxu0 %v2549
    %4732 = vmatprep.subr.bf16.mxu0 %v2558
    %4733 = vmatpush1.bf16.msra.mxu0 %v2557
    %4734 = vmatprep.subr.bf16.mxu0 %v2566
    %4735 = vmatpush1.bf16.msra.mxu0 %v2565
    %4736 = vmatprep.subr.bf16.mxu0 %v2574
    %4737 = vmatpush1.bf16.msra.mxu0 %v2573
    %4738 = vmatprep.subr.bf16.mxu0 %v2582
    %4739 = vmatpush1.bf16.msra.mxu0 %v2581
    %4740 = vmatprep.subr.bf16.mxu0 %v2590
    %4741 = vmatpush1.bf16.msra.mxu0 %v2589
    %4742 = vmatprep.subr.bf16.mxu0 %v2598
    %4743 = vmatpush1.bf16.msra.mxu0 %v2597
    %4744 = vmatprep.subr.bf16.mxu0 %v2606
    %4745 = vmatpush1.bf16.msra.mxu0 %v2605
    %4746 = vmatprep.subr.bf16.mxu0 %v2614
    %4747 = vmatpush1.bf16.msra.mxu0 %v2613
    %4748 = vmatprep.subr.bf16.mxu0 %v2622
    %4749 = vmatpush1.bf16.msra.mxu0 %v2621
    %4750 = vmatprep.subr.bf16.mxu0 %v2630
    %4751 = vmatpush1.bf16.msra.mxu0 %v2629
    %4752 = vmatprep.subr.bf16.mxu0 %v2638
    %4753 = vmatpush1.bf16.msra.mxu0 %v2637
    %4754 = vmatprep.subr.bf16.mxu0 %v2646
    %4755 = vmatpush1.bf16.msra.mxu0 %v2645
    %4756 = vmatprep.subr.bf16.mxu0 %v2654
    %4757 = vmatpush1.bf16.msra.mxu0 %v2653
    %4758 = vmatprep.subr.bf16.mxu0 %v2662
    %4759 = vmatpush1.bf16.msra.mxu0 %v2661
    %4760 = vmatprep.mubr.bf16.mxu0 %v4291
    %4761 = vmatmul.mubr.bf16.gmra.mrb[0].mxu0 %v4290
    %v4762 = vpop.f32.mrb[0].mxu0
    %v4763 = vadd.f32 %v4599, %v4762
    %v4764 = vpop.f32.mrb[0].mxu0
    %v4765 = vadd.f32 %v4601, %v4764
    %v4766 = vpop.f32.mrb[0].mxu0
    %v4767 = vpop.f32.mrb[0].mxu0
    %4768 = vdwg.mxu0
    %4769 = vmatprep.subr.bf16.mxu0 %v2544
    %4770 = vmatpush1.bf16.msra.mxu0 %v2543
    %4771 = vmatprep.subr.bf16.mxu0 %v2552
    %4772 = vmatpush1.bf16.msra.mxu0 %v2551
    %4773 = vmatprep.subr.bf16.mxu0 %v2560
    %4774 = vmatpush1.bf16.msra.mxu0 %v2559
    %4775 = vmatprep.subr.bf16.mxu0 %v2568
    %4776 = vmatpush1.bf16.msra.mxu0 %v2567
    %4777 = vmatprep.subr.bf16.mxu0 %v2576
    %4778 = vmatpush1.bf16.msra.mxu0 %v2575
    %4779 = vmatprep.subr.bf16.mxu0 %v2584
    %4780 = vmatpush1.bf16.msra.mxu0 %v2583
    %4781 = vmatprep.subr.bf16.mxu0 %v2592
    %4782 = vmatpush1.bf16.msra.mxu0 %v2591
    %4783 = vmatprep.subr.bf16.mxu0 %v2600
    %4784 = vmatpush1.bf16.msra.mxu0 %v2599
    %4785 = vmatprep.subr.bf16.mxu0 %v2608
    %4786 = vmatpush1.bf16.msra.mxu0 %v2607
    %4787 = vmatprep.subr.bf16.mxu0 %v2616
    %4788 = vmatpush1.bf16.msra.mxu0 %v2615
    %4789 = vmatprep.subr.bf16.mxu0 %v2624
    %4790 = vmatpush1.bf16.msra.mxu0 %v2623
    %4791 = vmatprep.subr.bf16.mxu0 %v2632
    %4792 = vmatpush1.bf16.msra.mxu0 %v2631
    %4793 = vmatprep.subr.bf16.mxu0 %v2640
    %4794 = vmatpush1.bf16.msra.mxu0 %v2639
    %4795 = vmatprep.subr.bf16.mxu0 %v2648
    %4796 = vmatpush1.bf16.msra.mxu0 %v2647
    %4797 = vmatprep.subr.bf16.mxu0 %v2656
    %4798 = vmatpush1.bf16.msra.mxu0 %v2655
    %4799 = vmatprep.subr.bf16.mxu0 %v2664
    %4800 = vmatpush1.bf16.msra.mxu0 %v2663
    %4801 = vmatprep.mubr.bf16.mxu0 %v4291
    %4802 = vmatmul.mubr.bf16.gmra.mrb[0].mxu0 %v4290
    %v4803 = vpop.f32.mrb[0].mxu0
    %v4804 = vadd.f32 %v4640, %v4803
    %v4805 = vpop.f32.mrb[0].mxu0
    %v4806 = vadd.f32 %v4642, %v4805
    %v4807 = vpop.f32.mrb[0].mxu0
    %v4808 = vpop.f32.mrb[0].mxu0
    %4809 = vdwg.mxu0
    %4810 = vmatprep.subr.bf16.mxu0 %v2546
    %4811 = vmatpush1.bf16.msra.mxu0 %v2545
    %4812 = vmatprep.subr.bf16.mxu0 %v2554
    %4813 = vmatpush1.bf16.msra.mxu0 %v2553
    %4814 = vmatprep.subr.bf16.mxu0 %v2562
    %4815 = vmatpush1.bf16.msra.mxu0 %v2561
    %4816 = vmatprep.subr.bf16.mxu0 %v2570
    %4817 = vmatpush1.bf16.msra.mxu0 %v2569
    %4818 = vmatprep.subr.bf16.mxu0 %v2578
    %4819 = vmatpush1.bf16.msra.mxu0 %v2577
    %4820 = vmatprep.subr.bf16.mxu0 %v2586
    %4821 = vmatpush1.bf16.msra.mxu0 %v2585
    %4822 = vmatprep.subr.bf16.mxu0 %v2594
    %4823 = vmatpush1.bf16.msra.mxu0 %v2593
    %4824 = vmatprep.subr.bf16.mxu0 %v2602
    %4825 = vmatpush1.bf16.msra.mxu0 %v2601
    %4826 = vmatprep.subr.bf16.mxu0 %v2610
    %4827 = vmatpush1.bf16.msra.mxu0 %v2609
    %4828 = vmatprep.subr.bf16.mxu0 %v2618
    %4829 = vmatpush1.bf16.msra.mxu0 %v2617
    %4830 = vmatprep.subr.bf16.mxu0 %v2626
    %4831 = vmatpush1.bf16.msra.mxu0 %v2625
    %4832 = vmatprep.subr.bf16.mxu0 %v2634
    %4833 = vmatpush1.bf16.msra.mxu0 %v2633
    %4834 = vmatprep.subr.bf16.mxu0 %v2642
    %4835 = vmatpush1.bf16.msra.mxu0 %v2641
    %4836 = vmatprep.subr.bf16.mxu0 %v2650
    %4837 = vmatpush1.bf16.msra.mxu0 %v2649
    %4838 = vmatprep.subr.bf16.mxu0 %v2658
    %4839 = vmatpush1.bf16.msra.mxu0 %v2657
    %4840 = vmatprep.subr.bf16.mxu0 %v2666
    %4841 = vmatpush1.bf16.msra.mxu0 %v2665
    %4842 = vmatprep.mubr.bf16.mxu0 %v4291
    %4843 = vmatmul.mubr.bf16.gmra.mrb[0].mxu0 %v4290
    %v4844 = vpop.f32.mrb[0].mxu0
    %v4845 = vadd.f32 %v4681, %v4844
    %v4846 = vpop.f32.mrb[0].mxu0
    %v4847 = vadd.f32 %v4683, %v4846
    %v4848 = vpop.f32.mrb[0].mxu0
    %v4849 = vpop.f32.mrb[0].mxu0
    %4850 = vdwg.mxu0
    %v4851 = vadd.f32 %v4722, %v2963
    %v4852 = vadd.f32 %v4724, %v2967
    %v4853 = vadd.f32 %v4763, %v2971
    %v4854 = vadd.f32 %v4765, %v2975
    %v4855 = vadd.f32 %v4804, %v2979
    %v4856 = vadd.f32 %v4806, %v2983
    %v4857 = vadd.f32 %v4845, %v2987
    %v4858 = vadd.f32 %v4847, %v2991
    %v4859 = vxor.u32 %v4851, 2147483648
    %v4860 = vxor.u32 %v4852, 2147483648
    %v4861 = vxor.u32 %v4853, 2147483648
    %v4862 = vxor.u32 %v4854, 2147483648
    %v4863 = vxor.u32 %v4855, 2147483648
    %v4864 = vxor.u32 %v4856, 2147483648
    %v4865 = vmul.f32 %v4859, 1.442695
    %v4866 = vpow.pop %v4865
    %v4867 = vmul.f32 %v4860, 1.442695
    %v4868 = vpow.pop %v4867
    %v4869 = vmul.f32 %v4861, 1.442695
    %v4870 = vpow.pop %v4869
    %v4871 = vmul.f32 %v4862, 1.442695
    %v4872 = vpow.pop %v4871
    %v4873 = vmul.f32 %v4863, 1.442695
    %v4874 = vpow.pop %v4873
    %v4875 = vmul.f32 %v4864, 1.442695
    %v4876 = vpow.pop %v4875
    %v4877 = vadd.f32 %v4866, 1.0
    %v4878 = vadd.f32 %v4868, 1.0
    %v4879 = vadd.f32 %v4870, 1.0
    %v4880 = vadd.f32 %v4872, 1.0
    %v4881 = vadd.f32 %v4874, 1.0
    %v4882 = vadd.f32 %v4876, 1.0
    %v4883 = vrcp.pop %v4877
    %v4884 = vmul.f32 1.0, %v4883
    %v4885 = vrcp.pop %v4878
    %v4886 = vmul.f32 1.0, %v4885
    %v4887 = vrcp.pop %v4879
    %v4888 = vmul.f32 1.0, %v4887
    %v4889 = vrcp.pop %v4880
    %v4890 = vmul.f32 1.0, %v4889
    %v4891 = vrcp.pop %v4881
    %v4892 = vmul.f32 1.0, %v4891
    %v4893 = vrcp.pop %v4882
    %v4894 = vmul.f32 1.0, %v4893
    %v4895 = vtanh.pop %v4857
    %v4896 = vtanh.pop %v4858
    %v4897 = vmul.f32 %v4888, %v4284
    %v4898 = vmul.f32 %v4890, %v4285
    %v4899 = vmul.f32 %v4884, %v4895
    %v4900 = vmul.f32 %v4886, %v4896
    %v4901 = vadd.f32 %v4897, %v4899
    %v4902 = vadd.f32 %v4898, %v4900
    %v4903 = vtanh.pop %v4901
    %v4904 = vtanh.pop %v4902
    %v4905 = vmul.f32 %v4892, %v4903
    %v4906 = vmul.f32 %v4894, %v4904
    %v4907 = vpack.c.bf16 %v4905, %v4905
    %v4908 = vpack.c.bf16 %v4906, %v4906
    %s4909 = scalar_lea.vmem [#allocation2], 256
    %v4910 = vld [vmem:[%s4909] sm:$0xff]
    %v4911 = vld [vmem:[%s4909 + $0x8] sm:$0xff]
    %v4912 = vld [vmem:[%s4909 + $0x10] sm:$0xff]
    %v4913 = vld [vmem:[%s4909 + $0x18] sm:$0xff]
    %v4914 = vld [vmem:[%s4909 + $0x20] sm:$0xff]
    %v4915 = vld [vmem:[%s4909 + $0x28] sm:$0xff]
    %v4916 = vld [vmem:[%s4909 + $0x30] sm:$0xff]
    %v4917 = vld [vmem:[%s4909 + $0x38] sm:$0xff]
    %4918 = vmatprep.subr.bf16.mxu0 %v746
    %4919 = vmatpush1.bf16.msra.mxu0 %v745
    %4920 = vmatprep.subr.bf16.mxu0 %v754
    %4921 = vmatpush1.bf16.msra.mxu0 %v753
    %4922 = vmatprep.subr.bf16.mxu0 %v762
    %4923 = vmatpush1.bf16.msra.mxu0 %v761
    %4924 = vmatprep.subr.bf16.mxu0 %v770
    %4925 = vmatpush1.bf16.msra.mxu0 %v769
    %4926 = vmatprep.subr.bf16.mxu0 %v778
    %4927 = vmatpush1.bf16.msra.mxu0 %v777
    %4928 = vmatprep.subr.bf16.mxu0 %v786
    %4929 = vmatpush1.bf16.msra.mxu0 %v785
    %4930 = vmatprep.subr.bf16.mxu0 %v794
    %4931 = vmatpush1.bf16.msra.mxu0 %v793
    %4932 = vmatprep.subr.bf16.mxu0 %v802
    %4933 = vmatpush1.bf16.msra.mxu0 %v801
    %4934 = vmatprep.subr.bf16.mxu0 %v810
    %4935 = vmatpush1.bf16.msra.mxu0 %v809
    %4936 = vmatprep.subr.bf16.mxu0 %v818
    %4937 = vmatpush1.bf16.msra.mxu0 %v817
    %4938 = vmatprep.subr.bf16.mxu0 %v826
    %4939 = vmatpush1.bf16.msra.mxu0 %v825
    %4940 = vmatprep.subr.bf16.mxu0 %v834
    %4941 = vmatpush1.bf16.msra.mxu0 %v833
    %4942 = vmatprep.subr.bf16.mxu0 %v842
    %4943 = vmatpush1.bf16.msra.mxu0 %v841
    %4944 = vmatprep.subr.bf16.mxu0 %v850
    %4945 = vmatpush1.bf16.msra.mxu0 %v849
    %4946 = vmatprep.subr.bf16.mxu0 %v858
    %4947 = vmatpush1.bf16.msra.mxu0 %v857
    %4948 = vmatprep.subr.bf16.mxu0 %v866
    %4949 = vmatpush1.bf16.msra.mxu0 %v865
    %4950 = vmatprep.mubr.bf16.mxu0 %v4522
    %4951 = vmatmul.mubr.bf16.gmra.mrb[0].mxu0 %v4521
    %v4952 = vpop.f32.mrb[0].mxu0
    %v4953 = vadd.f32 0.0, %v4952
    %v4954 = vpop.f32.mrb[0].mxu0
    %v4955 = vadd.f32 0.0, %v4954
    %v4956 = vpop.f32.mrb[0].mxu0
    %v4957 = vpop.f32.mrb[0].mxu0
    %4958 = vdwg.mxu0
    %4959 = vmatprep.subr.bf16.mxu0 %v748
    %4960 = vmatpush1.bf16.msra.mxu0 %v747
    %4961 = vmatprep.subr.bf16.mxu0 %v756
    %4962 = vmatpush1.bf16.msra.mxu0 %v755
    %4963 = vmatprep.subr.bf16.mxu0 %v764
    %4964 = vmatpush1.bf16.msra.mxu0 %v763
    %4965 = vmatprep.subr.bf16.mxu0 %v772
    %4966 = vmatpush1.bf16.msra.mxu0 %v771
    %4967 = vmatprep.subr.bf16.mxu0 %v780
    %4968 = vmatpush1.bf16.msra.mxu0 %v779
    %4969 = vmatprep.subr.bf16.mxu0 %v788
    %4970 = vmatpush1.bf16.msra.mxu0 %v787
    %4971 = vmatprep.subr.bf16.mxu0 %v796
    %4972 = vmatpush1.bf16.msra.mxu0 %v795
    %4973 = vmatprep.subr.bf16.mxu0 %v804
    %4974 = vmatpush1.bf16.msra.mxu0 %v803
    %4975 = vmatprep.subr.bf16.mxu0 %v812
    %4976 = vmatpush1.bf16.msra.mxu0 %v811
    %4977 = vmatprep.subr.bf16.mxu0 %v820
    %4978 = vmatpush1.bf16.msra.mxu0 %v819
    %4979 = vmatprep.subr.bf16.mxu0 %v828
    %4980 = vmatpush1.bf16.msra.mxu0 %v827
    %4981 = vmatprep.subr.bf16.mxu0 %v836
    %4982 = vmatpush1.bf16.msra.mxu0 %v835
    %4983 = vmatprep.subr.bf16.mxu0 %v844
    %4984 = vmatpush1.bf16.msra.mxu0 %v843
    %4985 = vmatprep.subr.bf16.mxu0 %v852
    %4986 = vmatpush1.bf16.msra.mxu0 %v851
    %4987 = vmatprep.subr.bf16.mxu0 %v860
    %4988 = vmatpush1.bf16.msra.mxu0 %v859
    %4989 = vmatprep.subr.bf16.mxu0 %v868
    %4990 = vmatpush1.bf16.msra.mxu0 %v867
    %4991 = vmatprep.mubr.bf16.mxu0 %v4522
    %4992 = vmatmul.mubr.bf16.gmra.mrb[0].mxu0 %v4521
    %v4993 = vpop.f32.mrb[0].mxu0
    %v4994 = vadd.f32 0.0, %v4993
    %v4995 = vpop.f32.mrb[0].mxu0
    %v4996 = vadd.f32 0.0, %v4995
    %v4997 = vpop.f32.mrb[0].mxu0
    %v4998 = vpop.f32.mrb[0].mxu0
    %4999 = vdwg.mxu0
    %5000 = vmatprep.subr.bf16.mxu0 %v750
    %5001 = vmatpush1.bf16.msra.mxu0 %v749
    %5002 = vmatprep.subr.bf16.mxu0 %v758
    %5003 = vmatpush1.bf16.msra.mxu0 %v757
    %5004 = vmatprep.subr.bf16.mxu0 %v766
    %5005 = vmatpush1.bf16.msra.mxu0 %v765
    %5006 = vmatprep.subr.bf16.mxu0 %v774
    %5007 = vmatpush1.bf16.msra.mxu0 %v773
    %5008 = vmatprep.subr.bf16.mxu0 %v782
    %5009 = vmatpush1.bf16.msra.mxu0 %v781
    %5010 = vmatprep.subr.bf16.mxu0 %v790
    %5011 = vmatpush1.bf16.msra.mxu0 %v789
    %5012 = vmatprep.subr.bf16.mxu0 %v798
    %5013 = vmatpush1.bf16.msra.mxu0 %v797
    %5014 = vmatprep.subr.bf16.mxu0 %v806
    %5015 = vmatpush1.bf16.msra.mxu0 %v805
    %5016 = vmatprep.subr.bf16.mxu0 %v814
    %5017 = vmatpush1.bf16.msra.mxu0 %v813
    %5018 = vmatprep.subr.bf16.mxu0 %v822
    %5019 = vmatpush1.bf16.msra.mxu0 %v821
    %5020 = vmatprep.subr.bf16.mxu0 %v830
    %5021 = vmatpush1.bf16.msra.mxu0 %v829
    %5022 = vmatprep.subr.bf16.mxu0 %v838
    %5023 = vmatpush1.bf16.msra.mxu0 %v837
    %5024 = vmatprep.subr.bf16.mxu0 %v846
    %5025 = vmatpush1.bf16.msra.mxu0 %v845
    %5026 = vmatprep.subr.bf16.mxu0 %v854
    %5027 = vmatpush1.bf16.msra.mxu0 %v853
    %5028 = vmatprep.subr.bf16.mxu0 %v862
    %5029 = vmatpush1.bf16.msra.mxu0 %v861
    %5030 = vmatprep.subr.bf16.mxu0 %v870
    %5031 = vmatpush1.bf16.msra.mxu0 %v869
    %5032 = vmatprep.mubr.bf16.mxu0 %v4522
    %5033 = vmatmul.mubr.bf16.gmra.mrb[0].mxu0 %v4521
    %v5034 = vpop.f32.mrb[0].mxu0
    %v5035 = vadd.f32 0.0, %v5034
    %v5036 = vpop.f32.mrb[0].mxu0
    %v5037 = vadd.f32 0.0, %v5036
    %v5038 = vpop.f32.mrb[0].mxu0
    %v5039 = vpop.f32.mrb[0].mxu0
    %5040 = vdwg.mxu0
    %5041 = vmatprep.subr.bf16.mxu0 %v752
    %5042 = vmatpush1.bf16.msra.mxu0 %v751
    %5043 = vmatprep.subr.bf16.mxu0 %v760
    %5044 = vmatpush1.bf16.msra.mxu0 %v759
    %5045 = vmatprep.subr.bf16.mxu0 %v768
    %5046 = vmatpush1.bf16.msra.mxu0 %v767
    %5047 = vmatprep.subr.bf16.mxu0 %v776
    %5048 = vmatpush1.bf16.msra.mxu0 %v775
    %5049 = vmatprep.subr.bf16.mxu0 %v784
    %5050 = vmatpush1.bf16.msra.mxu0 %v783
    %5051 = vmatprep.subr.bf16.mxu0 %v792
    %5052 = vmatpush1.bf16.msra.mxu0 %v791
    %5053 = vmatprep.subr.bf16.mxu0 %v800
    %5054 = vmatpush1.bf16.msra.mxu0 %v799
    %5055 = vmatprep.subr.bf16.mxu0 %v808
    %5056 = vmatpush1.bf16.msra.mxu0 %v807
    %5057 = vmatprep.subr.bf16.mxu0 %v816
    %5058 = vmatpush1.bf16.msra.mxu0 %v815
    %5059 = vmatprep.subr.bf16.mxu0 %v824
    %5060 = vmatpush1.bf16.msra.mxu0 %v823
    %5061 = vmatprep.subr.bf16.mxu0 %v832
    %5062 = vmatpush1.bf16.msra.mxu0 %v831
    %5063 = vmatprep.subr.bf16.mxu0 %v840
    %5064 = vmatpush1.bf16.msra.mxu0 %v839
    %5065 = vmatprep.subr.bf16.mxu0 %v848
    %5066 = vmatpush1.bf16.msra.mxu0 %v847
    %5067 = vmatprep.subr.bf16.mxu0 %v856
    %5068 = vmatpush1.bf16.msra.mxu0 %v855
    %5069 = vmatprep.subr.bf16.mxu0 %v864
    %5070 = vmatpush1.bf16.msra.mxu0 %v863
    %5071 = vmatprep.subr.bf16.mxu0 %v872
    %5072 = vmatpush1.bf16.msra.mxu0 %v871
    %5073 = vmatprep.mubr.bf16.mxu0 %v4522
    %5074 = vmatmul.mubr.bf16.gmra.mrb[0].mxu0 %v4521
    %v5075 = vpop.f32.mrb[0].mxu0
    %v5076 = vadd.f32 0.0, %v5075
    %v5077 = vpop.f32.mrb[0].mxu0
    %v5078 = vadd.f32 0.0, %v5077
    %v5079 = vpop.f32.mrb[0].mxu0
    %v5080 = vpop.f32.mrb[0].mxu0
    %5081 = vdwg.mxu0
    %v5082 = vadd.f32 %v4910, %v4953
    %v5083 = vadd.f32 %v4911, %v4955
    %v5084 = vadd.f32 %v4912, %v4994
    %v5085 = vadd.f32 %v4913, %v4996
    %v5086 = vadd.f32 %v4914, %v5035
    %v5087 = vadd.f32 %v4915, %v5037
    %v5088 = vadd.f32 %v4916, %v5076
    %v5089 = vadd.f32 %v4917, %v5078
    %v5090 = vxor.u32 %v5082, 2147483648
    %v5091 = vxor.u32 %v5083, 2147483648
    %v5092 = vxor.u32 %v5084, 2147483648
    %v5093 = vxor.u32 %v5085, 2147483648
    %v5094 = vxor.u32 %v5086, 2147483648
    %v5095 = vxor.u32 %v5087, 2147483648
    %v5096 = vmul.f32 %v5090, 1.442695
    %v5097 = vpow.pop %v5096
    %v5098 = vmul.f32 %v5091, 1.442695
    %v5099 = vpow.pop %v5098
    %v5100 = vmul.f32 %v5092, 1.442695
    %v5101 = vpow.pop %v5100
    %v5102 = vmul.f32 %v5093, 1.442695
    %v5103 = vpow.pop %v5102
    %v5104 = vmul.f32 %v5094, 1.442695
    %v5105 = vpow.pop %v5104
    %v5106 = vmul.f32 %v5095, 1.442695
    %v5107 = vpow.pop %v5106
    %v5108 = vadd.f32 %v5097, 1.0
    %v5109 = vadd.f32 %v5099, 1.0
    %v5110 = vadd.f32 %v5101, 1.0
    %v5111 = vadd.f32 %v5103, 1.0
    %v5112 = vadd.f32 %v5105, 1.0
    %v5113 = vadd.f32 %v5107, 1.0
    %v5114 = vrcp.pop %v5108
    %v5115 = vmul.f32 1.0, %v5114
    %v5116 = vrcp.pop %v5109
    %v5117 = vmul.f32 1.0, %v5116
    %v5118 = vrcp.pop %v5110
    %v5119 = vmul.f32 1.0, %v5118
    %v5120 = vrcp.pop %v5111
    %v5121 = vmul.f32 1.0, %v5120
    %v5122 = vrcp.pop %v5112
    %v5123 = vmul.f32 1.0, %v5122
    %v5124 = vrcp.pop %v5113
    %v5125 = vmul.f32 1.0, %v5124
    %v5126 = vtanh.pop %v5088
    %v5127 = vtanh.pop %v5089
    %v5128 = vmul.f32 %v5119, %v4515
    %v5129 = vmul.f32 %v5121, %v4516
    %v5130 = vmul.f32 %v5115, %v5126
    %v5131 = vmul.f32 %v5117, %v5127
    %v5132 = vadd.f32 %v5128, %v5130
    %v5133 = vadd.f32 %v5129, %v5131
    %v5134 = vtanh.pop %v5132
    %v5135 = vtanh.pop %v5133
    %v5136 = vmul.f32 %v5123, %v5134
    %v5137 = vmul.f32 %v5125, %v5135
    %v5138 = vpack.c.bf16 %v5136, %v5136
    %v5139 = vpack.c.bf16 %v5137, %v5137
    %5140 = vmatprep.subr.bf16.mxu0 %v1736
    %5141 = vmatpush1.bf16.msra.mxu0 %v1735
    %5142 = vmatprep.subr.bf16.mxu0 %v1744
    %5143 = vmatpush1.bf16.msra.mxu0 %v1743
    %5144 = vmatprep.subr.bf16.mxu0 %v1752
    %5145 = vmatpush1.bf16.msra.mxu0 %v1751
    %5146 = vmatprep.subr.bf16.mxu0 %v1760
    %5147 = vmatpush1.bf16.msra.mxu0 %v1759
    %5148 = vmatprep.subr.bf16.mxu0 %v1768
    %5149 = vmatpush1.bf16.msra.mxu0 %v1767
    %5150 = vmatprep.subr.bf16.mxu0 %v1776
    %5151 = vmatpush1.bf16.msra.mxu0 %v1775
    %5152 = vmatprep.subr.bf16.mxu0 %v1784
    %5153 = vmatpush1.bf16.msra.mxu0 %v1783
    %5154 = vmatprep.subr.bf16.mxu0 %v1792
    %5155 = vmatpush1.bf16.msra.mxu0 %v1791
    %5156 = vmatprep.subr.bf16.mxu0 %v1800
    %5157 = vmatpush1.bf16.msra.mxu0 %v1799
    %5158 = vmatprep.subr.bf16.mxu0 %v1808
    %5159 = vmatpush1.bf16.msra.mxu0 %v1807
    %5160 = vmatprep.subr.bf16.mxu0 %v1816
    %5161 = vmatpush1.bf16.msra.mxu0 %v1815
    %5162 = vmatprep.subr.bf16.mxu0 %v1824
    %5163 = vmatpush1.bf16.msra.mxu0 %v1823
    %5164 = vmatprep.subr.bf16.mxu0 %v1832
    %5165 = vmatpush1.bf16.msra.mxu0 %v1831
    %5166 = vmatprep.subr.bf16.mxu0 %v1840
    %5167 = vmatpush1.bf16.msra.mxu0 %v1839
    %5168 = vmatprep.subr.bf16.mxu0 %v1848
    %5169 = vmatpush1.bf16.msra.mxu0 %v1847
    %5170 = vmatprep.subr.bf16.mxu0 %v1856
    %5171 = vmatpush1.bf16.msra.mxu0 %v1855
    %5172 = vmatprep.mubr.bf16.mxu0 %v5139
    %5173 = vmatmul.mubr.bf16.gmra.mrb[0].mxu0 %v5138
    %v5174 = vpop.f32.mrb[0].mxu0
    %v5175 = vadd.f32 0.0, %v5174
    %v5176 = vpop.f32.mrb[0].mxu0
    %v5177 = vadd.f32 0.0, %v5176
    %v5178 = vpop.f32.mrb[0].mxu0
    %v5179 = vpop.f32.mrb[0].mxu0
    %5180 = vdwg.mxu0
    %5181 = vmatprep.subr.bf16.mxu0 %v1738
    %5182 = vmatpush1.bf16.msra.mxu0 %v1737
    %5183 = vmatprep.subr.bf16.mxu0 %v1746
    %5184 = vmatpush1.bf16.msra.mxu0 %v1745
    %5185 = vmatprep.subr.bf16.mxu0 %v1754
    %5186 = vmatpush1.bf16.msra.mxu0 %v1753
    %5187 = vmatprep.subr.bf16.mxu0 %v1762
    %5188 = vmatpush1.bf16.msra.mxu0 %v1761
    %5189 = vmatprep.subr.bf16.mxu0 %v1770
    %5190 = vmatpush1.bf16.msra.mxu0 %v1769
    %5191 = vmatprep.subr.bf16.mxu0 %v1778
    %5192 = vmatpush1.bf16.msra.mxu0 %v1777
    %5193 = vmatprep.subr.bf16.mxu0 %v1786
    %5194 = vmatpush1.bf16.msra.mxu0 %v1785
    %5195 = vmatprep.subr.bf16.mxu0 %v1794
    %5196 = vmatpush1.bf16.msra.mxu0 %v1793
    %5197 = vmatprep.subr.bf16.mxu0 %v1802
    %5198 = vmatpush1.bf16.msra.mxu0 %v1801
    %5199 = vmatprep.subr.bf16.mxu0 %v1810
    %5200 = vmatpush1.bf16.msra.mxu0 %v1809
    %5201 = vmatprep.subr.bf16.mxu0 %v1818
    %5202 = vmatpush1.bf16.msra.mxu0 %v1817
    %5203 = vmatprep.subr.bf16.mxu0 %v1826
    %5204 = vmatpush1.bf16.msra.mxu0 %v1825
    %5205 = vmatprep.subr.bf16.mxu0 %v1834
    %5206 = vmatpush1.bf16.msra.mxu0 %v1833
    %5207 = vmatprep.subr.bf16.mxu0 %v1842
    %5208 = vmatpush1.bf16.msra.mxu0 %v1841
    %5209 = vmatprep.subr.bf16.mxu0 %v1850
    %5210 = vmatpush1.bf16.msra.mxu0 %v1849
    %5211 = vmatprep.subr.bf16.mxu0 %v1858
    %5212 = vmatpush1.bf16.msra.mxu0 %v1857
    %5213 = vmatprep.mubr.bf16.mxu0 %v5139
    %5214 = vmatmul.mubr.bf16.gmra.mrb[0].mxu0 %v5138
    %v5215 = vpop.f32.mrb[0].mxu0
    %v5216 = vadd.f32 0.0, %v5215
    %v5217 = vpop.f32.mrb[0].mxu0
    %v5218 = vadd.f32 0.0, %v5217
    %v5219 = vpop.f32.mrb[0].mxu0
    %v5220 = vpop.f32.mrb[0].mxu0
    %5221 = vdwg.mxu0
    %5222 = vmatprep.subr.bf16.mxu0 %v1740
    %5223 = vmatpush1.bf16.msra.mxu0 %v1739
    %5224 = vmatprep.subr.bf16.mxu0 %v1748
    %5225 = vmatpush1.bf16.msra.mxu0 %v1747
    %5226 = vmatprep.subr.bf16.mxu0 %v1756
    %5227 = vmatpush1.bf16.msra.mxu0 %v1755
    %5228 = vmatprep.subr.bf16.mxu0 %v1764
    %5229 = vmatpush1.bf16.msra.mxu0 %v1763
    %5230 = vmatprep.subr.bf16.mxu0 %v1772
    %5231 = vmatpush1.bf16.msra.mxu0 %v1771
    %5232 = vmatprep.subr.bf16.mxu0 %v1780
    %5233 = vmatpush1.bf16.msra.mxu0 %v1779
    %5234 = vmatprep.subr.bf16.mxu0 %v1788
    %5235 = vmatpush1.bf16.msra.mxu0 %v1787
    %5236 = vmatprep.subr.bf16.mxu0 %v1796
    %5237 = vmatpush1.bf16.msra.mxu0 %v1795
    %5238 = vmatprep.subr.bf16.mxu0 %v1804
    %5239 = vmatpush1.bf16.msra.mxu0 %v1803
    %5240 = vmatprep.subr.bf16.mxu0 %v1812
    %5241 = vmatpush1.bf16.msra.mxu0 %v1811
    %5242 = vmatprep.subr.bf16.mxu0 %v1820
    %5243 = vmatpush1.bf16.msra.mxu0 %v1819
    %5244 = vmatprep.subr.bf16.mxu0 %v1828
    %5245 = vmatpush1.bf16.msra.mxu0 %v1827
    %5246 = vmatprep.subr.bf16.mxu0 %v1836
    %5247 = vmatpush1.bf16.msra.mxu0 %v1835
    %5248 = vmatprep.subr.bf16.mxu0 %v1844
    %5249 = vmatpush1.bf16.msra.mxu0 %v1843
    %5250 = vmatprep.subr.bf16.mxu0 %v1852
    %5251 = vmatpush1.bf16.msra.mxu0 %v1851
    %5252 = vmatprep.subr.bf16.mxu0 %v1860
    %5253 = vmatpush1.bf16.msra.mxu0 %v1859
    %5254 = vmatprep.mubr.bf16.mxu0 %v5139
    %5255 = vmatmul.mubr.bf16.gmra.mrb[0].mxu0 %v5138
    %v5256 = vpop.f32.mrb[0].mxu0
    %v5257 = vadd.f32 0.0, %v5256
    %v5258 = vpop.f32.mrb[0].mxu0
    %v5259 = vadd.f32 0.0, %v5258
    %v5260 = vpop.f32.mrb[0].mxu0
    %v5261 = vpop.f32.mrb[0].mxu0
    %5262 = vdwg.mxu0
    %5263 = vmatprep.subr.bf16.mxu0 %v1742
    %5264 = vmatpush1.bf16.msra.mxu0 %v1741
    %5265 = vmatprep.subr.bf16.mxu0 %v1750
    %5266 = vmatpush1.bf16.msra.mxu0 %v1749
    %5267 = vmatprep.subr.bf16.mxu0 %v1758
    %5268 = vmatpush1.bf16.msra.mxu0 %v1757
    %5269 = vmatprep.subr.bf16.mxu0 %v1766
    %5270 = vmatpush1.bf16.msra.mxu0 %v1765
    %5271 = vmatprep.subr.bf16.mxu0 %v1774
    %5272 = vmatpush1.bf16.msra.mxu0 %v1773
    %5273 = vmatprep.subr.bf16.mxu0 %v1782
    %5274 = vmatpush1.bf16.msra.mxu0 %v1781
    %5275 = vmatprep.subr.bf16.mxu0 %v1790
    %5276 = vmatpush1.bf16.msra.mxu0 %v1789
    %5277 = vmatprep.subr.bf16.mxu0 %v1798
    %5278 = vmatpush1.bf16.msra.mxu0 %v1797
    %5279 = vmatprep.subr.bf16.mxu0 %v1806
    %5280 = vmatpush1.bf16.msra.mxu0 %v1805
    %5281 = vmatprep.subr.bf16.mxu0 %v1814
    %5282 = vmatpush1.bf16.msra.mxu0 %v1813
    %5283 = vmatprep.subr.bf16.mxu0 %v1822
    %5284 = vmatpush1.bf16.msra.mxu0 %v1821
    %5285 = vmatprep.subr.bf16.mxu0 %v1830
    %5286 = vmatpush1.bf16.msra.mxu0 %v1829
    %5287 = vmatprep.subr.bf16.mxu0 %v1838
    %5288 = vmatpush1.bf16.msra.mxu0 %v1837
    %5289 = vmatprep.subr.bf16.mxu0 %v1846
    %5290 = vmatpush1.bf16.msra.mxu0 %v1845
    %5291 = vmatprep.subr.bf16.mxu0 %v1854
    %5292 = vmatpush1.bf16.msra.mxu0 %v1853
    %5293 = vmatprep.subr.bf16.mxu0 %v1862
    %5294 = vmatpush1.bf16.msra.mxu0 %v1861
    %5295 = vmatprep.mubr.bf16.mxu0 %v5139
    %5296 = vmatmul.mubr.bf16.gmra.mrb[0].mxu0 %v5138
    %v5297 = vpop.f32.mrb[0].mxu0
    %v5298 = vadd.f32 0.0, %v5297
    %v5299 = vpop.f32.mrb[0].mxu0
    %v5300 = vadd.f32 0.0, %v5299
    %v5301 = vpop.f32.mrb[0].mxu0
    %v5302 = vpop.f32.mrb[0].mxu0
    %5303 = vdwg.mxu0
    %5304 = vmatprep.subr.bf16.mxu0 %v2540
    %5305 = vmatpush1.bf16.msra.mxu0 %v2539
    %5306 = vmatprep.subr.bf16.mxu0 %v2548
    %5307 = vmatpush1.bf16.msra.mxu0 %v2547
    %5308 = vmatprep.subr.bf16.mxu0 %v2556
    %5309 = vmatpush1.bf16.msra.mxu0 %v2555
    %5310 = vmatprep.subr.bf16.mxu0 %v2564
    %5311 = vmatpush1.bf16.msra.mxu0 %v2563
    %5312 = vmatprep.subr.bf16.mxu0 %v2572
    %5313 = vmatpush1.bf16.msra.mxu0 %v2571
    %5314 = vmatprep.subr.bf16.mxu0 %v2580
    %5315 = vmatpush1.bf16.msra.mxu0 %v2579
    %5316 = vmatprep.subr.bf16.mxu0 %v2588
    %5317 = vmatpush1.bf16.msra.mxu0 %v2587
    %5318 = vmatprep.subr.bf16.mxu0 %v2596
    %5319 = vmatpush1.bf16.msra.mxu0 %v2595
    %5320 = vmatprep.subr.bf16.mxu0 %v2604
    %5321 = vmatpush1.bf16.msra.mxu0 %v2603
    %5322 = vmatprep.subr.bf16.mxu0 %v2612
    %5323 = vmatpush1.bf16.msra.mxu0 %v2611
    %5324 = vmatprep.subr.bf16.mxu0 %v2620
    %5325 = vmatpush1.bf16.msra.mxu0 %v2619
    %5326 = vmatprep.subr.bf16.mxu0 %v2628
    %5327 = vmatpush1.bf16.msra.mxu0 %v2627
    %5328 = vmatprep.subr.bf16.mxu0 %v2636
    %5329 = vmatpush1.bf16.msra.mxu0 %v2635
    %5330 = vmatprep.subr.bf16.mxu0 %v2644
    %5331 = vmatpush1.bf16.msra.mxu0 %v2643
    %5332 = vmatprep.subr.bf16.mxu0 %v2652
    %5333 = vmatpush1.bf16.msra.mxu0 %v2651
    %5334 = vmatprep.subr.bf16.mxu0 %v2660
    %5335 = vmatpush1.bf16.msra.mxu0 %v2659
    %5336 = vmatprep.mubr.bf16.mxu0 %v4908
    %5337 = vmatmul.mubr.bf16.gmra.mrb[0].mxu0 %v4907
    %v5338 = vpop.f32.mrb[0].mxu0
    %v5339 = vadd.f32 %v5175, %v5338
    %v5340 = vpop.f32.mrb[0].mxu0
    %v5341 = vadd.f32 %v5177, %v5340
    %v5342 = vpop.f32.mrb[0].mxu0
    %v5343 = vpop.f32.mrb[0].mxu0
    %5344 = vdwg.mxu0
    %5345 = vmatprep.subr.bf16.mxu0 %v2542
    %5346 = vmatpush1.bf16.msra.mxu0 %v2541
    %5347 = vmatprep.subr.bf16.mxu0 %v2550
    %5348 = vmatpush1.bf16.msra.mxu0 %v2549
    %5349 = vmatprep.subr.bf16.mxu0 %v2558
    %5350 = vmatpush1.bf16.msra.mxu0 %v2557
    %5351 = vmatprep.subr.bf16.mxu0 %v2566
    %5352 = vmatpush1.bf16.msra.mxu0 %v2565
    %5353 = vmatprep.subr.bf16.mxu0 %v2574
    %5354 = vmatpush1.bf16.msra.mxu0 %v2573
    %5355 = vmatprep.subr.bf16.mxu0 %v2582
    %5356 = vmatpush1.bf16.msra.mxu0 %v2581
    %5357 = vmatprep.subr.bf16.mxu0 %v2590
    %5358 = vmatpush1.bf16.msra.mxu0 %v2589
    %5359 = vmatprep.subr.bf16.mxu0 %v2598
    %5360 = vmatpush1.bf16.msra.mxu0 %v2597
    %5361 = vmatprep.subr.bf16.mxu0 %v2606
    %5362 = vmatpush1.bf16.msra.mxu0 %v2605
    %5363 = vmatprep.subr.bf16.mxu0 %v2614
    %5364 = vmatpush1.bf16.msra.mxu0 %v2613
    %5365 = vmatprep.subr.bf16.mxu0 %v2622
    %5366 = vmatpush1.bf16.msra.mxu0 %v2621
    %5367 = vmatprep.subr.bf16.mxu0 %v2630
    %5368 = vmatpush1.bf16.msra.mxu0 %v2629
    %5369 = vmatprep.subr.bf16.mxu0 %v2638
    %5370 = vmatpush1.bf16.msra.mxu0 %v2637
    %5371 = vmatprep.subr.bf16.mxu0 %v2646
    %5372 = vmatpush1.bf16.msra.mxu0 %v2645
    %5373 = vmatprep.subr.bf16.mxu0 %v2654
    %5374 = vmatpush1.bf16.msra.mxu0 %v2653
    %5375 = vmatprep.subr.bf16.mxu0 %v2662
    %5376 = vmatpush1.bf16.msra.mxu0 %v2661
    %5377 = vmatprep.mubr.bf16.mxu0 %v4908
    %5378 = vmatmul.mubr.bf16.gmra.mrb[0].mxu0 %v4907
    %v5379 = vpop.f32.mrb[0].mxu0
    %v5380 = vadd.f32 %v5216, %v5379
    %v5381 = vpop.f32.mrb[0].mxu0
    %v5382 = vadd.f32 %v5218, %v5381
    %v5383 = vpop.f32.mrb[0].mxu0
    %v5384 = vpop.f32.mrb[0].mxu0
    %5385 = vdwg.mxu0
    %5386 = vmatprep.subr.bf16.mxu0 %v2544
    %5387 = vmatpush1.bf16.msra.mxu0 %v2543
    %5388 = vmatprep.subr.bf16.mxu0 %v2552
    %5389 = vmatpush1.bf16.msra.mxu0 %v2551
    %5390 = vmatprep.subr.bf16.mxu0 %v2560
    %5391 = vmatpush1.bf16.msra.mxu0 %v2559
    %5392 = vmatprep.subr.bf16.mxu0 %v2568
    %5393 = vmatpush1.bf16.msra.mxu0 %v2567
    %5394 = vmatprep.subr.bf16.mxu0 %v2576
    %5395 = vmatpush1.bf16.msra.mxu0 %v2575
    %5396 = vmatprep.subr.bf16.mxu0 %v2584
    %5397 = vmatpush1.bf16.msra.mxu0 %v2583
    %5398 = vmatprep.subr.bf16.mxu0 %v2592
    %5399 = vmatpush1.bf16.msra.mxu0 %v2591
    %5400 = vmatprep.subr.bf16.mxu0 %v2600
    %5401 = vmatpush1.bf16.msra.mxu0 %v2599
    %5402 = vmatprep.subr.bf16.mxu0 %v2608
    %5403 = vmatpush1.bf16.msra.mxu0 %v2607
    %5404 = vmatprep.subr.bf16.mxu0 %v2616
    %5405 = vmatpush1.bf16.msra.mxu0 %v2615
    %5406 = vmatprep.subr.bf16.mxu0 %v2624
    %5407 = vmatpush1.bf16.msra.mxu0 %v2623
    %5408 = vmatprep.subr.bf16.mxu0 %v2632
    %5409 = vmatpush1.bf16.msra.mxu0 %v2631
    %5410 = vmatprep.subr.bf16.mxu0 %v2640
    %5411 = vmatpush1.bf16.msra.mxu0 %v2639
    %5412 = vmatprep.subr.bf16.mxu0 %v2648
    %5413 = vmatpush1.bf16.msra.mxu0 %v2647
    %5414 = vmatprep.subr.bf16.mxu0 %v2656
    %5415 = vmatpush1.bf16.msra.mxu0 %v2655
    %5416 = vmatprep.subr.bf16.mxu0 %v2664
    %5417 = vmatpush1.bf16.msra.mxu0 %v2663
    %5418 = vmatprep.mubr.bf16.mxu0 %v4908
    %5419 = vmatmul.mubr.bf16.gmra.mrb[0].mxu0 %v4907
    %v5420 = vpop.f32.mrb[0].mxu0
    %v5421 = vadd.f32 %v5257, %v5420
    %v5422 = vpop.f32.mrb[0].mxu0
    %v5423 = vadd.f32 %v5259, %v5422
    %v5424 = vpop.f32.mrb[0].mxu0
    %v5425 = vpop.f32.mrb[0].mxu0
    %5426 = vdwg.mxu0
    %5427 = vmatprep.subr.bf16.mxu0 %v2546
    %5428 = vmatpush1.bf16.msra.mxu0 %v2545
    %5429 = vmatprep.subr.bf16.mxu0 %v2554
    %5430 = vmatpush1.bf16.msra.mxu0 %v2553
    %5431 = vmatprep.subr.bf16.mxu0 %v2562
    %5432 = vmatpush1.bf16.msra.mxu0 %v2561
    %5433 = vmatprep.subr.bf16.mxu0 %v2570
    %5434 = vmatpush1.bf16.msra.mxu0 %v2569
    %5435 = vmatprep.subr.bf16.mxu0 %v2578
    %5436 = vmatpush1.bf16.msra.mxu0 %v2577
    %5437 = vmatprep.subr.bf16.mxu0 %v2586
    %5438 = vmatpush1.bf16.msra.mxu0 %v2585
    %5439 = vmatprep.subr.bf16.mxu0 %v2594
    %5440 = vmatpush1.bf16.msra.mxu0 %v2593
    %5441 = vmatprep.subr.bf16.mxu0 %v2602
    %5442 = vmatpush1.bf16.msra.mxu0 %v2601
    %5443 = vmatprep.subr.bf16.mxu0 %v2610
    %5444 = vmatpush1.bf16.msra.mxu0 %v2609
    %5445 = vmatprep.subr.bf16.mxu0 %v2618
    %5446 = vmatpush1.bf16.msra.mxu0 %v2617
    %5447 = vmatprep.subr.bf16.mxu0 %v2626
    %5448 = vmatpush1.bf16.msra.mxu0 %v2625
    %5449 = vmatprep.subr.bf16.mxu0 %v2634
    %5450 = vmatpush1.bf16.msra.mxu0 %v2633
    %5451 = vmatprep.subr.bf16.mxu0 %v2642
    %5452 = vmatpush1.bf16.msra.mxu0 %v2641
    %5453 = vmatprep.subr.bf16.mxu0 %v2650
    %5454 = vmatpush1.bf16.msra.mxu0 %v2649
    %5455 = vmatprep.subr.bf16.mxu0 %v2658
    %5456 = vmatpush1.bf16.msra.mxu0 %v2657
    %5457 = vmatprep.subr.bf16.mxu0 %v2666
    %5458 = vmatpush1.bf16.msra.mxu0 %v2665
    %5459 = vmatprep.mubr.bf16.mxu0 %v4908
    %5460 = vmatmul.mubr.bf16.gmra.mrb[0].mxu0 %v4907
    %v5461 = vpop.f32.mrb[0].mxu0
    %v5462 = vadd.f32 %v5298, %v5461
    %v5463 = vpop.f32.mrb[0].mxu0
    %v5464 = vadd.f32 %v5300, %v5463
    %v5465 = vpop.f32.mrb[0].mxu0
    %v5466 = vpop.f32.mrb[0].mxu0
    %5467 = vdwg.mxu0
    %v5468 = vadd.f32 %v5339, %v2963
    %v5469 = vadd.f32 %v5341, %v2967
    %v5470 = vadd.f32 %v5380, %v2971
    %v5471 = vadd.f32 %v5382, %v2975
    %v5472 = vadd.f32 %v5421, %v2979
    %v5473 = vadd.f32 %v5423, %v2983
    %v5474 = vadd.f32 %v5462, %v2987
    %v5475 = vadd.f32 %v5464, %v2991
    %v5476 = vxor.u32 %v5468, 2147483648
    %v5477 = vxor.u32 %v5469, 2147483648
    %v5478 = vxor.u32 %v5470, 2147483648
    %v5479 = vxor.u32 %v5471, 2147483648
    %v5480 = vxor.u32 %v5472, 2147483648
    %v5481 = vxor.u32 %v5473, 2147483648
    %v5482 = vmul.f32 %v5476, 1.442695
    %v5483 = vpow.pop %v5482
    %v5484 = vmul.f32 %v5477, 1.442695
    %v5485 = vpow.pop %v5484
    %v5486 = vmul.f32 %v5478, 1.442695
    %v5487 = vpow.pop %v5486
    %v5488 = vmul.f32 %v5479, 1.442695
    %v5489 = vpow.pop %v5488
    %v5490 = vmul.f32 %v5480, 1.442695
    %v5491 = vpow.pop %v5490
    %v5492 = vmul.f32 %v5481, 1.442695
    %v5493 = vpow.pop %v5492
    %v5494 = vadd.f32 %v5483, 1.0
    %v5495 = vadd.f32 %v5485, 1.0
    %v5496 = vadd.f32 %v5487, 1.0
    %v5497 = vadd.f32 %v5489, 1.0
    %v5498 = vadd.f32 %v5491, 1.0
    %v5499 = vadd.f32 %v5493, 1.0
    %v5500 = vrcp.pop %v5494
    %v5501 = vmul.f32 1.0, %v5500
    %v5502 = vrcp.pop %v5495
    %v5503 = vmul.f32 1.0, %v5502
    %v5504 = vrcp.pop %v5496
    %v5505 = vmul.f32 1.0, %v5504
    %v5506 = vrcp.pop %v5497
    %v5507 = vmul.f32 1.0, %v5506
    %v5508 = vrcp.pop %v5498
    %v5509 = vmul.f32 1.0, %v5508
    %v5510 = vrcp.pop %v5499
    %v5511 = vmul.f32 1.0, %v5510
    %v5512 = vtanh.pop %v5474
    %v5513 = vtanh.pop %v5475
    %v5514 = vmul.f32 %v5505, %v4901
    %v5515 = vmul.f32 %v5507, %v4902
    %v5516 = vmul.f32 %v5501, %v5512
    %v5517 = vmul.f32 %v5503, %v5513
    %v5518 = vadd.f32 %v5514, %v5516
    %v5519 = vadd.f32 %v5515, %v5517
    %v5520 = vtanh.pop %v5518
    %v5521 = vtanh.pop %v5519
    %v5522 = vmul.f32 %v5509, %v5520
    %v5523 = vmul.f32 %v5511, %v5521
    %v5524 = vpack.c.bf16 %v5522, %v5522
    %v5525 = vpack.c.bf16 %v5523, %v5523
    %s5526 = scalar_lea.vmem [#allocation2], 320
    %v5527 = vld [vmem:[%s5526] sm:$0xff]
    %v5528 = vld [vmem:[%s5526 + $0x8] sm:$0xff]
    %v5529 = vld [vmem:[%s5526 + $0x10] sm:$0xff]
    %v5530 = vld [vmem:[%s5526 + $0x18] sm:$0xff]
    %v5531 = vld [vmem:[%s5526 + $0x20] sm:$0xff]
    %v5532 = vld [vmem:[%s5526 + $0x28] sm:$0xff]
    %v5533 = vld [vmem:[%s5526 + $0x30] sm:$0xff]
    %v5534 = vld [vmem:[%s5526 + $0x38] sm:$0xff]
    %5535 = vmatprep.subr.bf16.mxu0 %v746
    %5536 = vmatpush1.bf16.msra.mxu0 %v745
    %5537 = vmatprep.subr.bf16.mxu0 %v754
    %5538 = vmatpush1.bf16.msra.mxu0 %v753
    %5539 = vmatprep.subr.bf16.mxu0 %v762
    %5540 = vmatpush1.bf16.msra.mxu0 %v761
    %5541 = vmatprep.subr.bf16.mxu0 %v770
    %5542 = vmatpush1.bf16.msra.mxu0 %v769
    %5543 = vmatprep.subr.bf16.mxu0 %v778
    %5544 = vmatpush1.bf16.msra.mxu0 %v777
    %5545 = vmatprep.subr.bf16.mxu0 %v786
    %5546 = vmatpush1.bf16.msra.mxu0 %v785
    %5547 = vmatprep.subr.bf16.mxu0 %v794
    %5548 = vmatpush1.bf16.msra.mxu0 %v793
    %5549 = vmatprep.subr.bf16.mxu0 %v802
    %5550 = vmatpush1.bf16.msra.mxu0 %v801
    %5551 = vmatprep.subr.bf16.mxu0 %v810
    %5552 = vmatpush1.bf16.msra.mxu0 %v809
    %5553 = vmatprep.subr.bf16.mxu0 %v818
    %5554 = vmatpush1.bf16.msra.mxu0 %v817
    %5555 = vmatprep.subr.bf16.mxu0 %v826
    %5556 = vmatpush1.bf16.msra.mxu0 %v825
    %5557 = vmatprep.subr.bf16.mxu0 %v834
    %5558 = vmatpush1.bf16.msra.mxu0 %v833
    %5559 = vmatprep.subr.bf16.mxu0 %v842
    %5560 = vmatpush1.bf16.msra.mxu0 %v841
    %5561 = vmatprep.subr.bf16.mxu0 %v850
    %5562 = vmatpush1.bf16.msra.mxu0 %v849
    %5563 = vmatprep.subr.bf16.mxu0 %v858
    %5564 = vmatpush1.bf16.msra.mxu0 %v857
    %5565 = vmatprep.subr.bf16.mxu0 %v866
    %5566 = vmatpush1.bf16.msra.mxu0 %v865
    %5567 = vmatprep.mubr.bf16.mxu0 %v5139
    %5568 = vmatmul.mubr.bf16.gmra.mrb[0].mxu0 %v5138
    %v5569 = vpop.f32.mrb[0].mxu0
    %v5570 = vadd.f32 0.0, %v5569
    %v5571 = vpop.f32.mrb[0].mxu0
    %v5572 = vadd.f32 0.0, %v5571
    %v5573 = vpop.f32.mrb[0].mxu0
    %v5574 = vpop.f32.mrb[0].mxu0
    %5575 = vdwg.mxu0
    %5576 = vmatprep.subr.bf16.mxu0 %v748
    %5577 = vmatpush1.bf16.msra.mxu0 %v747
    %5578 = vmatprep.subr.bf16.mxu0 %v756
    %5579 = vmatpush1.bf16.msra.mxu0 %v755
    %5580 = vmatprep.subr.bf16.mxu0 %v764
    %5581 = vmatpush1.bf16.msra.mxu0 %v763
    %5582 = vmatprep.subr.bf16.mxu0 %v772
    %5583 = vmatpush1.bf16.msra.mxu0 %v771
    %5584 = vmatprep.subr.bf16.mxu0 %v780
    %5585 = vmatpush1.bf16.msra.mxu0 %v779
    %5586 = vmatprep.subr.bf16.mxu0 %v788
    %5587 = vmatpush1.bf16.msra.mxu0 %v787
    %5588 = vmatprep.subr.bf16.mxu0 %v796
    %5589 = vmatpush1.bf16.msra.mxu0 %v795
    %5590 = vmatprep.subr.bf16.mxu0 %v804
    %5591 = vmatpush1.bf16.msra.mxu0 %v803
    %5592 = vmatprep.subr.bf16.mxu0 %v812
    %5593 = vmatpush1.bf16.msra.mxu0 %v811
    %5594 = vmatprep.subr.bf16.mxu0 %v820
    %5595 = vmatpush1.bf16.msra.mxu0 %v819
    %5596 = vmatprep.subr.bf16.mxu0 %v828
    %5597 = vmatpush1.bf16.msra.mxu0 %v827
    %5598 = vmatprep.subr.bf16.mxu0 %v836
    %5599 = vmatpush1.bf16.msra.mxu0 %v835
    %5600 = vmatprep.subr.bf16.mxu0 %v844
    %5601 = vmatpush1.bf16.msra.mxu0 %v843
    %5602 = vmatprep.subr.bf16.mxu0 %v852
    %5603 = vmatpush1.bf16.msra.mxu0 %v851
    %5604 = vmatprep.subr.bf16.mxu0 %v860
    %5605 = vmatpush1.bf16.msra.mxu0 %v859
    %5606 = vmatprep.subr.bf16.mxu0 %v868
    %5607 = vmatpush1.bf16.msra.mxu0 %v867
    %5608 = vmatprep.mubr.bf16.mxu0 %v5139
    %5609 = vmatmul.mubr.bf16.gmra.mrb[0].mxu0 %v5138
    %v5610 = vpop.f32.mrb[0].mxu0
    %v5611 = vadd.f32 0.0, %v5610
    %v5612 = vpop.f32.mrb[0].mxu0
    %v5613 = vadd.f32 0.0, %v5612
    %v5614 = vpop.f32.mrb[0].mxu0
    %v5615 = vpop.f32.mrb[0].mxu0
    %5616 = vdwg.mxu0
    %5617 = vmatprep.subr.bf16.mxu0 %v750
    %5618 = vmatpush1.bf16.msra.mxu0 %v749
    %5619 = vmatprep.subr.bf16.mxu0 %v758
    %5620 = vmatpush1.bf16.msra.mxu0 %v757
    %5621 = vmatprep.subr.bf16.mxu0 %v766
    %5622 = vmatpush1.bf16.msra.mxu0 %v765
    %5623 = vmatprep.subr.bf16.mxu0 %v774
    %5624 = vmatpush1.bf16.msra.mxu0 %v773
    %5625 = vmatprep.subr.bf16.mxu0 %v782
    %5626 = vmatpush1.bf16.msra.mxu0 %v781
    %5627 = vmatprep.subr.bf16.mxu0 %v790
    %5628 = vmatpush1.bf16.msra.mxu0 %v789
    %5629 = vmatprep.subr.bf16.mxu0 %v798
    %5630 = vmatpush1.bf16.msra.mxu0 %v797
    %5631 = vmatprep.subr.bf16.mxu0 %v806
    %5632 = vmatpush1.bf16.msra.mxu0 %v805
    %5633 = vmatprep.subr.bf16.mxu0 %v814
    %5634 = vmatpush1.bf16.msra.mxu0 %v813
    %5635 = vmatprep.subr.bf16.mxu0 %v822
    %5636 = vmatpush1.bf16.msra.mxu0 %v821
    %5637 = vmatprep.subr.bf16.mxu0 %v830
    %5638 = vmatpush1.bf16.msra.mxu0 %v829
    %5639 = vmatprep.subr.bf16.mxu0 %v838
    %5640 = vmatpush1.bf16.msra.mxu0 %v837
    %5641 = vmatprep.subr.bf16.mxu0 %v846
    %5642 = vmatpush1.bf16.msra.mxu0 %v845
    %5643 = vmatprep.subr.bf16.mxu0 %v854
    %5644 = vmatpush1.bf16.msra.mxu0 %v853
    %5645 = vmatprep.subr.bf16.mxu0 %v862
    %5646 = vmatpush1.bf16.msra.mxu0 %v861
    %5647 = vmatprep.subr.bf16.mxu0 %v870
    %5648 = vmatpush1.bf16.msra.mxu0 %v869
    %5649 = vmatprep.mubr.bf16.mxu0 %v5139
    %5650 = vmatmul.mubr.bf16.gmra.mrb[0].mxu0 %v5138
    %v5651 = vpop.f32.mrb[0].mxu0
    %v5652 = vadd.f32 0.0, %v5651
    %v5653 = vpop.f32.mrb[0].mxu0
    %v5654 = vadd.f32 0.0, %v5653
    %v5655 = vpop.f32.mrb[0].mxu0
    %v5656 = vpop.f32.mrb[0].mxu0
    %5657 = vdwg.mxu0
    %5658 = vmatprep.subr.bf16.mxu0 %v752
    %5659 = vmatpush1.bf16.msra.mxu0 %v751
    %5660 = vmatprep.subr.bf16.mxu0 %v760
    %5661 = vmatpush1.bf16.msra.mxu0 %v759
    %5662 = vmatprep.subr.bf16.mxu0 %v768
    %5663 = vmatpush1.bf16.msra.mxu0 %v767
    %5664 = vmatprep.subr.bf16.mxu0 %v776
    %5665 = vmatpush1.bf16.msra.mxu0 %v775
    %5666 = vmatprep.subr.bf16.mxu0 %v784
    %5667 = vmatpush1.bf16.msra.mxu0 %v783
    %5668 = vmatprep.subr.bf16.mxu0 %v792
    %5669 = vmatpush1.bf16.msra.mxu0 %v791
    %5670 = vmatprep.subr.bf16.mxu0 %v800
    %5671 = vmatpush1.bf16.msra.mxu0 %v799
    %5672 = vmatprep.subr.bf16.mxu0 %v808
    %5673 = vmatpush1.bf16.msra.mxu0 %v807
    %5674 = vmatprep.subr.bf16.mxu0 %v816
    %5675 = vmatpush1.bf16.msra.mxu0 %v815
    %5676 = vmatprep.subr.bf16.mxu0 %v824
    %5677 = vmatpush1.bf16.msra.mxu0 %v823
    %5678 = vmatprep.subr.bf16.mxu0 %v832
    %5679 = vmatpush1.bf16.msra.mxu0 %v831
    %5680 = vmatprep.subr.bf16.mxu0 %v840
    %5681 = vmatpush1.bf16.msra.mxu0 %v839
    %5682 = vmatprep.subr.bf16.mxu0 %v848
    %5683 = vmatpush1.bf16.msra.mxu0 %v847
    %5684 = vmatprep.subr.bf16.mxu0 %v856
    %5685 = vmatpush1.bf16.msra.mxu0 %v855
    %5686 = vmatprep.subr.bf16.mxu0 %v864
    %5687 = vmatpush1.bf16.msra.mxu0 %v863
    %5688 = vmatprep.subr.bf16.mxu0 %v872
    %5689 = vmatpush1.bf16.msra.mxu0 %v871
    %5690 = vmatprep.mubr.bf16.mxu0 %v5139
    %5691 = vmatmul.mubr.bf16.gmra.mrb[0].mxu0 %v5138
    %v5692 = vpop.f32.mrb[0].mxu0
    %v5693 = vadd.f32 0.0, %v5692
    %v5694 = vpop.f32.mrb[0].mxu0
    %v5695 = vadd.f32 0.0, %v5694
    %v5696 = vpop.f32.mrb[0].mxu0
    %v5697 = vpop.f32.mrb[0].mxu0
    %5698 = vdwg.mxu0
    %v5699 = vadd.f32 %v5527, %v5570
    %v5700 = vadd.f32 %v5528, %v5572
    %v5701 = vadd.f32 %v5529, %v5611
    %v5702 = vadd.f32 %v5530, %v5613
    %v5703 = vadd.f32 %v5531, %v5652
    %v5704 = vadd.f32 %v5532, %v5654
    %v5705 = vadd.f32 %v5533, %v5693
    %v5706 = vadd.f32 %v5534, %v5695
    %v5707 = vxor.u32 %v5699, 2147483648
    %v5708 = vxor.u32 %v5700, 2147483648
    %v5709 = vxor.u32 %v5701, 2147483648
    %v5710 = vxor.u32 %v5702, 2147483648
    %v5711 = vxor.u32 %v5703, 2147483648
    %v5712 = vxor.u32 %v5704, 2147483648
    %v5713 = vmul.f32 %v5707, 1.442695
    %v5714 = vpow.pop %v5713
    %v5715 = vmul.f32 %v5708, 1.442695
    %v5716 = vpow.pop %v5715
    %v5717 = vmul.f32 %v5709, 1.442695
    %v5718 = vpow.pop %v5717
    %v5719 = vmul.f32 %v5710, 1.442695
    %v5720 = vpow.pop %v5719
    %v5721 = vmul.f32 %v5711, 1.442695
    %v5722 = vpow.pop %v5721
    %v5723 = vmul.f32 %v5712, 1.442695
    %v5724 = vpow.pop %v5723
    %v5725 = vadd.f32 %v5714, 1.0
    %v5726 = vadd.f32 %v5716, 1.0
    %v5727 = vadd.f32 %v5718, 1.0
    %v5728 = vadd.f32 %v5720, 1.0
    %v5729 = vadd.f32 %v5722, 1.0
    %v5730 = vadd.f32 %v5724, 1.0
    %v5731 = vrcp.pop %v5725
    %v5732 = vmul.f32 1.0, %v5731
    %v5733 = vrcp.pop %v5726
    %v5734 = vmul.f32 1.0, %v5733
    %v5735 = vrcp.pop %v5727
    %v5736 = vmul.f32 1.0, %v5735
    %v5737 = vrcp.pop %v5728
    %v5738 = vmul.f32 1.0, %v5737
    %v5739 = vrcp.pop %v5729
    %v5740 = vmul.f32 1.0, %v5739
    %v5741 = vrcp.pop %v5730
    %v5742 = vmul.f32 1.0, %v5741
    %v5743 = vtanh.pop %v5705
    %v5744 = vtanh.pop %v5706
    %v5745 = vmul.f32 %v5736, %v5132
    %v5746 = vmul.f32 %v5738, %v5133
    %v5747 = vmul.f32 %v5732, %v5743
    %v5748 = vmul.f32 %v5734, %v5744
    %v5749 = vadd.f32 %v5745, %v5747
    %v5750 = vadd.f32 %v5746, %v5748
    %v5751 = vtanh.pop %v5749
    %v5752 = vtanh.pop %v5750
    %v5753 = vmul.f32 %v5740, %v5751
    %v5754 = vmul.f32 %v5742, %v5752
    %v5755 = vpack.c.bf16 %v5753, %v5753
    %v5756 = vpack.c.bf16 %v5754, %v5754
    %5757 = vmatprep.subr.bf16.mxu0 %v1736
    %5758 = vmatpush1.bf16.msra.mxu0 %v1735
    %5759 = vmatprep.subr.bf16.mxu0 %v1744
    %5760 = vmatpush1.bf16.msra.mxu0 %v1743
    %5761 = vmatprep.subr.bf16.mxu0 %v1752
    %5762 = vmatpush1.bf16.msra.mxu0 %v1751
    %5763 = vmatprep.subr.bf16.mxu0 %v1760
    %5764 = vmatpush1.bf16.msra.mxu0 %v1759
    %5765 = vmatprep.subr.bf16.mxu0 %v1768
    %5766 = vmatpush1.bf16.msra.mxu0 %v1767
    %5767 = vmatprep.subr.bf16.mxu0 %v1776
    %5768 = vmatpush1.bf16.msra.mxu0 %v1775
    %5769 = vmatprep.subr.bf16.mxu0 %v1784
    %5770 = vmatpush1.bf16.msra.mxu0 %v1783
    %5771 = vmatprep.subr.bf16.mxu0 %v1792
    %5772 = vmatpush1.bf16.msra.mxu0 %v1791
    %5773 = vmatprep.subr.bf16.mxu0 %v1800
    %5774 = vmatpush1.bf16.msra.mxu0 %v1799
    %5775 = vmatprep.subr.bf16.mxu0 %v1808
    %5776 = vmatpush1.bf16.msra.mxu0 %v1807
    %5777 = vmatprep.subr.bf16.mxu0 %v1816
    %5778 = vmatpush1.bf16.msra.mxu0 %v1815
    %5779 = vmatprep.subr.bf16.mxu0 %v1824
    %5780 = vmatpush1.bf16.msra.mxu0 %v1823
    %5781 = vmatprep.subr.bf16.mxu0 %v1832
    %5782 = vmatpush1.bf16.msra.mxu0 %v1831
    %5783 = vmatprep.subr.bf16.mxu0 %v1840
    %5784 = vmatpush1.bf16.msra.mxu0 %v1839
    %5785 = vmatprep.subr.bf16.mxu0 %v1848
    %5786 = vmatpush1.bf16.msra.mxu0 %v1847
    %5787 = vmatprep.subr.bf16.mxu0 %v1856
    %5788 = vmatpush1.bf16.msra.mxu0 %v1855
    %5789 = vmatprep.mubr.bf16.mxu0 %v5756
    %5790 = vmatmul.mubr.bf16.gmra.mrb[0].mxu0 %v5755
    %v5791 = vpop.f32.mrb[0].mxu0
    %v5792 = vadd.f32 0.0, %v5791
    %v5793 = vpop.f32.mrb[0].mxu0
    %v5794 = vadd.f32 0.0, %v5793
    %v5795 = vpop.f32.mrb[0].mxu0
    %v5796 = vpop.f32.mrb[0].mxu0
    %5797 = vdwg.mxu0
    %5798 = vmatprep.subr.bf16.mxu0 %v1738
    %5799 = vmatpush1.bf16.msra.mxu0 %v1737
    %5800 = vmatprep.subr.bf16.mxu0 %v1746
    %5801 = vmatpush1.bf16.msra.mxu0 %v1745
    %5802 = vmatprep.subr.bf16.mxu0 %v1754
    %5803 = vmatpush1.bf16.msra.mxu0 %v1753
    %5804 = vmatprep.subr.bf16.mxu0 %v1762
    %5805 = vmatpush1.bf16.msra.mxu0 %v1761
    %5806 = vmatprep.subr.bf16.mxu0 %v1770
    %5807 = vmatpush1.bf16.msra.mxu0 %v1769
    %5808 = vmatprep.subr.bf16.mxu0 %v1778
    %5809 = vmatpush1.bf16.msra.mxu0 %v1777
    %5810 = vmatprep.subr.bf16.mxu0 %v1786
    %5811 = vmatpush1.bf16.msra.mxu0 %v1785
    %5812 = vmatprep.subr.bf16.mxu0 %v1794
    %5813 = vmatpush1.bf16.msra.mxu0 %v1793
    %5814 = vmatprep.subr.bf16.mxu0 %v1802
    %5815 = vmatpush1.bf16.msra.mxu0 %v1801
    %5816 = vmatprep.subr.bf16.mxu0 %v1810
    %5817 = vmatpush1.bf16.msra.mxu0 %v1809
    %5818 = vmatprep.subr.bf16.mxu0 %v1818
    %5819 = vmatpush1.bf16.msra.mxu0 %v1817
    %5820 = vmatprep.subr.bf16.mxu0 %v1826
    %5821 = vmatpush1.bf16.msra.mxu0 %v1825
    %5822 = vmatprep.subr.bf16.mxu0 %v1834
    %5823 = vmatpush1.bf16.msra.mxu0 %v1833
    %5824 = vmatprep.subr.bf16.mxu0 %v1842
    %5825 = vmatpush1.bf16.msra.mxu0 %v1841
    %5826 = vmatprep.subr.bf16.mxu0 %v1850
    %5827 = vmatpush1.bf16.msra.mxu0 %v1849
    %5828 = vmatprep.subr.bf16.mxu0 %v1858
    %5829 = vmatpush1.bf16.msra.mxu0 %v1857
    %5830 = vmatprep.mubr.bf16.mxu0 %v5756
    %5831 = vmatmul.mubr.bf16.gmra.mrb[0].mxu0 %v5755
    %v5832 = vpop.f32.mrb[0].mxu0
    %v5833 = vadd.f32 0.0, %v5832
    %v5834 = vpop.f32.mrb[0].mxu0
    %v5835 = vadd.f32 0.0, %v5834
    %v5836 = vpop.f32.mrb[0].mxu0
    %v5837 = vpop.f32.mrb[0].mxu0
    %5838 = vdwg.mxu0
    %5839 = vmatprep.subr.bf16.mxu0 %v1740
    %5840 = vmatpush1.bf16.msra.mxu0 %v1739
    %5841 = vmatprep.subr.bf16.mxu0 %v1748
    %5842 = vmatpush1.bf16.msra.mxu0 %v1747
    %5843 = vmatprep.subr.bf16.mxu0 %v1756
    %5844 = vmatpush1.bf16.msra.mxu0 %v1755
    %5845 = vmatprep.subr.bf16.mxu0 %v1764
    %5846 = vmatpush1.bf16.msra.mxu0 %v1763
    %5847 = vmatprep.subr.bf16.mxu0 %v1772
    %5848 = vmatpush1.bf16.msra.mxu0 %v1771
    %5849 = vmatprep.subr.bf16.mxu0 %v1780
    %5850 = vmatpush1.bf16.msra.mxu0 %v1779
    %5851 = vmatprep.subr.bf16.mxu0 %v1788
    %5852 = vmatpush1.bf16.msra.mxu0 %v1787
    %5853 = vmatprep.subr.bf16.mxu0 %v1796
    %5854 = vmatpush1.bf16.msra.mxu0 %v1795
    %5855 = vmatprep.subr.bf16.mxu0 %v1804
    %5856 = vmatpush1.bf16.msra.mxu0 %v1803
    %5857 = vmatprep.subr.bf16.mxu0 %v1812
    %5858 = vmatpush1.bf16.msra.mxu0 %v1811
    %5859 = vmatprep.subr.bf16.mxu0 %v1820
    %5860 = vmatpush1.bf16.msra.mxu0 %v1819
    %5861 = vmatprep.subr.bf16.mxu0 %v1828
    %5862 = vmatpush1.bf16.msra.mxu0 %v1827
    %5863 = vmatprep.subr.bf16.mxu0 %v1836
    %5864 = vmatpush1.bf16.msra.mxu0 %v1835
    %5865 = vmatprep.subr.bf16.mxu0 %v1844
    %5866 = vmatpush1.bf16.msra.mxu0 %v1843
    %5867 = vmatprep.subr.bf16.mxu0 %v1852
    %5868 = vmatpush1.bf16.msra.mxu0 %v1851
    %5869 = vmatprep.subr.bf16.mxu0 %v1860
    %5870 = vmatpush1.bf16.msra.mxu0 %v1859
    %5871 = vmatprep.mubr.bf16.mxu0 %v5756
    %5872 = vmatmul.mubr.bf16.gmra.mrb[0].mxu0 %v5755
    %v5873 = vpop.f32.mrb[0].mxu0
    %v5874 = vadd.f32 0.0, %v5873
    %v5875 = vpop.f32.mrb[0].mxu0
    %v5876 = vadd.f32 0.0, %v5875
    %v5877 = vpop.f32.mrb[0].mxu0
    %v5878 = vpop.f32.mrb[0].mxu0
    %5879 = vdwg.mxu0
    %5880 = vmatprep.subr.bf16.mxu0 %v1742
    %5881 = vmatpush1.bf16.msra.mxu0 %v1741
    %5882 = vmatprep.subr.bf16.mxu0 %v1750
    %5883 = vmatpush1.bf16.msra.mxu0 %v1749
    %5884 = vmatprep.subr.bf16.mxu0 %v1758
    %5885 = vmatpush1.bf16.msra.mxu0 %v1757
    %5886 = vmatprep.subr.bf16.mxu0 %v1766
    %5887 = vmatpush1.bf16.msra.mxu0 %v1765
    %5888 = vmatprep.subr.bf16.mxu0 %v1774
    %5889 = vmatpush1.bf16.msra.mxu0 %v1773
    %5890 = vmatprep.subr.bf16.mxu0 %v1782
    %5891 = vmatpush1.bf16.msra.mxu0 %v1781
    %5892 = vmatprep.subr.bf16.mxu0 %v1790
    %5893 = vmatpush1.bf16.msra.mxu0 %v1789
    %5894 = vmatprep.subr.bf16.mxu0 %v1798
    %5895 = vmatpush1.bf16.msra.mxu0 %v1797
    %5896 = vmatprep.subr.bf16.mxu0 %v1806
    %5897 = vmatpush1.bf16.msra.mxu0 %v1805
    %5898 = vmatprep.subr.bf16.mxu0 %v1814
    %5899 = vmatpush1.bf16.msra.mxu0 %v1813
    %5900 = vmatprep.subr.bf16.mxu0 %v1822
    %5901 = vmatpush1.bf16.msra.mxu0 %v1821
    %5902 = vmatprep.subr.bf16.mxu0 %v1830
    %5903 = vmatpush1.bf16.msra.mxu0 %v1829
    %5904 = vmatprep.subr.bf16.mxu0 %v1838
    %5905 = vmatpush1.bf16.msra.mxu0 %v1837
    %5906 = vmatprep.subr.bf16.mxu0 %v1846
    %5907 = vmatpush1.bf16.msra.mxu0 %v1845
    %5908 = vmatprep.subr.bf16.mxu0 %v1854
    %5909 = vmatpush1.bf16.msra.mxu0 %v1853
    %5910 = vmatprep.subr.bf16.mxu0 %v1862
    %5911 = vmatpush1.bf16.msra.mxu0 %v1861
    %5912 = vmatprep.mubr.bf16.mxu0 %v5756
    %5913 = vmatmul.mubr.bf16.gmra.mrb[0].mxu0 %v5755
    %v5914 = vpop.f32.mrb[0].mxu0
    %v5915 = vadd.f32 0.0, %v5914
    %v5916 = vpop.f32.mrb[0].mxu0
    %v5917 = vadd.f32 0.0, %v5916
    %v5918 = vpop.f32.mrb[0].mxu0
    %v5919 = vpop.f32.mrb[0].mxu0
    %5920 = vdwg.mxu0
    %5921 = vmatprep.subr.bf16.mxu0 %v2540
    %5922 = vmatpush1.bf16.msra.mxu0 %v2539
    %5923 = vmatprep.subr.bf16.mxu0 %v2548
    %5924 = vmatpush1.bf16.msra.mxu0 %v2547
    %5925 = vmatprep.subr.bf16.mxu0 %v2556
    %5926 = vmatpush1.bf16.msra.mxu0 %v2555
    %5927 = vmatprep.subr.bf16.mxu0 %v2564
    %5928 = vmatpush1.bf16.msra.mxu0 %v2563
    %5929 = vmatprep.subr.bf16.mxu0 %v2572
    %5930 = vmatpush1.bf16.msra.mxu0 %v2571
    %5931 = vmatprep.subr.bf16.mxu0 %v2580
    %5932 = vmatpush1.bf16.msra.mxu0 %v2579
    %5933 = vmatprep.subr.bf16.mxu0 %v2588
    %5934 = vmatpush1.bf16.msra.mxu0 %v2587
    %5935 = vmatprep.subr.bf16.mxu0 %v2596
    %5936 = vmatpush1.bf16.msra.mxu0 %v2595
    %5937 = vmatprep.subr.bf16.mxu0 %v2604
    %5938 = vmatpush1.bf16.msra.mxu0 %v2603
    %5939 = vmatprep.subr.bf16.mxu0 %v2612
    %5940 = vmatpush1.bf16.msra.mxu0 %v2611
    %5941 = vmatprep.subr.bf16.mxu0 %v2620
    %5942 = vmatpush1.bf16.msra.mxu0 %v2619
    %5943 = vmatprep.subr.bf16.mxu0 %v2628
    %5944 = vmatpush1.bf16.msra.mxu0 %v2627
    %5945 = vmatprep.subr.bf16.mxu0 %v2636
    %5946 = vmatpush1.bf16.msra.mxu0 %v2635
    %5947 = vmatprep.subr.bf16.mxu0 %v2644
    %5948 = vmatpush1.bf16.msra.mxu0 %v2643
    %5949 = vmatprep.subr.bf16.mxu0 %v2652
    %5950 = vmatpush1.bf16.msra.mxu0 %v2651
    %5951 = vmatprep.subr.bf16.mxu0 %v2660
    %5952 = vmatpush1.bf16.msra.mxu0 %v2659
    %5953 = vmatprep.mubr.bf16.mxu0 %v5525
    %5954 = vmatmul.mubr.bf16.gmra.mrb[0].mxu0 %v5524
    %v5955 = vpop.f32.mrb[0].mxu0
    %v5956 = vadd.f32 %v5792, %v5955
    %v5957 = vpop.f32.mrb[0].mxu0
    %v5958 = vadd.f32 %v5794, %v5957
    %v5959 = vpop.f32.mrb[0].mxu0
    %v5960 = vpop.f32.mrb[0].mxu0
    %5961 = vdwg.mxu0
    %5962 = vmatprep.subr.bf16.mxu0 %v2542
    %5963 = vmatpush1.bf16.msra.mxu0 %v2541
    %5964 = vmatprep.subr.bf16.mxu0 %v2550
    %5965 = vmatpush1.bf16.msra.mxu0 %v2549
    %5966 = vmatprep.subr.bf16.mxu0 %v2558
    %5967 = vmatpush1.bf16.msra.mxu0 %v2557
    %5968 = vmatprep.subr.bf16.mxu0 %v2566
    %5969 = vmatpush1.bf16.msra.mxu0 %v2565
    %5970 = vmatprep.subr.bf16.mxu0 %v2574
    %5971 = vmatpush1.bf16.msra.mxu0 %v2573
    %5972 = vmatprep.subr.bf16.mxu0 %v2582
    %5973 = vmatpush1.bf16.msra.mxu0 %v2581
    %5974 = vmatprep.subr.bf16.mxu0 %v2590
    %5975 = vmatpush1.bf16.msra.mxu0 %v2589
    %5976 = vmatprep.subr.bf16.mxu0 %v2598
    %5977 = vmatpush1.bf16.msra.mxu0 %v2597
    %5978 = vmatprep.subr.bf16.mxu0 %v2606
    %5979 = vmatpush1.bf16.msra.mxu0 %v2605
    %5980 = vmatprep.subr.bf16.mxu0 %v2614
    %5981 = vmatpush1.bf16.msra.mxu0 %v2613
    %5982 = vmatprep.subr.bf16.mxu0 %v2622
    %5983 = vmatpush1.bf16.msra.mxu0 %v2621
    %5984 = vmatprep.subr.bf16.mxu0 %v2630
    %5985 = vmatpush1.bf16.msra.mxu0 %v2629
    %5986 = vmatprep.subr.bf16.mxu0 %v2638
    %5987 = vmatpush1.bf16.msra.mxu0 %v2637
    %5988 = vmatprep.subr.bf16.mxu0 %v2646
    %5989 = vmatpush1.bf16.msra.mxu0 %v2645
    %5990 = vmatprep.subr.bf16.mxu0 %v2654
    %5991 = vmatpush1.bf16.msra.mxu0 %v2653
    %5992 = vmatprep.subr.bf16.mxu0 %v2662
    %5993 = vmatpush1.bf16.msra.mxu0 %v2661
    %5994 = vmatprep.mubr.bf16.mxu0 %v5525
    %5995 = vmatmul.mubr.bf16.gmra.mrb[0].mxu0 %v5524
    %v5996 = vpop.f32.mrb[0].mxu0
    %v5997 = vadd.f32 %v5833, %v5996
    %v5998 = vpop.f32.mrb[0].mxu0
    %v5999 = vadd.f32 %v5835, %v5998
    %v6000 = vpop.f32.mrb[0].mxu0
    %v6001 = vpop.f32.mrb[0].mxu0
    %6002 = vdwg.mxu0
    %6003 = vmatprep.subr.bf16.mxu0 %v2544
    %6004 = vmatpush1.bf16.msra.mxu0 %v2543
    %6005 = vmatprep.subr.bf16.mxu0 %v2552
    %6006 = vmatpush1.bf16.msra.mxu0 %v2551
    %6007 = vmatprep.subr.bf16.mxu0 %v2560
    %6008 = vmatpush1.bf16.msra.mxu0 %v2559
    %6009 = vmatprep.subr.bf16.mxu0 %v2568
    %6010 = vmatpush1.bf16.msra.mxu0 %v2567
    %6011 = vmatprep.subr.bf16.mxu0 %v2576
    %6012 = vmatpush1.bf16.msra.mxu0 %v2575
    %6013 = vmatprep.subr.bf16.mxu0 %v2584
    %6014 = vmatpush1.bf16.msra.mxu0 %v2583
    %6015 = vmatprep.subr.bf16.mxu0 %v2592
    %6016 = vmatpush1.bf16.msra.mxu0 %v2591
    %6017 = vmatprep.subr.bf16.mxu0 %v2600
    %6018 = vmatpush1.bf16.msra.mxu0 %v2599
    %6019 = vmatprep.subr.bf16.mxu0 %v2608
    %6020 = vmatpush1.bf16.msra.mxu0 %v2607
    %6021 = vmatprep.subr.bf16.mxu0 %v2616
    %6022 = vmatpush1.bf16.msra.mxu0 %v2615
    %6023 = vmatprep.subr.bf16.mxu0 %v2624
    %6024 = vmatpush1.bf16.msra.mxu0 %v2623
    %6025 = vmatprep.subr.bf16.mxu0 %v2632
    %6026 = vmatpush1.bf16.msra.mxu0 %v2631
    %6027 = vmatprep.subr.bf16.mxu0 %v2640
    %6028 = vmatpush1.bf16.msra.mxu0 %v2639
    %6029 = vmatprep.subr.bf16.mxu0 %v2648
    %6030 = vmatpush1.bf16.msra.mxu0 %v2647
    %6031 = vmatprep.subr.bf16.mxu0 %v2656
    %6032 = vmatpush1.bf16.msra.mxu0 %v2655
    %6033 = vmatprep.subr.bf16.mxu0 %v2664
    %6034 = vmatpush1.bf16.msra.mxu0 %v2663
    %6035 = vmatprep.mubr.bf16.mxu0 %v5525
    %6036 = vmatmul.mubr.bf16.gmra.mrb[0].mxu0 %v5524
    %v6037 = vpop.f32.mrb[0].mxu0
    %v6038 = vadd.f32 %v5874, %v6037
    %v6039 = vpop.f32.mrb[0].mxu0
    %v6040 = vadd.f32 %v5876, %v6039
    %v6041 = vpop.f32.mrb[0].mxu0
    %v6042 = vpop.f32.mrb[0].mxu0
    %6043 = vdwg.mxu0
    %6044 = vmatprep.subr.bf16.mxu0 %v2546
    %6045 = vmatpush1.bf16.msra.mxu0 %v2545
    %6046 = vmatprep.subr.bf16.mxu0 %v2554
    %6047 = vmatpush1.bf16.msra.mxu0 %v2553
    %6048 = vmatprep.subr.bf16.mxu0 %v2562
    %6049 = vmatpush1.bf16.msra.mxu0 %v2561
    %6050 = vmatprep.subr.bf16.mxu0 %v2570
    %6051 = vmatpush1.bf16.msra.mxu0 %v2569
    %6052 = vmatprep.subr.bf16.mxu0 %v2578
    %6053 = vmatpush1.bf16.msra.mxu0 %v2577
    %6054 = vmatprep.subr.bf16.mxu0 %v2586
    %6055 = vmatpush1.bf16.msra.mxu0 %v2585
    %6056 = vmatprep.subr.bf16.mxu0 %v2594
    %6057 = vmatpush1.bf16.msra.mxu0 %v2593
    %6058 = vmatprep.subr.bf16.mxu0 %v2602
    %6059 = vmatpush1.bf16.msra.mxu0 %v2601
    %6060 = vmatprep.subr.bf16.mxu0 %v2610
    %6061 = vmatpush1.bf16.msra.mxu0 %v2609
    %6062 = vmatprep.subr.bf16.mxu0 %v2618
    %6063 = vmatpush1.bf16.msra.mxu0 %v2617
    %6064 = vmatprep.subr.bf16.mxu0 %v2626
    %6065 = vmatpush1.bf16.msra.mxu0 %v2625
    %6066 = vmatprep.subr.bf16.mxu0 %v2634
    %6067 = vmatpush1.bf16.msra.mxu0 %v2633
    %6068 = vmatprep.subr.bf16.mxu0 %v2642
    %6069 = vmatpush1.bf16.msra.mxu0 %v2641
    %6070 = vmatprep.subr.bf16.mxu0 %v2650
    %6071 = vmatpush1.bf16.msra.mxu0 %v2649
    %6072 = vmatprep.subr.bf16.mxu0 %v2658
    %6073 = vmatpush1.bf16.msra.mxu0 %v2657
    %6074 = vmatprep.subr.bf16.mxu0 %v2666
    %6075 = vmatpush1.bf16.msra.mxu0 %v2665
    %6076 = vmatprep.mubr.bf16.mxu0 %v5525
    %6077 = vmatmul.mubr.bf16.gmra.mrb[0].mxu0 %v5524
    %v6078 = vpop.f32.mrb[0].mxu0
    %v6079 = vadd.f32 %v5915, %v6078
    %v6080 = vpop.f32.mrb[0].mxu0
    %v6081 = vadd.f32 %v5917, %v6080
    %v6082 = vpop.f32.mrb[0].mxu0
    %v6083 = vpop.f32.mrb[0].mxu0
    %6084 = vdwg.mxu0
    %v6085 = vadd.f32 %v5956, %v2963
    %v6086 = vadd.f32 %v5958, %v2967
    %v6087 = vadd.f32 %v5997, %v2971
    %v6088 = vadd.f32 %v5999, %v2975
    %v6089 = vadd.f32 %v6038, %v2979
    %v6090 = vadd.f32 %v6040, %v2983
    %v6091 = vadd.f32 %v6079, %v2987
    %v6092 = vadd.f32 %v6081, %v2991
    %v6093 = vxor.u32 %v6085, 2147483648
    %v6094 = vxor.u32 %v6086, 2147483648
    %v6095 = vxor.u32 %v6087, 2147483648
    %v6096 = vxor.u32 %v6088, 2147483648
    %v6097 = vxor.u32 %v6089, 2147483648
    %v6098 = vxor.u32 %v6090, 2147483648
    %v6099 = vmul.f32 %v6093, 1.442695
    %v6100 = vpow.pop %v6099
    %v6101 = vmul.f32 %v6094, 1.442695
    %v6102 = vpow.pop %v6101
    %v6103 = vmul.f32 %v6095, 1.442695
    %v6104 = vpow.pop %v6103
    %v6105 = vmul.f32 %v6096, 1.442695
    %v6106 = vpow.pop %v6105
    %v6107 = vmul.f32 %v6097, 1.442695
    %v6108 = vpow.pop %v6107
    %v6109 = vmul.f32 %v6098, 1.442695
    %v6110 = vpow.pop %v6109
    %v6111 = vadd.f32 %v6100, 1.0
    %v6112 = vadd.f32 %v6102, 1.0
    %v6113 = vadd.f32 %v6104, 1.0
    %v6114 = vadd.f32 %v6106, 1.0
    %v6115 = vadd.f32 %v6108, 1.0
    %v6116 = vadd.f32 %v6110, 1.0
    %v6117 = vrcp.pop %v6111
    %v6118 = vmul.f32 1.0, %v6117
    %v6119 = vrcp.pop %v6112
    %v6120 = vmul.f32 1.0, %v6119
    %v6121 = vrcp.pop %v6113
    %v6122 = vmul.f32 1.0, %v6121
    %v6123 = vrcp.pop %v6114
    %v6124 = vmul.f32 1.0, %v6123
    %v6125 = vrcp.pop %v6115
    %v6126 = vmul.f32 1.0, %v6125
    %v6127 = vrcp.pop %v6116
    %v6128 = vmul.f32 1.0, %v6127
    %v6129 = vtanh.pop %v6091
    %v6130 = vtanh.pop %v6092
    %v6131 = vmul.f32 %v6122, %v5518
    %v6132 = vmul.f32 %v6124, %v5519
    %v6133 = vmul.f32 %v6118, %v6129
    %v6134 = vmul.f32 %v6120, %v6130
    %v6135 = vadd.f32 %v6131, %v6133
    %v6136 = vadd.f32 %v6132, %v6134
    %v6137 = vtanh.pop %v6135
    %v6138 = vtanh.pop %v6136
    %v6139 = vmul.f32 %v6126, %v6137
    %v6140 = vmul.f32 %v6128, %v6138
    %v6141 = vpack.c.bf16 %v6139, %v6139
    %v6142 = vpack.c.bf16 %v6140, %v6140
    %s6143 = scalar_lea.vmem [#allocation2], 384
    %v6144 = vld [vmem:[%s6143] sm:$0xff]
    %v6145 = vld [vmem:[%s6143 + $0x8] sm:$0xff]
    %v6146 = vld [vmem:[%s6143 + $0x10] sm:$0xff]
    %v6147 = vld [vmem:[%s6143 + $0x18] sm:$0xff]
    %v6148 = vld [vmem:[%s6143 + $0x20] sm:$0xff]
    %v6149 = vld [vmem:[%s6143 + $0x28] sm:$0xff]
    %v6150 = vld [vmem:[%s6143 + $0x30] sm:$0xff]
    %v6151 = vld [vmem:[%s6143 + $0x38] sm:$0xff]
    %6152 = vmatprep.subr.bf16.mxu0 %v746
    %6153 = vmatpush1.bf16.msra.mxu0 %v745
    %6154 = vmatprep.subr.bf16.mxu0 %v754
    %6155 = vmatpush1.bf16.msra.mxu0 %v753
    %6156 = vmatprep.subr.bf16.mxu0 %v762
    %6157 = vmatpush1.bf16.msra.mxu0 %v761
    %6158 = vmatprep.subr.bf16.mxu0 %v770
    %6159 = vmatpush1.bf16.msra.mxu0 %v769
    %6160 = vmatprep.subr.bf16.mxu0 %v778
    %6161 = vmatpush1.bf16.msra.mxu0 %v777
    %6162 = vmatprep.subr.bf16.mxu0 %v786
    %6163 = vmatpush1.bf16.msra.mxu0 %v785
    %6164 = vmatprep.subr.bf16.mxu0 %v794
    %6165 = vmatpush1.bf16.msra.mxu0 %v793
    %6166 = vmatprep.subr.bf16.mxu0 %v802
    %6167 = vmatpush1.bf16.msra.mxu0 %v801
    %6168 = vmatprep.subr.bf16.mxu0 %v810
    %6169 = vmatpush1.bf16.msra.mxu0 %v809
    %6170 = vmatprep.subr.bf16.mxu0 %v818
    %6171 = vmatpush1.bf16.msra.mxu0 %v817
    %6172 = vmatprep.subr.bf16.mxu0 %v826
    %6173 = vmatpush1.bf16.msra.mxu0 %v825
    %6174 = vmatprep.subr.bf16.mxu0 %v834
    %6175 = vmatpush1.bf16.msra.mxu0 %v833
    %6176 = vmatprep.subr.bf16.mxu0 %v842
    %6177 = vmatpush1.bf16.msra.mxu0 %v841
    %6178 = vmatprep.subr.bf16.mxu0 %v850
    %6179 = vmatpush1.bf16.msra.mxu0 %v849
    %6180 = vmatprep.subr.bf16.mxu0 %v858
    %6181 = vmatpush1.bf16.msra.mxu0 %v857
    %6182 = vmatprep.subr.bf16.mxu0 %v866
    %6183 = vmatpush1.bf16.msra.mxu0 %v865
    %6184 = vmatprep.mubr.bf16.mxu0 %v5756
    %6185 = vmatmul.mubr.bf16.gmra.mrb[0].mxu0 %v5755
    %v6186 = vpop.f32.mrb[0].mxu0
    %v6187 = vadd.f32 0.0, %v6186
    %v6188 = vpop.f32.mrb[0].mxu0
    %v6189 = vadd.f32 0.0, %v6188
    %v6190 = vpop.f32.mrb[0].mxu0
    %v6191 = vpop.f32.mrb[0].mxu0
    %6192 = vdwg.mxu0
    %6193 = vmatprep.subr.bf16.mxu0 %v748
    %6194 = vmatpush1.bf16.msra.mxu0 %v747
    %6195 = vmatprep.subr.bf16.mxu0 %v756
    %6196 = vmatpush1.bf16.msra.mxu0 %v755
    %6197 = vmatprep.subr.bf16.mxu0 %v764
    %6198 = vmatpush1.bf16.msra.mxu0 %v763
    %6199 = vmatprep.subr.bf16.mxu0 %v772
    %6200 = vmatpush1.bf16.msra.mxu0 %v771
    %6201 = vmatprep.subr.bf16.mxu0 %v780
    %6202 = vmatpush1.bf16.msra.mxu0 %v779
    %6203 = vmatprep.subr.bf16.mxu0 %v788
    %6204 = vmatpush1.bf16.msra.mxu0 %v787
    %6205 = vmatprep.subr.bf16.mxu0 %v796
    %6206 = vmatpush1.bf16.msra.mxu0 %v795
    %6207 = vmatprep.subr.bf16.mxu0 %v804
    %6208 = vmatpush1.bf16.msra.mxu0 %v803
    %6209 = vmatprep.subr.bf16.mxu0 %v812
    %6210 = vmatpush1.bf16.msra.mxu0 %v811
    %6211 = vmatprep.subr.bf16.mxu0 %v820
    %6212 = vmatpush1.bf16.msra.mxu0 %v819
    %6213 = vmatprep.subr.bf16.mxu0 %v828
    %6214 = vmatpush1.bf16.msra.mxu0 %v827
    %6215 = vmatprep.subr.bf16.mxu0 %v836
    %6216 = vmatpush1.bf16.msra.mxu0 %v835
    %6217 = vmatprep.subr.bf16.mxu0 %v844
    %6218 = vmatpush1.bf16.msra.mxu0 %v843
    %6219 = vmatprep.subr.bf16.mxu0 %v852
    %6220 = vmatpush1.bf16.msra.mxu0 %v851
    %6221 = vmatprep.subr.bf16.mxu0 %v860
    %6222 = vmatpush1.bf16.msra.mxu0 %v859
    %6223 = vmatprep.subr.bf16.mxu0 %v868
    %6224 = vmatpush1.bf16.msra.mxu0 %v867
    %6225 = vmatprep.mubr.bf16.mxu0 %v5756
    %6226 = vmatmul.mubr.bf16.gmra.mrb[0].mxu0 %v5755
    %v6227 = vpop.f32.mrb[0].mxu0
    %v6228 = vadd.f32 0.0, %v6227
    %v6229 = vpop.f32.mrb[0].mxu0
    %v6230 = vadd.f32 0.0, %v6229
    %v6231 = vpop.f32.mrb[0].mxu0
    %v6232 = vpop.f32.mrb[0].mxu0
    %6233 = vdwg.mxu0
    %6234 = vmatprep.subr.bf16.mxu0 %v750
    %6235 = vmatpush1.bf16.msra.mxu0 %v749
    %6236 = vmatprep.subr.bf16.mxu0 %v758
    %6237 = vmatpush1.bf16.msra.mxu0 %v757
    %6238 = vmatprep.subr.bf16.mxu0 %v766
    %6239 = vmatpush1.bf16.msra.mxu0 %v765
    %6240 = vmatprep.subr.bf16.mxu0 %v774
    %6241 = vmatpush1.bf16.msra.mxu0 %v773
    %6242 = vmatprep.subr.bf16.mxu0 %v782
    %6243 = vmatpush1.bf16.msra.mxu0 %v781
    %6244 = vmatprep.subr.bf16.mxu0 %v790
    %6245 = vmatpush1.bf16.msra.mxu0 %v789
    %6246 = vmatprep.subr.bf16.mxu0 %v798
    %6247 = vmatpush1.bf16.msra.mxu0 %v797
    %6248 = vmatprep.subr.bf16.mxu0 %v806
    %6249 = vmatpush1.bf16.msra.mxu0 %v805
    %6250 = vmatprep.subr.bf16.mxu0 %v814
    %6251 = vmatpush1.bf16.msra.mxu0 %v813
    %6252 = vmatprep.subr.bf16.mxu0 %v822
    %6253 = vmatpush1.bf16.msra.mxu0 %v821
    %6254 = vmatprep.subr.bf16.mxu0 %v830
    %6255 = vmatpush1.bf16.msra.mxu0 %v829
    %6256 = vmatprep.subr.bf16.mxu0 %v838
    %6257 = vmatpush1.bf16.msra.mxu0 %v837
    %6258 = vmatprep.subr.bf16.mxu0 %v846
    %6259 = vmatpush1.bf16.msra.mxu0 %v845
    %6260 = vmatprep.subr.bf16.mxu0 %v854
    %6261 = vmatpush1.bf16.msra.mxu0 %v853
    %6262 = vmatprep.subr.bf16.mxu0 %v862
    %6263 = vmatpush1.bf16.msra.mxu0 %v861
    %6264 = vmatprep.subr.bf16.mxu0 %v870
    %6265 = vmatpush1.bf16.msra.mxu0 %v869
    %6266 = vmatprep.mubr.bf16.mxu0 %v5756
    %6267 = vmatmul.mubr.bf16.gmra.mrb[0].mxu0 %v5755
    %v6268 = vpop.f32.mrb[0].mxu0
    %v6269 = vadd.f32 0.0, %v6268
    %v6270 = vpop.f32.mrb[0].mxu0
    %v6271 = vadd.f32 0.0, %v6270
    %v6272 = vpop.f32.mrb[0].mxu0
    %v6273 = vpop.f32.mrb[0].mxu0
    %6274 = vdwg.mxu0
    %6275 = vmatprep.subr.bf16.mxu0 %v752
    %6276 = vmatpush1.bf16.msra.mxu0 %v751
    %6277 = vmatprep.subr.bf16.mxu0 %v760
    %6278 = vmatpush1.bf16.msra.mxu0 %v759
    %6279 = vmatprep.subr.bf16.mxu0 %v768
    %6280 = vmatpush1.bf16.msra.mxu0 %v767
    %6281 = vmatprep.subr.bf16.mxu0 %v776
    %6282 = vmatpush1.bf16.msra.mxu0 %v775
    %6283 = vmatprep.subr.bf16.mxu0 %v784
    %6284 = vmatpush1.bf16.msra.mxu0 %v783
    %6285 = vmatprep.subr.bf16.mxu0 %v792
    %6286 = vmatpush1.bf16.msra.mxu0 %v791
    %6287 = vmatprep.subr.bf16.mxu0 %v800
    %6288 = vmatpush1.bf16.msra.mxu0 %v799
    %6289 = vmatprep.subr.bf16.mxu0 %v808
    %6290 = vmatpush1.bf16.msra.mxu0 %v807
    %6291 = vmatprep.subr.bf16.mxu0 %v816
    %6292 = vmatpush1.bf16.msra.mxu0 %v815
    %6293 = vmatprep.subr.bf16.mxu0 %v824
    %6294 = vmatpush1.bf16.msra.mxu0 %v823
    %6295 = vmatprep.subr.bf16.mxu0 %v832
    %6296 = vmatpush1.bf16.msra.mxu0 %v831
    %6297 = vmatprep.subr.bf16.mxu0 %v840
    %6298 = vmatpush1.bf16.msra.mxu0 %v839
    %6299 = vmatprep.subr.bf16.mxu0 %v848
    %6300 = vmatpush1.bf16.msra.mxu0 %v847
    %6301 = vmatprep.subr.bf16.mxu0 %v856
    %6302 = vmatpush1.bf16.msra.mxu0 %v855
    %6303 = vmatprep.subr.bf16.mxu0 %v864
    %6304 = vmatpush1.bf16.msra.mxu0 %v863
    %6305 = vmatprep.subr.bf16.mxu0 %v872
    %6306 = vmatpush1.bf16.msra.mxu0 %v871
    %6307 = vmatprep.mubr.bf16.mxu0 %v5756
    %6308 = vmatmul.mubr.bf16.gmra.mrb[0].mxu0 %v5755
    %v6309 = vpop.f32.mrb[0].mxu0
    %v6310 = vadd.f32 0.0, %v6309
    %v6311 = vpop.f32.mrb[0].mxu0
    %v6312 = vadd.f32 0.0, %v6311
    %v6313 = vpop.f32.mrb[0].mxu0
    %v6314 = vpop.f32.mrb[0].mxu0
    %6315 = vdwg.mxu0
    %v6316 = vadd.f32 %v6144, %v6187
    %v6317 = vadd.f32 %v6145, %v6189
    %v6318 = vadd.f32 %v6146, %v6228
    %v6319 = vadd.f32 %v6147, %v6230
    %v6320 = vadd.f32 %v6148, %v6269
    %v6321 = vadd.f32 %v6149, %v6271
    %v6322 = vadd.f32 %v6150, %v6310
    %v6323 = vadd.f32 %v6151, %v6312
    %v6324 = vxor.u32 %v6316, 2147483648
    %v6325 = vxor.u32 %v6317, 2147483648
    %v6326 = vxor.u32 %v6318, 2147483648
    %v6327 = vxor.u32 %v6319, 2147483648
    %v6328 = vxor.u32 %v6320, 2147483648
    %v6329 = vxor.u32 %v6321, 2147483648
    %v6330 = vmul.f32 %v6324, 1.442695
    %v6331 = vpow.pop %v6330
    %v6332 = vmul.f32 %v6325, 1.442695
    %v6333 = vpow.pop %v6332
    %v6334 = vmul.f32 %v6326, 1.442695
    %v6335 = vpow.pop %v6334
    %v6336 = vmul.f32 %v6327, 1.442695
    %v6337 = vpow.pop %v6336
    %v6338 = vmul.f32 %v6328, 1.442695
    %v6339 = vpow.pop %v6338
    %v6340 = vmul.f32 %v6329, 1.442695
    %v6341 = vpow.pop %v6340
    %v6342 = vadd.f32 %v6331, 1.0
    %v6343 = vadd.f32 %v6333, 1.0
    %v6344 = vadd.f32 %v6335, 1.0
    %v6345 = vadd.f32 %v6337, 1.0
    %v6346 = vadd.f32 %v6339, 1.0
    %v6347 = vadd.f32 %v6341, 1.0
    %v6348 = vrcp.pop %v6342
    %v6349 = vmul.f32 1.0, %v6348
    %v6350 = vrcp.pop %v6343
    %v6351 = vmul.f32 1.0, %v6350
    %v6352 = vrcp.pop %v6344
    %v6353 = vmul.f32 1.0, %v6352
    %v6354 = vrcp.pop %v6345
    %v6355 = vmul.f32 1.0, %v6354
    %v6356 = vrcp.pop %v6346
    %v6357 = vmul.f32 1.0, %v6356
    %v6358 = vrcp.pop %v6347
    %v6359 = vmul.f32 1.0, %v6358
    %v6360 = vtanh.pop %v6322
    %v6361 = vtanh.pop %v6323
    %v6362 = vmul.f32 %v6353, %v5749
    %v6363 = vmul.f32 %v6355, %v5750
    %v6364 = vmul.f32 %v6349, %v6360
    %v6365 = vmul.f32 %v6351, %v6361
    %v6366 = vadd.f32 %v6362, %v6364
    %v6367 = vadd.f32 %v6363, %v6365
    %v6368 = vtanh.pop %v6366
    %v6369 = vtanh.pop %v6367
    %v6370 = vmul.f32 %v6357, %v6368
    %v6371 = vmul.f32 %v6359, %v6369
    %v6372 = vpack.c.bf16 %v6370, %v6370
    %v6373 = vpack.c.bf16 %v6371, %v6371
    %6374 = vmatprep.subr.bf16.mxu0 %v1736
    %6375 = vmatpush1.bf16.msra.mxu0 %v1735
    %6376 = vmatprep.subr.bf16.mxu0 %v1744
    %6377 = vmatpush1.bf16.msra.mxu0 %v1743
    %6378 = vmatprep.subr.bf16.mxu0 %v1752
    %6379 = vmatpush1.bf16.msra.mxu0 %v1751
    %6380 = vmatprep.subr.bf16.mxu0 %v1760
    %6381 = vmatpush1.bf16.msra.mxu0 %v1759
    %6382 = vmatprep.subr.bf16.mxu0 %v1768
    %6383 = vmatpush1.bf16.msra.mxu0 %v1767
    %6384 = vmatprep.subr.bf16.mxu0 %v1776
    %6385 = vmatpush1.bf16.msra.mxu0 %v1775
    %6386 = vmatprep.subr.bf16.mxu0 %v1784
    %6387 = vmatpush1.bf16.msra.mxu0 %v1783
    %6388 = vmatprep.subr.bf16.mxu0 %v1792
    %6389 = vmatpush1.bf16.msra.mxu0 %v1791
    %6390 = vmatprep.subr.bf16.mxu0 %v1800
    %6391 = vmatpush1.bf16.msra.mxu0 %v1799
    %6392 = vmatprep.subr.bf16.mxu0 %v1808
    %6393 = vmatpush1.bf16.msra.mxu0 %v1807
    %6394 = vmatprep.subr.bf16.mxu0 %v1816
    %6395 = vmatpush1.bf16.msra.mxu0 %v1815
    %6396 = vmatprep.subr.bf16.mxu0 %v1824
    %6397 = vmatpush1.bf16.msra.mxu0 %v1823
    %6398 = vmatprep.subr.bf16.mxu0 %v1832
    %6399 = vmatpush1.bf16.msra.mxu0 %v1831
    %6400 = vmatprep.subr.bf16.mxu0 %v1840
    %6401 = vmatpush1.bf16.msra.mxu0 %v1839
    %6402 = vmatprep.subr.bf16.mxu0 %v1848
    %6403 = vmatpush1.bf16.msra.mxu0 %v1847
    %6404 = vmatprep.subr.bf16.mxu0 %v1856
    %6405 = vmatpush1.bf16.msra.mxu0 %v1855
    %6406 = vmatprep.mubr.bf16.mxu0 %v6373
    %6407 = vmatmul.mubr.bf16.gmra.mrb[0].mxu0 %v6372
    %v6408 = vpop.f32.mrb[0].mxu0
    %v6409 = vadd.f32 0.0, %v6408
    %v6410 = vpop.f32.mrb[0].mxu0
    %v6411 = vadd.f32 0.0, %v6410
    %v6412 = vpop.f32.mrb[0].mxu0
    %v6413 = vpop.f32.mrb[0].mxu0
    %6414 = vdwg.mxu0
    %6415 = vmatprep.subr.bf16.mxu0 %v1738
    %6416 = vmatpush1.bf16.msra.mxu0 %v1737
    %6417 = vmatprep.subr.bf16.mxu0 %v1746
    %6418 = vmatpush1.bf16.msra.mxu0 %v1745
    %6419 = vmatprep.subr.bf16.mxu0 %v1754
    %6420 = vmatpush1.bf16.msra.mxu0 %v1753
    %6421 = vmatprep.subr.bf16.mxu0 %v1762
    %6422 = vmatpush1.bf16.msra.mxu0 %v1761
    %6423 = vmatprep.subr.bf16.mxu0 %v1770
    %6424 = vmatpush1.bf16.msra.mxu0 %v1769
    %6425 = vmatprep.subr.bf16.mxu0 %v1778
    %6426 = vmatpush1.bf16.msra.mxu0 %v1777
    %6427 = vmatprep.subr.bf16.mxu0 %v1786
    %6428 = vmatpush1.bf16.msra.mxu0 %v1785
    %6429 = vmatprep.subr.bf16.mxu0 %v1794
    %6430 = vmatpush1.bf16.msra.mxu0 %v1793
    %6431 = vmatprep.subr.bf16.mxu0 %v1802
    %6432 = vmatpush1.bf16.msra.mxu0 %v1801
    %6433 = vmatprep.subr.bf16.mxu0 %v1810
    %6434 = vmatpush1.bf16.msra.mxu0 %v1809
    %6435 = vmatprep.subr.bf16.mxu0 %v1818
    %6436 = vmatpush1.bf16.msra.mxu0 %v1817
    %6437 = vmatprep.subr.bf16.mxu0 %v1826
    %6438 = vmatpush1.bf16.msra.mxu0 %v1825
    %6439 = vmatprep.subr.bf16.mxu0 %v1834
    %6440 = vmatpush1.bf16.msra.mxu0 %v1833
    %6441 = vmatprep.subr.bf16.mxu0 %v1842
    %6442 = vmatpush1.bf16.msra.mxu0 %v1841
    %6443 = vmatprep.subr.bf16.mxu0 %v1850
    %6444 = vmatpush1.bf16.msra.mxu0 %v1849
    %6445 = vmatprep.subr.bf16.mxu0 %v1858
    %6446 = vmatpush1.bf16.msra.mxu0 %v1857
    %6447 = vmatprep.mubr.bf16.mxu0 %v6373
    %6448 = vmatmul.mubr.bf16.gmra.mrb[0].mxu0 %v6372
    %v6449 = vpop.f32.mrb[0].mxu0
    %v6450 = vadd.f32 0.0, %v6449
    %v6451 = vpop.f32.mrb[0].mxu0
    %v6452 = vadd.f32 0.0, %v6451
    %v6453 = vpop.f32.mrb[0].mxu0
    %v6454 = vpop.f32.mrb[0].mxu0
    %6455 = vdwg.mxu0
    %6456 = vmatprep.subr.bf16.mxu0 %v1740
    %6457 = vmatpush1.bf16.msra.mxu0 %v1739
    %6458 = vmatprep.subr.bf16.mxu0 %v1748
    %6459 = vmatpush1.bf16.msra.mxu0 %v1747
    %6460 = vmatprep.subr.bf16.mxu0 %v1756
    %6461 = vmatpush1.bf16.msra.mxu0 %v1755
    %6462 = vmatprep.subr.bf16.mxu0 %v1764
    %6463 = vmatpush1.bf16.msra.mxu0 %v1763
    %6464 = vmatprep.subr.bf16.mxu0 %v1772
    %6465 = vmatpush1.bf16.msra.mxu0 %v1771
    %6466 = vmatprep.subr.bf16.mxu0 %v1780
    %6467 = vmatpush1.bf16.msra.mxu0 %v1779
    %6468 = vmatprep.subr.bf16.mxu0 %v1788
    %6469 = vmatpush1.bf16.msra.mxu0 %v1787
    %6470 = vmatprep.subr.bf16.mxu0 %v1796
    %6471 = vmatpush1.bf16.msra.mxu0 %v1795
    %6472 = vmatprep.subr.bf16.mxu0 %v1804
    %6473 = vmatpush1.bf16.msra.mxu0 %v1803
    %6474 = vmatprep.subr.bf16.mxu0 %v1812
    %6475 = vmatpush1.bf16.msra.mxu0 %v1811
    %6476 = vmatprep.subr.bf16.mxu0 %v1820
    %6477 = vmatpush1.bf16.msra.mxu0 %v1819
    %6478 = vmatprep.subr.bf16.mxu0 %v1828
    %6479 = vmatpush1.bf16.msra.mxu0 %v1827
    %6480 = vmatprep.subr.bf16.mxu0 %v1836
    %6481 = vmatpush1.bf16.msra.mxu0 %v1835
    %6482 = vmatprep.subr.bf16.mxu0 %v1844
    %6483 = vmatpush1.bf16.msra.mxu0 %v1843
    %6484 = vmatprep.subr.bf16.mxu0 %v1852
    %6485 = vmatpush1.bf16.msra.mxu0 %v1851
    %6486 = vmatprep.subr.bf16.mxu0 %v1860
    %6487 = vmatpush1.bf16.msra.mxu0 %v1859
    %6488 = vmatprep.mubr.bf16.mxu0 %v6373
    %6489 = vmatmul.mubr.bf16.gmra.mrb[0].mxu0 %v6372
    %v6490 = vpop.f32.mrb[0].mxu0
    %v6491 = vadd.f32 0.0, %v6490
    %v6492 = vpop.f32.mrb[0].mxu0
    %v6493 = vadd.f32 0.0, %v6492
    %v6494 = vpop.f32.mrb[0].mxu0
    %v6495 = vpop.f32.mrb[0].mxu0
    %6496 = vdwg.mxu0
    %6497 = vmatprep.subr.bf16.mxu0 %v1742
    %6498 = vmatpush1.bf16.msra.mxu0 %v1741
    %6499 = vmatprep.subr.bf16.mxu0 %v1750
    %6500 = vmatpush1.bf16.msra.mxu0 %v1749
    %6501 = vmatprep.subr.bf16.mxu0 %v1758
    %6502 = vmatpush1.bf16.msra.mxu0 %v1757
    %6503 = vmatprep.subr.bf16.mxu0 %v1766
    %6504 = vmatpush1.bf16.msra.mxu0 %v1765
    %6505 = vmatprep.subr.bf16.mxu0 %v1774
    %6506 = vmatpush1.bf16.msra.mxu0 %v1773
    %6507 = vmatprep.subr.bf16.mxu0 %v1782
    %6508 = vmatpush1.bf16.msra.mxu0 %v1781
    %6509 = vmatprep.subr.bf16.mxu0 %v1790
    %6510 = vmatpush1.bf16.msra.mxu0 %v1789
    %6511 = vmatprep.subr.bf16.mxu0 %v1798
    %6512 = vmatpush1.bf16.msra.mxu0 %v1797
    %6513 = vmatprep.subr.bf16.mxu0 %v1806
    %6514 = vmatpush1.bf16.msra.mxu0 %v1805
    %6515 = vmatprep.subr.bf16.mxu0 %v1814
    %6516 = vmatpush1.bf16.msra.mxu0 %v1813
    %6517 = vmatprep.subr.bf16.mxu0 %v1822
    %6518 = vmatpush1.bf16.msra.mxu0 %v1821
    %6519 = vmatprep.subr.bf16.mxu0 %v1830
    %6520 = vmatpush1.bf16.msra.mxu0 %v1829
    %6521 = vmatprep.subr.bf16.mxu0 %v1838
    %6522 = vmatpush1.bf16.msra.mxu0 %v1837
    %6523 = vmatprep.subr.bf16.mxu0 %v1846
    %6524 = vmatpush1.bf16.msra.mxu0 %v1845
    %6525 = vmatprep.subr.bf16.mxu0 %v1854
    %6526 = vmatpush1.bf16.msra.mxu0 %v1853
    %6527 = vmatprep.subr.bf16.mxu0 %v1862
    %6528 = vmatpush1.bf16.msra.mxu0 %v1861
    %6529 = vmatprep.mubr.bf16.mxu0 %v6373
    %6530 = vmatmul.mubr.bf16.gmra.mrb[0].mxu0 %v6372
    %v6531 = vpop.f32.mrb[0].mxu0
    %v6532 = vadd.f32 0.0, %v6531
    %v6533 = vpop.f32.mrb[0].mxu0
    %v6534 = vadd.f32 0.0, %v6533
    %v6535 = vpop.f32.mrb[0].mxu0
    %v6536 = vpop.f32.mrb[0].mxu0
    %6537 = vdwg.mxu0
    %6538 = vmatprep.subr.bf16.mxu0 %v2540
    %6539 = vmatpush1.bf16.msra.mxu0 %v2539
    %6540 = vmatprep.subr.bf16.mxu0 %v2548
    %6541 = vmatpush1.bf16.msra.mxu0 %v2547
    %6542 = vmatprep.subr.bf16.mxu0 %v2556
    %6543 = vmatpush1.bf16.msra.mxu0 %v2555
    %6544 = vmatprep.subr.bf16.mxu0 %v2564
    %6545 = vmatpush1.bf16.msra.mxu0 %v2563
    %6546 = vmatprep.subr.bf16.mxu0 %v2572
    %6547 = vmatpush1.bf16.msra.mxu0 %v2571
    %6548 = vmatprep.subr.bf16.mxu0 %v2580
    %6549 = vmatpush1.bf16.msra.mxu0 %v2579
    %6550 = vmatprep.subr.bf16.mxu0 %v2588
    %6551 = vmatpush1.bf16.msra.mxu0 %v2587
    %6552 = vmatprep.subr.bf16.mxu0 %v2596
    %6553 = vmatpush1.bf16.msra.mxu0 %v2595
    %6554 = vmatprep.subr.bf16.mxu0 %v2604
    %6555 = vmatpush1.bf16.msra.mxu0 %v2603
    %6556 = vmatprep.subr.bf16.mxu0 %v2612
    %6557 = vmatpush1.bf16.msra.mxu0 %v2611
    %6558 = vmatprep.subr.bf16.mxu0 %v2620
    %6559 = vmatpush1.bf16.msra.mxu0 %v2619
    %6560 = vmatprep.subr.bf16.mxu0 %v2628
    %6561 = vmatpush1.bf16.msra.mxu0 %v2627
    %6562 = vmatprep.subr.bf16.mxu0 %v2636
    %6563 = vmatpush1.bf16.msra.mxu0 %v2635
    %6564 = vmatprep.subr.bf16.mxu0 %v2644
    %6565 = vmatpush1.bf16.msra.mxu0 %v2643
    %6566 = vmatprep.subr.bf16.mxu0 %v2652
    %6567 = vmatpush1.bf16.msra.mxu0 %v2651
    %6568 = vmatprep.subr.bf16.mxu0 %v2660
    %6569 = vmatpush1.bf16.msra.mxu0 %v2659
    %6570 = vmatprep.mubr.bf16.mxu0 %v6142
    %6571 = vmatmul.mubr.bf16.gmra.mrb[0].mxu0 %v6141
    %v6572 = vpop.f32.mrb[0].mxu0
    %v6573 = vadd.f32 %v6409, %v6572
    %v6574 = vpop.f32.mrb[0].mxu0
    %v6575 = vadd.f32 %v6411, %v6574
    %v6576 = vpop.f32.mrb[0].mxu0
    %v6577 = vpop.f32.mrb[0].mxu0
    %6578 = vdwg.mxu0
    %6579 = vmatprep.subr.bf16.mxu0 %v2542
    %6580 = vmatpush1.bf16.msra.mxu0 %v2541
    %6581 = vmatprep.subr.bf16.mxu0 %v2550
    %6582 = vmatpush1.bf16.msra.mxu0 %v2549
    %6583 = vmatprep.subr.bf16.mxu0 %v2558
    %6584 = vmatpush1.bf16.msra.mxu0 %v2557
    %6585 = vmatprep.subr.bf16.mxu0 %v2566
    %6586 = vmatpush1.bf16.msra.mxu0 %v2565
    %6587 = vmatprep.subr.bf16.mxu0 %v2574
    %6588 = vmatpush1.bf16.msra.mxu0 %v2573
    %6589 = vmatprep.subr.bf16.mxu0 %v2582
    %6590 = vmatpush1.bf16.msra.mxu0 %v2581
    %6591 = vmatprep.subr.bf16.mxu0 %v2590
    %6592 = vmatpush1.bf16.msra.mxu0 %v2589
    %6593 = vmatprep.subr.bf16.mxu0 %v2598
    %6594 = vmatpush1.bf16.msra.mxu0 %v2597
    %6595 = vmatprep.subr.bf16.mxu0 %v2606
    %6596 = vmatpush1.bf16.msra.mxu0 %v2605
    %6597 = vmatprep.subr.bf16.mxu0 %v2614
    %6598 = vmatpush1.bf16.msra.mxu0 %v2613
    %6599 = vmatprep.subr.bf16.mxu0 %v2622
    %6600 = vmatpush1.bf16.msra.mxu0 %v2621
    %6601 = vmatprep.subr.bf16.mxu0 %v2630
    %6602 = vmatpush1.bf16.msra.mxu0 %v2629
    %6603 = vmatprep.subr.bf16.mxu0 %v2638
    %6604 = vmatpush1.bf16.msra.mxu0 %v2637
    %6605 = vmatprep.subr.bf16.mxu0 %v2646
    %6606 = vmatpush1.bf16.msra.mxu0 %v2645
    %6607 = vmatprep.subr.bf16.mxu0 %v2654
    %6608 = vmatpush1.bf16.msra.mxu0 %v2653
    %6609 = vmatprep.subr.bf16.mxu0 %v2662
    %6610 = vmatpush1.bf16.msra.mxu0 %v2661
    %6611 = vmatprep.mubr.bf16.mxu0 %v6142
    %6612 = vmatmul.mubr.bf16.gmra.mrb[0].mxu0 %v6141
    %v6613 = vpop.f32.mrb[0].mxu0
    %v6614 = vadd.f32 %v6450, %v6613
    %v6615 = vpop.f32.mrb[0].mxu0
    %v6616 = vadd.f32 %v6452, %v6615
    %v6617 = vpop.f32.mrb[0].mxu0
    %v6618 = vpop.f32.mrb[0].mxu0
    %6619 = vdwg.mxu0
    %6620 = vmatprep.subr.bf16.mxu0 %v2544
    %6621 = vmatpush1.bf16.msra.mxu0 %v2543
    %6622 = vmatprep.subr.bf16.mxu0 %v2552
    %6623 = vmatpush1.bf16.msra.mxu0 %v2551
    %6624 = vmatprep.subr.bf16.mxu0 %v2560
    %6625 = vmatpush1.bf16.msra.mxu0 %v2559
    %6626 = vmatprep.subr.bf16.mxu0 %v2568
    %6627 = vmatpush1.bf16.msra.mxu0 %v2567
    %6628 = vmatprep.subr.bf16.mxu0 %v2576
    %6629 = vmatpush1.bf16.msra.mxu0 %v2575
    %6630 = vmatprep.subr.bf16.mxu0 %v2584
    %6631 = vmatpush1.bf16.msra.mxu0 %v2583
    %6632 = vmatprep.subr.bf16.mxu0 %v2592
    %6633 = vmatpush1.bf16.msra.mxu0 %v2591
    %6634 = vmatprep.subr.bf16.mxu0 %v2600
    %6635 = vmatpush1.bf16.msra.mxu0 %v2599
    %6636 = vmatprep.subr.bf16.mxu0 %v2608
    %6637 = vmatpush1.bf16.msra.mxu0 %v2607
    %6638 = vmatprep.subr.bf16.mxu0 %v2616
    %6639 = vmatpush1.bf16.msra.mxu0 %v2615
    %6640 = vmatprep.subr.bf16.mxu0 %v2624
    %6641 = vmatpush1.bf16.msra.mxu0 %v2623
    %6642 = vmatprep.subr.bf16.mxu0 %v2632
    %6643 = vmatpush1.bf16.msra.mxu0 %v2631
    %6644 = vmatprep.subr.bf16.mxu0 %v2640
    %6645 = vmatpush1.bf16.msra.mxu0 %v2639
    %6646 = vmatprep.subr.bf16.mxu0 %v2648
    %6647 = vmatpush1.bf16.msra.mxu0 %v2647
    %6648 = vmatprep.subr.bf16.mxu0 %v2656
    %6649 = vmatpush1.bf16.msra.mxu0 %v2655
    %6650 = vmatprep.subr.bf16.mxu0 %v2664
    %6651 = vmatpush1.bf16.msra.mxu0 %v2663
    %6652 = vmatprep.mubr.bf16.mxu0 %v6142
    %6653 = vmatmul.mubr.bf16.gmra.mrb[0].mxu0 %v6141
    %v6654 = vpop.f32.mrb[0].mxu0
    %v6655 = vadd.f32 %v6491, %v6654
    %v6656 = vpop.f32.mrb[0].mxu0
    %v6657 = vadd.f32 %v6493, %v6656
    %v6658 = vpop.f32.mrb[0].mxu0
    %v6659 = vpop.f32.mrb[0].mxu0
    %6660 = vdwg.mxu0
    %6661 = vmatprep.subr.bf16.mxu0 %v2546
    %6662 = vmatpush1.bf16.msra.mxu0 %v2545
    %6663 = vmatprep.subr.bf16.mxu0 %v2554
    %6664 = vmatpush1.bf16.msra.mxu0 %v2553
    %6665 = vmatprep.subr.bf16.mxu0 %v2562
    %6666 = vmatpush1.bf16.msra.mxu0 %v2561
    %6667 = vmatprep.subr.bf16.mxu0 %v2570
    %6668 = vmatpush1.bf16.msra.mxu0 %v2569
    %6669 = vmatprep.subr.bf16.mxu0 %v2578
    %6670 = vmatpush1.bf16.msra.mxu0 %v2577
    %6671 = vmatprep.subr.bf16.mxu0 %v2586
    %6672 = vmatpush1.bf16.msra.mxu0 %v2585
    %6673 = vmatprep.subr.bf16.mxu0 %v2594
    %6674 = vmatpush1.bf16.msra.mxu0 %v2593
    %6675 = vmatprep.subr.bf16.mxu0 %v2602
    %6676 = vmatpush1.bf16.msra.mxu0 %v2601
    %6677 = vmatprep.subr.bf16.mxu0 %v2610
    %6678 = vmatpush1.bf16.msra.mxu0 %v2609
    %6679 = vmatprep.subr.bf16.mxu0 %v2618
    %6680 = vmatpush1.bf16.msra.mxu0 %v2617
    %6681 = vmatprep.subr.bf16.mxu0 %v2626
    %6682 = vmatpush1.bf16.msra.mxu0 %v2625
    %6683 = vmatprep.subr.bf16.mxu0 %v2634
    %6684 = vmatpush1.bf16.msra.mxu0 %v2633
    %6685 = vmatprep.subr.bf16.mxu0 %v2642
    %6686 = vmatpush1.bf16.msra.mxu0 %v2641
    %6687 = vmatprep.subr.bf16.mxu0 %v2650
    %6688 = vmatpush1.bf16.msra.mxu0 %v2649
    %6689 = vmatprep.subr.bf16.mxu0 %v2658
    %6690 = vmatpush1.bf16.msra.mxu0 %v2657
    %6691 = vmatprep.subr.bf16.mxu0 %v2666
    %6692 = vmatpush1.bf16.msra.mxu0 %v2665
    %6693 = vmatprep.mubr.bf16.mxu0 %v6142
    %6694 = vmatmul.mubr.bf16.gmra.mrb[0].mxu0 %v6141
    %v6695 = vpop.f32.mrb[0].mxu0
    %v6696 = vadd.f32 %v6532, %v6695
    %v6697 = vpop.f32.mrb[0].mxu0
    %v6698 = vadd.f32 %v6534, %v6697
    %v6699 = vpop.f32.mrb[0].mxu0
    %v6700 = vpop.f32.mrb[0].mxu0
    %6701 = vdwg.mxu0
    %v6702 = vadd.f32 %v6573, %v2963
    %v6703 = vadd.f32 %v6575, %v2967
    %v6704 = vadd.f32 %v6614, %v2971
    %v6705 = vadd.f32 %v6616, %v2975
    %v6706 = vadd.f32 %v6655, %v2979
    %v6707 = vadd.f32 %v6657, %v2983
    %v6708 = vadd.f32 %v6696, %v2987
    %v6709 = vadd.f32 %v6698, %v2991
    %v6710 = vxor.u32 %v6702, 2147483648
    %v6711 = vxor.u32 %v6703, 2147483648
    %v6712 = vxor.u32 %v6704, 2147483648
    %v6713 = vxor.u32 %v6705, 2147483648
    %v6714 = vxor.u32 %v6706, 2147483648
    %v6715 = vxor.u32 %v6707, 2147483648
    %v6716 = vmul.f32 %v6710, 1.442695
    %v6717 = vpow.pop %v6716
    %v6718 = vmul.f32 %v6711, 1.442695
    %v6719 = vpow.pop %v6718
    %v6720 = vmul.f32 %v6712, 1.442695
    %v6721 = vpow.pop %v6720
    %v6722 = vmul.f32 %v6713, 1.442695
    %v6723 = vpow.pop %v6722
    %v6724 = vmul.f32 %v6714, 1.442695
    %v6725 = vpow.pop %v6724
    %v6726 = vmul.f32 %v6715, 1.442695
    %v6727 = vpow.pop %v6726
    %v6728 = vadd.f32 %v6717, 1.0
    %v6729 = vadd.f32 %v6719, 1.0
    %v6730 = vadd.f32 %v6721, 1.0
    %v6731 = vadd.f32 %v6723, 1.0
    %v6732 = vadd.f32 %v6725, 1.0
    %v6733 = vadd.f32 %v6727, 1.0
    %v6734 = vrcp.pop %v6728
    %v6735 = vmul.f32 1.0, %v6734
    %v6736 = vrcp.pop %v6729
    %v6737 = vmul.f32 1.0, %v6736
    %v6738 = vrcp.pop %v6730
    %v6739 = vmul.f32 1.0, %v6738
    %v6740 = vrcp.pop %v6731
    %v6741 = vmul.f32 1.0, %v6740
    %v6742 = vrcp.pop %v6732
    %v6743 = vmul.f32 1.0, %v6742
    %v6744 = vrcp.pop %v6733
    %v6745 = vmul.f32 1.0, %v6744
    %v6746 = vtanh.pop %v6708
    %v6747 = vtanh.pop %v6709
    %v6748 = vmul.f32 %v6739, %v6135
    %v6749 = vmul.f32 %v6741, %v6136
    %v6750 = vmul.f32 %v6735, %v6746
    %v6751 = vmul.f32 %v6737, %v6747
    %v6752 = vadd.f32 %v6748, %v6750
    %v6753 = vadd.f32 %v6749, %v6751
    %v6754 = vtanh.pop %v6752
    %v6755 = vtanh.pop %v6753
    %v6756 = vmul.f32 %v6743, %v6754
    %v6757 = vmul.f32 %v6745, %v6755
    %v6758 = vpack.c.bf16 %v6756, %v6756
    %v6759 = vpack.c.bf16 %v6757, %v6757
    %s6760 = scalar_lea.vmem [#allocation2], 448
    %v6761 = vld [vmem:[%s6760] sm:$0xff]
    %v6762 = vld [vmem:[%s6760 + $0x8] sm:$0xff]
    %v6763 = vld [vmem:[%s6760 + $0x10] sm:$0xff]
    %v6764 = vld [vmem:[%s6760 + $0x18] sm:$0xff]
    %v6765 = vld [vmem:[%s6760 + $0x20] sm:$0xff]
    %v6766 = vld [vmem:[%s6760 + $0x28] sm:$0xff]
    %v6767 = vld [vmem:[%s6760 + $0x30] sm:$0xff]
    %v6768 = vld [vmem:[%s6760 + $0x38] sm:$0xff]
    %6769 = vmatprep.subr.bf16.mxu0 %v746
    %6770 = vmatpush1.bf16.msra.mxu0 %v745
    %6771 = vmatprep.subr.bf16.mxu0 %v754
    %6772 = vmatpush1.bf16.msra.mxu0 %v753
    %6773 = vmatprep.subr.bf16.mxu0 %v762
    %6774 = vmatpush1.bf16.msra.mxu0 %v761
    %6775 = vmatprep.subr.bf16.mxu0 %v770
    %6776 = vmatpush1.bf16.msra.mxu0 %v769
    %6777 = vmatprep.subr.bf16.mxu0 %v778
    %6778 = vmatpush1.bf16.msra.mxu0 %v777
    %6779 = vmatprep.subr.bf16.mxu0 %v786
    %6780 = vmatpush1.bf16.msra.mxu0 %v785
    %6781 = vmatprep.subr.bf16.mxu0 %v794
    %6782 = vmatpush1.bf16.msra.mxu0 %v793
    %6783 = vmatprep.subr.bf16.mxu0 %v802
    %6784 = vmatpush1.bf16.msra.mxu0 %v801
    %6785 = vmatprep.subr.bf16.mxu0 %v810
    %6786 = vmatpush1.bf16.msra.mxu0 %v809
    %6787 = vmatprep.subr.bf16.mxu0 %v818
    %6788 = vmatpush1.bf16.msra.mxu0 %v817
    %6789 = vmatprep.subr.bf16.mxu0 %v826
    %6790 = vmatpush1.bf16.msra.mxu0 %v825
    %6791 = vmatprep.subr.bf16.mxu0 %v834
    %6792 = vmatpush1.bf16.msra.mxu0 %v833
    %6793 = vmatprep.subr.bf16.mxu0 %v842
    %6794 = vmatpush1.bf16.msra.mxu0 %v841
    %6795 = vmatprep.subr.bf16.mxu0 %v850
    %6796 = vmatpush1.bf16.msra.mxu0 %v849
    %6797 = vmatprep.subr.bf16.mxu0 %v858
    %6798 = vmatpush1.bf16.msra.mxu0 %v857
    %6799 = vmatprep.subr.bf16.mxu0 %v866
    %6800 = vmatpush1.bf16.msra.mxu0 %v865
    %6801 = vmatprep.mubr.bf16.mxu0 %v6373
    %6802 = vmatmul.mubr.bf16.gmra.mrb[0].mxu0 %v6372
    %v6803 = vpop.f32.mrb[0].mxu0
    %v6804 = vadd.f32 0.0, %v6803
    %v6805 = vpop.f32.mrb[0].mxu0
    %v6806 = vadd.f32 0.0, %v6805
    %v6807 = vpop.f32.mrb[0].mxu0
    %v6808 = vpop.f32.mrb[0].mxu0
    %6809 = vdwg.mxu0
    %6810 = vmatprep.subr.bf16.mxu0 %v748
    %6811 = vmatpush1.bf16.msra.mxu0 %v747
    %6812 = vmatprep.subr.bf16.mxu0 %v756
    %6813 = vmatpush1.bf16.msra.mxu0 %v755
    %6814 = vmatprep.subr.bf16.mxu0 %v764
    %6815 = vmatpush1.bf16.msra.mxu0 %v763
    %6816 = vmatprep.subr.bf16.mxu0 %v772
    %6817 = vmatpush1.bf16.msra.mxu0 %v771
    %6818 = vmatprep.subr.bf16.mxu0 %v780
    %6819 = vmatpush1.bf16.msra.mxu0 %v779
    %6820 = vmatprep.subr.bf16.mxu0 %v788
    %6821 = vmatpush1.bf16.msra.mxu0 %v787
    %6822 = vmatprep.subr.bf16.mxu0 %v796
    %6823 = vmatpush1.bf16.msra.mxu0 %v795
    %6824 = vmatprep.subr.bf16.mxu0 %v804
    %6825 = vmatpush1.bf16.msra.mxu0 %v803
    %6826 = vmatprep.subr.bf16.mxu0 %v812
    %6827 = vmatpush1.bf16.msra.mxu0 %v811
    %6828 = vmatprep.subr.bf16.mxu0 %v820
    %6829 = vmatpush1.bf16.msra.mxu0 %v819
    %6830 = vmatprep.subr.bf16.mxu0 %v828
    %6831 = vmatpush1.bf16.msra.mxu0 %v827
    %6832 = vmatprep.subr.bf16.mxu0 %v836
    %6833 = vmatpush1.bf16.msra.mxu0 %v835
    %6834 = vmatprep.subr.bf16.mxu0 %v844
    %6835 = vmatpush1.bf16.msra.mxu0 %v843
    %6836 = vmatprep.subr.bf16.mxu0 %v852
    %6837 = vmatpush1.bf16.msra.mxu0 %v851
    %6838 = vmatprep.subr.bf16.mxu0 %v860
    %6839 = vmatpush1.bf16.msra.mxu0 %v859
    %6840 = vmatprep.subr.bf16.mxu0 %v868
    %6841 = vmatpush1.bf16.msra.mxu0 %v867
    %6842 = vmatprep.mubr.bf16.mxu0 %v6373
    %6843 = vmatmul.mubr.bf16.gmra.mrb[0].mxu0 %v6372
    %v6844 = vpop.f32.mrb[0].mxu0
    %v6845 = vadd.f32 0.0, %v6844
    %v6846 = vpop.f32.mrb[0].mxu0
    %v6847 = vadd.f32 0.0, %v6846
    %v6848 = vpop.f32.mrb[0].mxu0
    %v6849 = vpop.f32.mrb[0].mxu0
    %6850 = vdwg.mxu0
    %6851 = vmatprep.subr.bf16.mxu0 %v750
    %6852 = vmatpush1.bf16.msra.mxu0 %v749
    %6853 = vmatprep.subr.bf16.mxu0 %v758
    %6854 = vmatpush1.bf16.msra.mxu0 %v757
    %6855 = vmatprep.subr.bf16.mxu0 %v766
    %6856 = vmatpush1.bf16.msra.mxu0 %v765
    %6857 = vmatprep.subr.bf16.mxu0 %v774
    %6858 = vmatpush1.bf16.msra.mxu0 %v773
    %6859 = vmatprep.subr.bf16.mxu0 %v782
    %6860 = vmatpush1.bf16.msra.mxu0 %v781
    %6861 = vmatprep.subr.bf16.mxu0 %v790
    %6862 = vmatpush1.bf16.msra.mxu0 %v789
    %6863 = vmatprep.subr.bf16.mxu0 %v798
    %6864 = vmatpush1.bf16.msra.mxu0 %v797
    %6865 = vmatprep.subr.bf16.mxu0 %v806
    %6866 = vmatpush1.bf16.msra.mxu0 %v805
    %6867 = vmatprep.subr.bf16.mxu0 %v814
    %6868 = vmatpush1.bf16.msra.mxu0 %v813
    %6869 = vmatprep.subr.bf16.mxu0 %v822
    %6870 = vmatpush1.bf16.msra.mxu0 %v821
    %6871 = vmatprep.subr.bf16.mxu0 %v830
    %6872 = vmatpush1.bf16.msra.mxu0 %v829
    %6873 = vmatprep.subr.bf16.mxu0 %v838
    %6874 = vmatpush1.bf16.msra.mxu0 %v837
    %6875 = vmatprep.subr.bf16.mxu0 %v846
    %6876 = vmatpush1.bf16.msra.mxu0 %v845
    %6877 = vmatprep.subr.bf16.mxu0 %v854
    %6878 = vmatpush1.bf16.msra.mxu0 %v853
    %6879 = vmatprep.subr.bf16.mxu0 %v862
    %6880 = vmatpush1.bf16.msra.mxu0 %v861
    %6881 = vmatprep.subr.bf16.mxu0 %v870
    %6882 = vmatpush1.bf16.msra.mxu0 %v869
    %6883 = vmatprep.mubr.bf16.mxu0 %v6373
    %6884 = vmatmul.mubr.bf16.gmra.mrb[0].mxu0 %v6372
    %v6885 = vpop.f32.mrb[0].mxu0
    %v6886 = vadd.f32 0.0, %v6885
    %v6887 = vpop.f32.mrb[0].mxu0
    %v6888 = vadd.f32 0.0, %v6887
    %v6889 = vpop.f32.mrb[0].mxu0
    %v6890 = vpop.f32.mrb[0].mxu0
    %6891 = vdwg.mxu0
    %6892 = vmatprep.subr.bf16.mxu0 %v752
    %6893 = vmatpush1.bf16.msra.mxu0 %v751
    %6894 = vmatprep.subr.bf16.mxu0 %v760
    %6895 = vmatpush1.bf16.msra.mxu0 %v759
    %6896 = vmatprep.subr.bf16.mxu0 %v768
    %6897 = vmatpush1.bf16.msra.mxu0 %v767
    %6898 = vmatprep.subr.bf16.mxu0 %v776
    %6899 = vmatpush1.bf16.msra.mxu0 %v775
    %6900 = vmatprep.subr.bf16.mxu0 %v784
    %6901 = vmatpush1.bf16.msra.mxu0 %v783
    %6902 = vmatprep.subr.bf16.mxu0 %v792
    %6903 = vmatpush1.bf16.msra.mxu0 %v791
    %6904 = vmatprep.subr.bf16.mxu0 %v800
    %6905 = vmatpush1.bf16.msra.mxu0 %v799
    %6906 = vmatprep.subr.bf16.mxu0 %v808
    %6907 = vmatpush1.bf16.msra.mxu0 %v807
    %6908 = vmatprep.subr.bf16.mxu0 %v816
    %6909 = vmatpush1.bf16.msra.mxu0 %v815
    %6910 = vmatprep.subr.bf16.mxu0 %v824
    %6911 = vmatpush1.bf16.msra.mxu0 %v823
    %6912 = vmatprep.subr.bf16.mxu0 %v832
    %6913 = vmatpush1.bf16.msra.mxu0 %v831
    %6914 = vmatprep.subr.bf16.mxu0 %v840
    %6915 = vmatpush1.bf16.msra.mxu0 %v839
    %6916 = vmatprep.subr.bf16.mxu0 %v848
    %6917 = vmatpush1.bf16.msra.mxu0 %v847
    %6918 = vmatprep.subr.bf16.mxu0 %v856
    %6919 = vmatpush1.bf16.msra.mxu0 %v855
    %6920 = vmatprep.subr.bf16.mxu0 %v864
    %6921 = vmatpush1.bf16.msra.mxu0 %v863
    %6922 = vmatprep.subr.bf16.mxu0 %v872
    %6923 = vmatpush1.bf16.msra.mxu0 %v871
    %6924 = vmatprep.mubr.bf16.mxu0 %v6373
    %6925 = vmatmul.mubr.bf16.gmra.mrb[0].mxu0 %v6372
    %v6926 = vpop.f32.mrb[0].mxu0
    %v6927 = vadd.f32 0.0, %v6926
    %v6928 = vpop.f32.mrb[0].mxu0
    %v6929 = vadd.f32 0.0, %v6928
    %v6930 = vpop.f32.mrb[0].mxu0
    %v6931 = vpop.f32.mrb[0].mxu0
    %6932 = vdwg.mxu0
    %v6933 = vadd.f32 %v6761, %v6804
    %v6934 = vadd.f32 %v6762, %v6806
    %v6935 = vadd.f32 %v6763, %v6845
    %v6936 = vadd.f32 %v6764, %v6847
    %v6937 = vadd.f32 %v6765, %v6886
    %v6938 = vadd.f32 %v6766, %v6888
    %v6939 = vadd.f32 %v6767, %v6927
    %v6940 = vadd.f32 %v6768, %v6929
    %v6941 = vxor.u32 %v6933, 2147483648
    %v6942 = vxor.u32 %v6934, 2147483648
    %v6943 = vxor.u32 %v6935, 2147483648
    %v6944 = vxor.u32 %v6936, 2147483648
    %v6945 = vxor.u32 %v6937, 2147483648
    %v6946 = vxor.u32 %v6938, 2147483648
    %v6947 = vmul.f32 %v6941, 1.442695
    %v6948 = vpow.pop %v6947
    %v6949 = vmul.f32 %v6942, 1.442695
    %v6950 = vpow.pop %v6949
    %v6951 = vmul.f32 %v6943, 1.442695
    %v6952 = vpow.pop %v6951
    %v6953 = vmul.f32 %v6944, 1.442695
    %v6954 = vpow.pop %v6953
    %v6955 = vmul.f32 %v6945, 1.442695
    %v6956 = vpow.pop %v6955
    %v6957 = vmul.f32 %v6946, 1.442695
    %v6958 = vpow.pop %v6957
    %v6959 = vadd.f32 %v6948, 1.0
    %v6960 = vadd.f32 %v6950, 1.0
    %v6961 = vadd.f32 %v6952, 1.0
    %v6962 = vadd.f32 %v6954, 1.0
    %v6963 = vadd.f32 %v6956, 1.0
    %v6964 = vadd.f32 %v6958, 1.0
    %v6965 = vrcp.pop %v6959
    %v6966 = vmul.f32 1.0, %v6965
    %v6967 = vrcp.pop %v6960
    %v6968 = vmul.f32 1.0, %v6967
    %v6969 = vrcp.pop %v6961
    %v6970 = vmul.f32 1.0, %v6969
    %v6971 = vrcp.pop %v6962
    %v6972 = vmul.f32 1.0, %v6971
    %v6973 = vrcp.pop %v6963
    %v6974 = vmul.f32 1.0, %v6973
    %v6975 = vrcp.pop %v6964
    %v6976 = vmul.f32 1.0, %v6975
    %v6977 = vtanh.pop %v6939
    %v6978 = vtanh.pop %v6940
    %v6979 = vmul.f32 %v6970, %v6366
    %v6980 = vmul.f32 %v6972, %v6367
    %v6981 = vmul.f32 %v6966, %v6977
    %v6982 = vmul.f32 %v6968, %v6978
    %v6983 = vadd.f32 %v6979, %v6981
    %v6984 = vadd.f32 %v6980, %v6982
    %v6985 = vtanh.pop %v6983
    %v6986 = vtanh.pop %v6984
    %v6987 = vmul.f32 %v6974, %v6985
    %v6988 = vmul.f32 %v6976, %v6986
    %v6989 = vpack.c.bf16 %v6987, %v6987
    %v6990 = vpack.c.bf16 %v6988, %v6988
    %6991 = vmatprep.subr.bf16.mxu0 %v1736
    %6992 = vmatpush1.bf16.msra.mxu0 %v1735
    %6993 = vmatprep.subr.bf16.mxu0 %v1744
    %6994 = vmatpush1.bf16.msra.mxu0 %v1743
    %6995 = vmatprep.subr.bf16.mxu0 %v1752
    %6996 = vmatpush1.bf16.msra.mxu0 %v1751
    %6997 = vmatprep.subr.bf16.mxu0 %v1760
    %6998 = vmatpush1.bf16.msra.mxu0 %v1759
    %6999 = vmatprep.subr.bf16.mxu0 %v1768
    %7000 = vmatpush1.bf16.msra.mxu0 %v1767
    %7001 = vmatprep.subr.bf16.mxu0 %v1776
    %7002 = vmatpush1.bf16.msra.mxu0 %v1775
    %7003 = vmatprep.subr.bf16.mxu0 %v1784
    %7004 = vmatpush1.bf16.msra.mxu0 %v1783
    %7005 = vmatprep.subr.bf16.mxu0 %v1792
    %7006 = vmatpush1.bf16.msra.mxu0 %v1791
    %7007 = vmatprep.subr.bf16.mxu0 %v1800
    %7008 = vmatpush1.bf16.msra.mxu0 %v1799
    %7009 = vmatprep.subr.bf16.mxu0 %v1808
    %7010 = vmatpush1.bf16.msra.mxu0 %v1807
    %7011 = vmatprep.subr.bf16.mxu0 %v1816
    %7012 = vmatpush1.bf16.msra.mxu0 %v1815
    %7013 = vmatprep.subr.bf16.mxu0 %v1824
    %7014 = vmatpush1.bf16.msra.mxu0 %v1823
    %7015 = vmatprep.subr.bf16.mxu0 %v1832
    %7016 = vmatpush1.bf16.msra.mxu0 %v1831
    %7017 = vmatprep.subr.bf16.mxu0 %v1840
    %7018 = vmatpush1.bf16.msra.mxu0 %v1839
    %7019 = vmatprep.subr.bf16.mxu0 %v1848
    %7020 = vmatpush1.bf16.msra.mxu0 %v1847
    %7021 = vmatprep.subr.bf16.mxu0 %v1856
    %7022 = vmatpush1.bf16.msra.mxu0 %v1855
    %7023 = vmatprep.mubr.bf16.mxu0 %v6990
    %7024 = vmatmul.mubr.bf16.gmra.mrb[0].mxu0 %v6989
    %v7025 = vpop.f32.mrb[0].mxu0
    %v7026 = vadd.f32 0.0, %v7025
    %v7027 = vpop.f32.mrb[0].mxu0
    %v7028 = vadd.f32 0.0, %v7027
    %v7029 = vpop.f32.mrb[0].mxu0
    %v7030 = vpop.f32.mrb[0].mxu0
    %7031 = vdwg.mxu0
    %7032 = vmatprep.subr.bf16.mxu0 %v1738
    %7033 = vmatpush1.bf16.msra.mxu0 %v1737
    %7034 = vmatprep.subr.bf16.mxu0 %v1746
    %7035 = vmatpush1.bf16.msra.mxu0 %v1745
    %7036 = vmatprep.subr.bf16.mxu0 %v1754
    %7037 = vmatpush1.bf16.msra.mxu0 %v1753
    %7038 = vmatprep.subr.bf16.mxu0 %v1762
    %7039 = vmatpush1.bf16.msra.mxu0 %v1761
    %7040 = vmatprep.subr.bf16.mxu0 %v1770
    %7041 = vmatpush1.bf16.msra.mxu0 %v1769
    %7042 = vmatprep.subr.bf16.mxu0 %v1778
    %7043 = vmatpush1.bf16.msra.mxu0 %v1777
    %7044 = vmatprep.subr.bf16.mxu0 %v1786
    %7045 = vmatpush1.bf16.msra.mxu0 %v1785
    %7046 = vmatprep.subr.bf16.mxu0 %v1794
    %7047 = vmatpush1.bf16.msra.mxu0 %v1793
    %7048 = vmatprep.subr.bf16.mxu0 %v1802
    %7049 = vmatpush1.bf16.msra.mxu0 %v1801
    %7050 = vmatprep.subr.bf16.mxu0 %v1810
    %7051 = vmatpush1.bf16.msra.mxu0 %v1809
    %7052 = vmatprep.subr.bf16.mxu0 %v1818
    %7053 = vmatpush1.bf16.msra.mxu0 %v1817
    %7054 = vmatprep.subr.bf16.mxu0 %v1826
    %7055 = vmatpush1.bf16.msra.mxu0 %v1825
    %7056 = vmatprep.subr.bf16.mxu0 %v1834
    %7057 = vmatpush1.bf16.msra.mxu0 %v1833
    %7058 = vmatprep.subr.bf16.mxu0 %v1842
    %7059 = vmatpush1.bf16.msra.mxu0 %v1841
    %7060 = vmatprep.subr.bf16.mxu0 %v1850
    %7061 = vmatpush1.bf16.msra.mxu0 %v1849
    %7062 = vmatprep.subr.bf16.mxu0 %v1858
    %7063 = vmatpush1.bf16.msra.mxu0 %v1857
    %7064 = vmatprep.mubr.bf16.mxu0 %v6990
    %7065 = vmatmul.mubr.bf16.gmra.mrb[0].mxu0 %v6989
    %v7066 = vpop.f32.mrb[0].mxu0
    %v7067 = vadd.f32 0.0, %v7066
    %v7068 = vpop.f32.mrb[0].mxu0
    %v7069 = vadd.f32 0.0, %v7068
    %v7070 = vpop.f32.mrb[0].mxu0
    %v7071 = vpop.f32.mrb[0].mxu0
    %7072 = vdwg.mxu0
    %7073 = vmatprep.subr.bf16.mxu0 %v1740
    %7074 = vmatpush1.bf16.msra.mxu0 %v1739
    %7075 = vmatprep.subr.bf16.mxu0 %v1748
    %7076 = vmatpush1.bf16.msra.mxu0 %v1747
    %7077 = vmatprep.subr.bf16.mxu0 %v1756
    %7078 = vmatpush1.bf16.msra.mxu0 %v1755
    %7079 = vmatprep.subr.bf16.mxu0 %v1764
    %7080 = vmatpush1.bf16.msra.mxu0 %v1763
    %7081 = vmatprep.subr.bf16.mxu0 %v1772
    %7082 = vmatpush1.bf16.msra.mxu0 %v1771
    %7083 = vmatprep.subr.bf16.mxu0 %v1780
    %7084 = vmatpush1.bf16.msra.mxu0 %v1779
    %7085 = vmatprep.subr.bf16.mxu0 %v1788
    %7086 = vmatpush1.bf16.msra.mxu0 %v1787
    %7087 = vmatprep.subr.bf16.mxu0 %v1796
    %7088 = vmatpush1.bf16.msra.mxu0 %v1795
    %7089 = vmatprep.subr.bf16.mxu0 %v1804
    %7090 = vmatpush1.bf16.msra.mxu0 %v1803
    %7091 = vmatprep.subr.bf16.mxu0 %v1812
    %7092 = vmatpush1.bf16.msra.mxu0 %v1811
    %7093 = vmatprep.subr.bf16.mxu0 %v1820
    %7094 = vmatpush1.bf16.msra.mxu0 %v1819
    %7095 = vmatprep.subr.bf16.mxu0 %v1828
    %7096 = vmatpush1.bf16.msra.mxu0 %v1827
    %7097 = vmatprep.subr.bf16.mxu0 %v1836
    %7098 = vmatpush1.bf16.msra.mxu0 %v1835
    %7099 = vmatprep.subr.bf16.mxu0 %v1844
    %7100 = vmatpush1.bf16.msra.mxu0 %v1843
    %7101 = vmatprep.subr.bf16.mxu0 %v1852
    %7102 = vmatpush1.bf16.msra.mxu0 %v1851
    %7103 = vmatprep.subr.bf16.mxu0 %v1860
    %7104 = vmatpush1.bf16.msra.mxu0 %v1859
    %7105 = vmatprep.mubr.bf16.mxu0 %v6990
    %7106 = vmatmul.mubr.bf16.gmra.mrb[0].mxu0 %v6989
    %v7107 = vpop.f32.mrb[0].mxu0
    %v7108 = vadd.f32 0.0, %v7107
    %v7109 = vpop.f32.mrb[0].mxu0
    %v7110 = vadd.f32 0.0, %v7109
    %v7111 = vpop.f32.mrb[0].mxu0
    %v7112 = vpop.f32.mrb[0].mxu0
    %7113 = vdwg.mxu0
    %7114 = vmatprep.subr.bf16.mxu0 %v1742
    %7115 = vmatpush1.bf16.msra.mxu0 %v1741
    %7116 = vmatprep.subr.bf16.mxu0 %v1750
    %7117 = vmatpush1.bf16.msra.mxu0 %v1749
    %7118 = vmatprep.subr.bf16.mxu0 %v1758
    %7119 = vmatpush1.bf16.msra.mxu0 %v1757
    %7120 = vmatprep.subr.bf16.mxu0 %v1766
    %7121 = vmatpush1.bf16.msra.mxu0 %v1765
    %7122 = vmatprep.subr.bf16.mxu0 %v1774
    %7123 = vmatpush1.bf16.msra.mxu0 %v1773
    %7124 = vmatprep.subr.bf16.mxu0 %v1782
    %7125 = vmatpush1.bf16.msra.mxu0 %v1781
    %7126 = vmatprep.subr.bf16.mxu0 %v1790
    %7127 = vmatpush1.bf16.msra.mxu0 %v1789
    %7128 = vmatprep.subr.bf16.mxu0 %v1798
    %7129 = vmatpush1.bf16.msra.mxu0 %v1797
    %7130 = vmatprep.subr.bf16.mxu0 %v1806
    %7131 = vmatpush1.bf16.msra.mxu0 %v1805
    %7132 = vmatprep.subr.bf16.mxu0 %v1814
    %7133 = vmatpush1.bf16.msra.mxu0 %v1813
    %7134 = vmatprep.subr.bf16.mxu0 %v1822
    %7135 = vmatpush1.bf16.msra.mxu0 %v1821
    %7136 = vmatprep.subr.bf16.mxu0 %v1830
    %7137 = vmatpush1.bf16.msra.mxu0 %v1829
    %7138 = vmatprep.subr.bf16.mxu0 %v1838
    %7139 = vmatpush1.bf16.msra.mxu0 %v1837
    %7140 = vmatprep.subr.bf16.mxu0 %v1846
    %7141 = vmatpush1.bf16.msra.mxu0 %v1845
    %7142 = vmatprep.subr.bf16.mxu0 %v1854
    %7143 = vmatpush1.bf16.msra.mxu0 %v1853
    %7144 = vmatprep.subr.bf16.mxu0 %v1862
    %7145 = vmatpush1.bf16.msra.mxu0 %v1861
    %7146 = vmatprep.mubr.bf16.mxu0 %v6990
    %7147 = vmatmul.mubr.bf16.gmra.mrb[0].mxu0 %v6989
    %v7148 = vpop.f32.mrb[0].mxu0
    %v7149 = vadd.f32 0.0, %v7148
    %v7150 = vpop.f32.mrb[0].mxu0
    %v7151 = vadd.f32 0.0, %v7150
    %v7152 = vpop.f32.mrb[0].mxu0
    %v7153 = vpop.f32.mrb[0].mxu0
    %7154 = vdwg.mxu0
    %7155 = vmatprep.subr.bf16.mxu0 %v2540
    %7156 = vmatpush1.bf16.msra.mxu0 %v2539
    %7157 = vmatprep.subr.bf16.mxu0 %v2548
    %7158 = vmatpush1.bf16.msra.mxu0 %v2547
    %7159 = vmatprep.subr.bf16.mxu0 %v2556
    %7160 = vmatpush1.bf16.msra.mxu0 %v2555
    %7161 = vmatprep.subr.bf16.mxu0 %v2564
    %7162 = vmatpush1.bf16.msra.mxu0 %v2563
    %7163 = vmatprep.subr.bf16.mxu0 %v2572
    %7164 = vmatpush1.bf16.msra.mxu0 %v2571
    %7165 = vmatprep.subr.bf16.mxu0 %v2580
    %7166 = vmatpush1.bf16.msra.mxu0 %v2579
    %7167 = vmatprep.subr.bf16.mxu0 %v2588
    %7168 = vmatpush1.bf16.msra.mxu0 %v2587
    %7169 = vmatprep.subr.bf16.mxu0 %v2596
    %7170 = vmatpush1.bf16.msra.mxu0 %v2595
    %7171 = vmatprep.subr.bf16.mxu0 %v2604
    %7172 = vmatpush1.bf16.msra.mxu0 %v2603
    %7173 = vmatprep.subr.bf16.mxu0 %v2612
    %7174 = vmatpush1.bf16.msra.mxu0 %v2611
    %7175 = vmatprep.subr.bf16.mxu0 %v2620
    %7176 = vmatpush1.bf16.msra.mxu0 %v2619
    %7177 = vmatprep.subr.bf16.mxu0 %v2628
    %7178 = vmatpush1.bf16.msra.mxu0 %v2627
    %7179 = vmatprep.subr.bf16.mxu0 %v2636
    %7180 = vmatpush1.bf16.msra.mxu0 %v2635
    %7181 = vmatprep.subr.bf16.mxu0 %v2644
    %7182 = vmatpush1.bf16.msra.mxu0 %v2643
    %7183 = vmatprep.subr.bf16.mxu0 %v2652
    %7184 = vmatpush1.bf16.msra.mxu0 %v2651
    %7185 = vmatprep.subr.bf16.mxu0 %v2660
    %7186 = vmatpush1.bf16.msra.mxu0 %v2659
    %7187 = vmatprep.mubr.bf16.mxu0 %v6759
    %7188 = vmatmul.mubr.bf16.gmra.mrb[0].mxu0 %v6758
    %v7189 = vpop.f32.mrb[0].mxu0
    %v7190 = vadd.f32 %v7026, %v7189
    %v7191 = vpop.f32.mrb[0].mxu0
    %v7192 = vadd.f32 %v7028, %v7191
    %v7193 = vpop.f32.mrb[0].mxu0
    %v7194 = vpop.f32.mrb[0].mxu0
    %7195 = vdwg.mxu0
    %7196 = vmatprep.subr.bf16.mxu0 %v2542
    %7197 = vmatpush1.bf16.msra.mxu0 %v2541
    %7198 = vmatprep.subr.bf16.mxu0 %v2550
    %7199 = vmatpush1.bf16.msra.mxu0 %v2549
    %7200 = vmatprep.subr.bf16.mxu0 %v2558
    %7201 = vmatpush1.bf16.msra.mxu0 %v2557
    %7202 = vmatprep.subr.bf16.mxu0 %v2566
    %7203 = vmatpush1.bf16.msra.mxu0 %v2565
    %7204 = vmatprep.subr.bf16.mxu0 %v2574
    %7205 = vmatpush1.bf16.msra.mxu0 %v2573
    %7206 = vmatprep.subr.bf16.mxu0 %v2582
    %7207 = vmatpush1.bf16.msra.mxu0 %v2581
    %7208 = vmatprep.subr.bf16.mxu0 %v2590
    %7209 = vmatpush1.bf16.msra.mxu0 %v2589
    %7210 = vmatprep.subr.bf16.mxu0 %v2598
    %7211 = vmatpush1.bf16.msra.mxu0 %v2597
    %7212 = vmatprep.subr.bf16.mxu0 %v2606
    %7213 = vmatpush1.bf16.msra.mxu0 %v2605
    %7214 = vmatprep.subr.bf16.mxu0 %v2614
    %7215 = vmatpush1.bf16.msra.mxu0 %v2613
    %7216 = vmatprep.subr.bf16.mxu0 %v2622
    %7217 = vmatpush1.bf16.msra.mxu0 %v2621
    %7218 = vmatprep.subr.bf16.mxu0 %v2630
    %7219 = vmatpush1.bf16.msra.mxu0 %v2629
    %7220 = vmatprep.subr.bf16.mxu0 %v2638
    %7221 = vmatpush1.bf16.msra.mxu0 %v2637
    %7222 = vmatprep.subr.bf16.mxu0 %v2646
    %7223 = vmatpush1.bf16.msra.mxu0 %v2645
    %7224 = vmatprep.subr.bf16.mxu0 %v2654
    %7225 = vmatpush1.bf16.msra.mxu0 %v2653
    %7226 = vmatprep.subr.bf16.mxu0 %v2662
    %7227 = vmatpush1.bf16.msra.mxu0 %v2661
    %7228 = vmatprep.mubr.bf16.mxu0 %v6759
    %7229 = vmatmul.mubr.bf16.gmra.mrb[0].mxu0 %v6758
    %v7230 = vpop.f32.mrb[0].mxu0
    %v7231 = vadd.f32 %v7067, %v7230
    %v7232 = vpop.f32.mrb[0].mxu0
    %v7233 = vadd.f32 %v7069, %v7232
    %v7234 = vpop.f32.mrb[0].mxu0
    %v7235 = vpop.f32.mrb[0].mxu0
    %7236 = vdwg.mxu0
    %7237 = vmatprep.subr.bf16.mxu0 %v2544
    %7238 = vmatpush1.bf16.msra.mxu0 %v2543
    %7239 = vmatprep.subr.bf16.mxu0 %v2552
    %7240 = vmatpush1.bf16.msra.mxu0 %v2551
    %7241 = vmatprep.subr.bf16.mxu0 %v2560
    %7242 = vmatpush1.bf16.msra.mxu0 %v2559
    %7243 = vmatprep.subr.bf16.mxu0 %v2568
    %7244 = vmatpush1.bf16.msra.mxu0 %v2567
    %7245 = vmatprep.subr.bf16.mxu0 %v2576
    %7246 = vmatpush1.bf16.msra.mxu0 %v2575
    %7247 = vmatprep.subr.bf16.mxu0 %v2584
    %7248 = vmatpush1.bf16.msra.mxu0 %v2583
    %7249 = vmatprep.subr.bf16.mxu0 %v2592
    %7250 = vmatpush1.bf16.msra.mxu0 %v2591
    %7251 = vmatprep.subr.bf16.mxu0 %v2600
    %7252 = vmatpush1.bf16.msra.mxu0 %v2599
    %7253 = vmatprep.subr.bf16.mxu0 %v2608
    %7254 = vmatpush1.bf16.msra.mxu0 %v2607
    %7255 = vmatprep.subr.bf16.mxu0 %v2616
    %7256 = vmatpush1.bf16.msra.mxu0 %v2615
    %7257 = vmatprep.subr.bf16.mxu0 %v2624
    %7258 = vmatpush1.bf16.msra.mxu0 %v2623
    %7259 = vmatprep.subr.bf16.mxu0 %v2632
    %7260 = vmatpush1.bf16.msra.mxu0 %v2631
    %7261 = vmatprep.subr.bf16.mxu0 %v2640
    %7262 = vmatpush1.bf16.msra.mxu0 %v2639
    %7263 = vmatprep.subr.bf16.mxu0 %v2648
    %7264 = vmatpush1.bf16.msra.mxu0 %v2647
    %7265 = vmatprep.subr.bf16.mxu0 %v2656
    %7266 = vmatpush1.bf16.msra.mxu0 %v2655
    %7267 = vmatprep.subr.bf16.mxu0 %v2664
    %7268 = vmatpush1.bf16.msra.mxu0 %v2663
    %7269 = vmatprep.mubr.bf16.mxu0 %v6759
    %7270 = vmatmul.mubr.bf16.gmra.mrb[0].mxu0 %v6758
    %v7271 = vpop.f32.mrb[0].mxu0
    %v7272 = vadd.f32 %v7108, %v7271
    %v7273 = vpop.f32.mrb[0].mxu0
    %v7274 = vadd.f32 %v7110, %v7273
    %v7275 = vpop.f32.mrb[0].mxu0
    %v7276 = vpop.f32.mrb[0].mxu0
    %7277 = vdwg.mxu0
    %7278 = vmatprep.subr.bf16.mxu0 %v2546
    %7279 = vmatpush1.bf16.msra.mxu0 %v2545
    %7280 = vmatprep.subr.bf16.mxu0 %v2554
    %7281 = vmatpush1.bf16.msra.mxu0 %v2553
    %7282 = vmatprep.subr.bf16.mxu0 %v2562
    %7283 = vmatpush1.bf16.msra.mxu0 %v2561
    %7284 = vmatprep.subr.bf16.mxu0 %v2570
    %7285 = vmatpush1.bf16.msra.mxu0 %v2569
    %7286 = vmatprep.subr.bf16.mxu0 %v2578
    %7287 = vmatpush1.bf16.msra.mxu0 %v2577
    %7288 = vmatprep.subr.bf16.mxu0 %v2586
    %7289 = vmatpush1.bf16.msra.mxu0 %v2585
    %7290 = vmatprep.subr.bf16.mxu0 %v2594
    %7291 = vmatpush1.bf16.msra.mxu0 %v2593
    %7292 = vmatprep.subr.bf16.mxu0 %v2602
    %7293 = vmatpush1.bf16.msra.mxu0 %v2601
    %7294 = vmatprep.subr.bf16.mxu0 %v2610
    %7295 = vmatpush1.bf16.msra.mxu0 %v2609
    %7296 = vmatprep.subr.bf16.mxu0 %v2618
    %7297 = vmatpush1.bf16.msra.mxu0 %v2617
    %7298 = vmatprep.subr.bf16.mxu0 %v2626
    %7299 = vmatpush1.bf16.msra.mxu0 %v2625
    %7300 = vmatprep.subr.bf16.mxu0 %v2634
    %7301 = vmatpush1.bf16.msra.mxu0 %v2633
    %7302 = vmatprep.subr.bf16.mxu0 %v2642
    %7303 = vmatpush1.bf16.msra.mxu0 %v2641
    %7304 = vmatprep.subr.bf16.mxu0 %v2650
    %7305 = vmatpush1.bf16.msra.mxu0 %v2649
    %7306 = vmatprep.subr.bf16.mxu0 %v2658
    %7307 = vmatpush1.bf16.msra.mxu0 %v2657
    %7308 = vmatprep.subr.bf16.mxu0 %v2666
    %7309 = vmatpush1.bf16.msra.mxu0 %v2665
    %7310 = vmatprep.mubr.bf16.mxu0 %v6759
    %7311 = vmatmul.mubr.bf16.gmra.mrb[0].mxu0 %v6758
    %v7312 = vpop.f32.mrb[0].mxu0
    %v7313 = vadd.f32 %v7149, %v7312
    %v7314 = vpop.f32.mrb[0].mxu0
    %v7315 = vadd.f32 %v7151, %v7314
    %v7316 = vpop.f32.mrb[0].mxu0
    %v7317 = vpop.f32.mrb[0].mxu0
    %7318 = vdwg.mxu0
    %v7319 = vadd.f32 %v7190, %v2963
    %v7320 = vadd.f32 %v7192, %v2967
    %v7321 = vadd.f32 %v7231, %v2971
    %v7322 = vadd.f32 %v7233, %v2975
    %v7323 = vadd.f32 %v7272, %v2979
    %v7324 = vadd.f32 %v7274, %v2983
    %v7325 = vadd.f32 %v7313, %v2987
    %v7326 = vadd.f32 %v7315, %v2991
    %v7327 = vxor.u32 %v7319, 2147483648
    %v7328 = vxor.u32 %v7320, 2147483648
    %v7329 = vxor.u32 %v7321, 2147483648
    %v7330 = vxor.u32 %v7322, 2147483648
    %v7331 = vxor.u32 %v7323, 2147483648
    %v7332 = vxor.u32 %v7324, 2147483648
    %v7333 = vmul.f32 %v7327, 1.442695
    %v7334 = vpow.pop %v7333
    %v7335 = vmul.f32 %v7328, 1.442695
    %v7336 = vpow.pop %v7335
    %v7337 = vmul.f32 %v7329, 1.442695
    %v7338 = vpow.pop %v7337
    %v7339 = vmul.f32 %v7330, 1.442695
    %v7340 = vpow.pop %v7339
    %v7341 = vmul.f32 %v7331, 1.442695
    %v7342 = vpow.pop %v7341
    %v7343 = vmul.f32 %v7332, 1.442695
    %v7344 = vpow.pop %v7343
    %v7345 = vadd.f32 %v7334, 1.0
    %v7346 = vadd.f32 %v7336, 1.0
    %v7347 = vadd.f32 %v7338, 1.0
    %v7348 = vadd.f32 %v7340, 1.0
    %v7349 = vadd.f32 %v7342, 1.0
    %v7350 = vadd.f32 %v7344, 1.0
    %v7351 = vrcp.pop %v7345
    %v7352 = vmul.f32 1.0, %v7351
    %v7353 = vrcp.pop %v7346
    %v7354 = vmul.f32 1.0, %v7353
    %v7355 = vrcp.pop %v7347
    %v7356 = vmul.f32 1.0, %v7355
    %v7357 = vrcp.pop %v7348
    %v7358 = vmul.f32 1.0, %v7357
    %v7359 = vrcp.pop %v7349
    %v7360 = vmul.f32 1.0, %v7359
    %v7361 = vrcp.pop %v7350
    %v7362 = vmul.f32 1.0, %v7361
    %v7363 = vtanh.pop %v7325
    %v7364 = vtanh.pop %v7326
    %v7365 = vmul.f32 %v7356, %v6752
    %v7366 = vmul.f32 %v7358, %v6753
    %v7367 = vmul.f32 %v7352, %v7363
    %v7368 = vmul.f32 %v7354, %v7364
    %v7369 = vadd.f32 %v7365, %v7367
    %v7370 = vadd.f32 %v7366, %v7368
    %v7371 = vtanh.pop %v7369
    %v7372 = vtanh.pop %v7370
    %v7373 = vmul.f32 %v7360, %v7371
    %v7374 = vmul.f32 %v7362, %v7372
    %v7375 = vpack.c.bf16 %v7373, %v7373
    %v7376 = vpack.c.bf16 %v7374, %v7374
    %v7377 = vld [vmem:[#allocation10] sm:$0xf]
    %v7378 = vld [vmem:[#allocation10 + $0x4] sm:$0xf]
    %v7379 = vld [vmem:[#allocation10 + $0x8] sm:$0xf]
    %v7380 = vld [vmem:[#allocation10 + $0xc] sm:$0xf]
    %v7381 = vld [vmem:[#allocation10 + $0x10] sm:$0xf]
    %v7382 = vld [vmem:[#allocation10 + $0x14] sm:$0xf]
    %v7383 = vld [vmem:[#allocation10 + $0x18] sm:$0xf]
    %v7384 = vld [vmem:[#allocation10 + $0x1c] sm:$0xf]
    %v7385 = vld [vmem:[#allocation10 + $0x20] sm:$0xf]
    %v7386 = vld [vmem:[#allocation10 + $0x24] sm:$0xf]
    %v7387 = vld [vmem:[#allocation10 + $0x28] sm:$0xf]
    %v7388 = vld [vmem:[#allocation10 + $0x2c] sm:$0xf]
    %v7389 = vld [vmem:[#allocation10 + $0x30] sm:$0xf]
    %v7390 = vld [vmem:[#allocation10 + $0x34] sm:$0xf]
    %v7391 = vld [vmem:[#allocation10 + $0x38] sm:$0xf]
    %v7392 = vld [vmem:[#allocation10 + $0x3c] sm:$0xf]
    %v7393 = vld [vmem:[#allocation10 + $0x40] sm:$0xf]
    %v7394 = vld [vmem:[#allocation10 + $0x44] sm:$0xf]
    %v7395 = vld [vmem:[#allocation10 + $0x48] sm:$0xf]
    %v7396 = vld [vmem:[#allocation10 + $0x4c] sm:$0xf]
    %v7397 = vld [vmem:[#allocation10 + $0x50] sm:$0xf]
    %v7398 = vld [vmem:[#allocation10 + $0x54] sm:$0xf]
    %v7399 = vld [vmem:[#allocation10 + $0x58] sm:$0xf]
    %v7400 = vld [vmem:[#allocation10 + $0x5c] sm:$0xf]
    %v7401 = vld [vmem:[#allocation10 + $0x60] sm:$0xf]
    %v7402 = vld [vmem:[#allocation10 + $0x64] sm:$0xf]
    %v7403 = vld [vmem:[#allocation10 + $0x68] sm:$0xf]
    %v7404 = vld [vmem:[#allocation10 + $0x6c] sm:$0xf]
    %v7405 = vld [vmem:[#allocation10 + $0x70] sm:$0xf]
    %v7406 = vld [vmem:[#allocation10 + $0x74] sm:$0xf]
    %v7407 = vld [vmem:[#allocation10 + $0x78] sm:$0xf]
    %v7408 = vld [vmem:[#allocation10 + $0x7c] sm:$0xf]
    %v7409 = vld [vmem:[%s6] sm:$0x1]
    %v7411 = vlaneseq
    %v7412 = vshrl.u32 %v7411, 7
    %v7413 = vsub.s32 0, %v7412
    %v7414 = vrot.slane %v7409, %v7413
    %v7448 = vunpack.c.l.b16 %v7377
    %v7449 = vunpack.c.l.b16 %v7378
    %v7450 = vunpack.c.l.b16 %v7379
    %v7451 = vunpack.c.l.b16 %v7380
    %v7452 = vunpack.c.l.b16 %v7381
    %v7453 = vunpack.c.l.b16 %v7382
    %v7454 = vunpack.c.l.b16 %v7383
    %v7455 = vunpack.c.l.b16 %v7384
    %v7456 = vunpack.c.l.b16 %v7385
    %v7457 = vunpack.c.l.b16 %v7386
    %v7458 = vunpack.c.l.b16 %v7387
    %v7459 = vunpack.c.l.b16 %v7388
    %v7460 = vunpack.c.l.b16 %v7389
    %v7461 = vunpack.c.l.b16 %v7390
    %v7462 = vunpack.c.l.b16 %v7391
    %v7463 = vunpack.c.l.b16 %v7392
    %v7464 = vunpack.c.l.b16 %v7393
    %v7465 = vunpack.c.l.b16 %v7394
    %v7466 = vunpack.c.l.b16 %v7395
    %v7467 = vunpack.c.l.b16 %v7396
    %v7468 = vunpack.c.l.b16 %v7397
    %v7469 = vunpack.c.l.b16 %v7398
    %v7470 = vunpack.c.l.b16 %v7399
    %v7471 = vunpack.c.l.b16 %v7400
    %v7472 = vunpack.c.l.b16 %v7401
    %v7473 = vunpack.c.l.b16 %v7402
    %v7474 = vunpack.c.l.b16 %v7403
    %v7475 = vunpack.c.l.b16 %v7404
    %v7476 = vunpack.c.l.b16 %v7405
    %v7477 = vunpack.c.l.b16 %v7406
    %v7478 = vunpack.c.l.b16 %v7407
    %v7479 = vunpack.c.l.b16 %v7408
    %v7480 = vpack.c.b16 %v7449, %v7448
    %v7481 = vpack.c.b16 %v7451, %v7450
    %v7482 = vpack.c.b16 %v7453, %v7452
    %v7483 = vpack.c.b16 %v7455, %v7454
    %v7484 = vpack.c.b16 %v7457, %v7456
    %v7485 = vpack.c.b16 %v7459, %v7458
    %v7486 = vpack.c.b16 %v7461, %v7460
    %v7487 = vpack.c.b16 %v7463, %v7462
    %v7488 = vpack.c.b16 %v7465, %v7464
    %v7489 = vpack.c.b16 %v7467, %v7466
    %v7490 = vpack.c.b16 %v7469, %v7468
    %v7491 = vpack.c.b16 %v7471, %v7470
    %v7492 = vpack.c.b16 %v7473, %v7472
    %v7493 = vpack.c.b16 %v7475, %v7474
    %v7494 = vpack.c.b16 %v7477, %v7476
    %v7495 = vpack.c.b16 %v7479, %v7478
    %7512 = vmatprep.subr.bf16.mxu0 0
    %7513 = vmatpush1.bf16.msra.mxu0 %v7480
    %7514 = vmatprep.subr.bf16.mxu0 0
    %7515 = vmatpush1.bf16.msra.mxu0 %v7481
    %7516 = vmatprep.subr.bf16.mxu0 0
    %7517 = vmatpush1.bf16.msra.mxu0 %v7482
    %7518 = vmatprep.subr.bf16.mxu0 0
    %7519 = vmatpush1.bf16.msra.mxu0 %v7483
    %7520 = vmatprep.subr.bf16.mxu0 0
    %7521 = vmatpush1.bf16.msra.mxu0 %v7484
    %7522 = vmatprep.subr.bf16.mxu0 0
    %7523 = vmatpush1.bf16.msra.mxu0 %v7485
    %7524 = vmatprep.subr.bf16.mxu0 0
    %7525 = vmatpush1.bf16.msra.mxu0 %v7486
    %7526 = vmatprep.subr.bf16.mxu0 0
    %7527 = vmatpush1.bf16.msra.mxu0 %v7487
    %7528 = vmatprep.subr.bf16.mxu0 0
    %7529 = vmatpush1.bf16.msra.mxu0 %v7488
    %7530 = vmatprep.subr.bf16.mxu0 0
    %7531 = vmatpush1.bf16.msra.mxu0 %v7489
    %7532 = vmatprep.subr.bf16.mxu0 0
    %7533 = vmatpush1.bf16.msra.mxu0 %v7490
    %7534 = vmatprep.subr.bf16.mxu0 0
    %7535 = vmatpush1.bf16.msra.mxu0 %v7491
    %7536 = vmatprep.subr.bf16.mxu0 0
    %7537 = vmatpush1.bf16.msra.mxu0 %v7492
    %7538 = vmatprep.subr.bf16.mxu0 0
    %7539 = vmatpush1.bf16.msra.mxu0 %v7493
    %7540 = vmatprep.subr.bf16.mxu0 0
    %7541 = vmatpush1.bf16.msra.mxu0 %v7494
    %7542 = vmatprep.subr.bf16.mxu0 0
    %7543 = vmatpush1.bf16.msra.mxu0 %v7495
    %7544 = vmatprep.mubr.bf16.mxu0 %v7376
    %7545 = vmatmul.mubr.bf16.gmra.mrb[0].mxu0 %v7375
    %v7546 = vpop.f32.mrb[0].mxu0
    %v7547 = vadd.f32 %v7414, %v7546
    %v7548 = vpop.f32.mrb[0].mxu0
    %v7549 = vpop.f32.mrb[0].mxu0
    %v7550 = vpop.f32.mrb[0].mxu0
    %7551 = vdwg.mxu0
    %7552 = vst [vmem:[#allocation11] sm:$0xff] %v7547
    // Predicated region
    $region50: #{tpu_custom_call.1} parent=1 // pred_check
      _
    $region51: #{tpu_custom_call.1} parent=1 // pred_check_branch
      %7554 = sbr.rel (0) target = $region53
    $region52: #{tpu_custom_call.1} parent=1 // pred_region
      %s7556 = ssub.s32 128, 128
      %7557 = vsyncadd [#allocation4], %s7556
      %s7559 = sshll.u32 [#allocation11], 4
      %s7560 = int_to_ptr.vmem [resolvable:$true] %s7559
      %7562 = dma.vmem_to_hbm [thread:$0]  %s7560, 128, %s7, [#allocation4]
    $region53: #{tpu_custom_call.1} parent=1 // pred_fallthru
      _
    // Predicated region
    $region54: #{tpu_custom_call.1} parent=1 // pred_check
      _
    $region55: #{tpu_custom_call.1} parent=1 // pred_check_branch
      %7564 = sbr.rel (0) target = $region57
    $region56: #{tpu_custom_call.1} parent=1 // pred_region
      %7565 = dma.done [#allocation4], 128
    $region57: #{tpu_custom_call.1} parent=1 // pred_fallthru
      _
    %7566 = vsyncpa [#allocation3], 1
    %7567 = vsyncpa [#allocation6], 1
    %7568 = vsyncpa [#allocation9], 1
    %7569 = vsyncpa [#allocation4], 1

</llo_original>
